<compile_context>
chip_gen: v7x
topology: tpu7x:2x2x1
jax: 0.10.0
libtpu: 0.0.40
codegen_flags: <defaults>
</compile_context>

<pallas_src>
import functools

import jax
import jax.numpy as jnp
from jax.experimental import pallas as pl
from jax.experimental.pallas import tpu as pltpu


def _round_up(n, m):
    return ((n + m - 1) // m) * m


def _sigmoid(x):
    # sigmoid(x) == 0.5 * tanh(0.5 * x) + 0.5 : single EUP op (no exp + recip).
    return 0.5 * jnp.tanh(0.5 * x) + 0.5


def _lstm_cell(gates, c, H):
    """PyTorch gate order (i, f, g, o); f32 math and state."""
    i = _sigmoid(gates[:, 0 * H:1 * H])
    f = _sigmoid(gates[:, 1 * H:2 * H])
    g = jnp.tanh(gates[:, 2 * H:3 * H])
    o = _sigmoid(gates[:, 3 * H:4 * H])
    c_new = f * c + i * g
    h_new = o * jnp.tanh(c_new)
    return h_new, c_new


# ----------------------------------------------------------------------------
# Fused kernel: 3 wavefront-interleaved LSTM layers + MLP classifier.
# Everything (weights, activations, state) is VMEM / vreg resident.
# ----------------------------------------------------------------------------
def _lstm_net_kernel(
    x_ref,                         # (T*Bp, Din) bf16, time-major rows t*Bp + b
    wih1_ref, whh1_ref, b1_ref,    # (Din,4H) bf16, (H,4H) bf16, (1,4H) f32
    w2_ref, b2_ref,                # (2H,4H) bf16 = [wih2; whh2], (1,4H) f32
    w3_ref, b3_ref,                # (2H,4H) bf16 = [wih3; whh3], (1,4H) f32
    wm1_ref, bm1_ref,              # (H,H)  bf16, (1,H)  f32
    wm2_ref, bm2_ref,              # (H,Cp) bf16, (1,Cp) f32
    out_ref,                       # (Bp, Cp) f32
    gin_sc,                        # (T*Bp, 4H) f32 : hoisted layer-1 preacts
):
    Bp = out_ref.shape[0]
    T = x_ref.shape[0] // Bp
    H = whh1_ref.shape[0]
    bf16 = jnp.bfloat16
    f32 = jnp.float32

    # ---- Layer-1 input projection for ALL timesteps: one big MXU matmul. ----
    gin_sc[...] = jnp.dot(x_ref[...], wih1_ref[...],
                          preferred_element_type=f32) + b1_ref[...]

    # Load the recurrent weights once; they stay in vregs/VMEM for the loop.
    whh1 = whh1_ref[...]
    w2 = w2_ref[...]
    b2 = b2_ref[...]
    w3 = w3_ref[...]
    b3 = b3_ref[...]

    zeros = jnp.zeros((Bp, H), f32)

    # ---- Wavefront: super-step s runs (layer1 @ t=s, layer2 @ t=s-1,
    #      layer3 @ t=s-2).  Every block reads only carried-in state, so the
    #      three blocks are independent within a super-step. -------------------
    def step(s, carry):
        h1, c1, h2, c2, h3, c3 = carry

        # layer 1 @ t = s (row clamped; garbage past T-1 is never consumed
        # as a valid layer-2 input).
        t1 = jnp.minimum(s, T - 1)
        row = pl.multiple_of(t1 * Bp, Bp)
        g1 = gin_sc[pl.ds(row, Bp), :] + jnp.dot(
            h1.astype(bf16), whh1, preferred_element_type=f32)
        nh1, nc1 = _lstm_cell(g1, c1, H)

        # layer 2 @ t = s-1: input is the *carried* h1 (layer-1 output @ s-1),
        # fused [h_in | h_prev] @ [W_ih; W_hh] single matmul.
        in2 = jnp.concatenate([h1, h2], axis=-1).astype(bf16)      # (Bp, 2H)
        g2 = jnp.dot(in2, w2, preferred_element_type=f32) + b2
        nh2, nc2 = _lstm_cell(g2, c2, H)

        # layer 3 @ t = s-2: input is the *carried* h2.
        in3 = jnp.concatenate([h2, h3], axis=-1).astype(bf16)      # (Bp, 2H)
        g3 = jnp.dot(in3, w3, preferred_element_type=f32) + b3
        nh3, nc3 = _lstm_cell(g3, c3, H)

        # Hold layers 2/3 at their zero initial state until their first valid
        # step (s>=1 / s>=2) so warm-up garbage never enters the recurrence.
        m2 = (s >= 1).astype(f32)
        m3 = (s >= 2).astype(f32)
        h2o = h2 + m2 * (nh2 - h2)
        c2o = c2 + m2 * (nc2 - c2)
        h3o = h3 + m3 * (nh3 - h3)
        c3o = c3 + m3 * (nc3 - c3)
        return nh1, nc1, h2o, c2o, h3o, c3o

    init = (zeros, zeros, zeros, zeros, zeros, zeros)
    unroll = True if T <= 16 else 4          # bound code size for long T
    carry = jax.lax.fori_loop(0, T + 2, step, init, unroll=unroll)
    h_last = carry[4]                        # layer-3 hidden at t = T-1

    # ---- Classifier: Dropout (eval identity) -> Linear -> ReLU -> Linear. ---
    hid = jnp.dot(h_last.astype(bf16), wm1_ref[...],
                  preferred_element_type=f32) + bm1_ref[...]
    hid = jnp.maximum(hid, 0.0)
    out_ref[...] = jnp.dot(hid.astype(bf16), wm2_ref[...],
                           preferred_element_type=f32) + bm2_ref[...]


# ----------------------------------------------------------------------------
# One-time weight preparation (off the per-call path).
# ----------------------------------------------------------------------------
def prepare_params(params):
    """bf16 casts, [W_ih; W_hh] fusion for layers 2/3, classifier lane padding.

    Run once at init; the returned arrays are passed straight to the kernel so
    the per-call wrapper does no weight copies/casts."""
    (wih1, whh1, b1), (wih2, whh2, b2), (wih3, whh3, b3) = params["lstm"]
    wm1, bm1, wm2, bm2 = params["mlp"]
    C = wm2.shape[1]
    Cp = _round_up(max(C, 128), 128)
    bf = lambda w: w.astype(jnp.bfloat16)
    return {
        "wih1": bf(wih1), "whh1": bf(whh1), "b1": b1,
        "w2": bf(jnp.concatenate([wih2, whh2], axis=0)), "b2": b2,
        "w3": bf(jnp.concatenate([wih3, whh3], axis=0)), "b3": b3,
        "wm1": bf(wm1), "bm1": bm1,
        "wm2": bf(jnp.pad(wm2, ((0, 0), (0, Cp - C)))),
        "bm2": jnp.pad(bm2, ((0, 0), (0, Cp - C))),
    }


# ----------------------------------------------------------------------------
# Forward wrapper (jitted).  Only activation pad/transpose/cast + one
# pallas_call per call.
# ----------------------------------------------------------------------------
@functools.partial(jax.jit, static_argnames=("num_classes",))
def lstm_net_forward(x, prep, *, num_classes):
    """x: (B, T, C, H, W) float32 -> logits (B, num_classes) float32."""
    B, T = x.shape[0], x.shape[1]
    x = x.reshape(B, T, -1)                       # torch.flatten(x, 2)
    Din = x.shape[-1]
    H = prep["whh1"].shape[0]
    Cp = prep["wm2"].shape[1]

    Bp = _round_up(max(B, 8), 8)                  # fill f32 sublanes

    # Pad batch, go time-major (row = t*Bp + b), cast activations to bf16.
    x = jnp.pad(x, ((0, Bp - B), (0, 0), (0, 0)))
    x_tm = jnp.transpose(x, (1, 0, 2)).reshape(T * Bp, Din).astype(jnp.bfloat16)

    args = (x_tm,
            prep["wih1"], prep["whh1"], prep["b1"],
            prep["w2"], prep["b2"],
            prep["w3"], prep["b3"],
            prep["wm1"], prep["bm1"],
            prep["wm2"], prep["bm2"])

    # Right-size the VMEM limit from the actual footprint (fused-in-VMEM is the
    # whole point); clamp to a generation-safe ceiling.
    arg_bytes = sum(int(a.size) * a.dtype.itemsize for a in args)
    scratch_bytes = T * Bp * 4 * H * 4
    out_bytes = Bp * Cp * 4
    vmem_limit = int(min(100 * 2**20,
                         max(32 * 2**20,
                             2 * (arg_bytes + scratch_bytes + out_bytes))))

    out = pl.pallas_call(
        _lstm_net_kernel,
        out_shape=jax.ShapeDtypeStruct((Bp, Cp), jnp.float32),
        scratch_shapes=[
            pltpu.VMEM((T * Bp, 4 * H), jnp.float32),   # gin_sc
        ],
        compiler_params=pltpu.CompilerParams(vmem_limit_bytes=vmem_limit),
    )(*args)
    return out[:B, :num_classes]


# ----------------------------------------------------------------------------
# Deterministic parameter init (PyTorch-style uniform(-1/sqrt(H), 1/sqrt(H))).
# Weights stored pre-transposed as (in_features, out_features); LSTM biases
# b_ih + b_hh fused; gate order is PyTorch's (i, f, g, o).
# ----------------------------------------------------------------------------
def init_params(key, input_size, hidden, num_classes, num_layers=3):
    k = 1.0 / jnp.sqrt(hidden)
    keys = jax.random.split(key, num_layers * 4 + 4)
    ki = iter(range(len(keys)))

    lstm_params = []
    d_in = input_size
    for _ in range(num_layers):
        w_ih_t = jax.random.uniform(keys[next(ki)], (d_in, 4 * hidden),
                                    jnp.float32, -k, k)
        w_hh_t = jax.random.uniform(keys[next(ki)], (hidden, 4 * hidden),
                                    jnp.float32, -k, k)
        b_ih = jax.random.uniform(keys[next(ki)], (4 * hidden,), jnp.float32, -k, k)
        b_hh = jax.random.uniform(keys[next(ki)], (4 * hidden,), jnp.float32, -k, k)
        lstm_params.append((w_ih_t, w_hh_t, (b_ih + b_hh).reshape(1, -1)))
        d_in = hidden

    w1_t = jax.random.uniform(keys[next(ki)], (hidden, hidden), jnp.float32, -k, k)
    b1 = jax.random.uniform(keys[next(ki)], (1, hidden), jnp.float32, -k, k)
    w2_t = jax.random.uniform(keys[next(ki)], (hidden, num_classes),
                              jnp.float32, -k, k)
    b2 = jax.random.uniform(keys[next(ki)], (1, num_classes), jnp.float32, -k, k)
    return {"lstm": lstm_params, "mlp": (w1_t, b1, w2_t, b2)}


# ----------------------------------------------------------------------------
# Pure-JAX reference.  matmul_dtype=bfloat16 mirrors the kernel's mixed
# precision (bf16 MXU operands, f32 accumulation / gate math / state);
# matmul_dtype=float32 is the original module's pure-f32 semantics.
# ----------------------------------------------------------------------------
def reference_forward(x, params, matmul_dtype=jnp.float32):
    B, T = x.shape[0], x.shape[1]
    seq = x.reshape(B, T, -1)
    for (wih, whh, b) in params["lstm"]:
        H = whh.shape[0]
        wih_m = wih.astype(matmul_dtype)
        whh_m = whh.astype(matmul_dtype)
        h = jnp.zeros((B, H), jnp.float32)
        c = jnp.zeros((B, H), jnp.float32)
        outs = []
        for t in range(T):
            g = (jnp.dot(seq[:, t, :].astype(matmul_dtype), wih_m,
                         preferred_element_type=jnp.float32)
                 + jnp.dot(h.astype(matmul_dtype), whh_m,
                           preferred_element_type=jnp.float32) + b)
            i = jax.nn.sigmoid(g[:, 0 * H:1 * H])
            f = jax.nn.sigmoid(g[:, 1 * H:2 * H])
            gg = jnp.tanh(g[:, 2 * H:3 * H])
            o = jax.nn.sigmoid(g[:, 3 * H:4 * H])
            c = f * c + i * gg
            h = o * jnp.tanh(c)
            outs.append(h)
        seq = jnp.stack(outs, axis=1)
    wm1, bm1, wm2, bm2 = params["mlp"]
    hid = jnp.maximum(
        jnp.dot(seq[:, -1, :].astype(matmul_dtype), wm1.astype(matmul_dtype),
                preferred_element_type=jnp.float32) + bm1, 0.0)
    return jnp.dot(hid.astype(matmul_dtype), wm2.astype(matmul_dtype),
                   preferred_element_type=jnp.float32) + bm2


if __name__ == "__main__":
    # Small shapes consistent with the module's forward:
    # x: (batch, seq, channels, height, width) -> flatten(2) -> (B, T, C*H*W)
    B, T, C, Hs, Ws = 2, 8, 3, 16, 16
    hidden = 128
    num_classes = 10
    D = C * Hs * Ws

    key = jax.random.PRNGKey(0)
    kx, kp = jax.random.split(key)
    x = jax.random.normal(kx, (B, T, C, Hs, Ws), jnp.float32)
    params = init_params(kp, D, hidden, num_classes)

    # One-time weight prep (bf16 cast / gate fusion / lane pad) off the
    # per-call path.
    prep = prepare_params(params)
    prep = jax.tree_util.tree_map(jax.block_until_ready, prep)

    out = lstm_net_forward(x, prep, num_classes=num_classes)
    jax.block_until_ready(out)
    assert out.shape == (B, num_classes), out.shape

    # Tight regression check against a reference using the SAME mixed precision
    # as the kernel (bf16 matmul operands, f32 accumulation/state).
    ref_mixed = reference_forward(x, params, matmul_dtype=jnp.bfloat16)
    err_mixed = float(jnp.max(jnp.abs(out - ref_mixed)))
    assert err_mixed < 5e-3, f"mismatch vs matched-precision reference: {err_mixed}"

    # Coarse drift check against the module's pure-f32 semantics (quantifies the
    # intentional bf16 mixed-precision error only).
    ref_f32 = reference_forward(x, params, matmul_dtype=jnp.float32)
    err_f32 = float(jnp.max(jnp.abs(out - ref_f32)))
    assert err_f32 < 1e-1, f"drift vs pure-f32 reference too large: {err_f32}"

    print("KERNEL_OK")
</pallas_src>

<mosaic_0001>
module attributes {stable_mosaic.version = 11 : i64} {
  func.func @_lstm_net_kernel(%arg0: memref<64x768xbf16, #tpu.memory_space<vmem>>, %arg1: memref<768x512xbf16, #tpu.memory_space<vmem>>, %arg2: memref<128x512xbf16, #tpu.memory_space<vmem>>, %arg3: memref<1x512xf32, #tpu.memory_space<vmem>>, %arg4: memref<256x512xbf16, #tpu.memory_space<vmem>>, %arg5: memref<1x512xf32, #tpu.memory_space<vmem>>, %arg6: memref<256x512xbf16, #tpu.memory_space<vmem>>, %arg7: memref<1x512xf32, #tpu.memory_space<vmem>>, %arg8: memref<128x128xbf16, #tpu.memory_space<vmem>>, %arg9: memref<1x128xf32, #tpu.memory_space<vmem>>, %arg10: memref<128x128xbf16, #tpu.memory_space<vmem>>, %arg11: memref<1x128xf32, #tpu.memory_space<vmem>>, %arg12: memref<8x128xf32, #tpu.memory_space<vmem>>, %arg13: memref<64x512xf32, #tpu.memory_space<vmem>>) attributes {dimension_semantics = [], scalar_prefetch = 0 : i64, scratch_operands = 1 : i64, tpu.core_type = #tpu.core_type<tc>} {
    %c0 = arith.constant 0 : index
    %c0_0 = arith.constant 0 : index
    %0 = vector.load %arg0[%c0, %c0_0] : memref<64x768xbf16, #tpu.memory_space<vmem>>, vector<64x768xbf16>
    %c0_1 = arith.constant 0 : index
    %c0_2 = arith.constant 0 : index
    %1 = vector.load %arg1[%c0_1, %c0_2] : memref<768x512xbf16, #tpu.memory_space<vmem>>, vector<768x512xbf16>
    %cst = arith.constant dense<0.000000e+00> : vector<64x512xf32>
    %2 = tpu.matmul %0, %1, %cst {dimension_numbers = #tpu.dot_dimension_numbers<[1], [0], [0], [1], [0, 0, 1, 1], [], []>} : vector<64x768xbf16>, vector<768x512xbf16>, vector<64x512xf32> -> vector<64x512xf32>
    %c0_3 = arith.constant 0 : index
    %c0_4 = arith.constant 0 : index
    %3 = vector.load %arg3[%c0_3, %c0_4] : memref<1x512xf32, #tpu.memory_space<vmem>>, vector<1x512xf32>
    %4 = vector.broadcast %3 : vector<1x512xf32> to vector<64x512xf32>
    %5 = arith.addf %2, %4 : vector<64x512xf32>
    %c0_5 = arith.constant 0 : index
    %c0_6 = arith.constant 0 : index
    %6 = vector.load %arg13[%c0_5, %c0_6] : memref<64x512xf32, #tpu.memory_space<vmem>>, vector<64x512xf32>
    tpu.vector_store %arg13[%c0_5, %c0_6], %5 {strides = array<i32>} : memref<64x512xf32, #tpu.memory_space<vmem>>, vector<64x512xf32>,
    %c0_7 = arith.constant 0 : index
    %c0_8 = arith.constant 0 : index
    %7 = vector.load %arg2[%c0_7, %c0_8] : memref<128x512xbf16, #tpu.memory_space<vmem>>, vector<128x512xbf16>
    %c0_9 = arith.constant 0 : index
    %c0_10 = arith.constant 0 : index
    %8 = vector.load %arg4[%c0_9, %c0_10] : memref<256x512xbf16, #tpu.memory_space<vmem>>, vector<256x512xbf16>
    %c0_11 = arith.constant 0 : index
    %c0_12 = arith.constant 0 : index
    %9 = vector.load %arg5[%c0_11, %c0_12] : memref<1x512xf32, #tpu.memory_space<vmem>>, vector<1x512xf32>
    %c0_13 = arith.constant 0 : index
    %c0_14 = arith.constant 0 : index
    %10 = vector.load %arg6[%c0_13, %c0_14] : memref<256x512xbf16, #tpu.memory_space<vmem>>, vector<256x512xbf16>
    %c0_15 = arith.constant 0 : index
    %c0_16 = arith.constant 0 : index
    %11 = vector.load %arg7[%c0_15, %c0_16] : memref<1x512xf32, #tpu.memory_space<vmem>>, vector<1x512xf32>
    %cst_17 = arith.constant 0.000000e+00 : f32
    %12 = vector.broadcast %cst_17 : f32 to vector<8x128xf32>
    %c0_i32 = arith.constant 0 : i32
    %c7_i32 = arith.constant 7 : i32
    %13 = arith.minsi %c0_i32, %c7_i32 : i32
    %c8_i32 = arith.constant 8 : i32
    %14 = arith.muli %13, %c8_i32 : i32
    %15 = tpu.assume_multiple %14, 8 : i32
    %16 = arith.index_cast %15 : i32 to index
    %c0_18 = arith.constant 0 : index
    %17 = vector.load %arg13[%16, %c0_18] : memref<64x512xf32, #tpu.memory_space<vmem>>, vector<8x512xf32>
    %18 = arith.truncf %12 : vector<8x128xf32> to vector<8x128xbf16>
    %cst_19 = arith.constant dense<0.000000e+00> : vector<8x512xf32>
    %19 = tpu.matmul %18, %7, %cst_19 {dimension_numbers = #tpu.dot_dimension_numbers<[1], [0], [0], [1], [0, 0, 1, 1], [], []>} : vector<8x128xbf16>, vector<128x512xbf16>, vector<8x512xf32> -> vector<8x512xf32>
    %20 = arith.addf %17, %19 : vector<8x512xf32>
    %21 = vector.extract_strided_slice %20 {offsets = [0, 0], sizes = [8, 128], strides = [1, 1]} : vector<8x512xf32> to vector<8x128xf32>
    %cst_20 = arith.constant 5.000000e-01 : f32
    %22 = vector.broadcast %cst_20 : f32 to vector<8x128xf32>
    %23 = arith.mulf %22, %21 : vector<8x128xf32>
    %24 = math.tanh %23 : vector<8x128xf32>
    %cst_21 = arith.constant 5.000000e-01 : f32
    %25 = vector.broadcast %cst_21 : f32 to vector<8x128xf32>
    %26 = arith.mulf %25, %24 : vector<8x128xf32>
    %cst_22 = arith.constant 5.000000e-01 : f32
    %27 = vector.broadcast %cst_22 : f32 to vector<8x128xf32>
    %28 = arith.addf %26, %27 : vector<8x128xf32>
    %29 = vector.extract_strided_slice %20 {offsets = [0, 128], sizes = [8, 128], strides = [1, 1]} : vector<8x512xf32> to vector<8x128xf32>
    %cst_23 = arith.constant 5.000000e-01 : f32
    %30 = vector.broadcast %cst_23 : f32 to vector<8x128xf32>
    %31 = arith.mulf %30, %29 : vector<8x128xf32>
    %32 = math.tanh %31 : vector<8x128xf32>
    %cst_24 = arith.constant 5.000000e-01 : f32
    %33 = vector.broadcast %cst_24 : f32 to vector<8x128xf32>
    %34 = arith.mulf %33, %32 : vector<8x128xf32>
    %cst_25 = arith.constant 5.000000e-01 : f32
    %35 = vector.broadcast %cst_25 : f32 to vector<8x128xf32>
    %36 = arith.addf %34, %35 : vector<8x128xf32>
    %37 = vector.extract_strided_slice %20 {offsets = [0, 256], sizes = [8, 128], strides = [1, 1]} : vector<8x512xf32> to vector<8x128xf32>
    %38 = math.tanh %37 : vector<8x128xf32>
    %39 = vector.extract_strided_slice %20 {offsets = [0, 384], sizes = [8, 128], strides = [1, 1]} : vector<8x512xf32> to vector<8x128xf32>
    %cst_26 = arith.constant 5.000000e-01 : f32
    %40 = vector.broadcast %cst_26 : f32 to vector<8x128xf32>
    %41 = arith.mulf %40, %39 : vector<8x128xf32>
    %42 = math.tanh %41 : vector<8x128xf32>
    %cst_27 = arith.constant 5.000000e-01 : f32
    %43 = vector.broadcast %cst_27 : f32 to vector<8x128xf32>
    %44 = arith.mulf %43, %42 : vector<8x128xf32>
    %cst_28 = arith.constant 5.000000e-01 : f32
    %45 = vector.broadcast %cst_28 : f32 to vector<8x128xf32>
    %46 = arith.addf %44, %45 : vector<8x128xf32>
    %47 = arith.mulf %36, %12 : vector<8x128xf32>
    %48 = arith.mulf %28, %38 : vector<8x128xf32>
    %49 = arith.addf %47, %48 : vector<8x128xf32>
    %50 = math.tanh %49 : vector<8x128xf32>
    %51 = arith.mulf %46, %50 : vector<8x128xf32>
    %52 = tpu.concatenate %12, %12 in 1 : vector<8x128xf32>, vector<8x128xf32> -> vector<8x256xf32>
    %53 = arith.truncf %52 : vector<8x256xf32> to vector<8x256xbf16>
    %cst_29 = arith.constant dense<0.000000e+00> : vector<8x512xf32>
    %54 = tpu.matmul %53, %8, %cst_29 {dimension_numbers = #tpu.dot_dimension_numbers<[1], [0], [0], [1], [0, 0, 1, 1], [], []>} : vector<8x256xbf16>, vector<256x512xbf16>, vector<8x512xf32> -> vector<8x512xf32>
    %55 = vector.broadcast %9 : vector<1x512xf32> to vector<8x512xf32>
    %56 = arith.addf %54, %55 : vector<8x512xf32>
    %57 = vector.extract_strided_slice %56 {offsets = [0, 0], sizes = [8, 128], strides = [1, 1]} : vector<8x512xf32> to vector<8x128xf32>
    %cst_30 = arith.constant 5.000000e-01 : f32
    %58 = vector.broadcast %cst_30 : f32 to vector<8x128xf32>
    %59 = arith.mulf %58, %57 : vector<8x128xf32>
    %60 = math.tanh %59 : vector<8x128xf32>
    %cst_31 = arith.constant 5.000000e-01 : f32
    %61 = vector.broadcast %cst_31 : f32 to vector<8x128xf32>
    %62 = arith.mulf %61, %60 : vector<8x128xf32>
    %cst_32 = arith.constant 5.000000e-01 : f32
    %63 = vector.broadcast %cst_32 : f32 to vector<8x128xf32>
    %64 = arith.addf %62, %63 : vector<8x128xf32>
    %65 = vector.extract_strided_slice %56 {offsets = [0, 128], sizes = [8, 128], strides = [1, 1]} : vector<8x512xf32> to vector<8x128xf32>
    %cst_33 = arith.constant 5.000000e-01 : f32
    %66 = vector.broadcast %cst_33 : f32 to vector<8x128xf32>
    %67 = arith.mulf %66, %65 : vector<8x128xf32>
    %68 = math.tanh %67 : vector<8x128xf32>
    %cst_34 = arith.constant 5.000000e-01 : f32
    %69 = vector.broadcast %cst_34 : f32 to vector<8x128xf32>
    %70 = arith.mulf %69, %68 : vector<8x128xf32>
    %cst_35 = arith.constant 5.000000e-01 : f32
    %71 = vector.broadcast %cst_35 : f32 to vector<8x128xf32>
    %72 = arith.addf %70, %71 : vector<8x128xf32>
    %73 = vector.extract_strided_slice %56 {offsets = [0, 256], sizes = [8, 128], strides = [1, 1]} : vector<8x512xf32> to vector<8x128xf32>
    %74 = math.tanh %73 : vector<8x128xf32>
    %75 = vector.extract_strided_slice %56 {offsets = [0, 384], sizes = [8, 128], strides = [1, 1]} : vector<8x512xf32> to vector<8x128xf32>
    %cst_36 = arith.constant 5.000000e-01 : f32
    %76 = vector.broadcast %cst_36 : f32 to vector<8x128xf32>
    %77 = arith.mulf %76, %75 : vector<8x128xf32>
    %78 = math.tanh %77 : vector<8x128xf32>
    %cst_37 = arith.constant 5.000000e-01 : f32
    %79 = vector.broadcast %cst_37 : f32 to vector<8x128xf32>
    %80 = arith.mulf %79, %78 : vector<8x128xf32>
    %cst_38 = arith.constant 5.000000e-01 : f32
    %81 = vector.broadcast %cst_38 : f32 to vector<8x128xf32>
    %82 = arith.addf %80, %81 : vector<8x128xf32>
    %83 = arith.mulf %72, %12 : vector<8x128xf32>
    %84 = arith.mulf %64, %74 : vector<8x128xf32>
    %85 = arith.addf %83, %84 : vector<8x128xf32>
    %86 = math.tanh %85 : vector<8x128xf32>
    %87 = arith.mulf %82, %86 : vector<8x128xf32>
    %88 = tpu.concatenate %12, %12 in 1 : vector<8x128xf32>, vector<8x128xf32> -> vector<8x256xf32>
    %89 = arith.truncf %88 : vector<8x256xf32> to vector<8x256xbf16>
    %cst_39 = arith.constant dense<0.000000e+00> : vector<8x512xf32>
    %90 = tpu.matmul %89, %10, %cst_39 {dimension_numbers = #tpu.dot_dimension_numbers<[1], [0], [0], [1], [0, 0, 1, 1], [], []>} : vector<8x256xbf16>, vector<256x512xbf16>, vector<8x512xf32> -> vector<8x512xf32>
    %91 = vector.broadcast %11 : vector<1x512xf32> to vector<8x512xf32>
    %92 = arith.addf %90, %91 : vector<8x512xf32>
    %93 = vector.extract_strided_slice %92 {offsets = [0, 0], sizes = [8, 128], strides = [1, 1]} : vector<8x512xf32> to vector<8x128xf32>
    %cst_40 = arith.constant 5.000000e-01 : f32
    %94 = vector.broadcast %cst_40 : f32 to vector<8x128xf32>
    %95 = arith.mulf %94, %93 : vector<8x128xf32>
    %96 = math.tanh %95 : vector<8x128xf32>
    %cst_41 = arith.constant 5.000000e-01 : f32
    %97 = vector.broadcast %cst_41 : f32 to vector<8x128xf32>
    %98 = arith.mulf %97, %96 : vector<8x128xf32>
    %cst_42 = arith.constant 5.000000e-01 : f32
    %99 = vector.broadcast %cst_42 : f32 to vector<8x128xf32>
    %100 = arith.addf %98, %99 : vector<8x128xf32>
    %101 = vector.extract_strided_slice %92 {offsets = [0, 128], sizes = [8, 128], strides = [1, 1]} : vector<8x512xf32> to vector<8x128xf32>
    %cst_43 = arith.constant 5.000000e-01 : f32
    %102 = vector.broadcast %cst_43 : f32 to vector<8x128xf32>
    %103 = arith.mulf %102, %101 : vector<8x128xf32>
    %104 = math.tanh %103 : vector<8x128xf32>
    %cst_44 = arith.constant 5.000000e-01 : f32
    %105 = vector.broadcast %cst_44 : f32 to vector<8x128xf32>
    %106 = arith.mulf %105, %104 : vector<8x128xf32>
    %cst_45 = arith.constant 5.000000e-01 : f32
    %107 = vector.broadcast %cst_45 : f32 to vector<8x128xf32>
    %108 = arith.addf %106, %107 : vector<8x128xf32>
    %109 = vector.extract_strided_slice %92 {offsets = [0, 256], sizes = [8, 128], strides = [1, 1]} : vector<8x512xf32> to vector<8x128xf32>
    %110 = math.tanh %109 : vector<8x128xf32>
    %111 = vector.extract_strided_slice %92 {offsets = [0, 384], sizes = [8, 128], strides = [1, 1]} : vector<8x512xf32> to vector<8x128xf32>
    %cst_46 = arith.constant 5.000000e-01 : f32
    %112 = vector.broadcast %cst_46 : f32 to vector<8x128xf32>
    %113 = arith.mulf %112, %111 : vector<8x128xf32>
    %114 = math.tanh %113 : vector<8x128xf32>
    %cst_47 = arith.constant 5.000000e-01 : f32
    %115 = vector.broadcast %cst_47 : f32 to vector<8x128xf32>
    %116 = arith.mulf %115, %114 : vector<8x128xf32>
    %cst_48 = arith.constant 5.000000e-01 : f32
    %117 = vector.broadcast %cst_48 : f32 to vector<8x128xf32>
    %118 = arith.addf %116, %117 : vector<8x128xf32>
    %119 = arith.mulf %108, %12 : vector<8x128xf32>
    %120 = arith.mulf %100, %110 : vector<8x128xf32>
    %121 = arith.addf %119, %120 : vector<8x128xf32>
    %122 = math.tanh %121 : vector<8x128xf32>
    %123 = arith.mulf %118, %122 : vector<8x128xf32>
    %c1_i32 = arith.constant 1 : i32
    %124 = arith.cmpi sge, %c0_i32, %c1_i32 : i32
    %125 = arith.extui %124 : i1 to i32
    %126 = arith.sitofp %125 : i32 to f32
    %c2_i32 = arith.constant 2 : i32
    %127 = arith.cmpi sge, %c0_i32, %c2_i32 : i32
    %128 = arith.extui %127 : i1 to i32
    %129 = arith.sitofp %128 : i32 to f32
    %130 = arith.subf %87, %12 : vector<8x128xf32>
    %131 = vector.broadcast %126 : f32 to vector<8x128xf32>
    %132 = arith.mulf %131, %130 : vector<8x128xf32>
    %133 = arith.addf %12, %132 : vector<8x128xf32>
    %134 = arith.subf %85, %12 : vector<8x128xf32>
    %135 = vector.broadcast %126 : f32 to vector<8x128xf32>
    %136 = arith.mulf %135, %134 : vector<8x128xf32>
    %137 = arith.addf %12, %136 : vector<8x128xf32>
    %138 = arith.subf %123, %12 : vector<8x128xf32>
    %139 = vector.broadcast %129 : f32 to vector<8x128xf32>
    %140 = arith.mulf %139, %138 : vector<8x128xf32>
    %141 = arith.addf %12, %140 : vector<8x128xf32>
    %142 = arith.subf %121, %12 : vector<8x128xf32>
    %143 = vector.broadcast %129 : f32 to vector<8x128xf32>
    %144 = arith.mulf %143, %142 : vector<8x128xf32>
    %145 = arith.addf %12, %144 : vector<8x128xf32>
    %c1_i32_49 = arith.constant 1 : i32
    %c7_i32_50 = arith.constant 7 : i32
    %146 = arith.minsi %c1_i32_49, %c7_i32_50 : i32
    %c8_i32_51 = arith.constant 8 : i32
    %147 = arith.muli %146, %c8_i32_51 : i32
    %148 = tpu.assume_multiple %147, 8 : i32
    %149 = arith.index_cast %148 : i32 to index
    %c0_52 = arith.constant 0 : index
    %150 = vector.load %arg13[%149, %c0_52] : memref<64x512xf32, #tpu.memory_space<vmem>>, vector<8x512xf32>
    %151 = arith.truncf %51 : vector<8x128xf32> to vector<8x128xbf16>
    %cst_53 = arith.constant dense<0.000000e+00> : vector<8x512xf32>
    %152 = tpu.matmul %151, %7, %cst_53 {dimension_numbers = #tpu.dot_dimension_numbers<[1], [0], [0], [1], [0, 0, 1, 1], [], []>} : vector<8x128xbf16>, vector<128x512xbf16>, vector<8x512xf32> -> vector<8x512xf32>
    %153 = arith.addf %150, %152 : vector<8x512xf32>
    %154 = vector.extract_strided_slice %153 {offsets = [0, 0], sizes = [8, 128], strides = [1, 1]} : vector<8x512xf32> to vector<8x128xf32>
    %cst_54 = arith.constant 5.000000e-01 : f32
    %155 = vector.broadcast %cst_54 : f32 to vector<8x128xf32>
    %156 = arith.mulf %155, %154 : vector<8x128xf32>
    %157 = math.tanh %156 : vector<8x128xf32>
    %cst_55 = arith.constant 5.000000e-01 : f32
    %158 = vector.broadcast %cst_55 : f32 to vector<8x128xf32>
    %159 = arith.mulf %158, %157 : vector<8x128xf32>
    %cst_56 = arith.constant 5.000000e-01 : f32
    %160 = vector.broadcast %cst_56 : f32 to vector<8x128xf32>
    %161 = arith.addf %159, %160 : vector<8x128xf32>
    %162 = vector.extract_strided_slice %153 {offsets = [0, 128], sizes = [8, 128], strides = [1, 1]} : vector<8x512xf32> to vector<8x128xf32>
    %cst_57 = arith.constant 5.000000e-01 : f32
    %163 = vector.broadcast %cst_57 : f32 to vector<8x128xf32>
    %164 = arith.mulf %163, %162 : vector<8x128xf32>
    %165 = math.tanh %164 : vector<8x128xf32>
    %cst_58 = arith.constant 5.000000e-01 : f32
    %166 = vector.broadcast %cst_58 : f32 to vector<8x128xf32>
    %167 = arith.mulf %166, %165 : vector<8x128xf32>
    %cst_59 = arith.constant 5.000000e-01 : f32
    %168 = vector.broadcast %cst_59 : f32 to vector<8x128xf32>
    %169 = arith.addf %167, %168 : vector<8x128xf32>
    %170 = vector.extract_strided_slice %153 {offsets = [0, 256], sizes = [8, 128], strides = [1, 1]} : vector<8x512xf32> to vector<8x128xf32>
    %171 = math.tanh %170 : vector<8x128xf32>
    %172 = vector.extract_strided_slice %153 {offsets = [0, 384], sizes = [8, 128], strides = [1, 1]} : vector<8x512xf32> to vector<8x128xf32>
    %cst_60 = arith.constant 5.000000e-01 : f32
    %173 = vector.broadcast %cst_60 : f32 to vector<8x128xf32>
    %174 = arith.mulf %173, %172 : vector<8x128xf32>
    %175 = math.tanh %174 : vector<8x128xf32>
    %cst_61 = arith.constant 5.000000e-01 : f32
    %176 = vector.broadcast %cst_61 : f32 to vector<8x128xf32>
    %177 = arith.mulf %176, %175 : vector<8x128xf32>
    %cst_62 = arith.constant 5.000000e-01 : f32
    %178 = vector.broadcast %cst_62 : f32 to vector<8x128xf32>
    %179 = arith.addf %177, %178 : vector<8x128xf32>
    %180 = arith.mulf %169, %49 : vector<8x128xf32>
    %181 = arith.mulf %161, %171 : vector<8x128xf32>
    %182 = arith.addf %180, %181 : vector<8x128xf32>
    %183 = math.tanh %182 : vector<8x128xf32>
    %184 = arith.mulf %179, %183 : vector<8x128xf32>
    %185 = tpu.concatenate %51, %133 in 1 : vector<8x128xf32>, vector<8x128xf32> -> vector<8x256xf32>
    %186 = arith.truncf %185 : vector<8x256xf32> to vector<8x256xbf16>
    %cst_63 = arith.constant dense<0.000000e+00> : vector<8x512xf32>
    %187 = tpu.matmul %186, %8, %cst_63 {dimension_numbers = #tpu.dot_dimension_numbers<[1], [0], [0], [1], [0, 0, 1, 1], [], []>} : vector<8x256xbf16>, vector<256x512xbf16>, vector<8x512xf32> -> vector<8x512xf32>
    %188 = vector.broadcast %9 : vector<1x512xf32> to vector<8x512xf32>
    %189 = arith.addf %187, %188 : vector<8x512xf32>
    %190 = vector.extract_strided_slice %189 {offsets = [0, 0], sizes = [8, 128], strides = [1, 1]} : vector<8x512xf32> to vector<8x128xf32>
    %cst_64 = arith.constant 5.000000e-01 : f32
    %191 = vector.broadcast %cst_64 : f32 to vector<8x128xf32>
    %192 = arith.mulf %191, %190 : vector<8x128xf32>
    %193 = math.tanh %192 : vector<8x128xf32>
    %cst_65 = arith.constant 5.000000e-01 : f32
    %194 = vector.broadcast %cst_65 : f32 to vector<8x128xf32>
    %195 = arith.mulf %194, %193 : vector<8x128xf32>
    %cst_66 = arith.constant 5.000000e-01 : f32
    %196 = vector.broadcast %cst_66 : f32 to vector<8x128xf32>
    %197 = arith.addf %195, %196 : vector<8x128xf32>
    %198 = vector.extract_strided_slice %189 {offsets = [0, 128], sizes = [8, 128], strides = [1, 1]} : vector<8x512xf32> to vector<8x128xf32>
    %cst_67 = arith.constant 5.000000e-01 : f32
    %199 = vector.broadcast %cst_67 : f32 to vector<8x128xf32>
    %200 = arith.mulf %199, %198 : vector<8x128xf32>
    %201 = math.tanh %200 : vector<8x128xf32>
    %cst_68 = arith.constant 5.000000e-01 : f32
    %202 = vector.broadcast %cst_68 : f32 to vector<8x128xf32>
    %203 = arith.mulf %202, %201 : vector<8x128xf32>
    %cst_69 = arith.constant 5.000000e-01 : f32
    %204 = vector.broadcast %cst_69 : f32 to vector<8x128xf32>
    %205 = arith.addf %203, %204 : vector<8x128xf32>
    %206 = vector.extract_strided_slice %189 {offsets = [0, 256], sizes = [8, 128], strides = [1, 1]} : vector<8x512xf32> to vector<8x128xf32>
    %207 = math.tanh %206 : vector<8x128xf32>
    %208 = vector.extract_strided_slice %189 {offsets = [0, 384], sizes = [8, 128], strides = [1, 1]} : vector<8x512xf32> to vector<8x128xf32>
    %cst_70 = arith.constant 5.000000e-01 : f32
    %209 = vector.broadcast %cst_70 : f32 to vector<8x128xf32>
    %210 = arith.mulf %209, %208 : vector<8x128xf32>
    %211 = math.tanh %210 : vector<8x128xf32>
    %cst_71 = arith.constant 5.000000e-01 : f32
    %212 = vector.broadcast %cst_71 : f32 to vector<8x128xf32>
    %213 = arith.mulf %212, %211 : vector<8x128xf32>
    %cst_72 = arith.constant 5.000000e-01 : f32
    %214 = vector.broadcast %cst_72 : f32 to vector<8x128xf32>
    %215 = arith.addf %213, %214 : vector<8x128xf32>
    %216 = arith.mulf %205, %137 : vector<8x128xf32>
    %217 = arith.mulf %197, %207 : vector<8x128xf32>
    %218 = arith.addf %216, %217 : vector<8x128xf32>
    %219 = math.tanh %218 : vector<8x128xf32>
    %220 = arith.mulf %215, %219 : vector<8x128xf32>
    %221 = tpu.concatenate %133, %141 in 1 : vector<8x128xf32>, vector<8x128xf32> -> vector<8x256xf32>
    %222 = arith.truncf %221 : vector<8x256xf32> to vector<8x256xbf16>
    %cst_73 = arith.constant dense<0.000000e+00> : vector<8x512xf32>
    %223 = tpu.matmul %222, %10, %cst_73 {dimension_numbers = #tpu.dot_dimension_numbers<[1], [0], [0], [1], [0, 0, 1, 1], [], []>} : vector<8x256xbf16>, vector<256x512xbf16>, vector<8x512xf32> -> vector<8x512xf32>
    %224 = vector.broadcast %11 : vector<1x512xf32> to vector<8x512xf32>
    %225 = arith.addf %223, %224 : vector<8x512xf32>
    %226 = vector.extract_strided_slice %225 {offsets = [0, 0], sizes = [8, 128], strides = [1, 1]} : vector<8x512xf32> to vector<8x128xf32>
    %cst_74 = arith.constant 5.000000e-01 : f32
    %227 = vector.broadcast %cst_74 : f32 to vector<8x128xf32>
    %228 = arith.mulf %227, %226 : vector<8x128xf32>
    %229 = math.tanh %228 : vector<8x128xf32>
    %cst_75 = arith.constant 5.000000e-01 : f32
    %230 = vector.broadcast %cst_75 : f32 to vector<8x128xf32>
    %231 = arith.mulf %230, %229 : vector<8x128xf32>
    %cst_76 = arith.constant 5.000000e-01 : f32
    %232 = vector.broadcast %cst_76 : f32 to vector<8x128xf32>
    %233 = arith.addf %231, %232 : vector<8x128xf32>
    %234 = vector.extract_strided_slice %225 {offsets = [0, 128], sizes = [8, 128], strides = [1, 1]} : vector<8x512xf32> to vector<8x128xf32>
    %cst_77 = arith.constant 5.000000e-01 : f32
    %235 = vector.broadcast %cst_77 : f32 to vector<8x128xf32>
    %236 = arith.mulf %235, %234 : vector<8x128xf32>
    %237 = math.tanh %236 : vector<8x128xf32>
    %cst_78 = arith.constant 5.000000e-01 : f32
    %238 = vector.broadcast %cst_78 : f32 to vector<8x128xf32>
    %239 = arith.mulf %238, %237 : vector<8x128xf32>
    %cst_79 = arith.constant 5.000000e-01 : f32
    %240 = vector.broadcast %cst_79 : f32 to vector<8x128xf32>
    %241 = arith.addf %239, %240 : vector<8x128xf32>
    %242 = vector.extract_strided_slice %225 {offsets = [0, 256], sizes = [8, 128], strides = [1, 1]} : vector<8x512xf32> to vector<8x128xf32>
    %243 = math.tanh %242 : vector<8x128xf32>
    %244 = vector.extract_strided_slice %225 {offsets = [0, 384], sizes = [8, 128], strides = [1, 1]} : vector<8x512xf32> to vector<8x128xf32>
    %cst_80 = arith.constant 5.000000e-01 : f32
    %245 = vector.broadcast %cst_80 : f32 to vector<8x128xf32>
    %246 = arith.mulf %245, %244 : vector<8x128xf32>
    %247 = math.tanh %246 : vector<8x128xf32>
    %cst_81 = arith.constant 5.000000e-01 : f32
    %248 = vector.broadcast %cst_81 : f32 to vector<8x128xf32>
    %249 = arith.mulf %248, %247 : vector<8x128xf32>
    %cst_82 = arith.constant 5.000000e-01 : f32
    %250 = vector.broadcast %cst_82 : f32 to vector<8x128xf32>
    %251 = arith.addf %249, %250 : vector<8x128xf32>
    %252 = arith.mulf %241, %145 : vector<8x128xf32>
    %253 = arith.mulf %233, %243 : vector<8x128xf32>
    %254 = arith.addf %252, %253 : vector<8x128xf32>
    %255 = math.tanh %254 : vector<8x128xf32>
    %256 = arith.mulf %251, %255 : vector<8x128xf32>
    %c1_i32_83 = arith.constant 1 : i32
    %257 = arith.cmpi sge, %c1_i32_49, %c1_i32_83 : i32
    %258 = arith.extui %257 : i1 to i32
    %259 = arith.sitofp %258 : i32 to f32
    %c2_i32_84 = arith.constant 2 : i32
    %260 = arith.cmpi sge, %c1_i32_49, %c2_i32_84 : i32
    %261 = arith.extui %260 : i1 to i32
    %262 = arith.sitofp %261 : i32 to f32
    %263 = arith.subf %220, %133 : vector<8x128xf32>
    %264 = vector.broadcast %259 : f32 to vector<8x128xf32>
    %265 = arith.mulf %264, %263 : vector<8x128xf32>
    %266 = arith.addf %133, %265 : vector<8x128xf32>
    %267 = arith.subf %218, %137 : vector<8x128xf32>
    %268 = vector.broadcast %259 : f32 to vector<8x128xf32>
    %269 = arith.mulf %268, %267 : vector<8x128xf32>
    %270 = arith.addf %137, %269 : vector<8x128xf32>
    %271 = arith.subf %256, %141 : vector<8x128xf32>
    %272 = vector.broadcast %262 : f32 to vector<8x128xf32>
    %273 = arith.mulf %272, %271 : vector<8x128xf32>
    %274 = arith.addf %141, %273 : vector<8x128xf32>
    %275 = arith.subf %254, %145 : vector<8x128xf32>
    %276 = vector.broadcast %262 : f32 to vector<8x128xf32>
    %277 = arith.mulf %276, %275 : vector<8x128xf32>
    %278 = arith.addf %145, %277 : vector<8x128xf32>
    %c2_i32_85 = arith.constant 2 : i32
    %c7_i32_86 = arith.constant 7 : i32
    %279 = arith.minsi %c2_i32_85, %c7_i32_86 : i32
    %c8_i32_87 = arith.constant 8 : i32
    %280 = arith.muli %279, %c8_i32_87 : i32
    %281 = tpu.assume_multiple %280, 8 : i32
    %282 = arith.index_cast %281 : i32 to index
    %c0_88 = arith.constant 0 : index
    %283 = vector.load %arg13[%282, %c0_88] : memref<64x512xf32, #tpu.memory_space<vmem>>, vector<8x512xf32>
    %284 = arith.truncf %184 : vector<8x128xf32> to vector<8x128xbf16>
    %cst_89 = arith.constant dense<0.000000e+00> : vector<8x512xf32>
    %285 = tpu.matmul %284, %7, %cst_89 {dimension_numbers = #tpu.dot_dimension_numbers<[1], [0], [0], [1], [0, 0, 1, 1], [], []>} : vector<8x128xbf16>, vector<128x512xbf16>, vector<8x512xf32> -> vector<8x512xf32>
    %286 = arith.addf %283, %285 : vector<8x512xf32>
    %287 = vector.extract_strided_slice %286 {offsets = [0, 0], sizes = [8, 128], strides = [1, 1]} : vector<8x512xf32> to vector<8x128xf32>
    %cst_90 = arith.constant 5.000000e-01 : f32
    %288 = vector.broadcast %cst_90 : f32 to vector<8x128xf32>
    %289 = arith.mulf %288, %287 : vector<8x128xf32>
    %290 = math.tanh %289 : vector<8x128xf32>
    %cst_91 = arith.constant 5.000000e-01 : f32
    %291 = vector.broadcast %cst_91 : f32 to vector<8x128xf32>
    %292 = arith.mulf %291, %290 : vector<8x128xf32>
    %cst_92 = arith.constant 5.000000e-01 : f32
    %293 = vector.broadcast %cst_92 : f32 to vector<8x128xf32>
    %294 = arith.addf %292, %293 : vector<8x128xf32>
    %295 = vector.extract_strided_slice %286 {offsets = [0, 128], sizes = [8, 128], strides = [1, 1]} : vector<8x512xf32> to vector<8x128xf32>
    %cst_93 = arith.constant 5.000000e-01 : f32
    %296 = vector.broadcast %cst_93 : f32 to vector<8x128xf32>
    %297 = arith.mulf %296, %295 : vector<8x128xf32>
    %298 = math.tanh %297 : vector<8x128xf32>
    %cst_94 = arith.constant 5.000000e-01 : f32
    %299 = vector.broadcast %cst_94 : f32 to vector<8x128xf32>
    %300 = arith.mulf %299, %298 : vector<8x128xf32>
    %cst_95 = arith.constant 5.000000e-01 : f32
    %301 = vector.broadcast %cst_95 : f32 to vector<8x128xf32>
    %302 = arith.addf %300, %301 : vector<8x128xf32>
    %303 = vector.extract_strided_slice %286 {offsets = [0, 256], sizes = [8, 128], strides = [1, 1]} : vector<8x512xf32> to vector<8x128xf32>
    %304 = math.tanh %303 : vector<8x128xf32>
    %305 = vector.extract_strided_slice %286 {offsets = [0, 384], sizes = [8, 128], strides = [1, 1]} : vector<8x512xf32> to vector<8x128xf32>
    %cst_96 = arith.constant 5.000000e-01 : f32
    %306 = vector.broadcast %cst_96 : f32 to vector<8x128xf32>
    %307 = arith.mulf %306, %305 : vector<8x128xf32>
    %308 = math.tanh %307 : vector<8x128xf32>
    %cst_97 = arith.constant 5.000000e-01 : f32
    %309 = vector.broadcast %cst_97 : f32 to vector<8x128xf32>
    %310 = arith.mulf %309, %308 : vector<8x128xf32>
    %cst_98 = arith.constant 5.000000e-01 : f32
    %311 = vector.broadcast %cst_98 : f32 to vector<8x128xf32>
    %312 = arith.addf %310, %311 : vector<8x128xf32>
    %313 = arith.mulf %302, %182 : vector<8x128xf32>
    %314 = arith.mulf %294, %304 : vector<8x128xf32>
    %315 = arith.addf %313, %314 : vector<8x128xf32>
    %316 = math.tanh %315 : vector<8x128xf32>
    %317 = arith.mulf %312, %316 : vector<8x128xf32>
    %318 = tpu.concatenate %184, %266 in 1 : vector<8x128xf32>, vector<8x128xf32> -> vector<8x256xf32>
    %319 = arith.truncf %318 : vector<8x256xf32> to vector<8x256xbf16>
    %cst_99 = arith.constant dense<0.000000e+00> : vector<8x512xf32>
    %320 = tpu.matmul %319, %8, %cst_99 {dimension_numbers = #tpu.dot_dimension_numbers<[1], [0], [0], [1], [0, 0, 1, 1], [], []>} : vector<8x256xbf16>, vector<256x512xbf16>, vector<8x512xf32> -> vector<8x512xf32>
    %321 = vector.broadcast %9 : vector<1x512xf32> to vector<8x512xf32>
    %322 = arith.addf %320, %321 : vector<8x512xf32>
    %323 = vector.extract_strided_slice %322 {offsets = [0, 0], sizes = [8, 128], strides = [1, 1]} : vector<8x512xf32> to vector<8x128xf32>
    %cst_100 = arith.constant 5.000000e-01 : f32
    %324 = vector.broadcast %cst_100 : f32 to vector<8x128xf32>
    %325 = arith.mulf %324, %323 : vector<8x128xf32>
    %326 = math.tanh %325 : vector<8x128xf32>
    %cst_101 = arith.constant 5.000000e-01 : f32
    %327 = vector.broadcast %cst_101 : f32 to vector<8x128xf32>
    %328 = arith.mulf %327, %326 : vector<8x128xf32>
    %cst_102 = arith.constant 5.000000e-01 : f32
    %329 = vector.broadcast %cst_102 : f32 to vector<8x128xf32>
    %330 = arith.addf %328, %329 : vector<8x128xf32>
    %331 = vector.extract_strided_slice %322 {offsets = [0, 128], sizes = [8, 128], strides = [1, 1]} : vector<8x512xf32> to vector<8x128xf32>
    %cst_103 = arith.constant 5.000000e-01 : f32
    %332 = vector.broadcast %cst_103 : f32 to vector<8x128xf32>
    %333 = arith.mulf %332, %331 : vector<8x128xf32>
    %334 = math.tanh %333 : vector<8x128xf32>
    %cst_104 = arith.constant 5.000000e-01 : f32
    %335 = vector.broadcast %cst_104 : f32 to vector<8x128xf32>
    %336 = arith.mulf %335, %334 : vector<8x128xf32>
    %cst_105 = arith.constant 5.000000e-01 : f32
    %337 = vector.broadcast %cst_105 : f32 to vector<8x128xf32>
    %338 = arith.addf %336, %337 : vector<8x128xf32>
    %339 = vector.extract_strided_slice %322 {offsets = [0, 256], sizes = [8, 128], strides = [1, 1]} : vector<8x512xf32> to vector<8x128xf32>
    %340 = math.tanh %339 : vector<8x128xf32>
    %341 = vector.extract_strided_slice %322 {offsets = [0, 384], sizes = [8, 128], strides = [1, 1]} : vector<8x512xf32> to vector<8x128xf32>
    %cst_106 = arith.constant 5.000000e-01 : f32
    %342 = vector.broadcast %cst_106 : f32 to vector<8x128xf32>
    %343 = arith.mulf %342, %341 : vector<8x128xf32>
    %344 = math.tanh %343 : vector<8x128xf32>
    %cst_107 = arith.constant 5.000000e-01 : f32
    %345 = vector.broadcast %cst_107 : f32 to vector<8x128xf32>
    %346 = arith.mulf %345, %344 : vector<8x128xf32>
    %cst_108 = arith.constant 5.000000e-01 : f32
    %347 = vector.broadcast %cst_108 : f32 to vector<8x128xf32>
    %348 = arith.addf %346, %347 : vector<8x128xf32>
    %349 = arith.mulf %338, %270 : vector<8x128xf32>
    %350 = arith.mulf %330, %340 : vector<8x128xf32>
    %351 = arith.addf %349, %350 : vector<8x128xf32>
    %352 = math.tanh %351 : vector<8x128xf32>
    %353 = arith.mulf %348, %352 : vector<8x128xf32>
    %354 = tpu.concatenate %266, %274 in 1 : vector<8x128xf32>, vector<8x128xf32> -> vector<8x256xf32>
    %355 = arith.truncf %354 : vector<8x256xf32> to vector<8x256xbf16>
    %cst_109 = arith.constant dense<0.000000e+00> : vector<8x512xf32>
    %356 = tpu.matmul %355, %10, %cst_109 {dimension_numbers = #tpu.dot_dimension_numbers<[1], [0], [0], [1], [0, 0, 1, 1], [], []>} : vector<8x256xbf16>, vector<256x512xbf16>, vector<8x512xf32> -> vector<8x512xf32>
    %357 = vector.broadcast %11 : vector<1x512xf32> to vector<8x512xf32>
    %358 = arith.addf %356, %357 : vector<8x512xf32>
    %359 = vector.extract_strided_slice %358 {offsets = [0, 0], sizes = [8, 128], strides = [1, 1]} : vector<8x512xf32> to vector<8x128xf32>
    %cst_110 = arith.constant 5.000000e-01 : f32
    %360 = vector.broadcast %cst_110 : f32 to vector<8x128xf32>
    %361 = arith.mulf %360, %359 : vector<8x128xf32>
    %362 = math.tanh %361 : vector<8x128xf32>
    %cst_111 = arith.constant 5.000000e-01 : f32
    %363 = vector.broadcast %cst_111 : f32 to vector<8x128xf32>
    %364 = arith.mulf %363, %362 : vector<8x128xf32>
    %cst_112 = arith.constant 5.000000e-01 : f32
    %365 = vector.broadcast %cst_112 : f32 to vector<8x128xf32>
    %366 = arith.addf %364, %365 : vector<8x128xf32>
    %367 = vector.extract_strided_slice %358 {offsets = [0, 128], sizes = [8, 128], strides = [1, 1]} : vector<8x512xf32> to vector<8x128xf32>
    %cst_113 = arith.constant 5.000000e-01 : f32
    %368 = vector.broadcast %cst_113 : f32 to vector<8x128xf32>
    %369 = arith.mulf %368, %367 : vector<8x128xf32>
    %370 = math.tanh %369 : vector<8x128xf32>
    %cst_114 = arith.constant 5.000000e-01 : f32
    %371 = vector.broadcast %cst_114 : f32 to vector<8x128xf32>
    %372 = arith.mulf %371, %370 : vector<8x128xf32>
    %cst_115 = arith.constant 5.000000e-01 : f32
    %373 = vector.broadcast %cst_115 : f32 to vector<8x128xf32>
    %374 = arith.addf %372, %373 : vector<8x128xf32>
    %375 = vector.extract_strided_slice %358 {offsets = [0, 256], sizes = [8, 128], strides = [1, 1]} : vector<8x512xf32> to vector<8x128xf32>
    %376 = math.tanh %375 : vector<8x128xf32>
    %377 = vector.extract_strided_slice %358 {offsets = [0, 384], sizes = [8, 128], strides = [1, 1]} : vector<8x512xf32> to vector<8x128xf32>
    %cst_116 = arith.constant 5.000000e-01 : f32
    %378 = vector.broadcast %cst_116 : f32 to vector<8x128xf32>
    %379 = arith.mulf %378, %377 : vector<8x128xf32>
    %380 = math.tanh %379 : vector<8x128xf32>
    %cst_117 = arith.constant 5.000000e-01 : f32
    %381 = vector.broadcast %cst_117 : f32 to vector<8x128xf32>
    %382 = arith.mulf %381, %380 : vector<8x128xf32>
    %cst_118 = arith.constant 5.000000e-01 : f32
    %383 = vector.broadcast %cst_118 : f32 to vector<8x128xf32>
    %384 = arith.addf %382, %383 : vector<8x128xf32>
    %385 = arith.mulf %374, %278 : vector<8x128xf32>
    %386 = arith.mulf %366, %376 : vector<8x128xf32>
    %387 = arith.addf %385, %386 : vector<8x128xf32>
    %388 = math.tanh %387 : vector<8x128xf32>
    %389 = arith.mulf %384, %388 : vector<8x128xf32>
    %c1_i32_119 = arith.constant 1 : i32
    %390 = arith.cmpi sge, %c2_i32_85, %c1_i32_119 : i32
    %391 = arith.extui %390 : i1 to i32
    %392 = arith.sitofp %391 : i32 to f32
    %c2_i32_120 = arith.constant 2 : i32
    %393 = arith.cmpi sge, %c2_i32_85, %c2_i32_120 : i32
    %394 = arith.extui %393 : i1 to i32
    %395 = arith.sitofp %394 : i32 to f32
    %396 = arith.subf %353, %266 : vector<8x128xf32>
    %397 = vector.broadcast %392 : f32 to vector<8x128xf32>
    %398 = arith.mulf %397, %396 : vector<8x128xf32>
    %399 = arith.addf %266, %398 : vector<8x128xf32>
    %400 = arith.subf %351, %270 : vector<8x128xf32>
    %401 = vector.broadcast %392 : f32 to vector<8x128xf32>
    %402 = arith.mulf %401, %400 : vector<8x128xf32>
    %403 = arith.addf %270, %402 : vector<8x128xf32>
    %404 = arith.subf %389, %274 : vector<8x128xf32>
    %405 = vector.broadcast %395 : f32 to vector<8x128xf32>
    %406 = arith.mulf %405, %404 : vector<8x128xf32>
    %407 = arith.addf %274, %406 : vector<8x128xf32>
    %408 = arith.subf %387, %278 : vector<8x128xf32>
    %409 = vector.broadcast %395 : f32 to vector<8x128xf32>
    %410 = arith.mulf %409, %408 : vector<8x128xf32>
    %411 = arith.addf %278, %410 : vector<8x128xf32>
    %c3_i32 = arith.constant 3 : i32
    %c7_i32_121 = arith.constant 7 : i32
    %412 = arith.minsi %c3_i32, %c7_i32_121 : i32
    %c8_i32_122 = arith.constant 8 : i32
    %413 = arith.muli %412, %c8_i32_122 : i32
    %414 = tpu.assume_multiple %413, 8 : i32
    %415 = arith.index_cast %414 : i32 to index
    %c0_123 = arith.constant 0 : index
    %416 = vector.load %arg13[%415, %c0_123] : memref<64x512xf32, #tpu.memory_space<vmem>>, vector<8x512xf32>
    %417 = arith.truncf %317 : vector<8x128xf32> to vector<8x128xbf16>
    %cst_124 = arith.constant dense<0.000000e+00> : vector<8x512xf32>
    %418 = tpu.matmul %417, %7, %cst_124 {dimension_numbers = #tpu.dot_dimension_numbers<[1], [0], [0], [1], [0, 0, 1, 1], [], []>} : vector<8x128xbf16>, vector<128x512xbf16>, vector<8x512xf32> -> vector<8x512xf32>
    %419 = arith.addf %416, %418 : vector<8x512xf32>
    %420 = vector.extract_strided_slice %419 {offsets = [0, 0], sizes = [8, 128], strides = [1, 1]} : vector<8x512xf32> to vector<8x128xf32>
    %cst_125 = arith.constant 5.000000e-01 : f32
    %421 = vector.broadcast %cst_125 : f32 to vector<8x128xf32>
    %422 = arith.mulf %421, %420 : vector<8x128xf32>
    %423 = math.tanh %422 : vector<8x128xf32>
    %cst_126 = arith.constant 5.000000e-01 : f32
    %424 = vector.broadcast %cst_126 : f32 to vector<8x128xf32>
    %425 = arith.mulf %424, %423 : vector<8x128xf32>
    %cst_127 = arith.constant 5.000000e-01 : f32
    %426 = vector.broadcast %cst_127 : f32 to vector<8x128xf32>
    %427 = arith.addf %425, %426 : vector<8x128xf32>
    %428 = vector.extract_strided_slice %419 {offsets = [0, 128], sizes = [8, 128], strides = [1, 1]} : vector<8x512xf32> to vector<8x128xf32>
    %cst_128 = arith.constant 5.000000e-01 : f32
    %429 = vector.broadcast %cst_128 : f32 to vector<8x128xf32>
    %430 = arith.mulf %429, %428 : vector<8x128xf32>
    %431 = math.tanh %430 : vector<8x128xf32>
    %cst_129 = arith.constant 5.000000e-01 : f32
    %432 = vector.broadcast %cst_129 : f32 to vector<8x128xf32>
    %433 = arith.mulf %432, %431 : vector<8x128xf32>
    %cst_130 = arith.constant 5.000000e-01 : f32
    %434 = vector.broadcast %cst_130 : f32 to vector<8x128xf32>
    %435 = arith.addf %433, %434 : vector<8x128xf32>
    %436 = vector.extract_strided_slice %419 {offsets = [0, 256], sizes = [8, 128], strides = [1, 1]} : vector<8x512xf32> to vector<8x128xf32>
    %437 = math.tanh %436 : vector<8x128xf32>
    %438 = vector.extract_strided_slice %419 {offsets = [0, 384], sizes = [8, 128], strides = [1, 1]} : vector<8x512xf32> to vector<8x128xf32>
    %cst_131 = arith.constant 5.000000e-01 : f32
    %439 = vector.broadcast %cst_131 : f32 to vector<8x128xf32>
    %440 = arith.mulf %439, %438 : vector<8x128xf32>
    %441 = math.tanh %440 : vector<8x128xf32>
    %cst_132 = arith.constant 5.000000e-01 : f32
    %442 = vector.broadcast %cst_132 : f32 to vector<8x128xf32>
    %443 = arith.mulf %442, %441 : vector<8x128xf32>
    %cst_133 = arith.constant 5.000000e-01 : f32
    %444 = vector.broadcast %cst_133 : f32 to vector<8x128xf32>
    %445 = arith.addf %443, %444 : vector<8x128xf32>
    %446 = arith.mulf %435, %315 : vector<8x128xf32>
    %447 = arith.mulf %427, %437 : vector<8x128xf32>
    %448 = arith.addf %446, %447 : vector<8x128xf32>
    %449 = math.tanh %448 : vector<8x128xf32>
    %450 = arith.mulf %445, %449 : vector<8x128xf32>
    %451 = tpu.concatenate %317, %399 in 1 : vector<8x128xf32>, vector<8x128xf32> -> vector<8x256xf32>
    %452 = arith.truncf %451 : vector<8x256xf32> to vector<8x256xbf16>
    %cst_134 = arith.constant dense<0.000000e+00> : vector<8x512xf32>
    %453 = tpu.matmul %452, %8, %cst_134 {dimension_numbers = #tpu.dot_dimension_numbers<[1], [0], [0], [1], [0, 0, 1, 1], [], []>} : vector<8x256xbf16>, vector<256x512xbf16>, vector<8x512xf32> -> vector<8x512xf32>
    %454 = vector.broadcast %9 : vector<1x512xf32> to vector<8x512xf32>
    %455 = arith.addf %453, %454 : vector<8x512xf32>
    %456 = vector.extract_strided_slice %455 {offsets = [0, 0], sizes = [8, 128], strides = [1, 1]} : vector<8x512xf32> to vector<8x128xf32>
    %cst_135 = arith.constant 5.000000e-01 : f32
    %457 = vector.broadcast %cst_135 : f32 to vector<8x128xf32>
    %458 = arith.mulf %457, %456 : vector<8x128xf32>
    %459 = math.tanh %458 : vector<8x128xf32>
    %cst_136 = arith.constant 5.000000e-01 : f32
    %460 = vector.broadcast %cst_136 : f32 to vector<8x128xf32>
    %461 = arith.mulf %460, %459 : vector<8x128xf32>
    %cst_137 = arith.constant 5.000000e-01 : f32
    %462 = vector.broadcast %cst_137 : f32 to vector<8x128xf32>
    %463 = arith.addf %461, %462 : vector<8x128xf32>
    %464 = vector.extract_strided_slice %455 {offsets = [0, 128], sizes = [8, 128], strides = [1, 1]} : vector<8x512xf32> to vector<8x128xf32>
    %cst_138 = arith.constant 5.000000e-01 : f32
    %465 = vector.broadcast %cst_138 : f32 to vector<8x128xf32>
    %466 = arith.mulf %465, %464 : vector<8x128xf32>
    %467 = math.tanh %466 : vector<8x128xf32>
    %cst_139 = arith.constant 5.000000e-01 : f32
    %468 = vector.broadcast %cst_139 : f32 to vector<8x128xf32>
    %469 = arith.mulf %468, %467 : vector<8x128xf32>
    %cst_140 = arith.constant 5.000000e-01 : f32
    %470 = vector.broadcast %cst_140 : f32 to vector<8x128xf32>
    %471 = arith.addf %469, %470 : vector<8x128xf32>
    %472 = vector.extract_strided_slice %455 {offsets = [0, 256], sizes = [8, 128], strides = [1, 1]} : vector<8x512xf32> to vector<8x128xf32>
    %473 = math.tanh %472 : vector<8x128xf32>
    %474 = vector.extract_strided_slice %455 {offsets = [0, 384], sizes = [8, 128], strides = [1, 1]} : vector<8x512xf32> to vector<8x128xf32>
    %cst_141 = arith.constant 5.000000e-01 : f32
    %475 = vector.broadcast %cst_141 : f32 to vector<8x128xf32>
    %476 = arith.mulf %475, %474 : vector<8x128xf32>
    %477 = math.tanh %476 : vector<8x128xf32>
    %cst_142 = arith.constant 5.000000e-01 : f32
    %478 = vector.broadcast %cst_142 : f32 to vector<8x128xf32>
    %479 = arith.mulf %478, %477 : vector<8x128xf32>
    %cst_143 = arith.constant 5.000000e-01 : f32
    %480 = vector.broadcast %cst_143 : f32 to vector<8x128xf32>
    %481 = arith.addf %479, %480 : vector<8x128xf32>
    %482 = arith.mulf %471, %403 : vector<8x128xf32>
    %483 = arith.mulf %463, %473 : vector<8x128xf32>
    %484 = arith.addf %482, %483 : vector<8x128xf32>
    %485 = math.tanh %484 : vector<8x128xf32>
    %486 = arith.mulf %481, %485 : vector<8x128xf32>
    %487 = tpu.concatenate %399, %407 in 1 : vector<8x128xf32>, vector<8x128xf32> -> vector<8x256xf32>
    %488 = arith.truncf %487 : vector<8x256xf32> to vector<8x256xbf16>
    %cst_144 = arith.constant dense<0.000000e+00> : vector<8x512xf32>
    %489 = tpu.matmul %488, %10, %cst_144 {dimension_numbers = #tpu.dot_dimension_numbers<[1], [0], [0], [1], [0, 0, 1, 1], [], []>} : vector<8x256xbf16>, vector<256x512xbf16>, vector<8x512xf32> -> vector<8x512xf32>
    %490 = vector.broadcast %11 : vector<1x512xf32> to vector<8x512xf32>
    %491 = arith.addf %489, %490 : vector<8x512xf32>
    %492 = vector.extract_strided_slice %491 {offsets = [0, 0], sizes = [8, 128], strides = [1, 1]} : vector<8x512xf32> to vector<8x128xf32>
    %cst_145 = arith.constant 5.000000e-01 : f32
    %493 = vector.broadcast %cst_145 : f32 to vector<8x128xf32>
    %494 = arith.mulf %493, %492 : vector<8x128xf32>
    %495 = math.tanh %494 : vector<8x128xf32>
    %cst_146 = arith.constant 5.000000e-01 : f32
    %496 = vector.broadcast %cst_146 : f32 to vector<8x128xf32>
    %497 = arith.mulf %496, %495 : vector<8x128xf32>
    %cst_147 = arith.constant 5.000000e-01 : f32
    %498 = vector.broadcast %cst_147 : f32 to vector<8x128xf32>
    %499 = arith.addf %497, %498 : vector<8x128xf32>
    %500 = vector.extract_strided_slice %491 {offsets = [0, 128], sizes = [8, 128], strides = [1, 1]} : vector<8x512xf32> to vector<8x128xf32>
    %cst_148 = arith.constant 5.000000e-01 : f32
    %501 = vector.broadcast %cst_148 : f32 to vector<8x128xf32>
    %502 = arith.mulf %501, %500 : vector<8x128xf32>
    %503 = math.tanh %502 : vector<8x128xf32>
    %cst_149 = arith.constant 5.000000e-01 : f32
    %504 = vector.broadcast %cst_149 : f32 to vector<8x128xf32>
    %505 = arith.mulf %504, %503 : vector<8x128xf32>
    %cst_150 = arith.constant 5.000000e-01 : f32
    %506 = vector.broadcast %cst_150 : f32 to vector<8x128xf32>
    %507 = arith.addf %505, %506 : vector<8x128xf32>
    %508 = vector.extract_strided_slice %491 {offsets = [0, 256], sizes = [8, 128], strides = [1, 1]} : vector<8x512xf32> to vector<8x128xf32>
    %509 = math.tanh %508 : vector<8x128xf32>
    %510 = vector.extract_strided_slice %491 {offsets = [0, 384], sizes = [8, 128], strides = [1, 1]} : vector<8x512xf32> to vector<8x128xf32>
    %cst_151 = arith.constant 5.000000e-01 : f32
    %511 = vector.broadcast %cst_151 : f32 to vector<8x128xf32>
    %512 = arith.mulf %511, %510 : vector<8x128xf32>
    %513 = math.tanh %512 : vector<8x128xf32>
    %cst_152 = arith.constant 5.000000e-01 : f32
    %514 = vector.broadcast %cst_152 : f32 to vector<8x128xf32>
    %515 = arith.mulf %514, %513 : vector<8x128xf32>
    %cst_153 = arith.constant 5.000000e-01 : f32
    %516 = vector.broadcast %cst_153 : f32 to vector<8x128xf32>
    %517 = arith.addf %515, %516 : vector<8x128xf32>
    %518 = arith.mulf %507, %411 : vector<8x128xf32>
    %519 = arith.mulf %499, %509 : vector<8x128xf32>
    %520 = arith.addf %518, %519 : vector<8x128xf32>
    %521 = math.tanh %520 : vector<8x128xf32>
    %522 = arith.mulf %517, %521 : vector<8x128xf32>
    %c1_i32_154 = arith.constant 1 : i32
    %523 = arith.cmpi sge, %c3_i32, %c1_i32_154 : i32
    %524 = arith.extui %523 : i1 to i32
    %525 = arith.sitofp %524 : i32 to f32
    %c2_i32_155 = arith.constant 2 : i32
    %526 = arith.cmpi sge, %c3_i32, %c2_i32_155 : i32
    %527 = arith.extui %526 : i1 to i32
    %528 = arith.sitofp %527 : i32 to f32
    %529 = arith.subf %486, %399 : vector<8x128xf32>
    %530 = vector.broadcast %525 : f32 to vector<8x128xf32>
    %531 = arith.mulf %530, %529 : vector<8x128xf32>
    %532 = arith.addf %399, %531 : vector<8x128xf32>
    %533 = arith.subf %484, %403 : vector<8x128xf32>
    %534 = vector.broadcast %525 : f32 to vector<8x128xf32>
    %535 = arith.mulf %534, %533 : vector<8x128xf32>
    %536 = arith.addf %403, %535 : vector<8x128xf32>
    %537 = arith.subf %522, %407 : vector<8x128xf32>
    %538 = vector.broadcast %528 : f32 to vector<8x128xf32>
    %539 = arith.mulf %538, %537 : vector<8x128xf32>
    %540 = arith.addf %407, %539 : vector<8x128xf32>
    %541 = arith.subf %520, %411 : vector<8x128xf32>
    %542 = vector.broadcast %528 : f32 to vector<8x128xf32>
    %543 = arith.mulf %542, %541 : vector<8x128xf32>
    %544 = arith.addf %411, %543 : vector<8x128xf32>
    %c4_i32 = arith.constant 4 : i32
    %c7_i32_156 = arith.constant 7 : i32
    %545 = arith.minsi %c4_i32, %c7_i32_156 : i32
    %c8_i32_157 = arith.constant 8 : i32
    %546 = arith.muli %545, %c8_i32_157 : i32
    %547 = tpu.assume_multiple %546, 8 : i32
    %548 = arith.index_cast %547 : i32 to index
    %c0_158 = arith.constant 0 : index
    %549 = vector.load %arg13[%548, %c0_158] : memref<64x512xf32, #tpu.memory_space<vmem>>, vector<8x512xf32>
    %550 = arith.truncf %450 : vector<8x128xf32> to vector<8x128xbf16>
    %cst_159 = arith.constant dense<0.000000e+00> : vector<8x512xf32>
    %551 = tpu.matmul %550, %7, %cst_159 {dimension_numbers = #tpu.dot_dimension_numbers<[1], [0], [0], [1], [0, 0, 1, 1], [], []>} : vector<8x128xbf16>, vector<128x512xbf16>, vector<8x512xf32> -> vector<8x512xf32>
    %552 = arith.addf %549, %551 : vector<8x512xf32>
    %553 = vector.extract_strided_slice %552 {offsets = [0, 0], sizes = [8, 128], strides = [1, 1]} : vector<8x512xf32> to vector<8x128xf32>
    %cst_160 = arith.constant 5.000000e-01 : f32
    %554 = vector.broadcast %cst_160 : f32 to vector<8x128xf32>
    %555 = arith.mulf %554, %553 : vector<8x128xf32>
    %556 = math.tanh %555 : vector<8x128xf32>
    %cst_161 = arith.constant 5.000000e-01 : f32
    %557 = vector.broadcast %cst_161 : f32 to vector<8x128xf32>
    %558 = arith.mulf %557, %556 : vector<8x128xf32>
    %cst_162 = arith.constant 5.000000e-01 : f32
    %559 = vector.broadcast %cst_162 : f32 to vector<8x128xf32>
    %560 = arith.addf %558, %559 : vector<8x128xf32>
    %561 = vector.extract_strided_slice %552 {offsets = [0, 128], sizes = [8, 128], strides = [1, 1]} : vector<8x512xf32> to vector<8x128xf32>
    %cst_163 = arith.constant 5.000000e-01 : f32
    %562 = vector.broadcast %cst_163 : f32 to vector<8x128xf32>
    %563 = arith.mulf %562, %561 : vector<8x128xf32>
    %564 = math.tanh %563 : vector<8x128xf32>
    %cst_164 = arith.constant 5.000000e-01 : f32
    %565 = vector.broadcast %cst_164 : f32 to vector<8x128xf32>
    %566 = arith.mulf %565, %564 : vector<8x128xf32>
    %cst_165 = arith.constant 5.000000e-01 : f32
    %567 = vector.broadcast %cst_165 : f32 to vector<8x128xf32>
    %568 = arith.addf %566, %567 : vector<8x128xf32>
    %569 = vector.extract_strided_slice %552 {offsets = [0, 256], sizes = [8, 128], strides = [1, 1]} : vector<8x512xf32> to vector<8x128xf32>
    %570 = math.tanh %569 : vector<8x128xf32>
    %571 = vector.extract_strided_slice %552 {offsets = [0, 384], sizes = [8, 128], strides = [1, 1]} : vector<8x512xf32> to vector<8x128xf32>
    %cst_166 = arith.constant 5.000000e-01 : f32
    %572 = vector.broadcast %cst_166 : f32 to vector<8x128xf32>
    %573 = arith.mulf %572, %571 : vector<8x128xf32>
    %574 = math.tanh %573 : vector<8x128xf32>
    %cst_167 = arith.constant 5.000000e-01 : f32
    %575 = vector.broadcast %cst_167 : f32 to vector<8x128xf32>
    %576 = arith.mulf %575, %574 : vector<8x128xf32>
    %cst_168 = arith.constant 5.000000e-01 : f32
    %577 = vector.broadcast %cst_168 : f32 to vector<8x128xf32>
    %578 = arith.addf %576, %577 : vector<8x128xf32>
    %579 = arith.mulf %568, %448 : vector<8x128xf32>
    %580 = arith.mulf %560, %570 : vector<8x128xf32>
    %581 = arith.addf %579, %580 : vector<8x128xf32>
    %582 = math.tanh %581 : vector<8x128xf32>
    %583 = arith.mulf %578, %582 : vector<8x128xf32>
    %584 = tpu.concatenate %450, %532 in 1 : vector<8x128xf32>, vector<8x128xf32> -> vector<8x256xf32>
    %585 = arith.truncf %584 : vector<8x256xf32> to vector<8x256xbf16>
    %cst_169 = arith.constant dense<0.000000e+00> : vector<8x512xf32>
    %586 = tpu.matmul %585, %8, %cst_169 {dimension_numbers = #tpu.dot_dimension_numbers<[1], [0], [0], [1], [0, 0, 1, 1], [], []>} : vector<8x256xbf16>, vector<256x512xbf16>, vector<8x512xf32> -> vector<8x512xf32>
    %587 = vector.broadcast %9 : vector<1x512xf32> to vector<8x512xf32>
    %588 = arith.addf %586, %587 : vector<8x512xf32>
    %589 = vector.extract_strided_slice %588 {offsets = [0, 0], sizes = [8, 128], strides = [1, 1]} : vector<8x512xf32> to vector<8x128xf32>
    %cst_170 = arith.constant 5.000000e-01 : f32
    %590 = vector.broadcast %cst_170 : f32 to vector<8x128xf32>
    %591 = arith.mulf %590, %589 : vector<8x128xf32>
    %592 = math.tanh %591 : vector<8x128xf32>
    %cst_171 = arith.constant 5.000000e-01 : f32
    %593 = vector.broadcast %cst_171 : f32 to vector<8x128xf32>
    %594 = arith.mulf %593, %592 : vector<8x128xf32>
    %cst_172 = arith.constant 5.000000e-01 : f32
    %595 = vector.broadcast %cst_172 : f32 to vector<8x128xf32>
    %596 = arith.addf %594, %595 : vector<8x128xf32>
    %597 = vector.extract_strided_slice %588 {offsets = [0, 128], sizes = [8, 128], strides = [1, 1]} : vector<8x512xf32> to vector<8x128xf32>
    %cst_173 = arith.constant 5.000000e-01 : f32
    %598 = vector.broadcast %cst_173 : f32 to vector<8x128xf32>
    %599 = arith.mulf %598, %597 : vector<8x128xf32>
    %600 = math.tanh %599 : vector<8x128xf32>
    %cst_174 = arith.constant 5.000000e-01 : f32
    %601 = vector.broadcast %cst_174 : f32 to vector<8x128xf32>
    %602 = arith.mulf %601, %600 : vector<8x128xf32>
    %cst_175 = arith.constant 5.000000e-01 : f32
    %603 = vector.broadcast %cst_175 : f32 to vector<8x128xf32>
    %604 = arith.addf %602, %603 : vector<8x128xf32>
    %605 = vector.extract_strided_slice %588 {offsets = [0, 256], sizes = [8, 128], strides = [1, 1]} : vector<8x512xf32> to vector<8x128xf32>
    %606 = math.tanh %605 : vector<8x128xf32>
    %607 = vector.extract_strided_slice %588 {offsets = [0, 384], sizes = [8, 128], strides = [1, 1]} : vector<8x512xf32> to vector<8x128xf32>
    %cst_176 = arith.constant 5.000000e-01 : f32
    %608 = vector.broadcast %cst_176 : f32 to vector<8x128xf32>
    %609 = arith.mulf %608, %607 : vector<8x128xf32>
    %610 = math.tanh %609 : vector<8x128xf32>
    %cst_177 = arith.constant 5.000000e-01 : f32
    %611 = vector.broadcast %cst_177 : f32 to vector<8x128xf32>
    %612 = arith.mulf %611, %610 : vector<8x128xf32>
    %cst_178 = arith.constant 5.000000e-01 : f32
    %613 = vector.broadcast %cst_178 : f32 to vector<8x128xf32>
    %614 = arith.addf %612, %613 : vector<8x128xf32>
    %615 = arith.mulf %604, %536 : vector<8x128xf32>
    %616 = arith.mulf %596, %606 : vector<8x128xf32>
    %617 = arith.addf %615, %616 : vector<8x128xf32>
    %618 = math.tanh %617 : vector<8x128xf32>
    %619 = arith.mulf %614, %618 : vector<8x128xf32>
    %620 = tpu.concatenate %532, %540 in 1 : vector<8x128xf32>, vector<8x128xf32> -> vector<8x256xf32>
    %621 = arith.truncf %620 : vector<8x256xf32> to vector<8x256xbf16>
    %cst_179 = arith.constant dense<0.000000e+00> : vector<8x512xf32>
    %622 = tpu.matmul %621, %10, %cst_179 {dimension_numbers = #tpu.dot_dimension_numbers<[1], [0], [0], [1], [0, 0, 1, 1], [], []>} : vector<8x256xbf16>, vector<256x512xbf16>, vector<8x512xf32> -> vector<8x512xf32>
    %623 = vector.broadcast %11 : vector<1x512xf32> to vector<8x512xf32>
    %624 = arith.addf %622, %623 : vector<8x512xf32>
    %625 = vector.extract_strided_slice %624 {offsets = [0, 0], sizes = [8, 128], strides = [1, 1]} : vector<8x512xf32> to vector<8x128xf32>
    %cst_180 = arith.constant 5.000000e-01 : f32
    %626 = vector.broadcast %cst_180 : f32 to vector<8x128xf32>
    %627 = arith.mulf %626, %625 : vector<8x128xf32>
    %628 = math.tanh %627 : vector<8x128xf32>
    %cst_181 = arith.constant 5.000000e-01 : f32
    %629 = vector.broadcast %cst_181 : f32 to vector<8x128xf32>
    %630 = arith.mulf %629, %628 : vector<8x128xf32>
    %cst_182 = arith.constant 5.000000e-01 : f32
    %631 = vector.broadcast %cst_182 : f32 to vector<8x128xf32>
    %632 = arith.addf %630, %631 : vector<8x128xf32>
    %633 = vector.extract_strided_slice %624 {offsets = [0, 128], sizes = [8, 128], strides = [1, 1]} : vector<8x512xf32> to vector<8x128xf32>
    %cst_183 = arith.constant 5.000000e-01 : f32
    %634 = vector.broadcast %cst_183 : f32 to vector<8x128xf32>
    %635 = arith.mulf %634, %633 : vector<8x128xf32>
    %636 = math.tanh %635 : vector<8x128xf32>
    %cst_184 = arith.constant 5.000000e-01 : f32
    %637 = vector.broadcast %cst_184 : f32 to vector<8x128xf32>
    %638 = arith.mulf %637, %636 : vector<8x128xf32>
    %cst_185 = arith.constant 5.000000e-01 : f32
    %639 = vector.broadcast %cst_185 : f32 to vector<8x128xf32>
    %640 = arith.addf %638, %639 : vector<8x128xf32>
    %641 = vector.extract_strided_slice %624 {offsets = [0, 256], sizes = [8, 128], strides = [1, 1]} : vector<8x512xf32> to vector<8x128xf32>
    %642 = math.tanh %641 : vector<8x128xf32>
    %643 = vector.extract_strided_slice %624 {offsets = [0, 384], sizes = [8, 128], strides = [1, 1]} : vector<8x512xf32> to vector<8x128xf32>
    %cst_186 = arith.constant 5.000000e-01 : f32
    %644 = vector.broadcast %cst_186 : f32 to vector<8x128xf32>
    %645 = arith.mulf %644, %643 : vector<8x128xf32>
    %646 = math.tanh %645 : vector<8x128xf32>
    %cst_187 = arith.constant 5.000000e-01 : f32
    %647 = vector.broadcast %cst_187 : f32 to vector<8x128xf32>
    %648 = arith.mulf %647, %646 : vector<8x128xf32>
    %cst_188 = arith.constant 5.000000e-01 : f32
    %649 = vector.broadcast %cst_188 : f32 to vector<8x128xf32>
    %650 = arith.addf %648, %649 : vector<8x128xf32>
    %651 = arith.mulf %640, %544 : vector<8x128xf32>
    %652 = arith.mulf %632, %642 : vector<8x128xf32>
    %653 = arith.addf %651, %652 : vector<8x128xf32>
    %654 = math.tanh %653 : vector<8x128xf32>
    %655 = arith.mulf %650, %654 : vector<8x128xf32>
    %c1_i32_189 = arith.constant 1 : i32
    %656 = arith.cmpi sge, %c4_i32, %c1_i32_189 : i32
    %657 = arith.extui %656 : i1 to i32
    %658 = arith.sitofp %657 : i32 to f32
    %c2_i32_190 = arith.constant 2 : i32
    %659 = arith.cmpi sge, %c4_i32, %c2_i32_190 : i32
    %660 = arith.extui %659 : i1 to i32
    %661 = arith.sitofp %660 : i32 to f32
    %662 = arith.subf %619, %532 : vector<8x128xf32>
    %663 = vector.broadcast %658 : f32 to vector<8x128xf32>
    %664 = arith.mulf %663, %662 : vector<8x128xf32>
    %665 = arith.addf %532, %664 : vector<8x128xf32>
    %666 = arith.subf %617, %536 : vector<8x128xf32>
    %667 = vector.broadcast %658 : f32 to vector<8x128xf32>
    %668 = arith.mulf %667, %666 : vector<8x128xf32>
    %669 = arith.addf %536, %668 : vector<8x128xf32>
    %670 = arith.subf %655, %540 : vector<8x128xf32>
    %671 = vector.broadcast %661 : f32 to vector<8x128xf32>
    %672 = arith.mulf %671, %670 : vector<8x128xf32>
    %673 = arith.addf %540, %672 : vector<8x128xf32>
    %674 = arith.subf %653, %544 : vector<8x128xf32>
    %675 = vector.broadcast %661 : f32 to vector<8x128xf32>
    %676 = arith.mulf %675, %674 : vector<8x128xf32>
    %677 = arith.addf %544, %676 : vector<8x128xf32>
    %c5_i32 = arith.constant 5 : i32
    %c7_i32_191 = arith.constant 7 : i32
    %678 = arith.minsi %c5_i32, %c7_i32_191 : i32
    %c8_i32_192 = arith.constant 8 : i32
    %679 = arith.muli %678, %c8_i32_192 : i32
    %680 = tpu.assume_multiple %679, 8 : i32
    %681 = arith.index_cast %680 : i32 to index
    %c0_193 = arith.constant 0 : index
    %682 = vector.load %arg13[%681, %c0_193] : memref<64x512xf32, #tpu.memory_space<vmem>>, vector<8x512xf32>
    %683 = arith.truncf %583 : vector<8x128xf32> to vector<8x128xbf16>
    %cst_194 = arith.constant dense<0.000000e+00> : vector<8x512xf32>
    %684 = tpu.matmul %683, %7, %cst_194 {dimension_numbers = #tpu.dot_dimension_numbers<[1], [0], [0], [1], [0, 0, 1, 1], [], []>} : vector<8x128xbf16>, vector<128x512xbf16>, vector<8x512xf32> -> vector<8x512xf32>
    %685 = arith.addf %682, %684 : vector<8x512xf32>
    %686 = vector.extract_strided_slice %685 {offsets = [0, 0], sizes = [8, 128], strides = [1, 1]} : vector<8x512xf32> to vector<8x128xf32>
    %cst_195 = arith.constant 5.000000e-01 : f32
    %687 = vector.broadcast %cst_195 : f32 to vector<8x128xf32>
    %688 = arith.mulf %687, %686 : vector<8x128xf32>
    %689 = math.tanh %688 : vector<8x128xf32>
    %cst_196 = arith.constant 5.000000e-01 : f32
    %690 = vector.broadcast %cst_196 : f32 to vector<8x128xf32>
    %691 = arith.mulf %690, %689 : vector<8x128xf32>
    %cst_197 = arith.constant 5.000000e-01 : f32
    %692 = vector.broadcast %cst_197 : f32 to vector<8x128xf32>
    %693 = arith.addf %691, %692 : vector<8x128xf32>
    %694 = vector.extract_strided_slice %685 {offsets = [0, 128], sizes = [8, 128], strides = [1, 1]} : vector<8x512xf32> to vector<8x128xf32>
    %cst_198 = arith.constant 5.000000e-01 : f32
    %695 = vector.broadcast %cst_198 : f32 to vector<8x128xf32>
    %696 = arith.mulf %695, %694 : vector<8x128xf32>
    %697 = math.tanh %696 : vector<8x128xf32>
    %cst_199 = arith.constant 5.000000e-01 : f32
    %698 = vector.broadcast %cst_199 : f32 to vector<8x128xf32>
    %699 = arith.mulf %698, %697 : vector<8x128xf32>
    %cst_200 = arith.constant 5.000000e-01 : f32
    %700 = vector.broadcast %cst_200 : f32 to vector<8x128xf32>
    %701 = arith.addf %699, %700 : vector<8x128xf32>
    %702 = vector.extract_strided_slice %685 {offsets = [0, 256], sizes = [8, 128], strides = [1, 1]} : vector<8x512xf32> to vector<8x128xf32>
    %703 = math.tanh %702 : vector<8x128xf32>
    %704 = vector.extract_strided_slice %685 {offsets = [0, 384], sizes = [8, 128], strides = [1, 1]} : vector<8x512xf32> to vector<8x128xf32>
    %cst_201 = arith.constant 5.000000e-01 : f32
    %705 = vector.broadcast %cst_201 : f32 to vector<8x128xf32>
    %706 = arith.mulf %705, %704 : vector<8x128xf32>
    %707 = math.tanh %706 : vector<8x128xf32>
    %cst_202 = arith.constant 5.000000e-01 : f32
    %708 = vector.broadcast %cst_202 : f32 to vector<8x128xf32>
    %709 = arith.mulf %708, %707 : vector<8x128xf32>
    %cst_203 = arith.constant 5.000000e-01 : f32
    %710 = vector.broadcast %cst_203 : f32 to vector<8x128xf32>
    %711 = arith.addf %709, %710 : vector<8x128xf32>
    %712 = arith.mulf %701, %581 : vector<8x128xf32>
    %713 = arith.mulf %693, %703 : vector<8x128xf32>
    %714 = arith.addf %712, %713 : vector<8x128xf32>
    %715 = math.tanh %714 : vector<8x128xf32>
    %716 = arith.mulf %711, %715 : vector<8x128xf32>
    %717 = tpu.concatenate %583, %665 in 1 : vector<8x128xf32>, vector<8x128xf32> -> vector<8x256xf32>
    %718 = arith.truncf %717 : vector<8x256xf32> to vector<8x256xbf16>
    %cst_204 = arith.constant dense<0.000000e+00> : vector<8x512xf32>
    %719 = tpu.matmul %718, %8, %cst_204 {dimension_numbers = #tpu.dot_dimension_numbers<[1], [0], [0], [1], [0, 0, 1, 1], [], []>} : vector<8x256xbf16>, vector<256x512xbf16>, vector<8x512xf32> -> vector<8x512xf32>
    %720 = vector.broadcast %9 : vector<1x512xf32> to vector<8x512xf32>
    %721 = arith.addf %719, %720 : vector<8x512xf32>
    %722 = vector.extract_strided_slice %721 {offsets = [0, 0], sizes = [8, 128], strides = [1, 1]} : vector<8x512xf32> to vector<8x128xf32>
    %cst_205 = arith.constant 5.000000e-01 : f32
    %723 = vector.broadcast %cst_205 : f32 to vector<8x128xf32>
    %724 = arith.mulf %723, %722 : vector<8x128xf32>
    %725 = math.tanh %724 : vector<8x128xf32>
    %cst_206 = arith.constant 5.000000e-01 : f32
    %726 = vector.broadcast %cst_206 : f32 to vector<8x128xf32>
    %727 = arith.mulf %726, %725 : vector<8x128xf32>
    %cst_207 = arith.constant 5.000000e-01 : f32
    %728 = vector.broadcast %cst_207 : f32 to vector<8x128xf32>
    %729 = arith.addf %727, %728 : vector<8x128xf32>
    %730 = vector.extract_strided_slice %721 {offsets = [0, 128], sizes = [8, 128], strides = [1, 1]} : vector<8x512xf32> to vector<8x128xf32>
    %cst_208 = arith.constant 5.000000e-01 : f32
    %731 = vector.broadcast %cst_208 : f32 to vector<8x128xf32>
    %732 = arith.mulf %731, %730 : vector<8x128xf32>
    %733 = math.tanh %732 : vector<8x128xf32>
    %cst_209 = arith.constant 5.000000e-01 : f32
    %734 = vector.broadcast %cst_209 : f32 to vector<8x128xf32>
    %735 = arith.mulf %734, %733 : vector<8x128xf32>
    %cst_210 = arith.constant 5.000000e-01 : f32
    %736 = vector.broadcast %cst_210 : f32 to vector<8x128xf32>
    %737 = arith.addf %735, %736 : vector<8x128xf32>
    %738 = vector.extract_strided_slice %721 {offsets = [0, 256], sizes = [8, 128], strides = [1, 1]} : vector<8x512xf32> to vector<8x128xf32>
    %739 = math.tanh %738 : vector<8x128xf32>
    %740 = vector.extract_strided_slice %721 {offsets = [0, 384], sizes = [8, 128], strides = [1, 1]} : vector<8x512xf32> to vector<8x128xf32>
    %cst_211 = arith.constant 5.000000e-01 : f32
    %741 = vector.broadcast %cst_211 : f32 to vector<8x128xf32>
    %742 = arith.mulf %741, %740 : vector<8x128xf32>
    %743 = math.tanh %742 : vector<8x128xf32>
    %cst_212 = arith.constant 5.000000e-01 : f32
    %744 = vector.broadcast %cst_212 : f32 to vector<8x128xf32>
    %745 = arith.mulf %744, %743 : vector<8x128xf32>
    %cst_213 = arith.constant 5.000000e-01 : f32
    %746 = vector.broadcast %cst_213 : f32 to vector<8x128xf32>
    %747 = arith.addf %745, %746 : vector<8x128xf32>
    %748 = arith.mulf %737, %669 : vector<8x128xf32>
    %749 = arith.mulf %729, %739 : vector<8x128xf32>
    %750 = arith.addf %748, %749 : vector<8x128xf32>
    %751 = math.tanh %750 : vector<8x128xf32>
    %752 = arith.mulf %747, %751 : vector<8x128xf32>
    %753 = tpu.concatenate %665, %673 in 1 : vector<8x128xf32>, vector<8x128xf32> -> vector<8x256xf32>
    %754 = arith.truncf %753 : vector<8x256xf32> to vector<8x256xbf16>
    %cst_214 = arith.constant dense<0.000000e+00> : vector<8x512xf32>
    %755 = tpu.matmul %754, %10, %cst_214 {dimension_numbers = #tpu.dot_dimension_numbers<[1], [0], [0], [1], [0, 0, 1, 1], [], []>} : vector<8x256xbf16>, vector<256x512xbf16>, vector<8x512xf32> -> vector<8x512xf32>
    %756 = vector.broadcast %11 : vector<1x512xf32> to vector<8x512xf32>
    %757 = arith.addf %755, %756 : vector<8x512xf32>
    %758 = vector.extract_strided_slice %757 {offsets = [0, 0], sizes = [8, 128], strides = [1, 1]} : vector<8x512xf32> to vector<8x128xf32>
    %cst_215 = arith.constant 5.000000e-01 : f32
    %759 = vector.broadcast %cst_215 : f32 to vector<8x128xf32>
    %760 = arith.mulf %759, %758 : vector<8x128xf32>
    %761 = math.tanh %760 : vector<8x128xf32>
    %cst_216 = arith.constant 5.000000e-01 : f32
    %762 = vector.broadcast %cst_216 : f32 to vector<8x128xf32>
    %763 = arith.mulf %762, %761 : vector<8x128xf32>
    %cst_217 = arith.constant 5.000000e-01 : f32
    %764 = vector.broadcast %cst_217 : f32 to vector<8x128xf32>
    %765 = arith.addf %763, %764 : vector<8x128xf32>
    %766 = vector.extract_strided_slice %757 {offsets = [0, 128], sizes = [8, 128], strides = [1, 1]} : vector<8x512xf32> to vector<8x128xf32>
    %cst_218 = arith.constant 5.000000e-01 : f32
    %767 = vector.broadcast %cst_218 : f32 to vector<8x128xf32>
    %768 = arith.mulf %767, %766 : vector<8x128xf32>
    %769 = math.tanh %768 : vector<8x128xf32>
    %cst_219 = arith.constant 5.000000e-01 : f32
    %770 = vector.broadcast %cst_219 : f32 to vector<8x128xf32>
    %771 = arith.mulf %770, %769 : vector<8x128xf32>
    %cst_220 = arith.constant 5.000000e-01 : f32
    %772 = vector.broadcast %cst_220 : f32 to vector<8x128xf32>
    %773 = arith.addf %771, %772 : vector<8x128xf32>
    %774 = vector.extract_strided_slice %757 {offsets = [0, 256], sizes = [8, 128], strides = [1, 1]} : vector<8x512xf32> to vector<8x128xf32>
    %775 = math.tanh %774 : vector<8x128xf32>
    %776 = vector.extract_strided_slice %757 {offsets = [0, 384], sizes = [8, 128], strides = [1, 1]} : vector<8x512xf32> to vector<8x128xf32>
    %cst_221 = arith.constant 5.000000e-01 : f32
    %777 = vector.broadcast %cst_221 : f32 to vector<8x128xf32>
    %778 = arith.mulf %777, %776 : vector<8x128xf32>
    %779 = math.tanh %778 : vector<8x128xf32>
    %cst_222 = arith.constant 5.000000e-01 : f32
    %780 = vector.broadcast %cst_222 : f32 to vector<8x128xf32>
    %781 = arith.mulf %780, %779 : vector<8x128xf32>
    %cst_223 = arith.constant 5.000000e-01 : f32
    %782 = vector.broadcast %cst_223 : f32 to vector<8x128xf32>
    %783 = arith.addf %781, %782 : vector<8x128xf32>
    %784 = arith.mulf %773, %677 : vector<8x128xf32>
    %785 = arith.mulf %765, %775 : vector<8x128xf32>
    %786 = arith.addf %784, %785 : vector<8x128xf32>
    %787 = math.tanh %786 : vector<8x128xf32>
    %788 = arith.mulf %783, %787 : vector<8x128xf32>
    %c1_i32_224 = arith.constant 1 : i32
    %789 = arith.cmpi sge, %c5_i32, %c1_i32_224 : i32
    %790 = arith.extui %789 : i1 to i32
    %791 = arith.sitofp %790 : i32 to f32
    %c2_i32_225 = arith.constant 2 : i32
    %792 = arith.cmpi sge, %c5_i32, %c2_i32_225 : i32
    %793 = arith.extui %792 : i1 to i32
    %794 = arith.sitofp %793 : i32 to f32
    %795 = arith.subf %752, %665 : vector<8x128xf32>
    %796 = vector.broadcast %791 : f32 to vector<8x128xf32>
    %797 = arith.mulf %796, %795 : vector<8x128xf32>
    %798 = arith.addf %665, %797 : vector<8x128xf32>
    %799 = arith.subf %750, %669 : vector<8x128xf32>
    %800 = vector.broadcast %791 : f32 to vector<8x128xf32>
    %801 = arith.mulf %800, %799 : vector<8x128xf32>
    %802 = arith.addf %669, %801 : vector<8x128xf32>
    %803 = arith.subf %788, %673 : vector<8x128xf32>
    %804 = vector.broadcast %794 : f32 to vector<8x128xf32>
    %805 = arith.mulf %804, %803 : vector<8x128xf32>
    %806 = arith.addf %673, %805 : vector<8x128xf32>
    %807 = arith.subf %786, %677 : vector<8x128xf32>
    %808 = vector.broadcast %794 : f32 to vector<8x128xf32>
    %809 = arith.mulf %808, %807 : vector<8x128xf32>
    %810 = arith.addf %677, %809 : vector<8x128xf32>
    %c6_i32 = arith.constant 6 : i32
    %c7_i32_226 = arith.constant 7 : i32
    %811 = arith.minsi %c6_i32, %c7_i32_226 : i32
    %c8_i32_227 = arith.constant 8 : i32
    %812 = arith.muli %811, %c8_i32_227 : i32
    %813 = tpu.assume_multiple %812, 8 : i32
    %814 = arith.index_cast %813 : i32 to index
    %c0_228 = arith.constant 0 : index
    %815 = vector.load %arg13[%814, %c0_228] : memref<64x512xf32, #tpu.memory_space<vmem>>, vector<8x512xf32>
    %816 = arith.truncf %716 : vector<8x128xf32> to vector<8x128xbf16>
    %cst_229 = arith.constant dense<0.000000e+00> : vector<8x512xf32>
    %817 = tpu.matmul %816, %7, %cst_229 {dimension_numbers = #tpu.dot_dimension_numbers<[1], [0], [0], [1], [0, 0, 1, 1], [], []>} : vector<8x128xbf16>, vector<128x512xbf16>, vector<8x512xf32> -> vector<8x512xf32>
    %818 = arith.addf %815, %817 : vector<8x512xf32>
    %819 = vector.extract_strided_slice %818 {offsets = [0, 0], sizes = [8, 128], strides = [1, 1]} : vector<8x512xf32> to vector<8x128xf32>
    %cst_230 = arith.constant 5.000000e-01 : f32
    %820 = vector.broadcast %cst_230 : f32 to vector<8x128xf32>
    %821 = arith.mulf %820, %819 : vector<8x128xf32>
    %822 = math.tanh %821 : vector<8x128xf32>
    %cst_231 = arith.constant 5.000000e-01 : f32
    %823 = vector.broadcast %cst_231 : f32 to vector<8x128xf32>
    %824 = arith.mulf %823, %822 : vector<8x128xf32>
    %cst_232 = arith.constant 5.000000e-01 : f32
    %825 = vector.broadcast %cst_232 : f32 to vector<8x128xf32>
    %826 = arith.addf %824, %825 : vector<8x128xf32>
    %827 = vector.extract_strided_slice %818 {offsets = [0, 128], sizes = [8, 128], strides = [1, 1]} : vector<8x512xf32> to vector<8x128xf32>
    %cst_233 = arith.constant 5.000000e-01 : f32
    %828 = vector.broadcast %cst_233 : f32 to vector<8x128xf32>
    %829 = arith.mulf %828, %827 : vector<8x128xf32>
    %830 = math.tanh %829 : vector<8x128xf32>
    %cst_234 = arith.constant 5.000000e-01 : f32
    %831 = vector.broadcast %cst_234 : f32 to vector<8x128xf32>
    %832 = arith.mulf %831, %830 : vector<8x128xf32>
    %cst_235 = arith.constant 5.000000e-01 : f32
    %833 = vector.broadcast %cst_235 : f32 to vector<8x128xf32>
    %834 = arith.addf %832, %833 : vector<8x128xf32>
    %835 = vector.extract_strided_slice %818 {offsets = [0, 256], sizes = [8, 128], strides = [1, 1]} : vector<8x512xf32> to vector<8x128xf32>
    %836 = math.tanh %835 : vector<8x128xf32>
    %837 = vector.extract_strided_slice %818 {offsets = [0, 384], sizes = [8, 128], strides = [1, 1]} : vector<8x512xf32> to vector<8x128xf32>
    %cst_236 = arith.constant 5.000000e-01 : f32
    %838 = vector.broadcast %cst_236 : f32 to vector<8x128xf32>
    %839 = arith.mulf %838, %837 : vector<8x128xf32>
    %840 = math.tanh %839 : vector<8x128xf32>
    %cst_237 = arith.constant 5.000000e-01 : f32
    %841 = vector.broadcast %cst_237 : f32 to vector<8x128xf32>
    %842 = arith.mulf %841, %840 : vector<8x128xf32>
    %cst_238 = arith.constant 5.000000e-01 : f32
    %843 = vector.broadcast %cst_238 : f32 to vector<8x128xf32>
    %844 = arith.addf %842, %843 : vector<8x128xf32>
    %845 = arith.mulf %834, %714 : vector<8x128xf32>
    %846 = arith.mulf %826, %836 : vector<8x128xf32>
    %847 = arith.addf %845, %846 : vector<8x128xf32>
    %848 = math.tanh %847 : vector<8x128xf32>
    %849 = arith.mulf %844, %848 : vector<8x128xf32>
    %850 = tpu.concatenate %716, %798 in 1 : vector<8x128xf32>, vector<8x128xf32> -> vector<8x256xf32>
    %851 = arith.truncf %850 : vector<8x256xf32> to vector<8x256xbf16>
    %cst_239 = arith.constant dense<0.000000e+00> : vector<8x512xf32>
    %852 = tpu.matmul %851, %8, %cst_239 {dimension_numbers = #tpu.dot_dimension_numbers<[1], [0], [0], [1], [0, 0, 1, 1], [], []>} : vector<8x256xbf16>, vector<256x512xbf16>, vector<8x512xf32> -> vector<8x512xf32>
    %853 = vector.broadcast %9 : vector<1x512xf32> to vector<8x512xf32>
    %854 = arith.addf %852, %853 : vector<8x512xf32>
    %855 = vector.extract_strided_slice %854 {offsets = [0, 0], sizes = [8, 128], strides = [1, 1]} : vector<8x512xf32> to vector<8x128xf32>
    %cst_240 = arith.constant 5.000000e-01 : f32
    %856 = vector.broadcast %cst_240 : f32 to vector<8x128xf32>
    %857 = arith.mulf %856, %855 : vector<8x128xf32>
    %858 = math.tanh %857 : vector<8x128xf32>
    %cst_241 = arith.constant 5.000000e-01 : f32
    %859 = vector.broadcast %cst_241 : f32 to vector<8x128xf32>
    %860 = arith.mulf %859, %858 : vector<8x128xf32>
    %cst_242 = arith.constant 5.000000e-01 : f32
    %861 = vector.broadcast %cst_242 : f32 to vector<8x128xf32>
    %862 = arith.addf %860, %861 : vector<8x128xf32>
    %863 = vector.extract_strided_slice %854 {offsets = [0, 128], sizes = [8, 128], strides = [1, 1]} : vector<8x512xf32> to vector<8x128xf32>
    %cst_243 = arith.constant 5.000000e-01 : f32
    %864 = vector.broadcast %cst_243 : f32 to vector<8x128xf32>
    %865 = arith.mulf %864, %863 : vector<8x128xf32>
    %866 = math.tanh %865 : vector<8x128xf32>
    %cst_244 = arith.constant 5.000000e-01 : f32
    %867 = vector.broadcast %cst_244 : f32 to vector<8x128xf32>
    %868 = arith.mulf %867, %866 : vector<8x128xf32>
    %cst_245 = arith.constant 5.000000e-01 : f32
    %869 = vector.broadcast %cst_245 : f32 to vector<8x128xf32>
    %870 = arith.addf %868, %869 : vector<8x128xf32>
    %871 = vector.extract_strided_slice %854 {offsets = [0, 256], sizes = [8, 128], strides = [1, 1]} : vector<8x512xf32> to vector<8x128xf32>
    %872 = math.tanh %871 : vector<8x128xf32>
    %873 = vector.extract_strided_slice %854 {offsets = [0, 384], sizes = [8, 128], strides = [1, 1]} : vector<8x512xf32> to vector<8x128xf32>
    %cst_246 = arith.constant 5.000000e-01 : f32
    %874 = vector.broadcast %cst_246 : f32 to vector<8x128xf32>
    %875 = arith.mulf %874, %873 : vector<8x128xf32>
    %876 = math.tanh %875 : vector<8x128xf32>
    %cst_247 = arith.constant 5.000000e-01 : f32
    %877 = vector.broadcast %cst_247 : f32 to vector<8x128xf32>
    %878 = arith.mulf %877, %876 : vector<8x128xf32>
    %cst_248 = arith.constant 5.000000e-01 : f32
    %879 = vector.broadcast %cst_248 : f32 to vector<8x128xf32>
    %880 = arith.addf %878, %879 : vector<8x128xf32>
    %881 = arith.mulf %870, %802 : vector<8x128xf32>
    %882 = arith.mulf %862, %872 : vector<8x128xf32>
    %883 = arith.addf %881, %882 : vector<8x128xf32>
    %884 = math.tanh %883 : vector<8x128xf32>
    %885 = arith.mulf %880, %884 : vector<8x128xf32>
    %886 = tpu.concatenate %798, %806 in 1 : vector<8x128xf32>, vector<8x128xf32> -> vector<8x256xf32>
    %887 = arith.truncf %886 : vector<8x256xf32> to vector<8x256xbf16>
    %cst_249 = arith.constant dense<0.000000e+00> : vector<8x512xf32>
    %888 = tpu.matmul %887, %10, %cst_249 {dimension_numbers = #tpu.dot_dimension_numbers<[1], [0], [0], [1], [0, 0, 1, 1], [], []>} : vector<8x256xbf16>, vector<256x512xbf16>, vector<8x512xf32> -> vector<8x512xf32>
    %889 = vector.broadcast %11 : vector<1x512xf32> to vector<8x512xf32>
    %890 = arith.addf %888, %889 : vector<8x512xf32>
    %891 = vector.extract_strided_slice %890 {offsets = [0, 0], sizes = [8, 128], strides = [1, 1]} : vector<8x512xf32> to vector<8x128xf32>
    %cst_250 = arith.constant 5.000000e-01 : f32
    %892 = vector.broadcast %cst_250 : f32 to vector<8x128xf32>
    %893 = arith.mulf %892, %891 : vector<8x128xf32>
    %894 = math.tanh %893 : vector<8x128xf32>
    %cst_251 = arith.constant 5.000000e-01 : f32
    %895 = vector.broadcast %cst_251 : f32 to vector<8x128xf32>
    %896 = arith.mulf %895, %894 : vector<8x128xf32>
    %cst_252 = arith.constant 5.000000e-01 : f32
    %897 = vector.broadcast %cst_252 : f32 to vector<8x128xf32>
    %898 = arith.addf %896, %897 : vector<8x128xf32>
    %899 = vector.extract_strided_slice %890 {offsets = [0, 128], sizes = [8, 128], strides = [1, 1]} : vector<8x512xf32> to vector<8x128xf32>
    %cst_253 = arith.constant 5.000000e-01 : f32
    %900 = vector.broadcast %cst_253 : f32 to vector<8x128xf32>
    %901 = arith.mulf %900, %899 : vector<8x128xf32>
    %902 = math.tanh %901 : vector<8x128xf32>
    %cst_254 = arith.constant 5.000000e-01 : f32
    %903 = vector.broadcast %cst_254 : f32 to vector<8x128xf32>
    %904 = arith.mulf %903, %902 : vector<8x128xf32>
    %cst_255 = arith.constant 5.000000e-01 : f32
    %905 = vector.broadcast %cst_255 : f32 to vector<8x128xf32>
    %906 = arith.addf %904, %905 : vector<8x128xf32>
    %907 = vector.extract_strided_slice %890 {offsets = [0, 256], sizes = [8, 128], strides = [1, 1]} : vector<8x512xf32> to vector<8x128xf32>
    %908 = math.tanh %907 : vector<8x128xf32>
    %909 = vector.extract_strided_slice %890 {offsets = [0, 384], sizes = [8, 128], strides = [1, 1]} : vector<8x512xf32> to vector<8x128xf32>
    %cst_256 = arith.constant 5.000000e-01 : f32
    %910 = vector.broadcast %cst_256 : f32 to vector<8x128xf32>
    %911 = arith.mulf %910, %909 : vector<8x128xf32>
    %912 = math.tanh %911 : vector<8x128xf32>
    %cst_257 = arith.constant 5.000000e-01 : f32
    %913 = vector.broadcast %cst_257 : f32 to vector<8x128xf32>
    %914 = arith.mulf %913, %912 : vector<8x128xf32>
    %cst_258 = arith.constant 5.000000e-01 : f32
    %915 = vector.broadcast %cst_258 : f32 to vector<8x128xf32>
    %916 = arith.addf %914, %915 : vector<8x128xf32>
    %917 = arith.mulf %906, %810 : vector<8x128xf32>
    %918 = arith.mulf %898, %908 : vector<8x128xf32>
    %919 = arith.addf %917, %918 : vector<8x128xf32>
    %920 = math.tanh %919 : vector<8x128xf32>
    %921 = arith.mulf %916, %920 : vector<8x128xf32>
    %c1_i32_259 = arith.constant 1 : i32
    %922 = arith.cmpi sge, %c6_i32, %c1_i32_259 : i32
    %923 = arith.extui %922 : i1 to i32
    %924 = arith.sitofp %923 : i32 to f32
    %c2_i32_260 = arith.constant 2 : i32
    %925 = arith.cmpi sge, %c6_i32, %c2_i32_260 : i32
    %926 = arith.extui %925 : i1 to i32
    %927 = arith.sitofp %926 : i32 to f32
    %928 = arith.subf %885, %798 : vector<8x128xf32>
    %929 = vector.broadcast %924 : f32 to vector<8x128xf32>
    %930 = arith.mulf %929, %928 : vector<8x128xf32>
    %931 = arith.addf %798, %930 : vector<8x128xf32>
    %932 = arith.subf %883, %802 : vector<8x128xf32>
    %933 = vector.broadcast %924 : f32 to vector<8x128xf32>
    %934 = arith.mulf %933, %932 : vector<8x128xf32>
    %935 = arith.addf %802, %934 : vector<8x128xf32>
    %936 = arith.subf %921, %806 : vector<8x128xf32>
    %937 = vector.broadcast %927 : f32 to vector<8x128xf32>
    %938 = arith.mulf %937, %936 : vector<8x128xf32>
    %939 = arith.addf %806, %938 : vector<8x128xf32>
    %940 = arith.subf %919, %810 : vector<8x128xf32>
    %941 = vector.broadcast %927 : f32 to vector<8x128xf32>
    %942 = arith.mulf %941, %940 : vector<8x128xf32>
    %943 = arith.addf %810, %942 : vector<8x128xf32>
    %c7_i32_261 = arith.constant 7 : i32
    %c7_i32_262 = arith.constant 7 : i32
    %944 = arith.minsi %c7_i32_261, %c7_i32_262 : i32
    %c8_i32_263 = arith.constant 8 : i32
    %945 = arith.muli %944, %c8_i32_263 : i32
    %946 = tpu.assume_multiple %945, 8 : i32
    %947 = arith.index_cast %946 : i32 to index
    %c0_264 = arith.constant 0 : index
    %948 = vector.load %arg13[%947, %c0_264] : memref<64x512xf32, #tpu.memory_space<vmem>>, vector<8x512xf32>
    %949 = arith.truncf %849 : vector<8x128xf32> to vector<8x128xbf16>
    %cst_265 = arith.constant dense<0.000000e+00> : vector<8x512xf32>
    %950 = tpu.matmul %949, %7, %cst_265 {dimension_numbers = #tpu.dot_dimension_numbers<[1], [0], [0], [1], [0, 0, 1, 1], [], []>} : vector<8x128xbf16>, vector<128x512xbf16>, vector<8x512xf32> -> vector<8x512xf32>
    %951 = arith.addf %948, %950 : vector<8x512xf32>
    %952 = vector.extract_strided_slice %951 {offsets = [0, 0], sizes = [8, 128], strides = [1, 1]} : vector<8x512xf32> to vector<8x128xf32>
    %cst_266 = arith.constant 5.000000e-01 : f32
    %953 = vector.broadcast %cst_266 : f32 to vector<8x128xf32>
    %954 = arith.mulf %953, %952 : vector<8x128xf32>
    %955 = math.tanh %954 : vector<8x128xf32>
    %cst_267 = arith.constant 5.000000e-01 : f32
    %956 = vector.broadcast %cst_267 : f32 to vector<8x128xf32>
    %957 = arith.mulf %956, %955 : vector<8x128xf32>
    %cst_268 = arith.constant 5.000000e-01 : f32
    %958 = vector.broadcast %cst_268 : f32 to vector<8x128xf32>
    %959 = arith.addf %957, %958 : vector<8x128xf32>
    %960 = vector.extract_strided_slice %951 {offsets = [0, 128], sizes = [8, 128], strides = [1, 1]} : vector<8x512xf32> to vector<8x128xf32>
    %cst_269 = arith.constant 5.000000e-01 : f32
    %961 = vector.broadcast %cst_269 : f32 to vector<8x128xf32>
    %962 = arith.mulf %961, %960 : vector<8x128xf32>
    %963 = math.tanh %962 : vector<8x128xf32>
    %cst_270 = arith.constant 5.000000e-01 : f32
    %964 = vector.broadcast %cst_270 : f32 to vector<8x128xf32>
    %965 = arith.mulf %964, %963 : vector<8x128xf32>
    %cst_271 = arith.constant 5.000000e-01 : f32
    %966 = vector.broadcast %cst_271 : f32 to vector<8x128xf32>
    %967 = arith.addf %965, %966 : vector<8x128xf32>
    %968 = vector.extract_strided_slice %951 {offsets = [0, 256], sizes = [8, 128], strides = [1, 1]} : vector<8x512xf32> to vector<8x128xf32>
    %969 = math.tanh %968 : vector<8x128xf32>
    %970 = vector.extract_strided_slice %951 {offsets = [0, 384], sizes = [8, 128], strides = [1, 1]} : vector<8x512xf32> to vector<8x128xf32>
    %cst_272 = arith.constant 5.000000e-01 : f32
    %971 = vector.broadcast %cst_272 : f32 to vector<8x128xf32>
    %972 = arith.mulf %971, %970 : vector<8x128xf32>
    %973 = math.tanh %972 : vector<8x128xf32>
    %cst_273 = arith.constant 5.000000e-01 : f32
    %974 = vector.broadcast %cst_273 : f32 to vector<8x128xf32>
    %975 = arith.mulf %974, %973 : vector<8x128xf32>
    %cst_274 = arith.constant 5.000000e-01 : f32
    %976 = vector.broadcast %cst_274 : f32 to vector<8x128xf32>
    %977 = arith.addf %975, %976 : vector<8x128xf32>
    %978 = arith.mulf %967, %847 : vector<8x128xf32>
    %979 = arith.mulf %959, %969 : vector<8x128xf32>
    %980 = arith.addf %978, %979 : vector<8x128xf32>
    %981 = math.tanh %980 : vector<8x128xf32>
    %982 = arith.mulf %977, %981 : vector<8x128xf32>
    %983 = tpu.concatenate %849, %931 in 1 : vector<8x128xf32>, vector<8x128xf32> -> vector<8x256xf32>
    %984 = arith.truncf %983 : vector<8x256xf32> to vector<8x256xbf16>
    %cst_275 = arith.constant dense<0.000000e+00> : vector<8x512xf32>
    %985 = tpu.matmul %984, %8, %cst_275 {dimension_numbers = #tpu.dot_dimension_numbers<[1], [0], [0], [1], [0, 0, 1, 1], [], []>} : vector<8x256xbf16>, vector<256x512xbf16>, vector<8x512xf32> -> vector<8x512xf32>
    %986 = vector.broadcast %9 : vector<1x512xf32> to vector<8x512xf32>
    %987 = arith.addf %985, %986 : vector<8x512xf32>
    %988 = vector.extract_strided_slice %987 {offsets = [0, 0], sizes = [8, 128], strides = [1, 1]} : vector<8x512xf32> to vector<8x128xf32>
    %cst_276 = arith.constant 5.000000e-01 : f32
    %989 = vector.broadcast %cst_276 : f32 to vector<8x128xf32>
    %990 = arith.mulf %989, %988 : vector<8x128xf32>
    %991 = math.tanh %990 : vector<8x128xf32>
    %cst_277 = arith.constant 5.000000e-01 : f32
    %992 = vector.broadcast %cst_277 : f32 to vector<8x128xf32>
    %993 = arith.mulf %992, %991 : vector<8x128xf32>
    %cst_278 = arith.constant 5.000000e-01 : f32
    %994 = vector.broadcast %cst_278 : f32 to vector<8x128xf32>
    %995 = arith.addf %993, %994 : vector<8x128xf32>
    %996 = vector.extract_strided_slice %987 {offsets = [0, 128], sizes = [8, 128], strides = [1, 1]} : vector<8x512xf32> to vector<8x128xf32>
    %cst_279 = arith.constant 5.000000e-01 : f32
    %997 = vector.broadcast %cst_279 : f32 to vector<8x128xf32>
    %998 = arith.mulf %997, %996 : vector<8x128xf32>
    %999 = math.tanh %998 : vector<8x128xf32>
    %cst_280 = arith.constant 5.000000e-01 : f32
    %1000 = vector.broadcast %cst_280 : f32 to vector<8x128xf32>
    %1001 = arith.mulf %1000, %999 : vector<8x128xf32>
    %cst_281 = arith.constant 5.000000e-01 : f32
    %1002 = vector.broadcast %cst_281 : f32 to vector<8x128xf32>
    %1003 = arith.addf %1001, %1002 : vector<8x128xf32>
    %1004 = vector.extract_strided_slice %987 {offsets = [0, 256], sizes = [8, 128], strides = [1, 1]} : vector<8x512xf32> to vector<8x128xf32>
    %1005 = math.tanh %1004 : vector<8x128xf32>
    %1006 = vector.extract_strided_slice %987 {offsets = [0, 384], sizes = [8, 128], strides = [1, 1]} : vector<8x512xf32> to vector<8x128xf32>
    %cst_282 = arith.constant 5.000000e-01 : f32
    %1007 = vector.broadcast %cst_282 : f32 to vector<8x128xf32>
    %1008 = arith.mulf %1007, %1006 : vector<8x128xf32>
    %1009 = math.tanh %1008 : vector<8x128xf32>
    %cst_283 = arith.constant 5.000000e-01 : f32
    %1010 = vector.broadcast %cst_283 : f32 to vector<8x128xf32>
    %1011 = arith.mulf %1010, %1009 : vector<8x128xf32>
    %cst_284 = arith.constant 5.000000e-01 : f32
    %1012 = vector.broadcast %cst_284 : f32 to vector<8x128xf32>
    %1013 = arith.addf %1011, %1012 : vector<8x128xf32>
    %1014 = arith.mulf %1003, %935 : vector<8x128xf32>
    %1015 = arith.mulf %995, %1005 : vector<8x128xf32>
    %1016 = arith.addf %1014, %1015 : vector<8x128xf32>
    %1017 = math.tanh %1016 : vector<8x128xf32>
    %1018 = arith.mulf %1013, %1017 : vector<8x128xf32>
    %1019 = tpu.concatenate %931, %939 in 1 : vector<8x128xf32>, vector<8x128xf32> -> vector<8x256xf32>
    %1020 = arith.truncf %1019 : vector<8x256xf32> to vector<8x256xbf16>
    %cst_285 = arith.constant dense<0.000000e+00> : vector<8x512xf32>
    %1021 = tpu.matmul %1020, %10, %cst_285 {dimension_numbers = #tpu.dot_dimension_numbers<[1], [0], [0], [1], [0, 0, 1, 1], [], []>} : vector<8x256xbf16>, vector<256x512xbf16>, vector<8x512xf32> -> vector<8x512xf32>
    %1022 = vector.broadcast %11 : vector<1x512xf32> to vector<8x512xf32>
    %1023 = arith.addf %1021, %1022 : vector<8x512xf32>
    %1024 = vector.extract_strided_slice %1023 {offsets = [0, 0], sizes = [8, 128], strides = [1, 1]} : vector<8x512xf32> to vector<8x128xf32>
    %cst_286 = arith.constant 5.000000e-01 : f32
    %1025 = vector.broadcast %cst_286 : f32 to vector<8x128xf32>
    %1026 = arith.mulf %1025, %1024 : vector<8x128xf32>
    %1027 = math.tanh %1026 : vector<8x128xf32>
    %cst_287 = arith.constant 5.000000e-01 : f32
    %1028 = vector.broadcast %cst_287 : f32 to vector<8x128xf32>
    %1029 = arith.mulf %1028, %1027 : vector<8x128xf32>
    %cst_288 = arith.constant 5.000000e-01 : f32
    %1030 = vector.broadcast %cst_288 : f32 to vector<8x128xf32>
    %1031 = arith.addf %1029, %1030 : vector<8x128xf32>
    %1032 = vector.extract_strided_slice %1023 {offsets = [0, 128], sizes = [8, 128], strides = [1, 1]} : vector<8x512xf32> to vector<8x128xf32>
    %cst_289 = arith.constant 5.000000e-01 : f32
    %1033 = vector.broadcast %cst_289 : f32 to vector<8x128xf32>
    %1034 = arith.mulf %1033, %1032 : vector<8x128xf32>
    %1035 = math.tanh %1034 : vector<8x128xf32>
    %cst_290 = arith.constant 5.000000e-01 : f32
    %1036 = vector.broadcast %cst_290 : f32 to vector<8x128xf32>
    %1037 = arith.mulf %1036, %1035 : vector<8x128xf32>
    %cst_291 = arith.constant 5.000000e-01 : f32
    %1038 = vector.broadcast %cst_291 : f32 to vector<8x128xf32>
    %1039 = arith.addf %1037, %1038 : vector<8x128xf32>
    %1040 = vector.extract_strided_slice %1023 {offsets = [0, 256], sizes = [8, 128], strides = [1, 1]} : vector<8x512xf32> to vector<8x128xf32>
    %1041 = math.tanh %1040 : vector<8x128xf32>
    %1042 = vector.extract_strided_slice %1023 {offsets = [0, 384], sizes = [8, 128], strides = [1, 1]} : vector<8x512xf32> to vector<8x128xf32>
    %cst_292 = arith.constant 5.000000e-01 : f32
    %1043 = vector.broadcast %cst_292 : f32 to vector<8x128xf32>
    %1044 = arith.mulf %1043, %1042 : vector<8x128xf32>
    %1045 = math.tanh %1044 : vector<8x128xf32>
    %cst_293 = arith.constant 5.000000e-01 : f32
    %1046 = vector.broadcast %cst_293 : f32 to vector<8x128xf32>
    %1047 = arith.mulf %1046, %1045 : vector<8x128xf32>
    %cst_294 = arith.constant 5.000000e-01 : f32
    %1048 = vector.broadcast %cst_294 : f32 to vector<8x128xf32>
    %1049 = arith.addf %1047, %1048 : vector<8x128xf32>
    %1050 = arith.mulf %1039, %943 : vector<8x128xf32>
    %1051 = arith.mulf %1031, %1041 : vector<8x128xf32>
    %1052 = arith.addf %1050, %1051 : vector<8x128xf32>
    %1053 = math.tanh %1052 : vector<8x128xf32>
    %1054 = arith.mulf %1049, %1053 : vector<8x128xf32>
    %c1_i32_295 = arith.constant 1 : i32
    %1055 = arith.cmpi sge, %c7_i32_261, %c1_i32_295 : i32
    %1056 = arith.extui %1055 : i1 to i32
    %1057 = arith.sitofp %1056 : i32 to f32
    %c2_i32_296 = arith.constant 2 : i32
    %1058 = arith.cmpi sge, %c7_i32_261, %c2_i32_296 : i32
    %1059 = arith.extui %1058 : i1 to i32
    %1060 = arith.sitofp %1059 : i32 to f32
    %1061 = arith.subf %1018, %931 : vector<8x128xf32>
    %1062 = vector.broadcast %1057 : f32 to vector<8x128xf32>
    %1063 = arith.mulf %1062, %1061 : vector<8x128xf32>
    %1064 = arith.addf %931, %1063 : vector<8x128xf32>
    %1065 = arith.subf %1016, %935 : vector<8x128xf32>
    %1066 = vector.broadcast %1057 : f32 to vector<8x128xf32>
    %1067 = arith.mulf %1066, %1065 : vector<8x128xf32>
    %1068 = arith.addf %935, %1067 : vector<8x128xf32>
    %1069 = arith.subf %1054, %939 : vector<8x128xf32>
    %1070 = vector.broadcast %1060 : f32 to vector<8x128xf32>
    %1071 = arith.mulf %1070, %1069 : vector<8x128xf32>
    %1072 = arith.addf %939, %1071 : vector<8x128xf32>
    %1073 = arith.subf %1052, %943 : vector<8x128xf32>
    %1074 = vector.broadcast %1060 : f32 to vector<8x128xf32>
    %1075 = arith.mulf %1074, %1073 : vector<8x128xf32>
    %1076 = arith.addf %943, %1075 : vector<8x128xf32>
    %c8_i32_297 = arith.constant 8 : i32
    %c7_i32_298 = arith.constant 7 : i32
    %1077 = arith.minsi %c8_i32_297, %c7_i32_298 : i32
    %c8_i32_299 = arith.constant 8 : i32
    %1078 = arith.muli %1077, %c8_i32_299 : i32
    %1079 = tpu.assume_multiple %1078, 8 : i32
    %1080 = arith.index_cast %1079 : i32 to index
    %c0_300 = arith.constant 0 : index
    %1081 = vector.load %arg13[%1080, %c0_300] : memref<64x512xf32, #tpu.memory_space<vmem>>, vector<8x512xf32>
    %1082 = arith.truncf %982 : vector<8x128xf32> to vector<8x128xbf16>
    %cst_301 = arith.constant dense<0.000000e+00> : vector<8x512xf32>
    %1083 = tpu.matmul %1082, %7, %cst_301 {dimension_numbers = #tpu.dot_dimension_numbers<[1], [0], [0], [1], [0, 0, 1, 1], [], []>} : vector<8x128xbf16>, vector<128x512xbf16>, vector<8x512xf32> -> vector<8x512xf32>
    %1084 = arith.addf %1081, %1083 : vector<8x512xf32>
    %1085 = vector.extract_strided_slice %1084 {offsets = [0, 0], sizes = [8, 128], strides = [1, 1]} : vector<8x512xf32> to vector<8x128xf32>
    %cst_302 = arith.constant 5.000000e-01 : f32
    %1086 = vector.broadcast %cst_302 : f32 to vector<8x128xf32>
    %1087 = arith.mulf %1086, %1085 : vector<8x128xf32>
    %1088 = math.tanh %1087 : vector<8x128xf32>
    %cst_303 = arith.constant 5.000000e-01 : f32
    %1089 = vector.broadcast %cst_303 : f32 to vector<8x128xf32>
    %1090 = arith.mulf %1089, %1088 : vector<8x128xf32>
    %cst_304 = arith.constant 5.000000e-01 : f32
    %1091 = vector.broadcast %cst_304 : f32 to vector<8x128xf32>
    %1092 = arith.addf %1090, %1091 : vector<8x128xf32>
    %1093 = vector.extract_strided_slice %1084 {offsets = [0, 128], sizes = [8, 128], strides = [1, 1]} : vector<8x512xf32> to vector<8x128xf32>
    %cst_305 = arith.constant 5.000000e-01 : f32
    %1094 = vector.broadcast %cst_305 : f32 to vector<8x128xf32>
    %1095 = arith.mulf %1094, %1093 : vector<8x128xf32>
    %1096 = math.tanh %1095 : vector<8x128xf32>
    %cst_306 = arith.constant 5.000000e-01 : f32
    %1097 = vector.broadcast %cst_306 : f32 to vector<8x128xf32>
    %1098 = arith.mulf %1097, %1096 : vector<8x128xf32>
    %cst_307 = arith.constant 5.000000e-01 : f32
    %1099 = vector.broadcast %cst_307 : f32 to vector<8x128xf32>
    %1100 = arith.addf %1098, %1099 : vector<8x128xf32>
    %1101 = vector.extract_strided_slice %1084 {offsets = [0, 256], sizes = [8, 128], strides = [1, 1]} : vector<8x512xf32> to vector<8x128xf32>
    %1102 = math.tanh %1101 : vector<8x128xf32>
    %1103 = vector.extract_strided_slice %1084 {offsets = [0, 384], sizes = [8, 128], strides = [1, 1]} : vector<8x512xf32> to vector<8x128xf32>
    %cst_308 = arith.constant 5.000000e-01 : f32
    %1104 = vector.broadcast %cst_308 : f32 to vector<8x128xf32>
    %1105 = arith.mulf %1104, %1103 : vector<8x128xf32>
    %1106 = math.tanh %1105 : vector<8x128xf32>
    %cst_309 = arith.constant 5.000000e-01 : f32
    %1107 = vector.broadcast %cst_309 : f32 to vector<8x128xf32>
    %1108 = arith.mulf %1107, %1106 : vector<8x128xf32>
    %cst_310 = arith.constant 5.000000e-01 : f32
    %1109 = vector.broadcast %cst_310 : f32 to vector<8x128xf32>
    %1110 = arith.addf %1108, %1109 : vector<8x128xf32>
    %1111 = arith.mulf %1100, %980 : vector<8x128xf32>
    %1112 = arith.mulf %1092, %1102 : vector<8x128xf32>
    %1113 = arith.addf %1111, %1112 : vector<8x128xf32>
    %1114 = math.tanh %1113 : vector<8x128xf32>
    %1115 = arith.mulf %1110, %1114 : vector<8x128xf32>
    %1116 = tpu.concatenate %982, %1064 in 1 : vector<8x128xf32>, vector<8x128xf32> -> vector<8x256xf32>
    %1117 = arith.truncf %1116 : vector<8x256xf32> to vector<8x256xbf16>
    %cst_311 = arith.constant dense<0.000000e+00> : vector<8x512xf32>
    %1118 = tpu.matmul %1117, %8, %cst_311 {dimension_numbers = #tpu.dot_dimension_numbers<[1], [0], [0], [1], [0, 0, 1, 1], [], []>} : vector<8x256xbf16>, vector<256x512xbf16>, vector<8x512xf32> -> vector<8x512xf32>
    %1119 = vector.broadcast %9 : vector<1x512xf32> to vector<8x512xf32>
    %1120 = arith.addf %1118, %1119 : vector<8x512xf32>
    %1121 = vector.extract_strided_slice %1120 {offsets = [0, 0], sizes = [8, 128], strides = [1, 1]} : vector<8x512xf32> to vector<8x128xf32>
    %cst_312 = arith.constant 5.000000e-01 : f32
    %1122 = vector.broadcast %cst_312 : f32 to vector<8x128xf32>
    %1123 = arith.mulf %1122, %1121 : vector<8x128xf32>
    %1124 = math.tanh %1123 : vector<8x128xf32>
    %cst_313 = arith.constant 5.000000e-01 : f32
    %1125 = vector.broadcast %cst_313 : f32 to vector<8x128xf32>
    %1126 = arith.mulf %1125, %1124 : vector<8x128xf32>
    %cst_314 = arith.constant 5.000000e-01 : f32
    %1127 = vector.broadcast %cst_314 : f32 to vector<8x128xf32>
    %1128 = arith.addf %1126, %1127 : vector<8x128xf32>
    %1129 = vector.extract_strided_slice %1120 {offsets = [0, 128], sizes = [8, 128], strides = [1, 1]} : vector<8x512xf32> to vector<8x128xf32>
    %cst_315 = arith.constant 5.000000e-01 : f32
    %1130 = vector.broadcast %cst_315 : f32 to vector<8x128xf32>
    %1131 = arith.mulf %1130, %1129 : vector<8x128xf32>
    %1132 = math.tanh %1131 : vector<8x128xf32>
    %cst_316 = arith.constant 5.000000e-01 : f32
    %1133 = vector.broadcast %cst_316 : f32 to vector<8x128xf32>
    %1134 = arith.mulf %1133, %1132 : vector<8x128xf32>
    %cst_317 = arith.constant 5.000000e-01 : f32
    %1135 = vector.broadcast %cst_317 : f32 to vector<8x128xf32>
    %1136 = arith.addf %1134, %1135 : vector<8x128xf32>
    %1137 = vector.extract_strided_slice %1120 {offsets = [0, 256], sizes = [8, 128], strides = [1, 1]} : vector<8x512xf32> to vector<8x128xf32>
    %1138 = math.tanh %1137 : vector<8x128xf32>
    %1139 = vector.extract_strided_slice %1120 {offsets = [0, 384], sizes = [8, 128], strides = [1, 1]} : vector<8x512xf32> to vector<8x128xf32>
    %cst_318 = arith.constant 5.000000e-01 : f32
    %1140 = vector.broadcast %cst_318 : f32 to vector<8x128xf32>
    %1141 = arith.mulf %1140, %1139 : vector<8x128xf32>
    %1142 = math.tanh %1141 : vector<8x128xf32>
    %cst_319 = arith.constant 5.000000e-01 : f32
    %1143 = vector.broadcast %cst_319 : f32 to vector<8x128xf32>
    %1144 = arith.mulf %1143, %1142 : vector<8x128xf32>
    %cst_320 = arith.constant 5.000000e-01 : f32
    %1145 = vector.broadcast %cst_320 : f32 to vector<8x128xf32>
    %1146 = arith.addf %1144, %1145 : vector<8x128xf32>
    %1147 = arith.mulf %1136, %1068 : vector<8x128xf32>
    %1148 = arith.mulf %1128, %1138 : vector<8x128xf32>
    %1149 = arith.addf %1147, %1148 : vector<8x128xf32>
    %1150 = math.tanh %1149 : vector<8x128xf32>
    %1151 = arith.mulf %1146, %1150 : vector<8x128xf32>
    %1152 = tpu.concatenate %1064, %1072 in 1 : vector<8x128xf32>, vector<8x128xf32> -> vector<8x256xf32>
    %1153 = arith.truncf %1152 : vector<8x256xf32> to vector<8x256xbf16>
    %cst_321 = arith.constant dense<0.000000e+00> : vector<8x512xf32>
    %1154 = tpu.matmul %1153, %10, %cst_321 {dimension_numbers = #tpu.dot_dimension_numbers<[1], [0], [0], [1], [0, 0, 1, 1], [], []>} : vector<8x256xbf16>, vector<256x512xbf16>, vector<8x512xf32> -> vector<8x512xf32>
    %1155 = vector.broadcast %11 : vector<1x512xf32> to vector<8x512xf32>
    %1156 = arith.addf %1154, %1155 : vector<8x512xf32>
    %1157 = vector.extract_strided_slice %1156 {offsets = [0, 0], sizes = [8, 128], strides = [1, 1]} : vector<8x512xf32> to vector<8x128xf32>
    %cst_322 = arith.constant 5.000000e-01 : f32
    %1158 = vector.broadcast %cst_322 : f32 to vector<8x128xf32>
    %1159 = arith.mulf %1158, %1157 : vector<8x128xf32>
    %1160 = math.tanh %1159 : vector<8x128xf32>
    %cst_323 = arith.constant 5.000000e-01 : f32
    %1161 = vector.broadcast %cst_323 : f32 to vector<8x128xf32>
    %1162 = arith.mulf %1161, %1160 : vector<8x128xf32>
    %cst_324 = arith.constant 5.000000e-01 : f32
    %1163 = vector.broadcast %cst_324 : f32 to vector<8x128xf32>
    %1164 = arith.addf %1162, %1163 : vector<8x128xf32>
    %1165 = vector.extract_strided_slice %1156 {offsets = [0, 128], sizes = [8, 128], strides = [1, 1]} : vector<8x512xf32> to vector<8x128xf32>
    %cst_325 = arith.constant 5.000000e-01 : f32
    %1166 = vector.broadcast %cst_325 : f32 to vector<8x128xf32>
    %1167 = arith.mulf %1166, %1165 : vector<8x128xf32>
    %1168 = math.tanh %1167 : vector<8x128xf32>
    %cst_326 = arith.constant 5.000000e-01 : f32
    %1169 = vector.broadcast %cst_326 : f32 to vector<8x128xf32>
    %1170 = arith.mulf %1169, %1168 : vector<8x128xf32>
    %cst_327 = arith.constant 5.000000e-01 : f32
    %1171 = vector.broadcast %cst_327 : f32 to vector<8x128xf32>
    %1172 = arith.addf %1170, %1171 : vector<8x128xf32>
    %1173 = vector.extract_strided_slice %1156 {offsets = [0, 256], sizes = [8, 128], strides = [1, 1]} : vector<8x512xf32> to vector<8x128xf32>
    %1174 = math.tanh %1173 : vector<8x128xf32>
    %1175 = vector.extract_strided_slice %1156 {offsets = [0, 384], sizes = [8, 128], strides = [1, 1]} : vector<8x512xf32> to vector<8x128xf32>
    %cst_328 = arith.constant 5.000000e-01 : f32
    %1176 = vector.broadcast %cst_328 : f32 to vector<8x128xf32>
    %1177 = arith.mulf %1176, %1175 : vector<8x128xf32>
    %1178 = math.tanh %1177 : vector<8x128xf32>
    %cst_329 = arith.constant 5.000000e-01 : f32
    %1179 = vector.broadcast %cst_329 : f32 to vector<8x128xf32>
    %1180 = arith.mulf %1179, %1178 : vector<8x128xf32>
    %cst_330 = arith.constant 5.000000e-01 : f32
    %1181 = vector.broadcast %cst_330 : f32 to vector<8x128xf32>
    %1182 = arith.addf %1180, %1181 : vector<8x128xf32>
    %1183 = arith.mulf %1172, %1076 : vector<8x128xf32>
    %1184 = arith.mulf %1164, %1174 : vector<8x128xf32>
    %1185 = arith.addf %1183, %1184 : vector<8x128xf32>
    %1186 = math.tanh %1185 : vector<8x128xf32>
    %1187 = arith.mulf %1182, %1186 : vector<8x128xf32>
    %c1_i32_331 = arith.constant 1 : i32
    %1188 = arith.cmpi sge, %c8_i32_297, %c1_i32_331 : i32
    %1189 = arith.extui %1188 : i1 to i32
    %1190 = arith.sitofp %1189 : i32 to f32
    %c2_i32_332 = arith.constant 2 : i32
    %1191 = arith.cmpi sge, %c8_i32_297, %c2_i32_332 : i32
    %1192 = arith.extui %1191 : i1 to i32
    %1193 = arith.sitofp %1192 : i32 to f32
    %1194 = arith.subf %1151, %1064 : vector<8x128xf32>
    %1195 = vector.broadcast %1190 : f32 to vector<8x128xf32>
    %1196 = arith.mulf %1195, %1194 : vector<8x128xf32>
    %1197 = arith.addf %1064, %1196 : vector<8x128xf32>
    %1198 = arith.subf %1149, %1068 : vector<8x128xf32>
    %1199 = vector.broadcast %1190 : f32 to vector<8x128xf32>
    %1200 = arith.mulf %1199, %1198 : vector<8x128xf32>
    %1201 = arith.addf %1068, %1200 : vector<8x128xf32>
    %1202 = arith.subf %1187, %1072 : vector<8x128xf32>
    %1203 = vector.broadcast %1193 : f32 to vector<8x128xf32>
    %1204 = arith.mulf %1203, %1202 : vector<8x128xf32>
    %1205 = arith.addf %1072, %1204 : vector<8x128xf32>
    %1206 = arith.subf %1185, %1076 : vector<8x128xf32>
    %1207 = vector.broadcast %1193 : f32 to vector<8x128xf32>
    %1208 = arith.mulf %1207, %1206 : vector<8x128xf32>
    %1209 = arith.addf %1076, %1208 : vector<8x128xf32>
    %c9_i32 = arith.constant 9 : i32
    %c7_i32_333 = arith.constant 7 : i32
    %1210 = arith.minsi %c9_i32, %c7_i32_333 : i32
    %c8_i32_334 = arith.constant 8 : i32
    %1211 = arith.muli %1210, %c8_i32_334 : i32
    %1212 = tpu.assume_multiple %1211, 8 : i32
    %1213 = arith.index_cast %1212 : i32 to index
    %c0_335 = arith.constant 0 : index
    %1214 = vector.load %arg13[%1213, %c0_335] : memref<64x512xf32, #tpu.memory_space<vmem>>, vector<8x512xf32>
    %1215 = arith.truncf %1115 : vector<8x128xf32> to vector<8x128xbf16>
    %cst_336 = arith.constant dense<0.000000e+00> : vector<8x512xf32>
    %1216 = tpu.matmul %1215, %7, %cst_336 {dimension_numbers = #tpu.dot_dimension_numbers<[1], [0], [0], [1], [0, 0, 1, 1], [], []>} : vector<8x128xbf16>, vector<128x512xbf16>, vector<8x512xf32> -> vector<8x512xf32>
    %1217 = arith.addf %1214, %1216 : vector<8x512xf32>
    %1218 = vector.extract_strided_slice %1217 {offsets = [0, 0], sizes = [8, 128], strides = [1, 1]} : vector<8x512xf32> to vector<8x128xf32>
    %cst_337 = arith.constant 5.000000e-01 : f32
    %1219 = vector.broadcast %cst_337 : f32 to vector<8x128xf32>
    %1220 = arith.mulf %1219, %1218 : vector<8x128xf32>
    %1221 = math.tanh %1220 : vector<8x128xf32>
    %cst_338 = arith.constant 5.000000e-01 : f32
    %1222 = vector.broadcast %cst_338 : f32 to vector<8x128xf32>
    %1223 = arith.mulf %1222, %1221 : vector<8x128xf32>
    %cst_339 = arith.constant 5.000000e-01 : f32
    %1224 = vector.broadcast %cst_339 : f32 to vector<8x128xf32>
    %1225 = arith.addf %1223, %1224 : vector<8x128xf32>
    %1226 = vector.extract_strided_slice %1217 {offsets = [0, 128], sizes = [8, 128], strides = [1, 1]} : vector<8x512xf32> to vector<8x128xf32>
    %cst_340 = arith.constant 5.000000e-01 : f32
    %1227 = vector.broadcast %cst_340 : f32 to vector<8x128xf32>
    %1228 = arith.mulf %1227, %1226 : vector<8x128xf32>
    %1229 = math.tanh %1228 : vector<8x128xf32>
    %cst_341 = arith.constant 5.000000e-01 : f32
    %1230 = vector.broadcast %cst_341 : f32 to vector<8x128xf32>
    %1231 = arith.mulf %1230, %1229 : vector<8x128xf32>
    %cst_342 = arith.constant 5.000000e-01 : f32
    %1232 = vector.broadcast %cst_342 : f32 to vector<8x128xf32>
    %1233 = arith.addf %1231, %1232 : vector<8x128xf32>
    %1234 = vector.extract_strided_slice %1217 {offsets = [0, 256], sizes = [8, 128], strides = [1, 1]} : vector<8x512xf32> to vector<8x128xf32>
    %1235 = math.tanh %1234 : vector<8x128xf32>
    %1236 = vector.extract_strided_slice %1217 {offsets = [0, 384], sizes = [8, 128], strides = [1, 1]} : vector<8x512xf32> to vector<8x128xf32>
    %cst_343 = arith.constant 5.000000e-01 : f32
    %1237 = vector.broadcast %cst_343 : f32 to vector<8x128xf32>
    %1238 = arith.mulf %1237, %1236 : vector<8x128xf32>
    %1239 = math.tanh %1238 : vector<8x128xf32>
    %cst_344 = arith.constant 5.000000e-01 : f32
    %1240 = vector.broadcast %cst_344 : f32 to vector<8x128xf32>
    %1241 = arith.mulf %1240, %1239 : vector<8x128xf32>
    %cst_345 = arith.constant 5.000000e-01 : f32
    %1242 = vector.broadcast %cst_345 : f32 to vector<8x128xf32>
    %1243 = arith.addf %1241, %1242 : vector<8x128xf32>
    %1244 = arith.mulf %1233, %1113 : vector<8x128xf32>
    %1245 = arith.mulf %1225, %1235 : vector<8x128xf32>
    %1246 = arith.addf %1244, %1245 : vector<8x128xf32>
    %1247 = math.tanh %1246 : vector<8x128xf32>
    %1248 = arith.mulf %1243, %1247 : vector<8x128xf32>
    %1249 = tpu.concatenate %1115, %1197 in 1 : vector<8x128xf32>, vector<8x128xf32> -> vector<8x256xf32>
    %1250 = arith.truncf %1249 : vector<8x256xf32> to vector<8x256xbf16>
    %cst_346 = arith.constant dense<0.000000e+00> : vector<8x512xf32>
    %1251 = tpu.matmul %1250, %8, %cst_346 {dimension_numbers = #tpu.dot_dimension_numbers<[1], [0], [0], [1], [0, 0, 1, 1], [], []>} : vector<8x256xbf16>, vector<256x512xbf16>, vector<8x512xf32> -> vector<8x512xf32>
    %1252 = vector.broadcast %9 : vector<1x512xf32> to vector<8x512xf32>
    %1253 = arith.addf %1251, %1252 : vector<8x512xf32>
    %1254 = vector.extract_strided_slice %1253 {offsets = [0, 0], sizes = [8, 128], strides = [1, 1]} : vector<8x512xf32> to vector<8x128xf32>
    %cst_347 = arith.constant 5.000000e-01 : f32
    %1255 = vector.broadcast %cst_347 : f32 to vector<8x128xf32>
    %1256 = arith.mulf %1255, %1254 : vector<8x128xf32>
    %1257 = math.tanh %1256 : vector<8x128xf32>
    %cst_348 = arith.constant 5.000000e-01 : f32
    %1258 = vector.broadcast %cst_348 : f32 to vector<8x128xf32>
    %1259 = arith.mulf %1258, %1257 : vector<8x128xf32>
    %cst_349 = arith.constant 5.000000e-01 : f32
    %1260 = vector.broadcast %cst_349 : f32 to vector<8x128xf32>
    %1261 = arith.addf %1259, %1260 : vector<8x128xf32>
    %1262 = vector.extract_strided_slice %1253 {offsets = [0, 128], sizes = [8, 128], strides = [1, 1]} : vector<8x512xf32> to vector<8x128xf32>
    %cst_350 = arith.constant 5.000000e-01 : f32
    %1263 = vector.broadcast %cst_350 : f32 to vector<8x128xf32>
    %1264 = arith.mulf %1263, %1262 : vector<8x128xf32>
    %1265 = math.tanh %1264 : vector<8x128xf32>
    %cst_351 = arith.constant 5.000000e-01 : f32
    %1266 = vector.broadcast %cst_351 : f32 to vector<8x128xf32>
    %1267 = arith.mulf %1266, %1265 : vector<8x128xf32>
    %cst_352 = arith.constant 5.000000e-01 : f32
    %1268 = vector.broadcast %cst_352 : f32 to vector<8x128xf32>
    %1269 = arith.addf %1267, %1268 : vector<8x128xf32>
    %1270 = vector.extract_strided_slice %1253 {offsets = [0, 256], sizes = [8, 128], strides = [1, 1]} : vector<8x512xf32> to vector<8x128xf32>
    %1271 = math.tanh %1270 : vector<8x128xf32>
    %1272 = vector.extract_strided_slice %1253 {offsets = [0, 384], sizes = [8, 128], strides = [1, 1]} : vector<8x512xf32> to vector<8x128xf32>
    %cst_353 = arith.constant 5.000000e-01 : f32
    %1273 = vector.broadcast %cst_353 : f32 to vector<8x128xf32>
    %1274 = arith.mulf %1273, %1272 : vector<8x128xf32>
    %1275 = math.tanh %1274 : vector<8x128xf32>
    %cst_354 = arith.constant 5.000000e-01 : f32
    %1276 = vector.broadcast %cst_354 : f32 to vector<8x128xf32>
    %1277 = arith.mulf %1276, %1275 : vector<8x128xf32>
    %cst_355 = arith.constant 5.000000e-01 : f32
    %1278 = vector.broadcast %cst_355 : f32 to vector<8x128xf32>
    %1279 = arith.addf %1277, %1278 : vector<8x128xf32>
    %1280 = arith.mulf %1269, %1201 : vector<8x128xf32>
    %1281 = arith.mulf %1261, %1271 : vector<8x128xf32>
    %1282 = arith.addf %1280, %1281 : vector<8x128xf32>
    %1283 = math.tanh %1282 : vector<8x128xf32>
    %1284 = arith.mulf %1279, %1283 : vector<8x128xf32>
    %1285 = tpu.concatenate %1197, %1205 in 1 : vector<8x128xf32>, vector<8x128xf32> -> vector<8x256xf32>
    %1286 = arith.truncf %1285 : vector<8x256xf32> to vector<8x256xbf16>
    %cst_356 = arith.constant dense<0.000000e+00> : vector<8x512xf32>
    %1287 = tpu.matmul %1286, %10, %cst_356 {dimension_numbers = #tpu.dot_dimension_numbers<[1], [0], [0], [1], [0, 0, 1, 1], [], []>} : vector<8x256xbf16>, vector<256x512xbf16>, vector<8x512xf32> -> vector<8x512xf32>
    %1288 = vector.broadcast %11 : vector<1x512xf32> to vector<8x512xf32>
    %1289 = arith.addf %1287, %1288 : vector<8x512xf32>
    %1290 = vector.extract_strided_slice %1289 {offsets = [0, 0], sizes = [8, 128], strides = [1, 1]} : vector<8x512xf32> to vector<8x128xf32>
    %cst_357 = arith.constant 5.000000e-01 : f32
    %1291 = vector.broadcast %cst_357 : f32 to vector<8x128xf32>
    %1292 = arith.mulf %1291, %1290 : vector<8x128xf32>
    %1293 = math.tanh %1292 : vector<8x128xf32>
    %cst_358 = arith.constant 5.000000e-01 : f32
    %1294 = vector.broadcast %cst_358 : f32 to vector<8x128xf32>
    %1295 = arith.mulf %1294, %1293 : vector<8x128xf32>
    %cst_359 = arith.constant 5.000000e-01 : f32
    %1296 = vector.broadcast %cst_359 : f32 to vector<8x128xf32>
    %1297 = arith.addf %1295, %1296 : vector<8x128xf32>
    %1298 = vector.extract_strided_slice %1289 {offsets = [0, 128], sizes = [8, 128], strides = [1, 1]} : vector<8x512xf32> to vector<8x128xf32>
    %cst_360 = arith.constant 5.000000e-01 : f32
    %1299 = vector.broadcast %cst_360 : f32 to vector<8x128xf32>
    %1300 = arith.mulf %1299, %1298 : vector<8x128xf32>
    %1301 = math.tanh %1300 : vector<8x128xf32>
    %cst_361 = arith.constant 5.000000e-01 : f32
    %1302 = vector.broadcast %cst_361 : f32 to vector<8x128xf32>
    %1303 = arith.mulf %1302, %1301 : vector<8x128xf32>
    %cst_362 = arith.constant 5.000000e-01 : f32
    %1304 = vector.broadcast %cst_362 : f32 to vector<8x128xf32>
    %1305 = arith.addf %1303, %1304 : vector<8x128xf32>
    %1306 = vector.extract_strided_slice %1289 {offsets = [0, 256], sizes = [8, 128], strides = [1, 1]} : vector<8x512xf32> to vector<8x128xf32>
    %1307 = math.tanh %1306 : vector<8x128xf32>
    %1308 = vector.extract_strided_slice %1289 {offsets = [0, 384], sizes = [8, 128], strides = [1, 1]} : vector<8x512xf32> to vector<8x128xf32>
    %cst_363 = arith.constant 5.000000e-01 : f32
    %1309 = vector.broadcast %cst_363 : f32 to vector<8x128xf32>
    %1310 = arith.mulf %1309, %1308 : vector<8x128xf32>
    %1311 = math.tanh %1310 : vector<8x128xf32>
    %cst_364 = arith.constant 5.000000e-01 : f32
    %1312 = vector.broadcast %cst_364 : f32 to vector<8x128xf32>
    %1313 = arith.mulf %1312, %1311 : vector<8x128xf32>
    %cst_365 = arith.constant 5.000000e-01 : f32
    %1314 = vector.broadcast %cst_365 : f32 to vector<8x128xf32>
    %1315 = arith.addf %1313, %1314 : vector<8x128xf32>
    %1316 = arith.mulf %1305, %1209 : vector<8x128xf32>
    %1317 = arith.mulf %1297, %1307 : vector<8x128xf32>
    %1318 = arith.addf %1316, %1317 : vector<8x128xf32>
    %1319 = math.tanh %1318 : vector<8x128xf32>
    %1320 = arith.mulf %1315, %1319 : vector<8x128xf32>
    %c1_i32_366 = arith.constant 1 : i32
    %1321 = arith.cmpi sge, %c9_i32, %c1_i32_366 : i32
    %1322 = arith.extui %1321 : i1 to i32
    %1323 = arith.sitofp %1322 : i32 to f32
    %c2_i32_367 = arith.constant 2 : i32
    %1324 = arith.cmpi sge, %c9_i32, %c2_i32_367 : i32
    %1325 = arith.extui %1324 : i1 to i32
    %1326 = arith.sitofp %1325 : i32 to f32
    %1327 = arith.subf %1284, %1197 : vector<8x128xf32>
    %1328 = vector.broadcast %1323 : f32 to vector<8x128xf32>
    %1329 = arith.mulf %1328, %1327 : vector<8x128xf32>
    %1330 = arith.addf %1197, %1329 : vector<8x128xf32>
    %1331 = arith.subf %1282, %1201 : vector<8x128xf32>
    %1332 = vector.broadcast %1323 : f32 to vector<8x128xf32>
    %1333 = arith.mulf %1332, %1331 : vector<8x128xf32>
    %1334 = arith.addf %1201, %1333 : vector<8x128xf32>
    %1335 = arith.subf %1320, %1205 : vector<8x128xf32>
    %1336 = vector.broadcast %1326 : f32 to vector<8x128xf32>
    %1337 = arith.mulf %1336, %1335 : vector<8x128xf32>
    %1338 = arith.addf %1205, %1337 : vector<8x128xf32>
    %1339 = arith.subf %1318, %1209 : vector<8x128xf32>
    %1340 = vector.broadcast %1326 : f32 to vector<8x128xf32>
    %1341 = arith.mulf %1340, %1339 : vector<8x128xf32>
    %1342 = arith.addf %1209, %1341 : vector<8x128xf32>
    %c10_i32 = arith.constant 10 : i32
    %1343 = arith.truncf %1338 : vector<8x128xf32> to vector<8x128xbf16>
    %c0_368 = arith.constant 0 : index
    %c0_369 = arith.constant 0 : index
    %1344 = vector.load %arg8[%c0_368, %c0_369] : memref<128x128xbf16, #tpu.memory_space<vmem>>, vector<128x128xbf16>
    %cst_370 = arith.constant dense<0.000000e+00> : vector<8x128xf32>
    %1345 = tpu.matmul %1343, %1344, %cst_370 {dimension_numbers = #tpu.dot_dimension_numbers<[1], [0], [0], [1], [0, 0, 1, 1], [], []>} : vector<8x128xbf16>, vector<128x128xbf16>, vector<8x128xf32> -> vector<8x128xf32>
    %c0_371 = arith.constant 0 : index
    %c0_372 = arith.constant 0 : index
    %1346 = vector.load %arg9[%c0_371, %c0_372] : memref<1x128xf32, #tpu.memory_space<vmem>>, vector<1x128xf32>
    %1347 = vector.broadcast %1346 : vector<1x128xf32> to vector<8x128xf32>
    %1348 = arith.addf %1345, %1347 : vector<8x128xf32>
    %cst_373 = arith.constant 0.000000e+00 : f32
    %1349 = vector.broadcast %cst_373 : f32 to vector<8x128xf32>
    %1350 = arith.maximumf %1348, %1349 : vector<8x128xf32>
    %1351 = arith.truncf %1350 : vector<8x128xf32> to vector<8x128xbf16>
    %c0_374 = arith.constant 0 : index
    %c0_375 = arith.constant 0 : index
    %1352 = vector.load %arg10[%c0_374, %c0_375] : memref<128x128xbf16, #tpu.memory_space<vmem>>, vector<128x128xbf16>
    %cst_376 = arith.constant dense<0.000000e+00> : vector<8x128xf32>
    %1353 = tpu.matmul %1351, %1352, %cst_376 {dimension_numbers = #tpu.dot_dimension_numbers<[1], [0], [0], [1], [0, 0, 1, 1], [], []>} : vector<8x128xbf16>, vector<128x128xbf16>, vector<8x128xf32> -> vector<8x128xf32>
    %c0_377 = arith.constant 0 : index
    %c0_378 = arith.constant 0 : index
    %1354 = vector.load %arg11[%c0_377, %c0_378] : memref<1x128xf32, #tpu.memory_space<vmem>>, vector<1x128xf32>
    %1355 = vector.broadcast %1354 : vector<1x128xf32> to vector<8x128xf32>
    %1356 = arith.addf %1353, %1355 : vector<8x128xf32>
    %c0_379 = arith.constant 0 : index
    %c0_380 = arith.constant 0 : index
    %1357 = vector.load %arg12[%c0_379, %c0_380] : memref<8x128xf32, #tpu.memory_space<vmem>>, vector<8x128xf32>
    tpu.vector_store %arg12[%c0_379, %c0_380], %1356 {strides = array<i32>} : memref<8x128xf32, #tpu.memory_space<vmem>>, vector<8x128xf32>,
    return
  }
}

</mosaic_0001>

<llo_original>
// kernel: lstm_net_forward.1
$region0: #{lstm_net_forward.1}
  #allocation0 [shape = 'u32[]', space=smem, size = 0x4, offset = 0x4, fixed_abs, tag = 'smem constant byte address 0x4 - core index']
  #allocation1 [shape = 'u32[144,128]{1,0:T(1,128)}', space=vmem, size = 0x12000, scoped, tag = 'internal scratch']
  #allocation2 [shape = 'f32[64,512]{1,0:T(8,128)}', space=vmem, size = 0x20000, scoped, tag = 'scratch operand']
  %s0 = inlined_call_operand.vmem [shape: bf16[64,768], index: 0, kind: input, shape index: {}]
  %s1 = inlined_call_operand.vmem [shape: bf16[768,512], index: 1, kind: input, shape index: {}]
  %s2 = inlined_call_operand.vmem [shape: bf16[128,512], index: 2, kind: input, shape index: {}]
  %s3 = inlined_call_operand.vmem [shape: f32[1,512], index: 3, kind: input, shape index: {}]
  %s4 = inlined_call_operand.hbm [shape: bf16[256,512], index: 4, kind: input, shape index: {}]
  %s5 = inlined_call_operand.vmem [shape: f32[1,512], index: 5, kind: input, shape index: {}]
  %s6 = inlined_call_operand.hbm [shape: bf16[256,512], index: 6, kind: input, shape index: {}]
  %s7 = inlined_call_operand.vmem [shape: f32[1,512], index: 7, kind: input, shape index: {}]
  %s8 = inlined_call_operand.vmem [shape: bf16[128,128], index: 8, kind: input, shape index: {}]
  %s9 = inlined_call_operand.vmem [shape: f32[1,128], index: 9, kind: input, shape index: {}]
  %s10 = inlined_call_operand.vmem [shape: bf16[128,128], index: 10, kind: input, shape index: {}]
  %s11 = inlined_call_operand.vmem [shape: f32[1,128], index: 11, kind: input, shape index: {}]
  %s12 = inlined_call_operand.vmem [shape: f32[8,128], index: 12, kind: output, shape index: {}]
  %s13 = sld [smem:[#allocation0]]
  $region66: #{lstm_net_forward.1} parent=0
    _
  %s15 = ssub.s32 1, %s13
  %s16 = scalar_select 0, %s15, %s13
  $region1: #{lstm_net_forward.1} parent=0
    #allocation3 [shape = 'u8[262144]{0}', space=vmem, size = 0x40000, scoped, tag = 'input window, operand 4, single buffered']
    #allocation4 [shape = 's32[1]{0}', space=sflag, size = 0x4, scoped, tag = 'scoped memory for lstm_net_forward.1']
    #allocation5 [shape = 'u8[262144]{0}', space=vmem, size = 0x40000, scoped, tag = 'input window, operand 6, single buffered']
    #allocation6 [shape = 's32[1]{0}', space=sflag, size = 0x4, scoped, tag = 'scoped memory for lstm_net_forward.1']
    %17 = vsyncpa [#allocation4], 0
    %18 = vsyncpa [#allocation6], 0
    // Predicated region
    $region2: #{lstm_net_forward.1} parent=1 // pred_check
      _
    $region3: #{lstm_net_forward.1} parent=1 // pred_check_branch
      %20 = sbr.rel (0) target = $region5
    $region4: #{lstm_net_forward.1} parent=1 // pred_region
      _
    $region5: #{lstm_net_forward.1} parent=1 // pred_fallthru
      _
    // Predicated region
    $region6: #{lstm_net_forward.1} parent=1 // pred_check
      _
    $region7: #{lstm_net_forward.1} parent=1 // pred_check_branch
      %22 = sbr.rel (0) target = $region9
    $region8: #{lstm_net_forward.1} parent=1 // pred_region
      _
    $region9: #{lstm_net_forward.1} parent=1 // pred_fallthru
      _
    // Predicated region
    $region10: #{lstm_net_forward.1} parent=1 // pred_check
      _
    $region11: #{lstm_net_forward.1} parent=1 // pred_check_branch
      %24 = sbr.rel (0) target = $region13
    $region12: #{lstm_net_forward.1} parent=1 // pred_region
      _
    $region13: #{lstm_net_forward.1} parent=1 // pred_fallthru
      _
    // Predicated region
    $region14: #{lstm_net_forward.1} parent=1 // pred_check
      _
    $region15: #{lstm_net_forward.1} parent=1 // pred_check_branch
      %26 = sbr.rel (0) target = $region17
    $region16: #{lstm_net_forward.1} parent=1 // pred_region
      _
    $region17: #{lstm_net_forward.1} parent=1 // pred_fallthru
      _
    // Predicated region
    $region18: #{lstm_net_forward.1} parent=1 // pred_check
      _
    $region19: #{lstm_net_forward.1} parent=1 // pred_check_branch
      %28 = sbr.rel (0) target = $region21
    $region20: #{lstm_net_forward.1} parent=1 // pred_region
      %s30 = ssub.s32 8192, 8192
      %31 = vsyncadd [#allocation4], %s30
      %s32 = sshll.u32 [#allocation3], 4
      %s33 = int_to_ptr.vmem [resolvable:$true] %s32
      %38 = dma.hbm_to_vmem [thread:$0]  %s4, 8192, %s33, [#allocation4], 256, 256, 16
    $region21: #{lstm_net_forward.1} parent=1 // pred_fallthru
      _
    // Predicated region
    $region22: #{lstm_net_forward.1} parent=1 // pred_check
      _
    $region23: #{lstm_net_forward.1} parent=1 // pred_check_branch
      %40 = sbr.rel (0) target = $region25
    $region24: #{lstm_net_forward.1} parent=1 // pred_region
      _
    $region25: #{lstm_net_forward.1} parent=1 // pred_fallthru
      _
    // Predicated region
    $region26: #{lstm_net_forward.1} parent=1 // pred_check
      _
    $region27: #{lstm_net_forward.1} parent=1 // pred_check_branch
      %42 = sbr.rel (0) target = $region29
    $region28: #{lstm_net_forward.1} parent=1 // pred_region
      %s44 = ssub.s32 8192, 8192
      %45 = vsyncadd [#allocation6], %s44
      %s46 = sshll.u32 [#allocation5], 4
      %s47 = int_to_ptr.vmem [resolvable:$true] %s46
      %52 = dma.hbm_to_vmem [thread:$0]  %s6, 8192, %s47, [#allocation6], 256, 256, 16
    $region29: #{lstm_net_forward.1} parent=1 // pred_fallthru
      _
    // Predicated region
    $region30: #{lstm_net_forward.1} parent=1 // pred_check
      _
    $region31: #{lstm_net_forward.1} parent=1 // pred_check_branch
      %54 = sbr.rel (0) target = $region33
    $region32: #{lstm_net_forward.1} parent=1 // pred_region
      _
    $region33: #{lstm_net_forward.1} parent=1 // pred_fallthru
      _
    // Predicated region
    $region34: #{lstm_net_forward.1} parent=1 // pred_check
      _
    $region35: #{lstm_net_forward.1} parent=1 // pred_check_branch
      %56 = sbr.rel (0) target = $region37
    $region36: #{lstm_net_forward.1} parent=1 // pred_region
      _
    $region37: #{lstm_net_forward.1} parent=1 // pred_fallthru
      _
    // Predicated region
    $region38: #{lstm_net_forward.1} parent=1 // pred_check
      _
    $region39: #{lstm_net_forward.1} parent=1 // pred_check_branch
      %58 = sbr.rel (0) target = $region41
    $region40: #{lstm_net_forward.1} parent=1 // pred_region
      _
    $region41: #{lstm_net_forward.1} parent=1 // pred_fallthru
      _
    // Predicated region
    $region42: #{lstm_net_forward.1} parent=1 // pred_check
      _
    $region43: #{lstm_net_forward.1} parent=1 // pred_check_branch
      %60 = sbr.rel (0) target = $region45
    $region44: #{lstm_net_forward.1} parent=1 // pred_region
      _
    $region45: #{lstm_net_forward.1} parent=1 // pred_fallthru
      _
    // Predicated region
    $region46: #{lstm_net_forward.1} parent=1 // pred_check
      _
    $region47: #{lstm_net_forward.1} parent=1 // pred_check_branch
      %62 = sbr.rel (0) target = $region49
    $region48: #{lstm_net_forward.1} parent=1 // pred_region
      _
    $region49: #{lstm_net_forward.1} parent=1 // pred_fallthru
      _
    // Predicated region
    $region50: #{lstm_net_forward.1} parent=1 // pred_check
      _
    $region51: #{lstm_net_forward.1} parent=1 // pred_check_branch
      %64 = sbr.rel (0) target = $region53
    $region52: #{lstm_net_forward.1} parent=1 // pred_region
      %65 = dma.done [#allocation4], 8192
    $region53: #{lstm_net_forward.1} parent=1 // pred_fallthru
      _
    // Predicated region
    $region54: #{lstm_net_forward.1} parent=1 // pred_check
      _
    $region55: #{lstm_net_forward.1} parent=1 // pred_check_branch
      %67 = sbr.rel (0) target = $region57
    $region56: #{lstm_net_forward.1} parent=1 // pred_region
      %68 = dma.done [#allocation6], 8192
    $region57: #{lstm_net_forward.1} parent=1 // pred_fallthru
      _
    %v70 = vld [vmem:[%s0] sm:$0xff]
    %v71 = vld [vmem:[%s0 + $0x8] sm:$0xff]
    %v72 = vld [vmem:[%s0 + $0x10] sm:$0xff]
    %v73 = vld [vmem:[%s0 + $0x18] sm:$0xff]
    %v74 = vld [vmem:[%s0 + $0x20] sm:$0xff]
    %v75 = vld [vmem:[%s0 + $0x28] sm:$0xff]
    %v76 = vld [vmem:[%s0 + $0x30] sm:$0xff]
    %v77 = vld [vmem:[%s0 + $0x38] sm:$0xff]
    %v78 = vld [vmem:[%s0 + $0x40] sm:$0xff]
    %v79 = vld [vmem:[%s0 + $0x48] sm:$0xff]
    %v80 = vld [vmem:[%s0 + $0x50] sm:$0xff]
    %v81 = vld [vmem:[%s0 + $0x58] sm:$0xff]
    %v82 = vld [vmem:[%s0 + $0x60] sm:$0xff]
    %v83 = vld [vmem:[%s0 + $0x68] sm:$0xff]
    %v84 = vld [vmem:[%s0 + $0x70] sm:$0xff]
    %v85 = vld [vmem:[%s0 + $0x78] sm:$0xff]
    %v86 = vld [vmem:[%s0 + $0x80] sm:$0xff]
    %v87 = vld [vmem:[%s0 + $0x88] sm:$0xff]
    %v88 = vld [vmem:[%s0 + $0x90] sm:$0xff]
    %v89 = vld [vmem:[%s0 + $0x98] sm:$0xff]
    %v90 = vld [vmem:[%s0 + $0xa0] sm:$0xff]
    %v91 = vld [vmem:[%s0 + $0xa8] sm:$0xff]
    %v92 = vld [vmem:[%s0 + $0xb0] sm:$0xff]
    %v93 = vld [vmem:[%s0 + $0xb8] sm:$0xff]
    %v94 = vld [vmem:[%s1] sm:$0xff]
    %v95 = vld [vmem:[%s1 + $0x8] sm:$0xff]
    %v96 = vld [vmem:[%s1 + $0x10] sm:$0xff]
    %v97 = vld [vmem:[%s1 + $0x18] sm:$0xff]
    %v98 = vld [vmem:[%s1 + $0x20] sm:$0xff]
    %v99 = vld [vmem:[%s1 + $0x28] sm:$0xff]
    %v100 = vld [vmem:[%s1 + $0x30] sm:$0xff]
    %v101 = vld [vmem:[%s1 + $0x38] sm:$0xff]
    %v102 = vld [vmem:[%s1 + $0x40] sm:$0xff]
    %v103 = vld [vmem:[%s1 + $0x48] sm:$0xff]
    %v104 = vld [vmem:[%s1 + $0x50] sm:$0xff]
    %v105 = vld [vmem:[%s1 + $0x58] sm:$0xff]
    %v106 = vld [vmem:[%s1 + $0x60] sm:$0xff]
    %v107 = vld [vmem:[%s1 + $0x68] sm:$0xff]
    %v108 = vld [vmem:[%s1 + $0x70] sm:$0xff]
    %v109 = vld [vmem:[%s1 + $0x78] sm:$0xff]
    %v110 = vld [vmem:[%s1 + $0x80] sm:$0xff]
    %v111 = vld [vmem:[%s1 + $0x88] sm:$0xff]
    %v112 = vld [vmem:[%s1 + $0x90] sm:$0xff]
    %v113 = vld [vmem:[%s1 + $0x98] sm:$0xff]
    %v114 = vld [vmem:[%s1 + $0xa0] sm:$0xff]
    %v115 = vld [vmem:[%s1 + $0xa8] sm:$0xff]
    %v116 = vld [vmem:[%s1 + $0xb0] sm:$0xff]
    %v117 = vld [vmem:[%s1 + $0xb8] sm:$0xff]
    %v118 = vld [vmem:[%s1 + $0xc0] sm:$0xff]
    %v119 = vld [vmem:[%s1 + $0xc8] sm:$0xff]
    %v120 = vld [vmem:[%s1 + $0xd0] sm:$0xff]
    %v121 = vld [vmem:[%s1 + $0xd8] sm:$0xff]
    %v122 = vld [vmem:[%s1 + $0xe0] sm:$0xff]
    %v123 = vld [vmem:[%s1 + $0xe8] sm:$0xff]
    %v124 = vld [vmem:[%s1 + $0xf0] sm:$0xff]
    %v125 = vld [vmem:[%s1 + $0xf8] sm:$0xff]
    %v126 = vld [vmem:[%s1 + $0x100] sm:$0xff]
    %v127 = vld [vmem:[%s1 + $0x108] sm:$0xff]
    %v128 = vld [vmem:[%s1 + $0x110] sm:$0xff]
    %v129 = vld [vmem:[%s1 + $0x118] sm:$0xff]
    %v130 = vld [vmem:[%s1 + $0x120] sm:$0xff]
    %v131 = vld [vmem:[%s1 + $0x128] sm:$0xff]
    %v132 = vld [vmem:[%s1 + $0x130] sm:$0xff]
    %v133 = vld [vmem:[%s1 + $0x138] sm:$0xff]
    %v134 = vld [vmem:[%s1 + $0x140] sm:$0xff]
    %v135 = vld [vmem:[%s1 + $0x148] sm:$0xff]
    %v136 = vld [vmem:[%s1 + $0x150] sm:$0xff]
    %v137 = vld [vmem:[%s1 + $0x158] sm:$0xff]
    %v138 = vld [vmem:[%s1 + $0x160] sm:$0xff]
    %v139 = vld [vmem:[%s1 + $0x168] sm:$0xff]
    %v140 = vld [vmem:[%s1 + $0x170] sm:$0xff]
    %v141 = vld [vmem:[%s1 + $0x178] sm:$0xff]
    %v142 = vld [vmem:[%s1 + $0x180] sm:$0xff]
    %v143 = vld [vmem:[%s1 + $0x188] sm:$0xff]
    %v144 = vld [vmem:[%s1 + $0x190] sm:$0xff]
    %v145 = vld [vmem:[%s1 + $0x198] sm:$0xff]
    %v146 = vld [vmem:[%s1 + $0x1a0] sm:$0xff]
    %v147 = vld [vmem:[%s1 + $0x1a8] sm:$0xff]
    %v148 = vld [vmem:[%s1 + $0x1b0] sm:$0xff]
    %v149 = vld [vmem:[%s1 + $0x1b8] sm:$0xff]
    %v150 = vld [vmem:[%s1 + $0x1c0] sm:$0xff]
    %v151 = vld [vmem:[%s1 + $0x1c8] sm:$0xff]
    %v152 = vld [vmem:[%s1 + $0x1d0] sm:$0xff]
    %v153 = vld [vmem:[%s1 + $0x1d8] sm:$0xff]
    %v154 = vld [vmem:[%s1 + $0x1e0] sm:$0xff]
    %v155 = vld [vmem:[%s1 + $0x1e8] sm:$0xff]
    %v156 = vld [vmem:[%s1 + $0x1f0] sm:$0xff]
    %v157 = vld [vmem:[%s1 + $0x1f8] sm:$0xff]
    %v158 = vld [vmem:[%s1 + $0x200] sm:$0xff]
    %v159 = vld [vmem:[%s1 + $0x208] sm:$0xff]
    %v160 = vld [vmem:[%s1 + $0x210] sm:$0xff]
    %v161 = vld [vmem:[%s1 + $0x218] sm:$0xff]
    %v162 = vld [vmem:[%s1 + $0x220] sm:$0xff]
    %v163 = vld [vmem:[%s1 + $0x228] sm:$0xff]
    %v164 = vld [vmem:[%s1 + $0x230] sm:$0xff]
    %v165 = vld [vmem:[%s1 + $0x238] sm:$0xff]
    %v166 = vld [vmem:[%s1 + $0x240] sm:$0xff]
    %v167 = vld [vmem:[%s1 + $0x248] sm:$0xff]
    %v168 = vld [vmem:[%s1 + $0x250] sm:$0xff]
    %v169 = vld [vmem:[%s1 + $0x258] sm:$0xff]
    %v170 = vld [vmem:[%s1 + $0x260] sm:$0xff]
    %v171 = vld [vmem:[%s1 + $0x268] sm:$0xff]
    %v172 = vld [vmem:[%s1 + $0x270] sm:$0xff]
    %v173 = vld [vmem:[%s1 + $0x278] sm:$0xff]
    %v174 = vld [vmem:[%s1 + $0x280] sm:$0xff]
    %v175 = vld [vmem:[%s1 + $0x288] sm:$0xff]
    %v176 = vld [vmem:[%s1 + $0x290] sm:$0xff]
    %v177 = vld [vmem:[%s1 + $0x298] sm:$0xff]
    %v178 = vld [vmem:[%s1 + $0x2a0] sm:$0xff]
    %v179 = vld [vmem:[%s1 + $0x2a8] sm:$0xff]
    %v180 = vld [vmem:[%s1 + $0x2b0] sm:$0xff]
    %v181 = vld [vmem:[%s1 + $0x2b8] sm:$0xff]
    %v182 = vld [vmem:[%s1 + $0x2c0] sm:$0xff]
    %v183 = vld [vmem:[%s1 + $0x2c8] sm:$0xff]
    %v184 = vld [vmem:[%s1 + $0x2d0] sm:$0xff]
    %v185 = vld [vmem:[%s1 + $0x2d8] sm:$0xff]
    %v186 = vld [vmem:[%s1 + $0x2e0] sm:$0xff]
    %v187 = vld [vmem:[%s1 + $0x2e8] sm:$0xff]
    %v188 = vld [vmem:[%s1 + $0x2f0] sm:$0xff]
    %v189 = vld [vmem:[%s1 + $0x2f8] sm:$0xff]
    %v190 = vld [vmem:[%s1 + $0x300] sm:$0xff]
    %v191 = vld [vmem:[%s1 + $0x308] sm:$0xff]
    %v192 = vld [vmem:[%s1 + $0x310] sm:$0xff]
    %v193 = vld [vmem:[%s1 + $0x318] sm:$0xff]
    %v194 = vld [vmem:[%s1 + $0x320] sm:$0xff]
    %v195 = vld [vmem:[%s1 + $0x328] sm:$0xff]
    %v196 = vld [vmem:[%s1 + $0x330] sm:$0xff]
    %v197 = vld [vmem:[%s1 + $0x338] sm:$0xff]
    %v198 = vld [vmem:[%s1 + $0x340] sm:$0xff]
    %v199 = vld [vmem:[%s1 + $0x348] sm:$0xff]
    %v200 = vld [vmem:[%s1 + $0x350] sm:$0xff]
    %v201 = vld [vmem:[%s1 + $0x358] sm:$0xff]
    %v202 = vld [vmem:[%s1 + $0x360] sm:$0xff]
    %v203 = vld [vmem:[%s1 + $0x368] sm:$0xff]
    %v204 = vld [vmem:[%s1 + $0x370] sm:$0xff]
    %v205 = vld [vmem:[%s1 + $0x378] sm:$0xff]
    %v206 = vld [vmem:[%s1 + $0x380] sm:$0xff]
    %v207 = vld [vmem:[%s1 + $0x388] sm:$0xff]
    %v208 = vld [vmem:[%s1 + $0x390] sm:$0xff]
    %v209 = vld [vmem:[%s1 + $0x398] sm:$0xff]
    %v210 = vld [vmem:[%s1 + $0x3a0] sm:$0xff]
    %v211 = vld [vmem:[%s1 + $0x3a8] sm:$0xff]
    %v212 = vld [vmem:[%s1 + $0x3b0] sm:$0xff]
    %v213 = vld [vmem:[%s1 + $0x3b8] sm:$0xff]
    %v214 = vld [vmem:[%s1 + $0x3c0] sm:$0xff]
    %v215 = vld [vmem:[%s1 + $0x3c8] sm:$0xff]
    %v216 = vld [vmem:[%s1 + $0x3d0] sm:$0xff]
    %v217 = vld [vmem:[%s1 + $0x3d8] sm:$0xff]
    %v218 = vld [vmem:[%s1 + $0x3e0] sm:$0xff]
    %v219 = vld [vmem:[%s1 + $0x3e8] sm:$0xff]
    %v220 = vld [vmem:[%s1 + $0x3f0] sm:$0xff]
    %v221 = vld [vmem:[%s1 + $0x3f8] sm:$0xff]
    %v222 = vld [vmem:[%s1 + $0x400] sm:$0xff]
    %v223 = vld [vmem:[%s1 + $0x408] sm:$0xff]
    %v224 = vld [vmem:[%s1 + $0x410] sm:$0xff]
    %v225 = vld [vmem:[%s1 + $0x418] sm:$0xff]
    %v226 = vld [vmem:[%s1 + $0x420] sm:$0xff]
    %v227 = vld [vmem:[%s1 + $0x428] sm:$0xff]
    %v228 = vld [vmem:[%s1 + $0x430] sm:$0xff]
    %v229 = vld [vmem:[%s1 + $0x438] sm:$0xff]
    %v230 = vld [vmem:[%s1 + $0x440] sm:$0xff]
    %v231 = vld [vmem:[%s1 + $0x448] sm:$0xff]
    %v232 = vld [vmem:[%s1 + $0x450] sm:$0xff]
    %v233 = vld [vmem:[%s1 + $0x458] sm:$0xff]
    %v234 = vld [vmem:[%s1 + $0x460] sm:$0xff]
    %v235 = vld [vmem:[%s1 + $0x468] sm:$0xff]
    %v236 = vld [vmem:[%s1 + $0x470] sm:$0xff]
    %v237 = vld [vmem:[%s1 + $0x478] sm:$0xff]
    %v238 = vld [vmem:[%s1 + $0x480] sm:$0xff]
    %v239 = vld [vmem:[%s1 + $0x488] sm:$0xff]
    %v240 = vld [vmem:[%s1 + $0x490] sm:$0xff]
    %v241 = vld [vmem:[%s1 + $0x498] sm:$0xff]
    %v242 = vld [vmem:[%s1 + $0x4a0] sm:$0xff]
    %v243 = vld [vmem:[%s1 + $0x4a8] sm:$0xff]
    %v244 = vld [vmem:[%s1 + $0x4b0] sm:$0xff]
    %v245 = vld [vmem:[%s1 + $0x4b8] sm:$0xff]
    %v246 = vld [vmem:[%s1 + $0x4c0] sm:$0xff]
    %v247 = vld [vmem:[%s1 + $0x4c8] sm:$0xff]
    %v248 = vld [vmem:[%s1 + $0x4d0] sm:$0xff]
    %v249 = vld [vmem:[%s1 + $0x4d8] sm:$0xff]
    %v250 = vld [vmem:[%s1 + $0x4e0] sm:$0xff]
    %v251 = vld [vmem:[%s1 + $0x4e8] sm:$0xff]
    %v252 = vld [vmem:[%s1 + $0x4f0] sm:$0xff]
    %v253 = vld [vmem:[%s1 + $0x4f8] sm:$0xff]
    %v254 = vld [vmem:[%s1 + $0x500] sm:$0xff]
    %v255 = vld [vmem:[%s1 + $0x508] sm:$0xff]
    %v256 = vld [vmem:[%s1 + $0x510] sm:$0xff]
    %v257 = vld [vmem:[%s1 + $0x518] sm:$0xff]
    %v258 = vld [vmem:[%s1 + $0x520] sm:$0xff]
    %v259 = vld [vmem:[%s1 + $0x528] sm:$0xff]
    %v260 = vld [vmem:[%s1 + $0x530] sm:$0xff]
    %v261 = vld [vmem:[%s1 + $0x538] sm:$0xff]
    %v262 = vld [vmem:[%s1 + $0x540] sm:$0xff]
    %v263 = vld [vmem:[%s1 + $0x548] sm:$0xff]
    %v264 = vld [vmem:[%s1 + $0x550] sm:$0xff]
    %v265 = vld [vmem:[%s1 + $0x558] sm:$0xff]
    %v266 = vld [vmem:[%s1 + $0x560] sm:$0xff]
    %v267 = vld [vmem:[%s1 + $0x568] sm:$0xff]
    %v268 = vld [vmem:[%s1 + $0x570] sm:$0xff]
    %v269 = vld [vmem:[%s1 + $0x578] sm:$0xff]
    %v270 = vld [vmem:[%s1 + $0x580] sm:$0xff]
    %v271 = vld [vmem:[%s1 + $0x588] sm:$0xff]
    %v272 = vld [vmem:[%s1 + $0x590] sm:$0xff]
    %v273 = vld [vmem:[%s1 + $0x598] sm:$0xff]
    %v274 = vld [vmem:[%s1 + $0x5a0] sm:$0xff]
    %v275 = vld [vmem:[%s1 + $0x5a8] sm:$0xff]
    %v276 = vld [vmem:[%s1 + $0x5b0] sm:$0xff]
    %v277 = vld [vmem:[%s1 + $0x5b8] sm:$0xff]
    %v278 = vld [vmem:[%s1 + $0x5c0] sm:$0xff]
    %v279 = vld [vmem:[%s1 + $0x5c8] sm:$0xff]
    %v280 = vld [vmem:[%s1 + $0x5d0] sm:$0xff]
    %v281 = vld [vmem:[%s1 + $0x5d8] sm:$0xff]
    %v282 = vld [vmem:[%s1 + $0x5e0] sm:$0xff]
    %v283 = vld [vmem:[%s1 + $0x5e8] sm:$0xff]
    %v284 = vld [vmem:[%s1 + $0x5f0] sm:$0xff]
    %v285 = vld [vmem:[%s1 + $0x5f8] sm:$0xff]
    %v286 = vld [vmem:[%s3] sm:$0xf]
    %v288 = vlaneseq
    %v289 = vshrl.u32 %v288, 7
    %v290 = vsub.s32 0, %v289
    %v291 = vrot.slane %v286, %v290
    %v292 = vlaneseq
    %v293 = vshrl.u32 %v292, 7
    %v294 = vsub.s32 1, %v293
    %v295 = vrot.slane %v286, %v294
    %v296 = vlaneseq
    %v297 = vshrl.u32 %v296, 7
    %v298 = vsub.s32 2, %v297
    %v299 = vrot.slane %v286, %v298
    %v300 = vlaneseq
    %v301 = vshrl.u32 %v300, 7
    %v302 = vsub.s32 3, %v301
    %v303 = vrot.slane %v286, %v302
    %v332 = vunpack.c.l.b16 %v70
    %v333 = vunpack.c.h.b16 %v70
    %v334 = vunpack.c.l.b16 %v71
    %v335 = vunpack.c.h.b16 %v71
    %v336 = vunpack.c.l.b16 %v72
    %v337 = vunpack.c.h.b16 %v72
    %v338 = vunpack.c.l.b16 %v73
    %v339 = vunpack.c.h.b16 %v73
    %v340 = vunpack.c.l.b16 %v74
    %v341 = vunpack.c.h.b16 %v74
    %v342 = vunpack.c.l.b16 %v75
    %v343 = vunpack.c.h.b16 %v75
    %v344 = vunpack.c.l.b16 %v76
    %v345 = vunpack.c.h.b16 %v76
    %v346 = vunpack.c.l.b16 %v77
    %v347 = vunpack.c.h.b16 %v77
    %v348 = vunpack.c.l.b16 %v78
    %v349 = vunpack.c.h.b16 %v78
    %v350 = vunpack.c.l.b16 %v79
    %v351 = vunpack.c.h.b16 %v79
    %v352 = vunpack.c.l.b16 %v80
    %v353 = vunpack.c.h.b16 %v80
    %v354 = vunpack.c.l.b16 %v81
    %v355 = vunpack.c.h.b16 %v81
    %v356 = vunpack.c.l.b16 %v82
    %v357 = vunpack.c.h.b16 %v82
    %v358 = vunpack.c.l.b16 %v83
    %v359 = vunpack.c.h.b16 %v83
    %v360 = vunpack.c.l.b16 %v84
    %v361 = vunpack.c.h.b16 %v84
    %v362 = vunpack.c.l.b16 %v85
    %v363 = vunpack.c.h.b16 %v85
    %v364 = vunpack.c.l.b16 %v86
    %v365 = vunpack.c.h.b16 %v86
    %v366 = vunpack.c.l.b16 %v87
    %v367 = vunpack.c.h.b16 %v87
    %v368 = vunpack.c.l.b16 %v88
    %v369 = vunpack.c.h.b16 %v88
    %v370 = vunpack.c.l.b16 %v89
    %v371 = vunpack.c.h.b16 %v89
    %v372 = vunpack.c.l.b16 %v90
    %v373 = vunpack.c.h.b16 %v90
    %v374 = vunpack.c.l.b16 %v91
    %v375 = vunpack.c.h.b16 %v91
    %v376 = vunpack.c.l.b16 %v92
    %v377 = vunpack.c.h.b16 %v92
    %v378 = vunpack.c.l.b16 %v93
    %v379 = vunpack.c.h.b16 %v93
    %v380 = vpack.c.b16 %v338, %v332
    %v381 = vpack.c.b16 %v339, %v333
    %v382 = vpack.c.b16 %v340, %v334
    %v383 = vpack.c.b16 %v341, %v335
    %v384 = vpack.c.b16 %v342, %v336
    %v385 = vpack.c.b16 %v343, %v337
    %v386 = vpack.c.b16 %v350, %v344
    %v387 = vpack.c.b16 %v351, %v345
    %v388 = vpack.c.b16 %v352, %v346
    %v389 = vpack.c.b16 %v353, %v347
    %v390 = vpack.c.b16 %v354, %v348
    %v391 = vpack.c.b16 %v355, %v349
    %v392 = vpack.c.b16 %v362, %v356
    %v393 = vpack.c.b16 %v363, %v357
    %v394 = vpack.c.b16 %v364, %v358
    %v395 = vpack.c.b16 %v365, %v359
    %v396 = vpack.c.b16 %v366, %v360
    %v397 = vpack.c.b16 %v367, %v361
    %v398 = vpack.c.b16 %v374, %v368
    %v399 = vpack.c.b16 %v375, %v369
    %v400 = vpack.c.b16 %v376, %v370
    %v401 = vpack.c.b16 %v377, %v371
    %v402 = vpack.c.b16 %v378, %v372
    %v403 = vpack.c.b16 %v379, %v373
    %v620 = vunpack.c.l.b16 %v94
    %v621 = vunpack.c.h.b16 %v94
    %v622 = vunpack.c.l.b16 %v95
    %v623 = vunpack.c.h.b16 %v95
    %v624 = vunpack.c.l.b16 %v96
    %v625 = vunpack.c.h.b16 %v96
    %v626 = vunpack.c.l.b16 %v97
    %v627 = vunpack.c.h.b16 %v97
    %v628 = vunpack.c.l.b16 %v98
    %v629 = vunpack.c.h.b16 %v98
    %v630 = vunpack.c.l.b16 %v99
    %v631 = vunpack.c.h.b16 %v99
    %v632 = vunpack.c.l.b16 %v100
    %v633 = vunpack.c.h.b16 %v100
    %v634 = vunpack.c.l.b16 %v101
    %v635 = vunpack.c.h.b16 %v101
    %v636 = vunpack.c.l.b16 %v102
    %v637 = vunpack.c.h.b16 %v102
    %v638 = vunpack.c.l.b16 %v103
    %v639 = vunpack.c.h.b16 %v103
    %v640 = vunpack.c.l.b16 %v104
    %v641 = vunpack.c.h.b16 %v104
    %v642 = vunpack.c.l.b16 %v105
    %v643 = vunpack.c.h.b16 %v105
    %v644 = vunpack.c.l.b16 %v106
    %v645 = vunpack.c.h.b16 %v106
    %v646 = vunpack.c.l.b16 %v107
    %v647 = vunpack.c.h.b16 %v107
    %v648 = vunpack.c.l.b16 %v108
    %v649 = vunpack.c.h.b16 %v108
    %v650 = vunpack.c.l.b16 %v109
    %v651 = vunpack.c.h.b16 %v109
    %v652 = vunpack.c.l.b16 %v110
    %v653 = vunpack.c.h.b16 %v110
    %v654 = vunpack.c.l.b16 %v111
    %v655 = vunpack.c.h.b16 %v111
    %v656 = vunpack.c.l.b16 %v112
    %v657 = vunpack.c.h.b16 %v112
    %v658 = vunpack.c.l.b16 %v113
    %v659 = vunpack.c.h.b16 %v113
    %v660 = vunpack.c.l.b16 %v114
    %v661 = vunpack.c.h.b16 %v114
    %v662 = vunpack.c.l.b16 %v115
    %v663 = vunpack.c.h.b16 %v115
    %v664 = vunpack.c.l.b16 %v116
    %v665 = vunpack.c.h.b16 %v116
    %v666 = vunpack.c.l.b16 %v117
    %v667 = vunpack.c.h.b16 %v117
    %v668 = vunpack.c.l.b16 %v118
    %v669 = vunpack.c.h.b16 %v118
    %v670 = vunpack.c.l.b16 %v119
    %v671 = vunpack.c.h.b16 %v119
    %v672 = vunpack.c.l.b16 %v120
    %v673 = vunpack.c.h.b16 %v120
    %v674 = vunpack.c.l.b16 %v121
    %v675 = vunpack.c.h.b16 %v121
    %v676 = vunpack.c.l.b16 %v122
    %v677 = vunpack.c.h.b16 %v122
    %v678 = vunpack.c.l.b16 %v123
    %v679 = vunpack.c.h.b16 %v123
    %v680 = vunpack.c.l.b16 %v124
    %v681 = vunpack.c.h.b16 %v124
    %v682 = vunpack.c.l.b16 %v125
    %v683 = vunpack.c.h.b16 %v125
    %v684 = vunpack.c.l.b16 %v126
    %v685 = vunpack.c.h.b16 %v126
    %v686 = vunpack.c.l.b16 %v127
    %v687 = vunpack.c.h.b16 %v127
    %v688 = vunpack.c.l.b16 %v128
    %v689 = vunpack.c.h.b16 %v128
    %v690 = vunpack.c.l.b16 %v129
    %v691 = vunpack.c.h.b16 %v129
    %v692 = vunpack.c.l.b16 %v130
    %v693 = vunpack.c.h.b16 %v130
    %v694 = vunpack.c.l.b16 %v131
    %v695 = vunpack.c.h.b16 %v131
    %v696 = vunpack.c.l.b16 %v132
    %v697 = vunpack.c.h.b16 %v132
    %v698 = vunpack.c.l.b16 %v133
    %v699 = vunpack.c.h.b16 %v133
    %v700 = vunpack.c.l.b16 %v134
    %v701 = vunpack.c.h.b16 %v134
    %v702 = vunpack.c.l.b16 %v135
    %v703 = vunpack.c.h.b16 %v135
    %v704 = vunpack.c.l.b16 %v136
    %v705 = vunpack.c.h.b16 %v136
    %v706 = vunpack.c.l.b16 %v137
    %v707 = vunpack.c.h.b16 %v137
    %v708 = vunpack.c.l.b16 %v138
    %v709 = vunpack.c.h.b16 %v138
    %v710 = vunpack.c.l.b16 %v139
    %v711 = vunpack.c.h.b16 %v139
    %v712 = vunpack.c.l.b16 %v140
    %v713 = vunpack.c.h.b16 %v140
    %v714 = vunpack.c.l.b16 %v141
    %v715 = vunpack.c.h.b16 %v141
    %v716 = vunpack.c.l.b16 %v142
    %v717 = vunpack.c.h.b16 %v142
    %v718 = vunpack.c.l.b16 %v143
    %v719 = vunpack.c.h.b16 %v143
    %v720 = vunpack.c.l.b16 %v144
    %v721 = vunpack.c.h.b16 %v144
    %v722 = vunpack.c.l.b16 %v145
    %v723 = vunpack.c.h.b16 %v145
    %v724 = vunpack.c.l.b16 %v146
    %v725 = vunpack.c.h.b16 %v146
    %v726 = vunpack.c.l.b16 %v147
    %v727 = vunpack.c.h.b16 %v147
    %v728 = vunpack.c.l.b16 %v148
    %v729 = vunpack.c.h.b16 %v148
    %v730 = vunpack.c.l.b16 %v149
    %v731 = vunpack.c.h.b16 %v149
    %v732 = vunpack.c.l.b16 %v150
    %v733 = vunpack.c.h.b16 %v150
    %v734 = vunpack.c.l.b16 %v151
    %v735 = vunpack.c.h.b16 %v151
    %v736 = vunpack.c.l.b16 %v152
    %v737 = vunpack.c.h.b16 %v152
    %v738 = vunpack.c.l.b16 %v153
    %v739 = vunpack.c.h.b16 %v153
    %v740 = vunpack.c.l.b16 %v154
    %v741 = vunpack.c.h.b16 %v154
    %v742 = vunpack.c.l.b16 %v155
    %v743 = vunpack.c.h.b16 %v155
    %v744 = vunpack.c.l.b16 %v156
    %v745 = vunpack.c.h.b16 %v156
    %v746 = vunpack.c.l.b16 %v157
    %v747 = vunpack.c.h.b16 %v157
    %v748 = vunpack.c.l.b16 %v158
    %v749 = vunpack.c.h.b16 %v158
    %v750 = vunpack.c.l.b16 %v159
    %v751 = vunpack.c.h.b16 %v159
    %v752 = vunpack.c.l.b16 %v160
    %v753 = vunpack.c.h.b16 %v160
    %v754 = vunpack.c.l.b16 %v161
    %v755 = vunpack.c.h.b16 %v161
    %v756 = vunpack.c.l.b16 %v162
    %v757 = vunpack.c.h.b16 %v162
    %v758 = vunpack.c.l.b16 %v163
    %v759 = vunpack.c.h.b16 %v163
    %v760 = vunpack.c.l.b16 %v164
    %v761 = vunpack.c.h.b16 %v164
    %v762 = vunpack.c.l.b16 %v165
    %v763 = vunpack.c.h.b16 %v165
    %v764 = vunpack.c.l.b16 %v166
    %v765 = vunpack.c.h.b16 %v166
    %v766 = vunpack.c.l.b16 %v167
    %v767 = vunpack.c.h.b16 %v167
    %v768 = vunpack.c.l.b16 %v168
    %v769 = vunpack.c.h.b16 %v168
    %v770 = vunpack.c.l.b16 %v169
    %v771 = vunpack.c.h.b16 %v169
    %v772 = vunpack.c.l.b16 %v170
    %v773 = vunpack.c.h.b16 %v170
    %v774 = vunpack.c.l.b16 %v171
    %v775 = vunpack.c.h.b16 %v171
    %v776 = vunpack.c.l.b16 %v172
    %v777 = vunpack.c.h.b16 %v172
    %v778 = vunpack.c.l.b16 %v173
    %v779 = vunpack.c.h.b16 %v173
    %v780 = vunpack.c.l.b16 %v174
    %v781 = vunpack.c.h.b16 %v174
    %v782 = vunpack.c.l.b16 %v175
    %v783 = vunpack.c.h.b16 %v175
    %v784 = vunpack.c.l.b16 %v176
    %v785 = vunpack.c.h.b16 %v176
    %v786 = vunpack.c.l.b16 %v177
    %v787 = vunpack.c.h.b16 %v177
    %v788 = vunpack.c.l.b16 %v178
    %v789 = vunpack.c.h.b16 %v178
    %v790 = vunpack.c.l.b16 %v179
    %v791 = vunpack.c.h.b16 %v179
    %v792 = vunpack.c.l.b16 %v180
    %v793 = vunpack.c.h.b16 %v180
    %v794 = vunpack.c.l.b16 %v181
    %v795 = vunpack.c.h.b16 %v181
    %v796 = vunpack.c.l.b16 %v182
    %v797 = vunpack.c.h.b16 %v182
    %v798 = vunpack.c.l.b16 %v183
    %v799 = vunpack.c.h.b16 %v183
    %v800 = vunpack.c.l.b16 %v184
    %v801 = vunpack.c.h.b16 %v184
    %v802 = vunpack.c.l.b16 %v185
    %v803 = vunpack.c.h.b16 %v185
    %v804 = vunpack.c.l.b16 %v186
    %v805 = vunpack.c.h.b16 %v186
    %v806 = vunpack.c.l.b16 %v187
    %v807 = vunpack.c.h.b16 %v187
    %v808 = vunpack.c.l.b16 %v188
    %v809 = vunpack.c.h.b16 %v188
    %v810 = vunpack.c.l.b16 %v189
    %v811 = vunpack.c.h.b16 %v189
    %v812 = vunpack.c.l.b16 %v190
    %v813 = vunpack.c.h.b16 %v190
    %v814 = vunpack.c.l.b16 %v191
    %v815 = vunpack.c.h.b16 %v191
    %v816 = vunpack.c.l.b16 %v192
    %v817 = vunpack.c.h.b16 %v192
    %v818 = vunpack.c.l.b16 %v193
    %v819 = vunpack.c.h.b16 %v193
    %v820 = vunpack.c.l.b16 %v194
    %v821 = vunpack.c.h.b16 %v194
    %v822 = vunpack.c.l.b16 %v195
    %v823 = vunpack.c.h.b16 %v195
    %v824 = vunpack.c.l.b16 %v196
    %v825 = vunpack.c.h.b16 %v196
    %v826 = vunpack.c.l.b16 %v197
    %v827 = vunpack.c.h.b16 %v197
    %v828 = vunpack.c.l.b16 %v198
    %v829 = vunpack.c.h.b16 %v198
    %v830 = vunpack.c.l.b16 %v199
    %v831 = vunpack.c.h.b16 %v199
    %v832 = vunpack.c.l.b16 %v200
    %v833 = vunpack.c.h.b16 %v200
    %v834 = vunpack.c.l.b16 %v201
    %v835 = vunpack.c.h.b16 %v201
    %v836 = vunpack.c.l.b16 %v202
    %v837 = vunpack.c.h.b16 %v202
    %v838 = vunpack.c.l.b16 %v203
    %v839 = vunpack.c.h.b16 %v203
    %v840 = vunpack.c.l.b16 %v204
    %v841 = vunpack.c.h.b16 %v204
    %v842 = vunpack.c.l.b16 %v205
    %v843 = vunpack.c.h.b16 %v205
    %v844 = vunpack.c.l.b16 %v206
    %v845 = vunpack.c.h.b16 %v206
    %v846 = vunpack.c.l.b16 %v207
    %v847 = vunpack.c.h.b16 %v207
    %v848 = vunpack.c.l.b16 %v208
    %v849 = vunpack.c.h.b16 %v208
    %v850 = vunpack.c.l.b16 %v209
    %v851 = vunpack.c.h.b16 %v209
    %v852 = vunpack.c.l.b16 %v210
    %v853 = vunpack.c.h.b16 %v210
    %v854 = vunpack.c.l.b16 %v211
    %v855 = vunpack.c.h.b16 %v211
    %v856 = vunpack.c.l.b16 %v212
    %v857 = vunpack.c.h.b16 %v212
    %v858 = vunpack.c.l.b16 %v213
    %v859 = vunpack.c.h.b16 %v213
    %v860 = vunpack.c.l.b16 %v214
    %v861 = vunpack.c.h.b16 %v214
    %v862 = vunpack.c.l.b16 %v215
    %v863 = vunpack.c.h.b16 %v215
    %v864 = vunpack.c.l.b16 %v216
    %v865 = vunpack.c.h.b16 %v216
    %v866 = vunpack.c.l.b16 %v217
    %v867 = vunpack.c.h.b16 %v217
    %v868 = vunpack.c.l.b16 %v218
    %v869 = vunpack.c.h.b16 %v218
    %v870 = vunpack.c.l.b16 %v219
    %v871 = vunpack.c.h.b16 %v219
    %v872 = vunpack.c.l.b16 %v220
    %v873 = vunpack.c.h.b16 %v220
    %v874 = vunpack.c.l.b16 %v221
    %v875 = vunpack.c.h.b16 %v221
    %v876 = vunpack.c.l.b16 %v222
    %v877 = vunpack.c.h.b16 %v222
    %v878 = vunpack.c.l.b16 %v223
    %v879 = vunpack.c.h.b16 %v223
    %v880 = vunpack.c.l.b16 %v224
    %v881 = vunpack.c.h.b16 %v224
    %v882 = vunpack.c.l.b16 %v225
    %v883 = vunpack.c.h.b16 %v225
    %v884 = vunpack.c.l.b16 %v226
    %v885 = vunpack.c.h.b16 %v226
    %v886 = vunpack.c.l.b16 %v227
    %v887 = vunpack.c.h.b16 %v227
    %v888 = vunpack.c.l.b16 %v228
    %v889 = vunpack.c.h.b16 %v228
    %v890 = vunpack.c.l.b16 %v229
    %v891 = vunpack.c.h.b16 %v229
    %v892 = vunpack.c.l.b16 %v230
    %v893 = vunpack.c.h.b16 %v230
    %v894 = vunpack.c.l.b16 %v231
    %v895 = vunpack.c.h.b16 %v231
    %v896 = vunpack.c.l.b16 %v232
    %v897 = vunpack.c.h.b16 %v232
    %v898 = vunpack.c.l.b16 %v233
    %v899 = vunpack.c.h.b16 %v233
    %v900 = vunpack.c.l.b16 %v234
    %v901 = vunpack.c.h.b16 %v234
    %v902 = vunpack.c.l.b16 %v235
    %v903 = vunpack.c.h.b16 %v235
    %v904 = vunpack.c.l.b16 %v236
    %v905 = vunpack.c.h.b16 %v236
    %v906 = vunpack.c.l.b16 %v237
    %v907 = vunpack.c.h.b16 %v237
    %v908 = vunpack.c.l.b16 %v238
    %v909 = vunpack.c.h.b16 %v238
    %v910 = vunpack.c.l.b16 %v239
    %v911 = vunpack.c.h.b16 %v239
    %v912 = vunpack.c.l.b16 %v240
    %v913 = vunpack.c.h.b16 %v240
    %v914 = vunpack.c.l.b16 %v241
    %v915 = vunpack.c.h.b16 %v241
    %v916 = vunpack.c.l.b16 %v242
    %v917 = vunpack.c.h.b16 %v242
    %v918 = vunpack.c.l.b16 %v243
    %v919 = vunpack.c.h.b16 %v243
    %v920 = vunpack.c.l.b16 %v244
    %v921 = vunpack.c.h.b16 %v244
    %v922 = vunpack.c.l.b16 %v245
    %v923 = vunpack.c.h.b16 %v245
    %v924 = vunpack.c.l.b16 %v246
    %v925 = vunpack.c.h.b16 %v246
    %v926 = vunpack.c.l.b16 %v247
    %v927 = vunpack.c.h.b16 %v247
    %v928 = vunpack.c.l.b16 %v248
    %v929 = vunpack.c.h.b16 %v248
    %v930 = vunpack.c.l.b16 %v249
    %v931 = vunpack.c.h.b16 %v249
    %v932 = vunpack.c.l.b16 %v250
    %v933 = vunpack.c.h.b16 %v250
    %v934 = vunpack.c.l.b16 %v251
    %v935 = vunpack.c.h.b16 %v251
    %v936 = vunpack.c.l.b16 %v252
    %v937 = vunpack.c.h.b16 %v252
    %v938 = vunpack.c.l.b16 %v253
    %v939 = vunpack.c.h.b16 %v253
    %v940 = vunpack.c.l.b16 %v254
    %v941 = vunpack.c.h.b16 %v254
    %v942 = vunpack.c.l.b16 %v255
    %v943 = vunpack.c.h.b16 %v255
    %v944 = vunpack.c.l.b16 %v256
    %v945 = vunpack.c.h.b16 %v256
    %v946 = vunpack.c.l.b16 %v257
    %v947 = vunpack.c.h.b16 %v257
    %v948 = vunpack.c.l.b16 %v258
    %v949 = vunpack.c.h.b16 %v258
    %v950 = vunpack.c.l.b16 %v259
    %v951 = vunpack.c.h.b16 %v259
    %v952 = vunpack.c.l.b16 %v260
    %v953 = vunpack.c.h.b16 %v260
    %v954 = vunpack.c.l.b16 %v261
    %v955 = vunpack.c.h.b16 %v261
    %v956 = vunpack.c.l.b16 %v262
    %v957 = vunpack.c.h.b16 %v262
    %v958 = vunpack.c.l.b16 %v263
    %v959 = vunpack.c.h.b16 %v263
    %v960 = vunpack.c.l.b16 %v264
    %v961 = vunpack.c.h.b16 %v264
    %v962 = vunpack.c.l.b16 %v265
    %v963 = vunpack.c.h.b16 %v265
    %v964 = vunpack.c.l.b16 %v266
    %v965 = vunpack.c.h.b16 %v266
    %v966 = vunpack.c.l.b16 %v267
    %v967 = vunpack.c.h.b16 %v267
    %v968 = vunpack.c.l.b16 %v268
    %v969 = vunpack.c.h.b16 %v268
    %v970 = vunpack.c.l.b16 %v269
    %v971 = vunpack.c.h.b16 %v269
    %v972 = vunpack.c.l.b16 %v270
    %v973 = vunpack.c.h.b16 %v270
    %v974 = vunpack.c.l.b16 %v271
    %v975 = vunpack.c.h.b16 %v271
    %v976 = vunpack.c.l.b16 %v272
    %v977 = vunpack.c.h.b16 %v272
    %v978 = vunpack.c.l.b16 %v273
    %v979 = vunpack.c.h.b16 %v273
    %v980 = vunpack.c.l.b16 %v274
    %v981 = vunpack.c.h.b16 %v274
    %v982 = vunpack.c.l.b16 %v275
    %v983 = vunpack.c.h.b16 %v275
    %v984 = vunpack.c.l.b16 %v276
    %v985 = vunpack.c.h.b16 %v276
    %v986 = vunpack.c.l.b16 %v277
    %v987 = vunpack.c.h.b16 %v277
    %v988 = vunpack.c.l.b16 %v278
    %v989 = vunpack.c.h.b16 %v278
    %v990 = vunpack.c.l.b16 %v279
    %v991 = vunpack.c.h.b16 %v279
    %v992 = vunpack.c.l.b16 %v280
    %v993 = vunpack.c.h.b16 %v280
    %v994 = vunpack.c.l.b16 %v281
    %v995 = vunpack.c.h.b16 %v281
    %v996 = vunpack.c.l.b16 %v282
    %v997 = vunpack.c.h.b16 %v282
    %v998 = vunpack.c.l.b16 %v283
    %v999 = vunpack.c.h.b16 %v283
    %v1000 = vunpack.c.l.b16 %v284
    %v1001 = vunpack.c.h.b16 %v284
    %v1002 = vunpack.c.l.b16 %v285
    %v1003 = vunpack.c.h.b16 %v285
    %v1004 = vpack.c.b16 %v624, %v620
    %v1005 = vpack.c.b16 %v625, %v621
    %v1006 = vpack.c.b16 %v626, %v622
    %v1007 = vpack.c.b16 %v627, %v623
    %v1008 = vpack.c.b16 %v632, %v628
    %v1009 = vpack.c.b16 %v633, %v629
    %v1010 = vpack.c.b16 %v634, %v630
    %v1011 = vpack.c.b16 %v635, %v631
    %v1012 = vpack.c.b16 %v640, %v636
    %v1013 = vpack.c.b16 %v641, %v637
    %v1014 = vpack.c.b16 %v642, %v638
    %v1015 = vpack.c.b16 %v643, %v639
    %v1016 = vpack.c.b16 %v648, %v644
    %v1017 = vpack.c.b16 %v649, %v645
    %v1018 = vpack.c.b16 %v650, %v646
    %v1019 = vpack.c.b16 %v651, %v647
    %v1020 = vpack.c.b16 %v656, %v652
    %v1021 = vpack.c.b16 %v657, %v653
    %v1022 = vpack.c.b16 %v658, %v654
    %v1023 = vpack.c.b16 %v659, %v655
    %v1024 = vpack.c.b16 %v664, %v660
    %v1025 = vpack.c.b16 %v665, %v661
    %v1026 = vpack.c.b16 %v666, %v662
    %v1027 = vpack.c.b16 %v667, %v663
    %v1028 = vpack.c.b16 %v672, %v668
    %v1029 = vpack.c.b16 %v673, %v669
    %v1030 = vpack.c.b16 %v674, %v670
    %v1031 = vpack.c.b16 %v675, %v671
    %v1032 = vpack.c.b16 %v680, %v676
    %v1033 = vpack.c.b16 %v681, %v677
    %v1034 = vpack.c.b16 %v682, %v678
    %v1035 = vpack.c.b16 %v683, %v679
    %v1036 = vpack.c.b16 %v688, %v684
    %v1037 = vpack.c.b16 %v689, %v685
    %v1038 = vpack.c.b16 %v690, %v686
    %v1039 = vpack.c.b16 %v691, %v687
    %v1040 = vpack.c.b16 %v696, %v692
    %v1041 = vpack.c.b16 %v697, %v693
    %v1042 = vpack.c.b16 %v698, %v694
    %v1043 = vpack.c.b16 %v699, %v695
    %v1044 = vpack.c.b16 %v704, %v700
    %v1045 = vpack.c.b16 %v705, %v701
    %v1046 = vpack.c.b16 %v706, %v702
    %v1047 = vpack.c.b16 %v707, %v703
    %v1048 = vpack.c.b16 %v712, %v708
    %v1049 = vpack.c.b16 %v713, %v709
    %v1050 = vpack.c.b16 %v714, %v710
    %v1051 = vpack.c.b16 %v715, %v711
    %v1052 = vpack.c.b16 %v720, %v716
    %v1053 = vpack.c.b16 %v721, %v717
    %v1054 = vpack.c.b16 %v722, %v718
    %v1055 = vpack.c.b16 %v723, %v719
    %v1056 = vpack.c.b16 %v728, %v724
    %v1057 = vpack.c.b16 %v729, %v725
    %v1058 = vpack.c.b16 %v730, %v726
    %v1059 = vpack.c.b16 %v731, %v727
    %v1060 = vpack.c.b16 %v736, %v732
    %v1061 = vpack.c.b16 %v737, %v733
    %v1062 = vpack.c.b16 %v738, %v734
    %v1063 = vpack.c.b16 %v739, %v735
    %v1064 = vpack.c.b16 %v744, %v740
    %v1065 = vpack.c.b16 %v745, %v741
    %v1066 = vpack.c.b16 %v746, %v742
    %v1067 = vpack.c.b16 %v747, %v743
    %v1068 = vpack.c.b16 %v752, %v748
    %v1069 = vpack.c.b16 %v753, %v749
    %v1070 = vpack.c.b16 %v754, %v750
    %v1071 = vpack.c.b16 %v755, %v751
    %v1072 = vpack.c.b16 %v760, %v756
    %v1073 = vpack.c.b16 %v761, %v757
    %v1074 = vpack.c.b16 %v762, %v758
    %v1075 = vpack.c.b16 %v763, %v759
    %v1076 = vpack.c.b16 %v768, %v764
    %v1077 = vpack.c.b16 %v769, %v765
    %v1078 = vpack.c.b16 %v770, %v766
    %v1079 = vpack.c.b16 %v771, %v767
    %v1080 = vpack.c.b16 %v776, %v772
    %v1081 = vpack.c.b16 %v777, %v773
    %v1082 = vpack.c.b16 %v778, %v774
    %v1083 = vpack.c.b16 %v779, %v775
    %v1084 = vpack.c.b16 %v784, %v780
    %v1085 = vpack.c.b16 %v785, %v781
    %v1086 = vpack.c.b16 %v786, %v782
    %v1087 = vpack.c.b16 %v787, %v783
    %v1088 = vpack.c.b16 %v792, %v788
    %v1089 = vpack.c.b16 %v793, %v789
    %v1090 = vpack.c.b16 %v794, %v790
    %v1091 = vpack.c.b16 %v795, %v791
    %v1092 = vpack.c.b16 %v800, %v796
    %v1093 = vpack.c.b16 %v801, %v797
    %v1094 = vpack.c.b16 %v802, %v798
    %v1095 = vpack.c.b16 %v803, %v799
    %v1096 = vpack.c.b16 %v808, %v804
    %v1097 = vpack.c.b16 %v809, %v805
    %v1098 = vpack.c.b16 %v810, %v806
    %v1099 = vpack.c.b16 %v811, %v807
    %v1100 = vpack.c.b16 %v816, %v812
    %v1101 = vpack.c.b16 %v817, %v813
    %v1102 = vpack.c.b16 %v818, %v814
    %v1103 = vpack.c.b16 %v819, %v815
    %v1104 = vpack.c.b16 %v824, %v820
    %v1105 = vpack.c.b16 %v825, %v821
    %v1106 = vpack.c.b16 %v826, %v822
    %v1107 = vpack.c.b16 %v827, %v823
    %v1108 = vpack.c.b16 %v832, %v828
    %v1109 = vpack.c.b16 %v833, %v829
    %v1110 = vpack.c.b16 %v834, %v830
    %v1111 = vpack.c.b16 %v835, %v831
    %v1112 = vpack.c.b16 %v840, %v836
    %v1113 = vpack.c.b16 %v841, %v837
    %v1114 = vpack.c.b16 %v842, %v838
    %v1115 = vpack.c.b16 %v843, %v839
    %v1116 = vpack.c.b16 %v848, %v844
    %v1117 = vpack.c.b16 %v849, %v845
    %v1118 = vpack.c.b16 %v850, %v846
    %v1119 = vpack.c.b16 %v851, %v847
    %v1120 = vpack.c.b16 %v856, %v852
    %v1121 = vpack.c.b16 %v857, %v853
    %v1122 = vpack.c.b16 %v858, %v854
    %v1123 = vpack.c.b16 %v859, %v855
    %v1124 = vpack.c.b16 %v864, %v860
    %v1125 = vpack.c.b16 %v865, %v861
    %v1126 = vpack.c.b16 %v866, %v862
    %v1127 = vpack.c.b16 %v867, %v863
    %v1128 = vpack.c.b16 %v872, %v868
    %v1129 = vpack.c.b16 %v873, %v869
    %v1130 = vpack.c.b16 %v874, %v870
    %v1131 = vpack.c.b16 %v875, %v871
    %v1132 = vpack.c.b16 %v880, %v876
    %v1133 = vpack.c.b16 %v881, %v877
    %v1134 = vpack.c.b16 %v882, %v878
    %v1135 = vpack.c.b16 %v883, %v879
    %v1136 = vpack.c.b16 %v888, %v884
    %v1137 = vpack.c.b16 %v889, %v885
    %v1138 = vpack.c.b16 %v890, %v886
    %v1139 = vpack.c.b16 %v891, %v887
    %v1140 = vpack.c.b16 %v896, %v892
    %v1141 = vpack.c.b16 %v897, %v893
    %v1142 = vpack.c.b16 %v898, %v894
    %v1143 = vpack.c.b16 %v899, %v895
    %v1144 = vpack.c.b16 %v904, %v900
    %v1145 = vpack.c.b16 %v905, %v901
    %v1146 = vpack.c.b16 %v906, %v902
    %v1147 = vpack.c.b16 %v907, %v903
    %v1148 = vpack.c.b16 %v912, %v908
    %v1149 = vpack.c.b16 %v913, %v909
    %v1150 = vpack.c.b16 %v914, %v910
    %v1151 = vpack.c.b16 %v915, %v911
    %v1152 = vpack.c.b16 %v920, %v916
    %v1153 = vpack.c.b16 %v921, %v917
    %v1154 = vpack.c.b16 %v922, %v918
    %v1155 = vpack.c.b16 %v923, %v919
    %v1156 = vpack.c.b16 %v928, %v924
    %v1157 = vpack.c.b16 %v929, %v925
    %v1158 = vpack.c.b16 %v930, %v926
    %v1159 = vpack.c.b16 %v931, %v927
    %v1160 = vpack.c.b16 %v936, %v932
    %v1161 = vpack.c.b16 %v937, %v933
    %v1162 = vpack.c.b16 %v938, %v934
    %v1163 = vpack.c.b16 %v939, %v935
    %v1164 = vpack.c.b16 %v944, %v940
    %v1165 = vpack.c.b16 %v945, %v941
    %v1166 = vpack.c.b16 %v946, %v942
    %v1167 = vpack.c.b16 %v947, %v943
    %v1168 = vpack.c.b16 %v952, %v948
    %v1169 = vpack.c.b16 %v953, %v949
    %v1170 = vpack.c.b16 %v954, %v950
    %v1171 = vpack.c.b16 %v955, %v951
    %v1172 = vpack.c.b16 %v960, %v956
    %v1173 = vpack.c.b16 %v961, %v957
    %v1174 = vpack.c.b16 %v962, %v958
    %v1175 = vpack.c.b16 %v963, %v959
    %v1176 = vpack.c.b16 %v968, %v964
    %v1177 = vpack.c.b16 %v969, %v965
    %v1178 = vpack.c.b16 %v970, %v966
    %v1179 = vpack.c.b16 %v971, %v967
    %v1180 = vpack.c.b16 %v976, %v972
    %v1181 = vpack.c.b16 %v977, %v973
    %v1182 = vpack.c.b16 %v978, %v974
    %v1183 = vpack.c.b16 %v979, %v975
    %v1184 = vpack.c.b16 %v984, %v980
    %v1185 = vpack.c.b16 %v985, %v981
    %v1186 = vpack.c.b16 %v986, %v982
    %v1187 = vpack.c.b16 %v987, %v983
    %v1188 = vpack.c.b16 %v992, %v988
    %v1189 = vpack.c.b16 %v993, %v989
    %v1190 = vpack.c.b16 %v994, %v990
    %v1191 = vpack.c.b16 %v995, %v991
    %v1192 = vpack.c.b16 %v1000, %v996
    %v1193 = vpack.c.b16 %v1001, %v997
    %v1194 = vpack.c.b16 %v1002, %v998
    %v1195 = vpack.c.b16 %v1003, %v999
    %1388 = vmatprep.subr.bf16.mxu0 %v1005
    %1389 = vmatpush1.bf16.msra.mxu0 %v1004
    %1390 = vmatprep.subr.bf16.mxu0 %v1009
    %1391 = vmatpush1.bf16.msra.mxu0 %v1008
    %1392 = vmatprep.subr.bf16.mxu0 %v1013
    %1393 = vmatpush1.bf16.msra.mxu0 %v1012
    %1394 = vmatprep.subr.bf16.mxu0 %v1017
    %1395 = vmatpush1.bf16.msra.mxu0 %v1016
    %1396 = vmatprep.subr.bf16.mxu0 %v1021
    %1397 = vmatpush1.bf16.msra.mxu0 %v1020
    %1398 = vmatprep.subr.bf16.mxu0 %v1025
    %1399 = vmatpush1.bf16.msra.mxu0 %v1024
    %1400 = vmatprep.subr.bf16.mxu0 %v1029
    %1401 = vmatpush1.bf16.msra.mxu0 %v1028
    %1402 = vmatprep.subr.bf16.mxu0 %v1033
    %1403 = vmatpush1.bf16.msra.mxu0 %v1032
    %1404 = vmatprep.subr.bf16.mxu0 %v1037
    %1405 = vmatpush1.bf16.msra.mxu0 %v1036
    %1406 = vmatprep.subr.bf16.mxu0 %v1041
    %1407 = vmatpush1.bf16.msra.mxu0 %v1040
    %1408 = vmatprep.subr.bf16.mxu0 %v1045
    %1409 = vmatpush1.bf16.msra.mxu0 %v1044
    %1410 = vmatprep.subr.bf16.mxu0 %v1049
    %1411 = vmatpush1.bf16.msra.mxu0 %v1048
    %1412 = vmatprep.subr.bf16.mxu0 %v1053
    %1413 = vmatpush1.bf16.msra.mxu0 %v1052
    %1414 = vmatprep.subr.bf16.mxu0 %v1057
    %1415 = vmatpush1.bf16.msra.mxu0 %v1056
    %1416 = vmatprep.subr.bf16.mxu0 %v1061
    %1417 = vmatpush1.bf16.msra.mxu0 %v1060
    %1418 = vmatprep.subr.bf16.mxu0 %v1065
    %1419 = vmatpush1.bf16.msra.mxu0 %v1064
    %1420 = vmatprep.mubr.bf16.mxu0 %v381
    %1421 = vmatmul.mubr.bf16.gmra.mrb[0].mxu0 %v380
    %v1422 = vpop.f32.mrb[0].mxu0
    %v1423 = vadd.f32 %v291, %v1422
    %v1424 = vpop.f32.mrb[0].mxu0
    %v1425 = vadd.f32 %v295, %v1424
    %v1426 = vpop.f32.mrb[0].mxu0
    %v1427 = vadd.f32 %v291, %v1426
    %v1428 = vpop.f32.mrb[0].mxu0
    %v1429 = vadd.f32 %v295, %v1428
    %1430 = vmatprep.mubr.bf16.mxu0 %v387
    %1431 = vmatmul.mubr.bf16.gmra.mrb[0].mxu0 %v386
    %v1432 = vpop.f32.mrb[0].mxu0
    %v1433 = vadd.f32 %v291, %v1432
    %v1434 = vpop.f32.mrb[0].mxu0
    %v1435 = vadd.f32 %v295, %v1434
    %v1436 = vpop.f32.mrb[0].mxu0
    %v1437 = vadd.f32 %v291, %v1436
    %v1438 = vpop.f32.mrb[0].mxu0
    %v1439 = vadd.f32 %v295, %v1438
    %1440 = vmatprep.mubr.bf16.mxu0 %v393
    %1441 = vmatmul.mubr.bf16.gmra.mrb[0].mxu0 %v392
    %v1442 = vpop.f32.mrb[0].mxu0
    %v1443 = vadd.f32 %v291, %v1442
    %v1444 = vpop.f32.mrb[0].mxu0
    %v1445 = vadd.f32 %v295, %v1444
    %v1446 = vpop.f32.mrb[0].mxu0
    %v1447 = vadd.f32 %v291, %v1446
    %v1448 = vpop.f32.mrb[0].mxu0
    %v1449 = vadd.f32 %v295, %v1448
    %1450 = vmatprep.mubr.bf16.mxu0 %v399
    %1451 = vmatmul.mubr.bf16.gmra.mrb[0].mxu0 %v398
    %v1452 = vpop.f32.mrb[0].mxu0
    %v1453 = vadd.f32 %v291, %v1452
    %v1454 = vpop.f32.mrb[0].mxu0
    %v1455 = vadd.f32 %v295, %v1454
    %v1456 = vpop.f32.mrb[0].mxu0
    %v1457 = vadd.f32 %v291, %v1456
    %v1458 = vpop.f32.mrb[0].mxu0
    %v1459 = vadd.f32 %v295, %v1458
    %1460 = vdwg.mxu0
    %1461 = vmatprep.subr.bf16.mxu0 %v1069
    %1462 = vmatpush1.bf16.msra.mxu0 %v1068
    %1463 = vmatprep.subr.bf16.mxu0 %v1073
    %1464 = vmatpush1.bf16.msra.mxu0 %v1072
    %1465 = vmatprep.subr.bf16.mxu0 %v1077
    %1466 = vmatpush1.bf16.msra.mxu0 %v1076
    %1467 = vmatprep.subr.bf16.mxu0 %v1081
    %1468 = vmatpush1.bf16.msra.mxu0 %v1080
    %1469 = vmatprep.subr.bf16.mxu0 %v1085
    %1470 = vmatpush1.bf16.msra.mxu0 %v1084
    %1471 = vmatprep.subr.bf16.mxu0 %v1089
    %1472 = vmatpush1.bf16.msra.mxu0 %v1088
    %1473 = vmatprep.subr.bf16.mxu0 %v1093
    %1474 = vmatpush1.bf16.msra.mxu0 %v1092
    %1475 = vmatprep.subr.bf16.mxu0 %v1097
    %1476 = vmatpush1.bf16.msra.mxu0 %v1096
    %1477 = vmatprep.subr.bf16.mxu0 %v1101
    %1478 = vmatpush1.bf16.msra.mxu0 %v1100
    %1479 = vmatprep.subr.bf16.mxu0 %v1105
    %1480 = vmatpush1.bf16.msra.mxu0 %v1104
    %1481 = vmatprep.subr.bf16.mxu0 %v1109
    %1482 = vmatpush1.bf16.msra.mxu0 %v1108
    %1483 = vmatprep.subr.bf16.mxu0 %v1113
    %1484 = vmatpush1.bf16.msra.mxu0 %v1112
    %1485 = vmatprep.subr.bf16.mxu0 %v1117
    %1486 = vmatpush1.bf16.msra.mxu0 %v1116
    %1487 = vmatprep.subr.bf16.mxu0 %v1121
    %1488 = vmatpush1.bf16.msra.mxu0 %v1120
    %1489 = vmatprep.subr.bf16.mxu0 %v1125
    %1490 = vmatpush1.bf16.msra.mxu0 %v1124
    %1491 = vmatprep.subr.bf16.mxu0 %v1129
    %1492 = vmatpush1.bf16.msra.mxu0 %v1128
    %1493 = vmatprep.mubr.bf16.mxu0 %v383
    %1494 = vmatmul.mubr.bf16.gmra.mrb[0].mxu0 %v382
    %v1495 = vpop.f32.mrb[0].mxu0
    %v1496 = vadd.f32 %v1423, %v1495
    %v1497 = vpop.f32.mrb[0].mxu0
    %v1498 = vadd.f32 %v1425, %v1497
    %v1499 = vpop.f32.mrb[0].mxu0
    %v1500 = vadd.f32 %v1427, %v1499
    %v1501 = vpop.f32.mrb[0].mxu0
    %v1502 = vadd.f32 %v1429, %v1501
    %1503 = vmatprep.mubr.bf16.mxu0 %v389
    %1504 = vmatmul.mubr.bf16.gmra.mrb[0].mxu0 %v388
    %v1505 = vpop.f32.mrb[0].mxu0
    %v1506 = vadd.f32 %v1433, %v1505
    %v1507 = vpop.f32.mrb[0].mxu0
    %v1508 = vadd.f32 %v1435, %v1507
    %v1509 = vpop.f32.mrb[0].mxu0
    %v1510 = vadd.f32 %v1437, %v1509
    %v1511 = vpop.f32.mrb[0].mxu0
    %v1512 = vadd.f32 %v1439, %v1511
    %1513 = vmatprep.mubr.bf16.mxu0 %v395
    %1514 = vmatmul.mubr.bf16.gmra.mrb[0].mxu0 %v394
    %v1515 = vpop.f32.mrb[0].mxu0
    %v1516 = vadd.f32 %v1443, %v1515
    %v1517 = vpop.f32.mrb[0].mxu0
    %v1518 = vadd.f32 %v1445, %v1517
    %v1519 = vpop.f32.mrb[0].mxu0
    %v1520 = vadd.f32 %v1447, %v1519
    %v1521 = vpop.f32.mrb[0].mxu0
    %v1522 = vadd.f32 %v1449, %v1521
    %1523 = vmatprep.mubr.bf16.mxu0 %v401
    %1524 = vmatmul.mubr.bf16.gmra.mrb[0].mxu0 %v400
    %v1525 = vpop.f32.mrb[0].mxu0
    %v1526 = vadd.f32 %v1453, %v1525
    %v1527 = vpop.f32.mrb[0].mxu0
    %v1528 = vadd.f32 %v1455, %v1527
    %v1529 = vpop.f32.mrb[0].mxu0
    %v1530 = vadd.f32 %v1457, %v1529
    %v1531 = vpop.f32.mrb[0].mxu0
    %v1532 = vadd.f32 %v1459, %v1531
    %1533 = vdwg.mxu0
    %1534 = vmatprep.subr.bf16.mxu0 %v1133
    %1535 = vmatpush1.bf16.msra.mxu0 %v1132
    %1536 = vmatprep.subr.bf16.mxu0 %v1137
    %1537 = vmatpush1.bf16.msra.mxu0 %v1136
    %1538 = vmatprep.subr.bf16.mxu0 %v1141
    %1539 = vmatpush1.bf16.msra.mxu0 %v1140
    %1540 = vmatprep.subr.bf16.mxu0 %v1145
    %1541 = vmatpush1.bf16.msra.mxu0 %v1144
    %1542 = vmatprep.subr.bf16.mxu0 %v1149
    %1543 = vmatpush1.bf16.msra.mxu0 %v1148
    %1544 = vmatprep.subr.bf16.mxu0 %v1153
    %1545 = vmatpush1.bf16.msra.mxu0 %v1152
    %1546 = vmatprep.subr.bf16.mxu0 %v1157
    %1547 = vmatpush1.bf16.msra.mxu0 %v1156
    %1548 = vmatprep.subr.bf16.mxu0 %v1161
    %1549 = vmatpush1.bf16.msra.mxu0 %v1160
    %1550 = vmatprep.subr.bf16.mxu0 %v1165
    %1551 = vmatpush1.bf16.msra.mxu0 %v1164
    %1552 = vmatprep.subr.bf16.mxu0 %v1169
    %1553 = vmatpush1.bf16.msra.mxu0 %v1168
    %1554 = vmatprep.subr.bf16.mxu0 %v1173
    %1555 = vmatpush1.bf16.msra.mxu0 %v1172
    %1556 = vmatprep.subr.bf16.mxu0 %v1177
    %1557 = vmatpush1.bf16.msra.mxu0 %v1176
    %1558 = vmatprep.subr.bf16.mxu0 %v1181
    %1559 = vmatpush1.bf16.msra.mxu0 %v1180
    %1560 = vmatprep.subr.bf16.mxu0 %v1185
    %1561 = vmatpush1.bf16.msra.mxu0 %v1184
    %1562 = vmatprep.subr.bf16.mxu0 %v1189
    %1563 = vmatpush1.bf16.msra.mxu0 %v1188
    %1564 = vmatprep.subr.bf16.mxu0 %v1193
    %1565 = vmatpush1.bf16.msra.mxu0 %v1192
    %1566 = vmatprep.mubr.bf16.mxu0 %v385
    %1567 = vmatmul.mubr.bf16.gmra.mrb[0].mxu0 %v384
    %v1568 = vpop.f32.mrb[0].mxu0
    %v1569 = vadd.f32 %v1496, %v1568
    %v1570 = vpop.f32.mrb[0].mxu0
    %v1571 = vadd.f32 %v1498, %v1570
    %v1572 = vpop.f32.mrb[0].mxu0
    %v1573 = vadd.f32 %v1500, %v1572
    %v1574 = vpop.f32.mrb[0].mxu0
    %v1575 = vadd.f32 %v1502, %v1574
    %1576 = vmatprep.mubr.bf16.mxu0 %v391
    %1577 = vmatmul.mubr.bf16.gmra.mrb[0].mxu0 %v390
    %v1578 = vpop.f32.mrb[0].mxu0
    %v1579 = vadd.f32 %v1506, %v1578
    %v1580 = vpop.f32.mrb[0].mxu0
    %v1581 = vadd.f32 %v1508, %v1580
    %v1582 = vpop.f32.mrb[0].mxu0
    %v1583 = vadd.f32 %v1510, %v1582
    %v1584 = vpop.f32.mrb[0].mxu0
    %v1585 = vadd.f32 %v1512, %v1584
    %1586 = vmatprep.mubr.bf16.mxu0 %v397
    %1587 = vmatmul.mubr.bf16.gmra.mrb[0].mxu0 %v396
    %v1588 = vpop.f32.mrb[0].mxu0
    %v1589 = vadd.f32 %v1516, %v1588
    %v1590 = vpop.f32.mrb[0].mxu0
    %v1591 = vadd.f32 %v1518, %v1590
    %v1592 = vpop.f32.mrb[0].mxu0
    %v1593 = vadd.f32 %v1520, %v1592
    %v1594 = vpop.f32.mrb[0].mxu0
    %v1595 = vadd.f32 %v1522, %v1594
    %1596 = vmatprep.mubr.bf16.mxu0 %v403
    %1597 = vmatmul.mubr.bf16.gmra.mrb[0].mxu0 %v402
    %v1598 = vpop.f32.mrb[0].mxu0
    %v1599 = vadd.f32 %v1526, %v1598
    %v1600 = vpop.f32.mrb[0].mxu0
    %v1601 = vadd.f32 %v1528, %v1600
    %v1602 = vpop.f32.mrb[0].mxu0
    %v1603 = vadd.f32 %v1530, %v1602
    %v1604 = vpop.f32.mrb[0].mxu0
    %v1605 = vadd.f32 %v1532, %v1604
    %1606 = vdwg.mxu0
    %1607 = vmatprep.subr.bf16.mxu0 %v1007
    %1608 = vmatpush1.bf16.msra.mxu0 %v1006
    %1609 = vmatprep.subr.bf16.mxu0 %v1011
    %1610 = vmatpush1.bf16.msra.mxu0 %v1010
    %1611 = vmatprep.subr.bf16.mxu0 %v1015
    %1612 = vmatpush1.bf16.msra.mxu0 %v1014
    %1613 = vmatprep.subr.bf16.mxu0 %v1019
    %1614 = vmatpush1.bf16.msra.mxu0 %v1018
    %1615 = vmatprep.subr.bf16.mxu0 %v1023
    %1616 = vmatpush1.bf16.msra.mxu0 %v1022
    %1617 = vmatprep.subr.bf16.mxu0 %v1027
    %1618 = vmatpush1.bf16.msra.mxu0 %v1026
    %1619 = vmatprep.subr.bf16.mxu0 %v1031
    %1620 = vmatpush1.bf16.msra.mxu0 %v1030
    %1621 = vmatprep.subr.bf16.mxu0 %v1035
    %1622 = vmatpush1.bf16.msra.mxu0 %v1034
    %1623 = vmatprep.subr.bf16.mxu0 %v1039
    %1624 = vmatpush1.bf16.msra.mxu0 %v1038
    %1625 = vmatprep.subr.bf16.mxu0 %v1043
    %1626 = vmatpush1.bf16.msra.mxu0 %v1042
    %1627 = vmatprep.subr.bf16.mxu0 %v1047
    %1628 = vmatpush1.bf16.msra.mxu0 %v1046
    %1629 = vmatprep.subr.bf16.mxu0 %v1051
    %1630 = vmatpush1.bf16.msra.mxu0 %v1050
    %1631 = vmatprep.subr.bf16.mxu0 %v1055
    %1632 = vmatpush1.bf16.msra.mxu0 %v1054
    %1633 = vmatprep.subr.bf16.mxu0 %v1059
    %1634 = vmatpush1.bf16.msra.mxu0 %v1058
    %1635 = vmatprep.subr.bf16.mxu0 %v1063
    %1636 = vmatpush1.bf16.msra.mxu0 %v1062
    %1637 = vmatprep.subr.bf16.mxu0 %v1067
    %1638 = vmatpush1.bf16.msra.mxu0 %v1066
    %1639 = vmatprep.mubr.bf16.mxu0 %v381
    %1640 = vmatmul.mubr.bf16.gmra.mrb[0].mxu0 %v380
    %v1641 = vpop.f32.mrb[0].mxu0
    %v1642 = vadd.f32 %v299, %v1641
    %v1643 = vpop.f32.mrb[0].mxu0
    %v1644 = vadd.f32 %v303, %v1643
    %v1645 = vpop.f32.mrb[0].mxu0
    %v1646 = vadd.f32 %v299, %v1645
    %v1647 = vpop.f32.mrb[0].mxu0
    %v1648 = vadd.f32 %v303, %v1647
    %1649 = vmatprep.mubr.bf16.mxu0 %v387
    %1650 = vmatmul.mubr.bf16.gmra.mrb[0].mxu0 %v386
    %v1651 = vpop.f32.mrb[0].mxu0
    %v1652 = vadd.f32 %v299, %v1651
    %v1653 = vpop.f32.mrb[0].mxu0
    %v1654 = vadd.f32 %v303, %v1653
    %v1655 = vpop.f32.mrb[0].mxu0
    %v1656 = vadd.f32 %v299, %v1655
    %v1657 = vpop.f32.mrb[0].mxu0
    %v1658 = vadd.f32 %v303, %v1657
    %1659 = vmatprep.mubr.bf16.mxu0 %v393
    %1660 = vmatmul.mubr.bf16.gmra.mrb[0].mxu0 %v392
    %v1661 = vpop.f32.mrb[0].mxu0
    %v1662 = vadd.f32 %v299, %v1661
    %v1663 = vpop.f32.mrb[0].mxu0
    %v1664 = vadd.f32 %v303, %v1663
    %v1665 = vpop.f32.mrb[0].mxu0
    %v1666 = vadd.f32 %v299, %v1665
    %v1667 = vpop.f32.mrb[0].mxu0
    %v1668 = vadd.f32 %v303, %v1667
    %1669 = vmatprep.mubr.bf16.mxu0 %v399
    %1670 = vmatmul.mubr.bf16.gmra.mrb[0].mxu0 %v398
    %v1671 = vpop.f32.mrb[0].mxu0
    %v1672 = vadd.f32 %v299, %v1671
    %v1673 = vpop.f32.mrb[0].mxu0
    %v1674 = vadd.f32 %v303, %v1673
    %v1675 = vpop.f32.mrb[0].mxu0
    %v1676 = vadd.f32 %v299, %v1675
    %v1677 = vpop.f32.mrb[0].mxu0
    %v1678 = vadd.f32 %v303, %v1677
    %1679 = vdwg.mxu0
    %1680 = vmatprep.subr.bf16.mxu0 %v1071
    %1681 = vmatpush1.bf16.msra.mxu0 %v1070
    %1682 = vmatprep.subr.bf16.mxu0 %v1075
    %1683 = vmatpush1.bf16.msra.mxu0 %v1074
    %1684 = vmatprep.subr.bf16.mxu0 %v1079
    %1685 = vmatpush1.bf16.msra.mxu0 %v1078
    %1686 = vmatprep.subr.bf16.mxu0 %v1083
    %1687 = vmatpush1.bf16.msra.mxu0 %v1082
    %1688 = vmatprep.subr.bf16.mxu0 %v1087
    %1689 = vmatpush1.bf16.msra.mxu0 %v1086
    %1690 = vmatprep.subr.bf16.mxu0 %v1091
    %1691 = vmatpush1.bf16.msra.mxu0 %v1090
    %1692 = vmatprep.subr.bf16.mxu0 %v1095
    %1693 = vmatpush1.bf16.msra.mxu0 %v1094
    %1694 = vmatprep.subr.bf16.mxu0 %v1099
    %1695 = vmatpush1.bf16.msra.mxu0 %v1098
    %1696 = vmatprep.subr.bf16.mxu0 %v1103
    %1697 = vmatpush1.bf16.msra.mxu0 %v1102
    %1698 = vmatprep.subr.bf16.mxu0 %v1107
    %1699 = vmatpush1.bf16.msra.mxu0 %v1106
    %1700 = vmatprep.subr.bf16.mxu0 %v1111
    %1701 = vmatpush1.bf16.msra.mxu0 %v1110
    %1702 = vmatprep.subr.bf16.mxu0 %v1115
    %1703 = vmatpush1.bf16.msra.mxu0 %v1114
    %1704 = vmatprep.subr.bf16.mxu0 %v1119
    %1705 = vmatpush1.bf16.msra.mxu0 %v1118
    %1706 = vmatprep.subr.bf16.mxu0 %v1123
    %1707 = vmatpush1.bf16.msra.mxu0 %v1122
    %1708 = vmatprep.subr.bf16.mxu0 %v1127
    %1709 = vmatpush1.bf16.msra.mxu0 %v1126
    %1710 = vmatprep.subr.bf16.mxu0 %v1131
    %1711 = vmatpush1.bf16.msra.mxu0 %v1130
    %1712 = vmatprep.mubr.bf16.mxu0 %v383
    %1713 = vmatmul.mubr.bf16.gmra.mrb[0].mxu0 %v382
    %v1714 = vpop.f32.mrb[0].mxu0
    %v1715 = vadd.f32 %v1642, %v1714
    %v1716 = vpop.f32.mrb[0].mxu0
    %v1717 = vadd.f32 %v1644, %v1716
    %v1718 = vpop.f32.mrb[0].mxu0
    %v1719 = vadd.f32 %v1646, %v1718
    %v1720 = vpop.f32.mrb[0].mxu0
    %v1721 = vadd.f32 %v1648, %v1720
    %1722 = vmatprep.mubr.bf16.mxu0 %v389
    %1723 = vmatmul.mubr.bf16.gmra.mrb[0].mxu0 %v388
    %v1724 = vpop.f32.mrb[0].mxu0
    %v1725 = vadd.f32 %v1652, %v1724
    %v1726 = vpop.f32.mrb[0].mxu0
    %v1727 = vadd.f32 %v1654, %v1726
    %v1728 = vpop.f32.mrb[0].mxu0
    %v1729 = vadd.f32 %v1656, %v1728
    %v1730 = vpop.f32.mrb[0].mxu0
    %v1731 = vadd.f32 %v1658, %v1730
    %1732 = vmatprep.mubr.bf16.mxu0 %v395
    %1733 = vmatmul.mubr.bf16.gmra.mrb[0].mxu0 %v394
    %v1734 = vpop.f32.mrb[0].mxu0
    %v1735 = vadd.f32 %v1662, %v1734
    %v1736 = vpop.f32.mrb[0].mxu0
    %v1737 = vadd.f32 %v1664, %v1736
    %v1738 = vpop.f32.mrb[0].mxu0
    %v1739 = vadd.f32 %v1666, %v1738
    %v1740 = vpop.f32.mrb[0].mxu0
    %v1741 = vadd.f32 %v1668, %v1740
    %1742 = vmatprep.mubr.bf16.mxu0 %v401
    %1743 = vmatmul.mubr.bf16.gmra.mrb[0].mxu0 %v400
    %v1744 = vpop.f32.mrb[0].mxu0
    %v1745 = vadd.f32 %v1672, %v1744
    %v1746 = vpop.f32.mrb[0].mxu0
    %v1747 = vadd.f32 %v1674, %v1746
    %v1748 = vpop.f32.mrb[0].mxu0
    %v1749 = vadd.f32 %v1676, %v1748
    %v1750 = vpop.f32.mrb[0].mxu0
    %v1751 = vadd.f32 %v1678, %v1750
    %1752 = vdwg.mxu0
    %1753 = vmatprep.subr.bf16.mxu0 %v1135
    %1754 = vmatpush1.bf16.msra.mxu0 %v1134
    %1755 = vmatprep.subr.bf16.mxu0 %v1139
    %1756 = vmatpush1.bf16.msra.mxu0 %v1138
    %1757 = vmatprep.subr.bf16.mxu0 %v1143
    %1758 = vmatpush1.bf16.msra.mxu0 %v1142
    %1759 = vmatprep.subr.bf16.mxu0 %v1147
    %1760 = vmatpush1.bf16.msra.mxu0 %v1146
    %1761 = vmatprep.subr.bf16.mxu0 %v1151
    %1762 = vmatpush1.bf16.msra.mxu0 %v1150
    %1763 = vmatprep.subr.bf16.mxu0 %v1155
    %1764 = vmatpush1.bf16.msra.mxu0 %v1154
    %1765 = vmatprep.subr.bf16.mxu0 %v1159
    %1766 = vmatpush1.bf16.msra.mxu0 %v1158
    %1767 = vmatprep.subr.bf16.mxu0 %v1163
    %1768 = vmatpush1.bf16.msra.mxu0 %v1162
    %1769 = vmatprep.subr.bf16.mxu0 %v1167
    %1770 = vmatpush1.bf16.msra.mxu0 %v1166
    %1771 = vmatprep.subr.bf16.mxu0 %v1171
    %1772 = vmatpush1.bf16.msra.mxu0 %v1170
    %1773 = vmatprep.subr.bf16.mxu0 %v1175
    %1774 = vmatpush1.bf16.msra.mxu0 %v1174
    %1775 = vmatprep.subr.bf16.mxu0 %v1179
    %1776 = vmatpush1.bf16.msra.mxu0 %v1178
    %1777 = vmatprep.subr.bf16.mxu0 %v1183
    %1778 = vmatpush1.bf16.msra.mxu0 %v1182
    %1779 = vmatprep.subr.bf16.mxu0 %v1187
    %1780 = vmatpush1.bf16.msra.mxu0 %v1186
    %1781 = vmatprep.subr.bf16.mxu0 %v1191
    %1782 = vmatpush1.bf16.msra.mxu0 %v1190
    %1783 = vmatprep.subr.bf16.mxu0 %v1195
    %1784 = vmatpush1.bf16.msra.mxu0 %v1194
    %1785 = vmatprep.mubr.bf16.mxu0 %v385
    %1786 = vmatmul.mubr.bf16.gmra.mrb[0].mxu0 %v384
    %v1787 = vpop.f32.mrb[0].mxu0
    %v1788 = vadd.f32 %v1715, %v1787
    %v1789 = vpop.f32.mrb[0].mxu0
    %v1790 = vadd.f32 %v1717, %v1789
    %v1791 = vpop.f32.mrb[0].mxu0
    %v1792 = vadd.f32 %v1719, %v1791
    %v1793 = vpop.f32.mrb[0].mxu0
    %v1794 = vadd.f32 %v1721, %v1793
    %1795 = vmatprep.mubr.bf16.mxu0 %v391
    %1796 = vmatmul.mubr.bf16.gmra.mrb[0].mxu0 %v390
    %v1797 = vpop.f32.mrb[0].mxu0
    %v1798 = vadd.f32 %v1725, %v1797
    %v1799 = vpop.f32.mrb[0].mxu0
    %v1800 = vadd.f32 %v1727, %v1799
    %v1801 = vpop.f32.mrb[0].mxu0
    %v1802 = vadd.f32 %v1729, %v1801
    %v1803 = vpop.f32.mrb[0].mxu0
    %v1804 = vadd.f32 %v1731, %v1803
    %1805 = vmatprep.mubr.bf16.mxu0 %v397
    %1806 = vmatmul.mubr.bf16.gmra.mrb[0].mxu0 %v396
    %v1807 = vpop.f32.mrb[0].mxu0
    %v1808 = vadd.f32 %v1735, %v1807
    %v1809 = vpop.f32.mrb[0].mxu0
    %v1810 = vadd.f32 %v1737, %v1809
    %v1811 = vpop.f32.mrb[0].mxu0
    %v1812 = vadd.f32 %v1739, %v1811
    %v1813 = vpop.f32.mrb[0].mxu0
    %v1814 = vadd.f32 %v1741, %v1813
    %1815 = vmatprep.mubr.bf16.mxu0 %v403
    %1816 = vmatmul.mubr.bf16.gmra.mrb[0].mxu0 %v402
    %v1817 = vpop.f32.mrb[0].mxu0
    %v1818 = vadd.f32 %v1745, %v1817
    %v1819 = vpop.f32.mrb[0].mxu0
    %v1820 = vadd.f32 %v1747, %v1819
    %v1821 = vpop.f32.mrb[0].mxu0
    %v1822 = vadd.f32 %v1749, %v1821
    %v1823 = vpop.f32.mrb[0].mxu0
    %v1824 = vadd.f32 %v1751, %v1823
    %1825 = vdwg.mxu0
    %1826 = vst [vmem:[#allocation2] sm:$0xff] %v1569
    %1827 = vst [vmem:[#allocation2 + $0x8] sm:$0xff] %v1571
    %1828 = vst [vmem:[#allocation2 + $0x10] sm:$0xff] %v1788
    %1829 = vst [vmem:[#allocation2 + $0x18] sm:$0xff] %v1790
    %1830 = vst [vmem:[#allocation2 + $0x20] sm:$0xff] %v1573
    %1831 = vst [vmem:[#allocation2 + $0x28] sm:$0xff] %v1575
    %1832 = vst [vmem:[#allocation2 + $0x30] sm:$0xff] %v1792
    %1833 = vst [vmem:[#allocation2 + $0x38] sm:$0xff] %v1794
    %1834 = vst [vmem:[#allocation2 + $0x40] sm:$0xff] %v1579
    %1835 = vst [vmem:[#allocation2 + $0x48] sm:$0xff] %v1581
    %1836 = vst [vmem:[#allocation2 + $0x50] sm:$0xff] %v1798
    %1837 = vst [vmem:[#allocation2 + $0x58] sm:$0xff] %v1800
    %1838 = vst [vmem:[#allocation2 + $0x60] sm:$0xff] %v1583
    %1839 = vst [vmem:[#allocation2 + $0x68] sm:$0xff] %v1585
    %1840 = vst [vmem:[#allocation2 + $0x70] sm:$0xff] %v1802
    %1841 = vst [vmem:[#allocation2 + $0x78] sm:$0xff] %v1804
    %1842 = vst [vmem:[#allocation2 + $0x80] sm:$0xff] %v1589
    %1843 = vst [vmem:[#allocation2 + $0x88] sm:$0xff] %v1591
    %1844 = vst [vmem:[#allocation2 + $0x90] sm:$0xff] %v1808
    %1845 = vst [vmem:[#allocation2 + $0x98] sm:$0xff] %v1810
    %1846 = vst [vmem:[#allocation2 + $0xa0] sm:$0xff] %v1593
    %1847 = vst [vmem:[#allocation2 + $0xa8] sm:$0xff] %v1595
    %1848 = vst [vmem:[#allocation2 + $0xb0] sm:$0xff] %v1812
    %1849 = vst [vmem:[#allocation2 + $0xb8] sm:$0xff] %v1814
    %1850 = vst [vmem:[#allocation2 + $0xc0] sm:$0xff] %v1599
    %1851 = vst [vmem:[#allocation2 + $0xc8] sm:$0xff] %v1601
    %1852 = vst [vmem:[#allocation2 + $0xd0] sm:$0xff] %v1818
    %1853 = vst [vmem:[#allocation2 + $0xd8] sm:$0xff] %v1820
    %1854 = vst [vmem:[#allocation2 + $0xe0] sm:$0xff] %v1603
    %1855 = vst [vmem:[#allocation2 + $0xe8] sm:$0xff] %v1605
    %1856 = vst [vmem:[#allocation2 + $0xf0] sm:$0xff] %v1822
    %1857 = vst [vmem:[#allocation2 + $0xf8] sm:$0xff] %v1824
    %v1858 = vld [vmem:[%s2] sm:$0xff]
    %v1859 = vld [vmem:[%s2 + $0x8] sm:$0xff]
    %v1860 = vld [vmem:[%s2 + $0x10] sm:$0xff]
    %v1861 = vld [vmem:[%s2 + $0x18] sm:$0xff]
    %v1862 = vld [vmem:[%s2 + $0x20] sm:$0xff]
    %v1863 = vld [vmem:[%s2 + $0x28] sm:$0xff]
    %v1864 = vld [vmem:[%s2 + $0x30] sm:$0xff]
    %v1865 = vld [vmem:[%s2 + $0x38] sm:$0xff]
    %v1866 = vld [vmem:[%s2 + $0x40] sm:$0xff]
    %v1867 = vld [vmem:[%s2 + $0x48] sm:$0xff]
    %v1868 = vld [vmem:[%s2 + $0x50] sm:$0xff]
    %v1869 = vld [vmem:[%s2 + $0x58] sm:$0xff]
    %v1870 = vld [vmem:[%s2 + $0x60] sm:$0xff]
    %v1871 = vld [vmem:[%s2 + $0x68] sm:$0xff]
    %v1872 = vld [vmem:[%s2 + $0x70] sm:$0xff]
    %v1873 = vld [vmem:[%s2 + $0x78] sm:$0xff]
    %v1874 = vld [vmem:[%s2 + $0x80] sm:$0xff]
    %v1875 = vld [vmem:[%s2 + $0x88] sm:$0xff]
    %v1876 = vld [vmem:[%s2 + $0x90] sm:$0xff]
    %v1877 = vld [vmem:[%s2 + $0x98] sm:$0xff]
    %v1878 = vld [vmem:[%s2 + $0xa0] sm:$0xff]
    %v1879 = vld [vmem:[%s2 + $0xa8] sm:$0xff]
    %v1880 = vld [vmem:[%s2 + $0xb0] sm:$0xff]
    %v1881 = vld [vmem:[%s2 + $0xb8] sm:$0xff]
    %v1882 = vld [vmem:[%s2 + $0xc0] sm:$0xff]
    %v1883 = vld [vmem:[%s2 + $0xc8] sm:$0xff]
    %v1884 = vld [vmem:[%s2 + $0xd0] sm:$0xff]
    %v1885 = vld [vmem:[%s2 + $0xd8] sm:$0xff]
    %v1886 = vld [vmem:[%s2 + $0xe0] sm:$0xff]
    %v1887 = vld [vmem:[%s2 + $0xe8] sm:$0xff]
    %v1888 = vld [vmem:[%s2 + $0xf0] sm:$0xff]
    %v1889 = vld [vmem:[%s2 + $0xf8] sm:$0xff]
    %v1890 = vld [vmem:[#allocation3] sm:$0xff]
    %v1891 = vld [vmem:[#allocation3 + $0x8] sm:$0xff]
    %v1892 = vld [vmem:[#allocation3 + $0x10] sm:$0xff]
    %v1893 = vld [vmem:[#allocation3 + $0x18] sm:$0xff]
    %v1894 = vld [vmem:[#allocation3 + $0x20] sm:$0xff]
    %v1895 = vld [vmem:[#allocation3 + $0x28] sm:$0xff]
    %v1896 = vld [vmem:[#allocation3 + $0x30] sm:$0xff]
    %v1897 = vld [vmem:[#allocation3 + $0x38] sm:$0xff]
    %v1898 = vld [vmem:[#allocation3 + $0x40] sm:$0xff]
    %v1899 = vld [vmem:[#allocation3 + $0x48] sm:$0xff]
    %v1900 = vld [vmem:[#allocation3 + $0x50] sm:$0xff]
    %v1901 = vld [vmem:[#allocation3 + $0x58] sm:$0xff]
    %v1902 = vld [vmem:[#allocation3 + $0x60] sm:$0xff]
    %v1903 = vld [vmem:[#allocation3 + $0x68] sm:$0xff]
    %v1904 = vld [vmem:[#allocation3 + $0x70] sm:$0xff]
    %v1905 = vld [vmem:[#allocation3 + $0x78] sm:$0xff]
    %v1906 = vld [vmem:[#allocation3 + $0x80] sm:$0xff]
    %v1907 = vld [vmem:[#allocation3 + $0x88] sm:$0xff]
    %v1908 = vld [vmem:[#allocation3 + $0x90] sm:$0xff]
    %v1909 = vld [vmem:[#allocation3 + $0x98] sm:$0xff]
    %v1910 = vld [vmem:[#allocation3 + $0xa0] sm:$0xff]
    %v1911 = vld [vmem:[#allocation3 + $0xa8] sm:$0xff]
    %v1912 = vld [vmem:[#allocation3 + $0xb0] sm:$0xff]
    %v1913 = vld [vmem:[#allocation3 + $0xb8] sm:$0xff]
    %v1914 = vld [vmem:[#allocation3 + $0xc0] sm:$0xff]
    %v1915 = vld [vmem:[#allocation3 + $0xc8] sm:$0xff]
    %v1916 = vld [vmem:[#allocation3 + $0xd0] sm:$0xff]
    %v1917 = vld [vmem:[#allocation3 + $0xd8] sm:$0xff]
    %v1918 = vld [vmem:[#allocation3 + $0xe0] sm:$0xff]
    %v1919 = vld [vmem:[#allocation3 + $0xe8] sm:$0xff]
    %v1920 = vld [vmem:[#allocation3 + $0xf0] sm:$0xff]
    %v1921 = vld [vmem:[#allocation3 + $0xf8] sm:$0xff]
    %v1922 = vld [vmem:[#allocation3 + $0x100] sm:$0xff]
    %v1923 = vld [vmem:[#allocation3 + $0x108] sm:$0xff]
    %v1924 = vld [vmem:[#allocation3 + $0x110] sm:$0xff]
    %v1925 = vld [vmem:[#allocation3 + $0x118] sm:$0xff]
    %v1926 = vld [vmem:[#allocation3 + $0x120] sm:$0xff]
    %v1927 = vld [vmem:[#allocation3 + $0x128] sm:$0xff]
    %v1928 = vld [vmem:[#allocation3 + $0x130] sm:$0xff]
    %v1929 = vld [vmem:[#allocation3 + $0x138] sm:$0xff]
    %v1930 = vld [vmem:[#allocation3 + $0x140] sm:$0xff]
    %v1931 = vld [vmem:[#allocation3 + $0x148] sm:$0xff]
    %v1932 = vld [vmem:[#allocation3 + $0x150] sm:$0xff]
    %v1933 = vld [vmem:[#allocation3 + $0x158] sm:$0xff]
    %v1934 = vld [vmem:[#allocation3 + $0x160] sm:$0xff]
    %v1935 = vld [vmem:[#allocation3 + $0x168] sm:$0xff]
    %v1936 = vld [vmem:[#allocation3 + $0x170] sm:$0xff]
    %v1937 = vld [vmem:[#allocation3 + $0x178] sm:$0xff]
    %v1938 = vld [vmem:[#allocation3 + $0x180] sm:$0xff]
    %v1939 = vld [vmem:[#allocation3 + $0x188] sm:$0xff]
    %v1940 = vld [vmem:[#allocation3 + $0x190] sm:$0xff]
    %v1941 = vld [vmem:[#allocation3 + $0x198] sm:$0xff]
    %v1942 = vld [vmem:[#allocation3 + $0x1a0] sm:$0xff]
    %v1943 = vld [vmem:[#allocation3 + $0x1a8] sm:$0xff]
    %v1944 = vld [vmem:[#allocation3 + $0x1b0] sm:$0xff]
    %v1945 = vld [vmem:[#allocation3 + $0x1b8] sm:$0xff]
    %v1946 = vld [vmem:[#allocation3 + $0x1c0] sm:$0xff]
    %v1947 = vld [vmem:[#allocation3 + $0x1c8] sm:$0xff]
    %v1948 = vld [vmem:[#allocation3 + $0x1d0] sm:$0xff]
    %v1949 = vld [vmem:[#allocation3 + $0x1d8] sm:$0xff]
    %v1950 = vld [vmem:[#allocation3 + $0x1e0] sm:$0xff]
    %v1951 = vld [vmem:[#allocation3 + $0x1e8] sm:$0xff]
    %v1952 = vld [vmem:[#allocation3 + $0x1f0] sm:$0xff]
    %v1953 = vld [vmem:[#allocation3 + $0x1f8] sm:$0xff]
    %v1954 = vld [vmem:[%s5] sm:$0xf]
    %v1955 = vld [vmem:[#allocation5] sm:$0xff]
    %v1956 = vld [vmem:[#allocation5 + $0x8] sm:$0xff]
    %v1957 = vld [vmem:[#allocation5 + $0x10] sm:$0xff]
    %v1958 = vld [vmem:[#allocation5 + $0x18] sm:$0xff]
    %v1959 = vld [vmem:[#allocation5 + $0x20] sm:$0xff]
    %v1960 = vld [vmem:[#allocation5 + $0x28] sm:$0xff]
    %v1961 = vld [vmem:[#allocation5 + $0x30] sm:$0xff]
    %v1962 = vld [vmem:[#allocation5 + $0x38] sm:$0xff]
    %v1963 = vld [vmem:[#allocation5 + $0x40] sm:$0xff]
    %v1964 = vld [vmem:[#allocation5 + $0x48] sm:$0xff]
    %v1965 = vld [vmem:[#allocation5 + $0x50] sm:$0xff]
    %v1966 = vld [vmem:[#allocation5 + $0x58] sm:$0xff]
    %v1967 = vld [vmem:[#allocation5 + $0x60] sm:$0xff]
    %v1968 = vld [vmem:[#allocation5 + $0x68] sm:$0xff]
    %v1969 = vld [vmem:[#allocation5 + $0x70] sm:$0xff]
    %v1970 = vld [vmem:[#allocation5 + $0x78] sm:$0xff]
    %v1971 = vld [vmem:[#allocation5 + $0x80] sm:$0xff]
    %v1972 = vld [vmem:[#allocation5 + $0x88] sm:$0xff]
    %v1973 = vld [vmem:[#allocation5 + $0x90] sm:$0xff]
    %v1974 = vld [vmem:[#allocation5 + $0x98] sm:$0xff]
    %v1975 = vld [vmem:[#allocation5 + $0xa0] sm:$0xff]
    %v1976 = vld [vmem:[#allocation5 + $0xa8] sm:$0xff]
    %v1977 = vld [vmem:[#allocation5 + $0xb0] sm:$0xff]
    %v1978 = vld [vmem:[#allocation5 + $0xb8] sm:$0xff]
    %v1979 = vld [vmem:[#allocation5 + $0xc0] sm:$0xff]
    %v1980 = vld [vmem:[#allocation5 + $0xc8] sm:$0xff]
    %v1981 = vld [vmem:[#allocation5 + $0xd0] sm:$0xff]
    %v1982 = vld [vmem:[#allocation5 + $0xd8] sm:$0xff]
    %v1983 = vld [vmem:[#allocation5 + $0xe0] sm:$0xff]
    %v1984 = vld [vmem:[#allocation5 + $0xe8] sm:$0xff]
    %v1985 = vld [vmem:[#allocation5 + $0xf0] sm:$0xff]
    %v1986 = vld [vmem:[#allocation5 + $0xf8] sm:$0xff]
    %v1987 = vld [vmem:[#allocation5 + $0x100] sm:$0xff]
    %v1988 = vld [vmem:[#allocation5 + $0x108] sm:$0xff]
    %v1989 = vld [vmem:[#allocation5 + $0x110] sm:$0xff]
    %v1990 = vld [vmem:[#allocation5 + $0x118] sm:$0xff]
    %v1991 = vld [vmem:[#allocation5 + $0x120] sm:$0xff]
    %v1992 = vld [vmem:[#allocation5 + $0x128] sm:$0xff]
    %v1993 = vld [vmem:[#allocation5 + $0x130] sm:$0xff]
    %v1994 = vld [vmem:[#allocation5 + $0x138] sm:$0xff]
    %v1995 = vld [vmem:[#allocation5 + $0x140] sm:$0xff]
    %v1996 = vld [vmem:[#allocation5 + $0x148] sm:$0xff]
    %v1997 = vld [vmem:[#allocation5 + $0x150] sm:$0xff]
    %v1998 = vld [vmem:[#allocation5 + $0x158] sm:$0xff]
    %v1999 = vld [vmem:[#allocation5 + $0x160] sm:$0xff]
    %v2000 = vld [vmem:[#allocation5 + $0x168] sm:$0xff]
    %v2001 = vld [vmem:[#allocation5 + $0x170] sm:$0xff]
    %v2002 = vld [vmem:[#allocation5 + $0x178] sm:$0xff]
    %v2003 = vld [vmem:[#allocation5 + $0x180] sm:$0xff]
    %v2004 = vld [vmem:[#allocation5 + $0x188] sm:$0xff]
    %v2005 = vld [vmem:[#allocation5 + $0x190] sm:$0xff]
    %v2006 = vld [vmem:[#allocation5 + $0x198] sm:$0xff]
    %v2007 = vld [vmem:[#allocation5 + $0x1a0] sm:$0xff]
    %v2008 = vld [vmem:[#allocation5 + $0x1a8] sm:$0xff]
    %v2009 = vld [vmem:[#allocation5 + $0x1b0] sm:$0xff]
    %v2010 = vld [vmem:[#allocation5 + $0x1b8] sm:$0xff]
    %v2011 = vld [vmem:[#allocation5 + $0x1c0] sm:$0xff]
    %v2012 = vld [vmem:[#allocation5 + $0x1c8] sm:$0xff]
    %v2013 = vld [vmem:[#allocation5 + $0x1d0] sm:$0xff]
    %v2014 = vld [vmem:[#allocation5 + $0x1d8] sm:$0xff]
    %v2015 = vld [vmem:[#allocation5 + $0x1e0] sm:$0xff]
    %v2016 = vld [vmem:[#allocation5 + $0x1e8] sm:$0xff]
    %v2017 = vld [vmem:[#allocation5 + $0x1f0] sm:$0xff]
    %v2018 = vld [vmem:[#allocation5 + $0x1f8] sm:$0xff]
    %v2019 = vld [vmem:[%s7] sm:$0xf]
    %s2020 = smul.u32 0, 4
    %s2021 = smul.addr %s2020, 8
    %s2022 = scalar_lea.vmem [#allocation2], %s2021
    %v2023 = vld [vmem:[%s2022] sm:$0xff]
    %v2024 = vld [vmem:[%s2022 + $0x8] sm:$0xff]
    %v2025 = vld [vmem:[%s2022 + $0x10] sm:$0xff]
    %v2026 = vld [vmem:[%s2022 + $0x18] sm:$0xff]
    %v2059 = vunpack.c.l.b16 %v1858
    %v2060 = vunpack.c.h.b16 %v1858
    %v2061 = vunpack.c.l.b16 %v1859
    %v2062 = vunpack.c.h.b16 %v1859
    %v2063 = vunpack.c.l.b16 %v1860
    %v2064 = vunpack.c.h.b16 %v1860
    %v2065 = vunpack.c.l.b16 %v1861
    %v2066 = vunpack.c.h.b16 %v1861
    %v2067 = vunpack.c.l.b16 %v1862
    %v2068 = vunpack.c.h.b16 %v1862
    %v2069 = vunpack.c.l.b16 %v1863
    %v2070 = vunpack.c.h.b16 %v1863
    %v2071 = vunpack.c.l.b16 %v1864
    %v2072 = vunpack.c.h.b16 %v1864
    %v2073 = vunpack.c.l.b16 %v1865
    %v2074 = vunpack.c.h.b16 %v1865
    %v2075 = vunpack.c.l.b16 %v1866
    %v2076 = vunpack.c.h.b16 %v1866
    %v2077 = vunpack.c.l.b16 %v1867
    %v2078 = vunpack.c.h.b16 %v1867
    %v2079 = vunpack.c.l.b16 %v1868
    %v2080 = vunpack.c.h.b16 %v1868
    %v2081 = vunpack.c.l.b16 %v1869
    %v2082 = vunpack.c.h.b16 %v1869
    %v2083 = vunpack.c.l.b16 %v1870
    %v2084 = vunpack.c.h.b16 %v1870
    %v2085 = vunpack.c.l.b16 %v1871
    %v2086 = vunpack.c.h.b16 %v1871
    %v2087 = vunpack.c.l.b16 %v1872
    %v2088 = vunpack.c.h.b16 %v1872
    %v2089 = vunpack.c.l.b16 %v1873
    %v2090 = vunpack.c.h.b16 %v1873
    %v2091 = vunpack.c.l.b16 %v1874
    %v2092 = vunpack.c.h.b16 %v1874
    %v2093 = vunpack.c.l.b16 %v1875
    %v2094 = vunpack.c.h.b16 %v1875
    %v2095 = vunpack.c.l.b16 %v1876
    %v2096 = vunpack.c.h.b16 %v1876
    %v2097 = vunpack.c.l.b16 %v1877
    %v2098 = vunpack.c.h.b16 %v1877
    %v2099 = vunpack.c.l.b16 %v1878
    %v2100 = vunpack.c.h.b16 %v1878
    %v2101 = vunpack.c.l.b16 %v1879
    %v2102 = vunpack.c.h.b16 %v1879
    %v2103 = vunpack.c.l.b16 %v1880
    %v2104 = vunpack.c.h.b16 %v1880
    %v2105 = vunpack.c.l.b16 %v1881
    %v2106 = vunpack.c.h.b16 %v1881
    %v2107 = vunpack.c.l.b16 %v1882
    %v2108 = vunpack.c.h.b16 %v1882
    %v2109 = vunpack.c.l.b16 %v1883
    %v2110 = vunpack.c.h.b16 %v1883
    %v2111 = vunpack.c.l.b16 %v1884
    %v2112 = vunpack.c.h.b16 %v1884
    %v2113 = vunpack.c.l.b16 %v1885
    %v2114 = vunpack.c.h.b16 %v1885
    %v2115 = vunpack.c.l.b16 %v1886
    %v2116 = vunpack.c.h.b16 %v1886
    %v2117 = vunpack.c.l.b16 %v1887
    %v2118 = vunpack.c.h.b16 %v1887
    %v2119 = vunpack.c.l.b16 %v1888
    %v2120 = vunpack.c.h.b16 %v1888
    %v2121 = vunpack.c.l.b16 %v1889
    %v2122 = vunpack.c.h.b16 %v1889
    %v2123 = vpack.c.b16 %v2063, %v2059
    %v2124 = vpack.c.b16 %v2064, %v2060
    %v2125 = vpack.c.b16 %v2065, %v2061
    %v2126 = vpack.c.b16 %v2066, %v2062
    %v2127 = vpack.c.b16 %v2071, %v2067
    %v2128 = vpack.c.b16 %v2072, %v2068
    %v2129 = vpack.c.b16 %v2073, %v2069
    %v2130 = vpack.c.b16 %v2074, %v2070
    %v2131 = vpack.c.b16 %v2079, %v2075
    %v2132 = vpack.c.b16 %v2080, %v2076
    %v2133 = vpack.c.b16 %v2081, %v2077
    %v2134 = vpack.c.b16 %v2082, %v2078
    %v2135 = vpack.c.b16 %v2087, %v2083
    %v2136 = vpack.c.b16 %v2088, %v2084
    %v2137 = vpack.c.b16 %v2089, %v2085
    %v2138 = vpack.c.b16 %v2090, %v2086
    %v2139 = vpack.c.b16 %v2095, %v2091
    %v2140 = vpack.c.b16 %v2096, %v2092
    %v2141 = vpack.c.b16 %v2097, %v2093
    %v2142 = vpack.c.b16 %v2098, %v2094
    %v2143 = vpack.c.b16 %v2103, %v2099
    %v2144 = vpack.c.b16 %v2104, %v2100
    %v2145 = vpack.c.b16 %v2105, %v2101
    %v2146 = vpack.c.b16 %v2106, %v2102
    %v2147 = vpack.c.b16 %v2111, %v2107
    %v2148 = vpack.c.b16 %v2112, %v2108
    %v2149 = vpack.c.b16 %v2113, %v2109
    %v2150 = vpack.c.b16 %v2114, %v2110
    %v2151 = vpack.c.b16 %v2119, %v2115
    %v2152 = vpack.c.b16 %v2120, %v2116
    %v2153 = vpack.c.b16 %v2121, %v2117
    %v2154 = vpack.c.b16 %v2122, %v2118
    %2187 = vmatprep.subr.bf16.mxu0 %v2124
    %2188 = vmatpush1.bf16.msra.mxu0 %v2123
    %2189 = vmatprep.subr.bf16.mxu0 %v2128
    %2190 = vmatpush1.bf16.msra.mxu0 %v2127
    %2191 = vmatprep.subr.bf16.mxu0 %v2132
    %2192 = vmatpush1.bf16.msra.mxu0 %v2131
    %2193 = vmatprep.subr.bf16.mxu0 %v2136
    %2194 = vmatpush1.bf16.msra.mxu0 %v2135
    %2195 = vmatprep.subr.bf16.mxu0 %v2140
    %2196 = vmatpush1.bf16.msra.mxu0 %v2139
    %2197 = vmatprep.subr.bf16.mxu0 %v2144
    %2198 = vmatpush1.bf16.msra.mxu0 %v2143
    %2199 = vmatprep.subr.bf16.mxu0 %v2148
    %2200 = vmatpush1.bf16.msra.mxu0 %v2147
    %2201 = vmatprep.subr.bf16.mxu0 %v2152
    %2202 = vmatpush1.bf16.msra.mxu0 %v2151
    %2203 = vmatprep.subr.bf16.mxu0 0
    %2204 = vmatpush1.bf16.msra.mxu0 0
    %2205 = vmatprep.subr.bf16.mxu0 0
    %2206 = vmatpush1.bf16.msra.mxu0 0
    %2207 = vmatprep.subr.bf16.mxu0 0
    %2208 = vmatpush1.bf16.msra.mxu0 0
    %2209 = vmatprep.subr.bf16.mxu0 0
    %2210 = vmatpush1.bf16.msra.mxu0 0
    %2211 = vmatprep.subr.bf16.mxu0 0
    %2212 = vmatpush1.bf16.msra.mxu0 0
    %2213 = vmatprep.subr.bf16.mxu0 0
    %2214 = vmatpush1.bf16.msra.mxu0 0
    %2215 = vmatprep.subr.bf16.mxu0 0
    %2216 = vmatpush1.bf16.msra.mxu0 0
    %2217 = vmatprep.subr.bf16.mxu0 0
    %2218 = vmatpush1.bf16.msra.mxu0 0
    %2219 = vmatprep.mubr.bf16.mxu0 0
    %2220 = vmatmul.mubr.bf16.gmra.mrb[0].mxu0 0
    %v2221 = vpop.f32.mrb[0].mxu0
    %v2222 = vadd.f32 0.0, %v2221
    %v2223 = vpop.f32.mrb[0].mxu0
    %v2224 = vadd.f32 0.0, %v2223
    %v2225 = vpop.f32.mrb[0].mxu0
    %v2226 = vpop.f32.mrb[0].mxu0
    %2227 = vdwg.mxu0
    %2228 = vmatprep.subr.bf16.mxu0 %v2126
    %2229 = vmatpush1.bf16.msra.mxu0 %v2125
    %2230 = vmatprep.subr.bf16.mxu0 %v2130
    %2231 = vmatpush1.bf16.msra.mxu0 %v2129
    %2232 = vmatprep.subr.bf16.mxu0 %v2134
    %2233 = vmatpush1.bf16.msra.mxu0 %v2133
    %2234 = vmatprep.subr.bf16.mxu0 %v2138
    %2235 = vmatpush1.bf16.msra.mxu0 %v2137
    %2236 = vmatprep.subr.bf16.mxu0 %v2142
    %2237 = vmatpush1.bf16.msra.mxu0 %v2141
    %2238 = vmatprep.subr.bf16.mxu0 %v2146
    %2239 = vmatpush1.bf16.msra.mxu0 %v2145
    %2240 = vmatprep.subr.bf16.mxu0 %v2150
    %2241 = vmatpush1.bf16.msra.mxu0 %v2149
    %2242 = vmatprep.subr.bf16.mxu0 %v2154
    %2243 = vmatpush1.bf16.msra.mxu0 %v2153
    %2244 = vmatprep.subr.bf16.mxu0 0
    %2245 = vmatpush1.bf16.msra.mxu0 0
    %2246 = vmatprep.subr.bf16.mxu0 0
    %2247 = vmatpush1.bf16.msra.mxu0 0
    %2248 = vmatprep.subr.bf16.mxu0 0
    %2249 = vmatpush1.bf16.msra.mxu0 0
    %2250 = vmatprep.subr.bf16.mxu0 0
    %2251 = vmatpush1.bf16.msra.mxu0 0
    %2252 = vmatprep.subr.bf16.mxu0 0
    %2253 = vmatpush1.bf16.msra.mxu0 0
    %2254 = vmatprep.subr.bf16.mxu0 0
    %2255 = vmatpush1.bf16.msra.mxu0 0
    %2256 = vmatprep.subr.bf16.mxu0 0
    %2257 = vmatpush1.bf16.msra.mxu0 0
    %2258 = vmatprep.subr.bf16.mxu0 0
    %2259 = vmatpush1.bf16.msra.mxu0 0
    %2260 = vmatprep.mubr.bf16.mxu0 0
    %2261 = vmatmul.mubr.bf16.gmra.mrb[0].mxu0 0
    %v2262 = vpop.f32.mrb[0].mxu0
    %v2263 = vadd.f32 0.0, %v2262
    %v2264 = vpop.f32.mrb[0].mxu0
    %v2265 = vadd.f32 0.0, %v2264
    %v2266 = vpop.f32.mrb[0].mxu0
    %v2267 = vpop.f32.mrb[0].mxu0
    %2268 = vdwg.mxu0
    %v2269 = vadd.f32 %v2023, %v2222
    %v2270 = vadd.f32 %v2024, %v2224
    %v2271 = vadd.f32 %v2025, %v2263
    %v2272 = vadd.f32 %v2026, %v2265
    %v2273 = vmul.f32 %v2269, 0.5
    %v2274 = vtanh.pop %v2273
    %v2275 = vmul.f32 %v2274, 0.5
    %v2276 = vadd.f32 %v2275, 0.5
    %v2277 = vmul.f32 %v2270, 0.5
    %v2278 = vtanh.pop %v2277
    %v2279 = vmul.f32 %v2278, 0.5
    %v2280 = vadd.f32 %v2279, 0.5
    %v2281 = vtanh.pop %v2271
    %v2282 = vmul.f32 %v2272, 0.5
    %v2283 = vtanh.pop %v2282
    %v2284 = vmul.f32 %v2283, 0.5
    %v2285 = vadd.f32 %v2284, 0.5
    %v2286 = vmul.f32 %v2280, 0.0
    %v2287 = vmul.f32 %v2276, %v2281
    %v2288 = vadd.f32 %v2286, %v2287
    %v2289 = vtanh.pop %v2288
    %v2290 = vmul.f32 %v2285, %v2289
    %v2291 = vpack.c.bf16 0.0, 0.0
    %v2293 = vlaneseq
    %v2294 = vshrl.u32 %v2293, 7
    %v2295 = vsub.s32 0, %v2294
    %v2296 = vrot.slane %v1954, %v2295
    %v2297 = vlaneseq
    %v2298 = vshrl.u32 %v2297, 7
    %v2299 = vsub.s32 1, %v2298
    %v2300 = vrot.slane %v1954, %v2299
    %v2301 = vlaneseq
    %v2302 = vshrl.u32 %v2301, 7
    %v2303 = vsub.s32 2, %v2302
    %v2304 = vrot.slane %v1954, %v2303
    %v2305 = vlaneseq
    %v2306 = vshrl.u32 %v2305, 7
    %v2307 = vsub.s32 3, %v2306
    %v2308 = vrot.slane %v1954, %v2307
    %v2377 = vunpack.c.l.b16 %v1890
    %v2378 = vunpack.c.h.b16 %v1890
    %v2379 = vunpack.c.l.b16 %v1891
    %v2380 = vunpack.c.h.b16 %v1891
    %v2381 = vunpack.c.l.b16 %v1892
    %v2382 = vunpack.c.h.b16 %v1892
    %v2383 = vunpack.c.l.b16 %v1893
    %v2384 = vunpack.c.h.b16 %v1893
    %v2385 = vunpack.c.l.b16 %v1894
    %v2386 = vunpack.c.h.b16 %v1894
    %v2387 = vunpack.c.l.b16 %v1895
    %v2388 = vunpack.c.h.b16 %v1895
    %v2389 = vunpack.c.l.b16 %v1896
    %v2390 = vunpack.c.h.b16 %v1896
    %v2391 = vunpack.c.l.b16 %v1897
    %v2392 = vunpack.c.h.b16 %v1897
    %v2393 = vunpack.c.l.b16 %v1898
    %v2394 = vunpack.c.h.b16 %v1898
    %v2395 = vunpack.c.l.b16 %v1899
    %v2396 = vunpack.c.h.b16 %v1899
    %v2397 = vunpack.c.l.b16 %v1900
    %v2398 = vunpack.c.h.b16 %v1900
    %v2399 = vunpack.c.l.b16 %v1901
    %v2400 = vunpack.c.h.b16 %v1901
    %v2401 = vunpack.c.l.b16 %v1902
    %v2402 = vunpack.c.h.b16 %v1902
    %v2403 = vunpack.c.l.b16 %v1903
    %v2404 = vunpack.c.h.b16 %v1903
    %v2405 = vunpack.c.l.b16 %v1904
    %v2406 = vunpack.c.h.b16 %v1904
    %v2407 = vunpack.c.l.b16 %v1905
    %v2408 = vunpack.c.h.b16 %v1905
    %v2409 = vunpack.c.l.b16 %v1906
    %v2410 = vunpack.c.h.b16 %v1906
    %v2411 = vunpack.c.l.b16 %v1907
    %v2412 = vunpack.c.h.b16 %v1907
    %v2413 = vunpack.c.l.b16 %v1908
    %v2414 = vunpack.c.h.b16 %v1908
    %v2415 = vunpack.c.l.b16 %v1909
    %v2416 = vunpack.c.h.b16 %v1909
    %v2417 = vunpack.c.l.b16 %v1910
    %v2418 = vunpack.c.h.b16 %v1910
    %v2419 = vunpack.c.l.b16 %v1911
    %v2420 = vunpack.c.h.b16 %v1911
    %v2421 = vunpack.c.l.b16 %v1912
    %v2422 = vunpack.c.h.b16 %v1912
    %v2423 = vunpack.c.l.b16 %v1913
    %v2424 = vunpack.c.h.b16 %v1913
    %v2425 = vunpack.c.l.b16 %v1914
    %v2426 = vunpack.c.h.b16 %v1914
    %v2427 = vunpack.c.l.b16 %v1915
    %v2428 = vunpack.c.h.b16 %v1915
    %v2429 = vunpack.c.l.b16 %v1916
    %v2430 = vunpack.c.h.b16 %v1916
    %v2431 = vunpack.c.l.b16 %v1917
    %v2432 = vunpack.c.h.b16 %v1917
    %v2433 = vunpack.c.l.b16 %v1918
    %v2434 = vunpack.c.h.b16 %v1918
    %v2435 = vunpack.c.l.b16 %v1919
    %v2436 = vunpack.c.h.b16 %v1919
    %v2437 = vunpack.c.l.b16 %v1920
    %v2438 = vunpack.c.h.b16 %v1920
    %v2439 = vunpack.c.l.b16 %v1921
    %v2440 = vunpack.c.h.b16 %v1921
    %v2441 = vunpack.c.l.b16 %v1922
    %v2442 = vunpack.c.h.b16 %v1922
    %v2443 = vunpack.c.l.b16 %v1923
    %v2444 = vunpack.c.h.b16 %v1923
    %v2445 = vunpack.c.l.b16 %v1924
    %v2446 = vunpack.c.h.b16 %v1924
    %v2447 = vunpack.c.l.b16 %v1925
    %v2448 = vunpack.c.h.b16 %v1925
    %v2449 = vunpack.c.l.b16 %v1926
    %v2450 = vunpack.c.h.b16 %v1926
    %v2451 = vunpack.c.l.b16 %v1927
    %v2452 = vunpack.c.h.b16 %v1927
    %v2453 = vunpack.c.l.b16 %v1928
    %v2454 = vunpack.c.h.b16 %v1928
    %v2455 = vunpack.c.l.b16 %v1929
    %v2456 = vunpack.c.h.b16 %v1929
    %v2457 = vunpack.c.l.b16 %v1930
    %v2458 = vunpack.c.h.b16 %v1930
    %v2459 = vunpack.c.l.b16 %v1931
    %v2460 = vunpack.c.h.b16 %v1931
    %v2461 = vunpack.c.l.b16 %v1932
    %v2462 = vunpack.c.h.b16 %v1932
    %v2463 = vunpack.c.l.b16 %v1933
    %v2464 = vunpack.c.h.b16 %v1933
    %v2465 = vunpack.c.l.b16 %v1934
    %v2466 = vunpack.c.h.b16 %v1934
    %v2467 = vunpack.c.l.b16 %v1935
    %v2468 = vunpack.c.h.b16 %v1935
    %v2469 = vunpack.c.l.b16 %v1936
    %v2470 = vunpack.c.h.b16 %v1936
    %v2471 = vunpack.c.l.b16 %v1937
    %v2472 = vunpack.c.h.b16 %v1937
    %v2473 = vunpack.c.l.b16 %v1938
    %v2474 = vunpack.c.h.b16 %v1938
    %v2475 = vunpack.c.l.b16 %v1939
    %v2476 = vunpack.c.h.b16 %v1939
    %v2477 = vunpack.c.l.b16 %v1940
    %v2478 = vunpack.c.h.b16 %v1940
    %v2479 = vunpack.c.l.b16 %v1941
    %v2480 = vunpack.c.h.b16 %v1941
    %v2481 = vunpack.c.l.b16 %v1942
    %v2482 = vunpack.c.h.b16 %v1942
    %v2483 = vunpack.c.l.b16 %v1943
    %v2484 = vunpack.c.h.b16 %v1943
    %v2485 = vunpack.c.l.b16 %v1944
    %v2486 = vunpack.c.h.b16 %v1944
    %v2487 = vunpack.c.l.b16 %v1945
    %v2488 = vunpack.c.h.b16 %v1945
    %v2489 = vunpack.c.l.b16 %v1946
    %v2490 = vunpack.c.h.b16 %v1946
    %v2491 = vunpack.c.l.b16 %v1947
    %v2492 = vunpack.c.h.b16 %v1947
    %v2493 = vunpack.c.l.b16 %v1948
    %v2494 = vunpack.c.h.b16 %v1948
    %v2495 = vunpack.c.l.b16 %v1949
    %v2496 = vunpack.c.h.b16 %v1949
    %v2497 = vunpack.c.l.b16 %v1950
    %v2498 = vunpack.c.h.b16 %v1950
    %v2499 = vunpack.c.l.b16 %v1951
    %v2500 = vunpack.c.h.b16 %v1951
    %v2501 = vunpack.c.l.b16 %v1952
    %v2502 = vunpack.c.h.b16 %v1952
    %v2503 = vunpack.c.l.b16 %v1953
    %v2504 = vunpack.c.h.b16 %v1953
    %v2505 = vpack.c.b16 %v2381, %v2377
    %v2506 = vpack.c.b16 %v2382, %v2378
    %v2507 = vpack.c.b16 %v2383, %v2379
    %v2508 = vpack.c.b16 %v2384, %v2380
    %v2509 = vpack.c.b16 %v2389, %v2385
    %v2510 = vpack.c.b16 %v2390, %v2386
    %v2511 = vpack.c.b16 %v2391, %v2387
    %v2512 = vpack.c.b16 %v2392, %v2388
    %v2513 = vpack.c.b16 %v2397, %v2393
    %v2514 = vpack.c.b16 %v2398, %v2394
    %v2515 = vpack.c.b16 %v2399, %v2395
    %v2516 = vpack.c.b16 %v2400, %v2396
    %v2517 = vpack.c.b16 %v2405, %v2401
    %v2518 = vpack.c.b16 %v2406, %v2402
    %v2519 = vpack.c.b16 %v2407, %v2403
    %v2520 = vpack.c.b16 %v2408, %v2404
    %v2521 = vpack.c.b16 %v2413, %v2409
    %v2522 = vpack.c.b16 %v2414, %v2410
    %v2523 = vpack.c.b16 %v2415, %v2411
    %v2524 = vpack.c.b16 %v2416, %v2412
    %v2525 = vpack.c.b16 %v2421, %v2417
    %v2526 = vpack.c.b16 %v2422, %v2418
    %v2527 = vpack.c.b16 %v2423, %v2419
    %v2528 = vpack.c.b16 %v2424, %v2420
    %v2529 = vpack.c.b16 %v2429, %v2425
    %v2530 = vpack.c.b16 %v2430, %v2426
    %v2531 = vpack.c.b16 %v2431, %v2427
    %v2532 = vpack.c.b16 %v2432, %v2428
    %v2533 = vpack.c.b16 %v2437, %v2433
    %v2534 = vpack.c.b16 %v2438, %v2434
    %v2535 = vpack.c.b16 %v2439, %v2435
    %v2536 = vpack.c.b16 %v2440, %v2436
    %v2537 = vpack.c.b16 %v2445, %v2441
    %v2538 = vpack.c.b16 %v2446, %v2442
    %v2539 = vpack.c.b16 %v2447, %v2443
    %v2540 = vpack.c.b16 %v2448, %v2444
    %v2541 = vpack.c.b16 %v2453, %v2449
    %v2542 = vpack.c.b16 %v2454, %v2450
    %v2543 = vpack.c.b16 %v2455, %v2451
    %v2544 = vpack.c.b16 %v2456, %v2452
    %v2545 = vpack.c.b16 %v2461, %v2457
    %v2546 = vpack.c.b16 %v2462, %v2458
    %v2547 = vpack.c.b16 %v2463, %v2459
    %v2548 = vpack.c.b16 %v2464, %v2460
    %v2549 = vpack.c.b16 %v2469, %v2465
    %v2550 = vpack.c.b16 %v2470, %v2466
    %v2551 = vpack.c.b16 %v2471, %v2467
    %v2552 = vpack.c.b16 %v2472, %v2468
    %v2553 = vpack.c.b16 %v2477, %v2473
    %v2554 = vpack.c.b16 %v2478, %v2474
    %v2555 = vpack.c.b16 %v2479, %v2475
    %v2556 = vpack.c.b16 %v2480, %v2476
    %v2557 = vpack.c.b16 %v2485, %v2481
    %v2558 = vpack.c.b16 %v2486, %v2482
    %v2559 = vpack.c.b16 %v2487, %v2483
    %v2560 = vpack.c.b16 %v2488, %v2484
    %v2561 = vpack.c.b16 %v2493, %v2489
    %v2562 = vpack.c.b16 %v2494, %v2490
    %v2563 = vpack.c.b16 %v2495, %v2491
    %v2564 = vpack.c.b16 %v2496, %v2492
    %v2565 = vpack.c.b16 %v2501, %v2497
    %v2566 = vpack.c.b16 %v2502, %v2498
    %v2567 = vpack.c.b16 %v2503, %v2499
    %v2568 = vpack.c.b16 %v2504, %v2500
    %2633 = vmatprep.subr.bf16.mxu0 %v2506
    %2634 = vmatpush1.bf16.msra.mxu0 %v2505
    %2635 = vmatprep.subr.bf16.mxu0 %v2510
    %2636 = vmatpush1.bf16.msra.mxu0 %v2509
    %2637 = vmatprep.subr.bf16.mxu0 %v2514
    %2638 = vmatpush1.bf16.msra.mxu0 %v2513
    %2639 = vmatprep.subr.bf16.mxu0 %v2518
    %2640 = vmatpush1.bf16.msra.mxu0 %v2517
    %2641 = vmatprep.subr.bf16.mxu0 %v2522
    %2642 = vmatpush1.bf16.msra.mxu0 %v2521
    %2643 = vmatprep.subr.bf16.mxu0 %v2526
    %2644 = vmatpush1.bf16.msra.mxu0 %v2525
    %2645 = vmatprep.subr.bf16.mxu0 %v2530
    %2646 = vmatpush1.bf16.msra.mxu0 %v2529
    %2647 = vmatprep.subr.bf16.mxu0 %v2534
    %2648 = vmatpush1.bf16.msra.mxu0 %v2533
    %2649 = vmatprep.subr.bf16.mxu0 %v2538
    %2650 = vmatpush1.bf16.msra.mxu0 %v2537
    %2651 = vmatprep.subr.bf16.mxu0 %v2542
    %2652 = vmatpush1.bf16.msra.mxu0 %v2541
    %2653 = vmatprep.subr.bf16.mxu0 %v2546
    %2654 = vmatpush1.bf16.msra.mxu0 %v2545
    %2655 = vmatprep.subr.bf16.mxu0 %v2550
    %2656 = vmatpush1.bf16.msra.mxu0 %v2549
    %2657 = vmatprep.subr.bf16.mxu0 %v2554
    %2658 = vmatpush1.bf16.msra.mxu0 %v2553
    %2659 = vmatprep.subr.bf16.mxu0 %v2558
    %2660 = vmatpush1.bf16.msra.mxu0 %v2557
    %2661 = vmatprep.subr.bf16.mxu0 %v2562
    %2662 = vmatpush1.bf16.msra.mxu0 %v2561
    %2663 = vmatprep.subr.bf16.mxu0 %v2566
    %2664 = vmatpush1.bf16.msra.mxu0 %v2565
    %2665 = vmatprep.mubr.bf16.mxu0 %v2291
    %2666 = vmatmul.mubr.bf16.gmra.mrb[0].mxu0 %v2291
    %v2667 = vpop.f32.mrb[0].mxu0
    %v2668 = vadd.f32 %v2296, %v2667
    %v2669 = vpop.f32.mrb[0].mxu0
    %v2670 = vadd.f32 %v2300, %v2669
    %v2671 = vpop.f32.mrb[0].mxu0
    %v2672 = vpop.f32.mrb[0].mxu0
    %2673 = vdwg.mxu0
    %2674 = vmatprep.subr.bf16.mxu0 %v2508
    %2675 = vmatpush1.bf16.msra.mxu0 %v2507
    %2676 = vmatprep.subr.bf16.mxu0 %v2512
    %2677 = vmatpush1.bf16.msra.mxu0 %v2511
    %2678 = vmatprep.subr.bf16.mxu0 %v2516
    %2679 = vmatpush1.bf16.msra.mxu0 %v2515
    %2680 = vmatprep.subr.bf16.mxu0 %v2520
    %2681 = vmatpush1.bf16.msra.mxu0 %v2519
    %2682 = vmatprep.subr.bf16.mxu0 %v2524
    %2683 = vmatpush1.bf16.msra.mxu0 %v2523
    %2684 = vmatprep.subr.bf16.mxu0 %v2528
    %2685 = vmatpush1.bf16.msra.mxu0 %v2527
    %2686 = vmatprep.subr.bf16.mxu0 %v2532
    %2687 = vmatpush1.bf16.msra.mxu0 %v2531
    %2688 = vmatprep.subr.bf16.mxu0 %v2536
    %2689 = vmatpush1.bf16.msra.mxu0 %v2535
    %2690 = vmatprep.subr.bf16.mxu0 %v2540
    %2691 = vmatpush1.bf16.msra.mxu0 %v2539
    %2692 = vmatprep.subr.bf16.mxu0 %v2544
    %2693 = vmatpush1.bf16.msra.mxu0 %v2543
    %2694 = vmatprep.subr.bf16.mxu0 %v2548
    %2695 = vmatpush1.bf16.msra.mxu0 %v2547
    %2696 = vmatprep.subr.bf16.mxu0 %v2552
    %2697 = vmatpush1.bf16.msra.mxu0 %v2551
    %2698 = vmatprep.subr.bf16.mxu0 %v2556
    %2699 = vmatpush1.bf16.msra.mxu0 %v2555
    %2700 = vmatprep.subr.bf16.mxu0 %v2560
    %2701 = vmatpush1.bf16.msra.mxu0 %v2559
    %2702 = vmatprep.subr.bf16.mxu0 %v2564
    %2703 = vmatpush1.bf16.msra.mxu0 %v2563
    %2704 = vmatprep.subr.bf16.mxu0 %v2568
    %2705 = vmatpush1.bf16.msra.mxu0 %v2567
    %2706 = vmatprep.mubr.bf16.mxu0 %v2291
    %2707 = vmatmul.mubr.bf16.gmra.mrb[0].mxu0 %v2291
    %v2708 = vpop.f32.mrb[0].mxu0
    %v2709 = vadd.f32 %v2304, %v2708
    %v2710 = vpop.f32.mrb[0].mxu0
    %v2711 = vadd.f32 %v2308, %v2710
    %v2712 = vpop.f32.mrb[0].mxu0
    %v2713 = vpop.f32.mrb[0].mxu0
    %2714 = vdwg.mxu0
    %v2715 = vmul.f32 %v2668, 0.5
    %v2716 = vtanh.pop %v2715
    %v2717 = vmul.f32 %v2716, 0.5
    %v2718 = vadd.f32 %v2717, 0.5
    %v2719 = vmul.f32 %v2670, 0.5
    %v2720 = vtanh.pop %v2719
    %v2721 = vmul.f32 %v2720, 0.5
    %v2722 = vadd.f32 %v2721, 0.5
    %v2723 = vtanh.pop %v2709
    %v2724 = vmul.f32 %v2711, 0.5
    %v2725 = vtanh.pop %v2724
    %v2726 = vmul.f32 %v2725, 0.5
    %v2727 = vadd.f32 %v2726, 0.5
    %v2728 = vmul.f32 %v2722, 0.0
    %v2729 = vmul.f32 %v2718, %v2723
    %v2730 = vadd.f32 %v2728, %v2729
    %v2731 = vtanh.pop %v2730
    %v2732 = vmul.f32 %v2727, %v2731
    %v2734 = vlaneseq
    %v2735 = vshrl.u32 %v2734, 7
    %v2736 = vsub.s32 0, %v2735
    %v2737 = vrot.slane %v2019, %v2736
    %v2738 = vlaneseq
    %v2739 = vshrl.u32 %v2738, 7
    %v2740 = vsub.s32 1, %v2739
    %v2741 = vrot.slane %v2019, %v2740
    %v2742 = vlaneseq
    %v2743 = vshrl.u32 %v2742, 7
    %v2744 = vsub.s32 2, %v2743
    %v2745 = vrot.slane %v2019, %v2744
    %v2746 = vlaneseq
    %v2747 = vshrl.u32 %v2746, 7
    %v2748 = vsub.s32 3, %v2747
    %v2749 = vrot.slane %v2019, %v2748
    %v2818 = vunpack.c.l.b16 %v1955
    %v2819 = vunpack.c.h.b16 %v1955
    %v2820 = vunpack.c.l.b16 %v1956
    %v2821 = vunpack.c.h.b16 %v1956
    %v2822 = vunpack.c.l.b16 %v1957
    %v2823 = vunpack.c.h.b16 %v1957
    %v2824 = vunpack.c.l.b16 %v1958
    %v2825 = vunpack.c.h.b16 %v1958
    %v2826 = vunpack.c.l.b16 %v1959
    %v2827 = vunpack.c.h.b16 %v1959
    %v2828 = vunpack.c.l.b16 %v1960
    %v2829 = vunpack.c.h.b16 %v1960
    %v2830 = vunpack.c.l.b16 %v1961
    %v2831 = vunpack.c.h.b16 %v1961
    %v2832 = vunpack.c.l.b16 %v1962
    %v2833 = vunpack.c.h.b16 %v1962
    %v2834 = vunpack.c.l.b16 %v1963
    %v2835 = vunpack.c.h.b16 %v1963
    %v2836 = vunpack.c.l.b16 %v1964
    %v2837 = vunpack.c.h.b16 %v1964
    %v2838 = vunpack.c.l.b16 %v1965
    %v2839 = vunpack.c.h.b16 %v1965
    %v2840 = vunpack.c.l.b16 %v1966
    %v2841 = vunpack.c.h.b16 %v1966
    %v2842 = vunpack.c.l.b16 %v1967
    %v2843 = vunpack.c.h.b16 %v1967
    %v2844 = vunpack.c.l.b16 %v1968
    %v2845 = vunpack.c.h.b16 %v1968
    %v2846 = vunpack.c.l.b16 %v1969
    %v2847 = vunpack.c.h.b16 %v1969
    %v2848 = vunpack.c.l.b16 %v1970
    %v2849 = vunpack.c.h.b16 %v1970
    %v2850 = vunpack.c.l.b16 %v1971
    %v2851 = vunpack.c.h.b16 %v1971
    %v2852 = vunpack.c.l.b16 %v1972
    %v2853 = vunpack.c.h.b16 %v1972
    %v2854 = vunpack.c.l.b16 %v1973
    %v2855 = vunpack.c.h.b16 %v1973
    %v2856 = vunpack.c.l.b16 %v1974
    %v2857 = vunpack.c.h.b16 %v1974
    %v2858 = vunpack.c.l.b16 %v1975
    %v2859 = vunpack.c.h.b16 %v1975
    %v2860 = vunpack.c.l.b16 %v1976
    %v2861 = vunpack.c.h.b16 %v1976
    %v2862 = vunpack.c.l.b16 %v1977
    %v2863 = vunpack.c.h.b16 %v1977
    %v2864 = vunpack.c.l.b16 %v1978
    %v2865 = vunpack.c.h.b16 %v1978
    %v2866 = vunpack.c.l.b16 %v1979
    %v2867 = vunpack.c.h.b16 %v1979
    %v2868 = vunpack.c.l.b16 %v1980
    %v2869 = vunpack.c.h.b16 %v1980
    %v2870 = vunpack.c.l.b16 %v1981
    %v2871 = vunpack.c.h.b16 %v1981
    %v2872 = vunpack.c.l.b16 %v1982
    %v2873 = vunpack.c.h.b16 %v1982
    %v2874 = vunpack.c.l.b16 %v1983
    %v2875 = vunpack.c.h.b16 %v1983
    %v2876 = vunpack.c.l.b16 %v1984
    %v2877 = vunpack.c.h.b16 %v1984
    %v2878 = vunpack.c.l.b16 %v1985
    %v2879 = vunpack.c.h.b16 %v1985
    %v2880 = vunpack.c.l.b16 %v1986
    %v2881 = vunpack.c.h.b16 %v1986
    %v2882 = vunpack.c.l.b16 %v1987
    %v2883 = vunpack.c.h.b16 %v1987
    %v2884 = vunpack.c.l.b16 %v1988
    %v2885 = vunpack.c.h.b16 %v1988
    %v2886 = vunpack.c.l.b16 %v1989
    %v2887 = vunpack.c.h.b16 %v1989
    %v2888 = vunpack.c.l.b16 %v1990
    %v2889 = vunpack.c.h.b16 %v1990
    %v2890 = vunpack.c.l.b16 %v1991
    %v2891 = vunpack.c.h.b16 %v1991
    %v2892 = vunpack.c.l.b16 %v1992
    %v2893 = vunpack.c.h.b16 %v1992
    %v2894 = vunpack.c.l.b16 %v1993
    %v2895 = vunpack.c.h.b16 %v1993
    %v2896 = vunpack.c.l.b16 %v1994
    %v2897 = vunpack.c.h.b16 %v1994
    %v2898 = vunpack.c.l.b16 %v1995
    %v2899 = vunpack.c.h.b16 %v1995
    %v2900 = vunpack.c.l.b16 %v1996
    %v2901 = vunpack.c.h.b16 %v1996
    %v2902 = vunpack.c.l.b16 %v1997
    %v2903 = vunpack.c.h.b16 %v1997
    %v2904 = vunpack.c.l.b16 %v1998
    %v2905 = vunpack.c.h.b16 %v1998
    %v2906 = vunpack.c.l.b16 %v1999
    %v2907 = vunpack.c.h.b16 %v1999
    %v2908 = vunpack.c.l.b16 %v2000
    %v2909 = vunpack.c.h.b16 %v2000
    %v2910 = vunpack.c.l.b16 %v2001
    %v2911 = vunpack.c.h.b16 %v2001
    %v2912 = vunpack.c.l.b16 %v2002
    %v2913 = vunpack.c.h.b16 %v2002
    %v2914 = vunpack.c.l.b16 %v2003
    %v2915 = vunpack.c.h.b16 %v2003
    %v2916 = vunpack.c.l.b16 %v2004
    %v2917 = vunpack.c.h.b16 %v2004
    %v2918 = vunpack.c.l.b16 %v2005
    %v2919 = vunpack.c.h.b16 %v2005
    %v2920 = vunpack.c.l.b16 %v2006
    %v2921 = vunpack.c.h.b16 %v2006
    %v2922 = vunpack.c.l.b16 %v2007
    %v2923 = vunpack.c.h.b16 %v2007
    %v2924 = vunpack.c.l.b16 %v2008
    %v2925 = vunpack.c.h.b16 %v2008
    %v2926 = vunpack.c.l.b16 %v2009
    %v2927 = vunpack.c.h.b16 %v2009
    %v2928 = vunpack.c.l.b16 %v2010
    %v2929 = vunpack.c.h.b16 %v2010
    %v2930 = vunpack.c.l.b16 %v2011
    %v2931 = vunpack.c.h.b16 %v2011
    %v2932 = vunpack.c.l.b16 %v2012
    %v2933 = vunpack.c.h.b16 %v2012
    %v2934 = vunpack.c.l.b16 %v2013
    %v2935 = vunpack.c.h.b16 %v2013
    %v2936 = vunpack.c.l.b16 %v2014
    %v2937 = vunpack.c.h.b16 %v2014
    %v2938 = vunpack.c.l.b16 %v2015
    %v2939 = vunpack.c.h.b16 %v2015
    %v2940 = vunpack.c.l.b16 %v2016
    %v2941 = vunpack.c.h.b16 %v2016
    %v2942 = vunpack.c.l.b16 %v2017
    %v2943 = vunpack.c.h.b16 %v2017
    %v2944 = vunpack.c.l.b16 %v2018
    %v2945 = vunpack.c.h.b16 %v2018
    %v2946 = vpack.c.b16 %v2822, %v2818
    %v2947 = vpack.c.b16 %v2823, %v2819
    %v2948 = vpack.c.b16 %v2824, %v2820
    %v2949 = vpack.c.b16 %v2825, %v2821
    %v2950 = vpack.c.b16 %v2830, %v2826
    %v2951 = vpack.c.b16 %v2831, %v2827
    %v2952 = vpack.c.b16 %v2832, %v2828
    %v2953 = vpack.c.b16 %v2833, %v2829
    %v2954 = vpack.c.b16 %v2838, %v2834
    %v2955 = vpack.c.b16 %v2839, %v2835
    %v2956 = vpack.c.b16 %v2840, %v2836
    %v2957 = vpack.c.b16 %v2841, %v2837
    %v2958 = vpack.c.b16 %v2846, %v2842
    %v2959 = vpack.c.b16 %v2847, %v2843
    %v2960 = vpack.c.b16 %v2848, %v2844
    %v2961 = vpack.c.b16 %v2849, %v2845
    %v2962 = vpack.c.b16 %v2854, %v2850
    %v2963 = vpack.c.b16 %v2855, %v2851
    %v2964 = vpack.c.b16 %v2856, %v2852
    %v2965 = vpack.c.b16 %v2857, %v2853
    %v2966 = vpack.c.b16 %v2862, %v2858
    %v2967 = vpack.c.b16 %v2863, %v2859
    %v2968 = vpack.c.b16 %v2864, %v2860
    %v2969 = vpack.c.b16 %v2865, %v2861
    %v2970 = vpack.c.b16 %v2870, %v2866
    %v2971 = vpack.c.b16 %v2871, %v2867
    %v2972 = vpack.c.b16 %v2872, %v2868
    %v2973 = vpack.c.b16 %v2873, %v2869
    %v2974 = vpack.c.b16 %v2878, %v2874
    %v2975 = vpack.c.b16 %v2879, %v2875
    %v2976 = vpack.c.b16 %v2880, %v2876
    %v2977 = vpack.c.b16 %v2881, %v2877
    %v2978 = vpack.c.b16 %v2886, %v2882
    %v2979 = vpack.c.b16 %v2887, %v2883
    %v2980 = vpack.c.b16 %v2888, %v2884
    %v2981 = vpack.c.b16 %v2889, %v2885
    %v2982 = vpack.c.b16 %v2894, %v2890
    %v2983 = vpack.c.b16 %v2895, %v2891
    %v2984 = vpack.c.b16 %v2896, %v2892
    %v2985 = vpack.c.b16 %v2897, %v2893
    %v2986 = vpack.c.b16 %v2902, %v2898
    %v2987 = vpack.c.b16 %v2903, %v2899
    %v2988 = vpack.c.b16 %v2904, %v2900
    %v2989 = vpack.c.b16 %v2905, %v2901
    %v2990 = vpack.c.b16 %v2910, %v2906
    %v2991 = vpack.c.b16 %v2911, %v2907
    %v2992 = vpack.c.b16 %v2912, %v2908
    %v2993 = vpack.c.b16 %v2913, %v2909
    %v2994 = vpack.c.b16 %v2918, %v2914
    %v2995 = vpack.c.b16 %v2919, %v2915
    %v2996 = vpack.c.b16 %v2920, %v2916
    %v2997 = vpack.c.b16 %v2921, %v2917
    %v2998 = vpack.c.b16 %v2926, %v2922
    %v2999 = vpack.c.b16 %v2927, %v2923
    %v3000 = vpack.c.b16 %v2928, %v2924
    %v3001 = vpack.c.b16 %v2929, %v2925
    %v3002 = vpack.c.b16 %v2934, %v2930
    %v3003 = vpack.c.b16 %v2935, %v2931
    %v3004 = vpack.c.b16 %v2936, %v2932
    %v3005 = vpack.c.b16 %v2937, %v2933
    %v3006 = vpack.c.b16 %v2942, %v2938
    %v3007 = vpack.c.b16 %v2943, %v2939
    %v3008 = vpack.c.b16 %v2944, %v2940
    %v3009 = vpack.c.b16 %v2945, %v2941
    %3074 = vmatprep.subr.bf16.mxu0 %v2947
    %3075 = vmatpush1.bf16.msra.mxu0 %v2946
    %3076 = vmatprep.subr.bf16.mxu0 %v2951
    %3077 = vmatpush1.bf16.msra.mxu0 %v2950
    %3078 = vmatprep.subr.bf16.mxu0 %v2955
    %3079 = vmatpush1.bf16.msra.mxu0 %v2954
    %3080 = vmatprep.subr.bf16.mxu0 %v2959
    %3081 = vmatpush1.bf16.msra.mxu0 %v2958
    %3082 = vmatprep.subr.bf16.mxu0 %v2963
    %3083 = vmatpush1.bf16.msra.mxu0 %v2962
    %3084 = vmatprep.subr.bf16.mxu0 %v2967
    %3085 = vmatpush1.bf16.msra.mxu0 %v2966
    %3086 = vmatprep.subr.bf16.mxu0 %v2971
    %3087 = vmatpush1.bf16.msra.mxu0 %v2970
    %3088 = vmatprep.subr.bf16.mxu0 %v2975
    %3089 = vmatpush1.bf16.msra.mxu0 %v2974
    %3090 = vmatprep.subr.bf16.mxu0 %v2979
    %3091 = vmatpush1.bf16.msra.mxu0 %v2978
    %3092 = vmatprep.subr.bf16.mxu0 %v2983
    %3093 = vmatpush1.bf16.msra.mxu0 %v2982
    %3094 = vmatprep.subr.bf16.mxu0 %v2987
    %3095 = vmatpush1.bf16.msra.mxu0 %v2986
    %3096 = vmatprep.subr.bf16.mxu0 %v2991
    %3097 = vmatpush1.bf16.msra.mxu0 %v2990
    %3098 = vmatprep.subr.bf16.mxu0 %v2995
    %3099 = vmatpush1.bf16.msra.mxu0 %v2994
    %3100 = vmatprep.subr.bf16.mxu0 %v2999
    %3101 = vmatpush1.bf16.msra.mxu0 %v2998
    %3102 = vmatprep.subr.bf16.mxu0 %v3003
    %3103 = vmatpush1.bf16.msra.mxu0 %v3002
    %3104 = vmatprep.subr.bf16.mxu0 %v3007
    %3105 = vmatpush1.bf16.msra.mxu0 %v3006
    %3106 = vmatprep.mubr.bf16.mxu0 %v2291
    %3107 = vmatmul.mubr.bf16.gmra.mrb[0].mxu0 %v2291
    %v3108 = vpop.f32.mrb[0].mxu0
    %v3109 = vadd.f32 %v2737, %v3108
    %v3110 = vpop.f32.mrb[0].mxu0
    %v3111 = vadd.f32 %v2741, %v3110
    %v3112 = vpop.f32.mrb[0].mxu0
    %v3113 = vpop.f32.mrb[0].mxu0
    %3114 = vdwg.mxu0
    %3115 = vmatprep.subr.bf16.mxu0 %v2949
    %3116 = vmatpush1.bf16.msra.mxu0 %v2948
    %3117 = vmatprep.subr.bf16.mxu0 %v2953
    %3118 = vmatpush1.bf16.msra.mxu0 %v2952
    %3119 = vmatprep.subr.bf16.mxu0 %v2957
    %3120 = vmatpush1.bf16.msra.mxu0 %v2956
    %3121 = vmatprep.subr.bf16.mxu0 %v2961
    %3122 = vmatpush1.bf16.msra.mxu0 %v2960
    %3123 = vmatprep.subr.bf16.mxu0 %v2965
    %3124 = vmatpush1.bf16.msra.mxu0 %v2964
    %3125 = vmatprep.subr.bf16.mxu0 %v2969
    %3126 = vmatpush1.bf16.msra.mxu0 %v2968
    %3127 = vmatprep.subr.bf16.mxu0 %v2973
    %3128 = vmatpush1.bf16.msra.mxu0 %v2972
    %3129 = vmatprep.subr.bf16.mxu0 %v2977
    %3130 = vmatpush1.bf16.msra.mxu0 %v2976
    %3131 = vmatprep.subr.bf16.mxu0 %v2981
    %3132 = vmatpush1.bf16.msra.mxu0 %v2980
    %3133 = vmatprep.subr.bf16.mxu0 %v2985
    %3134 = vmatpush1.bf16.msra.mxu0 %v2984
    %3135 = vmatprep.subr.bf16.mxu0 %v2989
    %3136 = vmatpush1.bf16.msra.mxu0 %v2988
    %3137 = vmatprep.subr.bf16.mxu0 %v2993
    %3138 = vmatpush1.bf16.msra.mxu0 %v2992
    %3139 = vmatprep.subr.bf16.mxu0 %v2997
    %3140 = vmatpush1.bf16.msra.mxu0 %v2996
    %3141 = vmatprep.subr.bf16.mxu0 %v3001
    %3142 = vmatpush1.bf16.msra.mxu0 %v3000
    %3143 = vmatprep.subr.bf16.mxu0 %v3005
    %3144 = vmatpush1.bf16.msra.mxu0 %v3004
    %3145 = vmatprep.subr.bf16.mxu0 %v3009
    %3146 = vmatpush1.bf16.msra.mxu0 %v3008
    %3147 = vmatprep.mubr.bf16.mxu0 %v2291
    %3148 = vmatmul.mubr.bf16.gmra.mrb[0].mxu0 %v2291
    %v3149 = vpop.f32.mrb[0].mxu0
    %v3150 = vadd.f32 %v2745, %v3149
    %v3151 = vpop.f32.mrb[0].mxu0
    %v3152 = vadd.f32 %v2749, %v3151
    %v3153 = vpop.f32.mrb[0].mxu0
    %v3154 = vpop.f32.mrb[0].mxu0
    %3155 = vdwg.mxu0
    %v3156 = vmul.f32 %v3109, 0.5
    %v3157 = vtanh.pop %v3156
    %v3158 = vmul.f32 %v3157, 0.5
    %v3159 = vadd.f32 %v3158, 0.5
    %v3160 = vmul.f32 %v3111, 0.5
    %v3161 = vtanh.pop %v3160
    %v3162 = vmul.f32 %v3161, 0.5
    %v3163 = vadd.f32 %v3162, 0.5
    %v3164 = vtanh.pop %v3150
    %v3165 = vmul.f32 %v3152, 0.5
    %v3166 = vtanh.pop %v3165
    %v3167 = vmul.f32 %v3166, 0.5
    %v3168 = vadd.f32 %v3167, 0.5
    %v3169 = vmul.f32 %v3163, 0.0
    %v3170 = vmul.f32 %v3159, %v3164
    %v3171 = vadd.f32 %v3169, %v3170
    %v3172 = vtanh.pop %v3171
    %v3173 = vmul.f32 %v3168, %v3172
    %v3174 = vmul.f32 %v2732, 0.0
    %v3175 = vadd.f32 %v3174, 0.0
    %v3176 = vmul.f32 %v2730, 0.0
    %v3177 = vadd.f32 %v3176, 0.0
    %v3178 = vmul.f32 %v3173, 0.0
    %v3179 = vadd.f32 %v3178, 0.0
    %v3180 = vmul.f32 %v3171, 0.0
    %v3181 = vadd.f32 %v3180, 0.0
    %s3182 = smul.u32 1, 4
    %s3183 = smul.addr %s3182, 8
    %s3184 = scalar_lea.vmem [#allocation2], %s3183
    %v3185 = vld [vmem:[%s3184] sm:$0xff]
    %v3186 = vld [vmem:[%s3184 + $0x8] sm:$0xff]
    %v3187 = vld [vmem:[%s3184 + $0x10] sm:$0xff]
    %v3188 = vld [vmem:[%s3184 + $0x18] sm:$0xff]
    %v3189 = vpack.c.bf16 %v2290, %v2290
    %3190 = vmatprep.subr.bf16.mxu0 %v2124
    %3191 = vmatpush1.bf16.msra.mxu0 %v2123
    %3192 = vmatprep.subr.bf16.mxu0 %v2128
    %3193 = vmatpush1.bf16.msra.mxu0 %v2127
    %3194 = vmatprep.subr.bf16.mxu0 %v2132
    %3195 = vmatpush1.bf16.msra.mxu0 %v2131
    %3196 = vmatprep.subr.bf16.mxu0 %v2136
    %3197 = vmatpush1.bf16.msra.mxu0 %v2135
    %3198 = vmatprep.subr.bf16.mxu0 %v2140
    %3199 = vmatpush1.bf16.msra.mxu0 %v2139
    %3200 = vmatprep.subr.bf16.mxu0 %v2144
    %3201 = vmatpush1.bf16.msra.mxu0 %v2143
    %3202 = vmatprep.subr.bf16.mxu0 %v2148
    %3203 = vmatpush1.bf16.msra.mxu0 %v2147
    %3204 = vmatprep.subr.bf16.mxu0 %v2152
    %3205 = vmatpush1.bf16.msra.mxu0 %v2151
    %3206 = vmatprep.subr.bf16.mxu0 0
    %3207 = vmatpush1.bf16.msra.mxu0 0
    %3208 = vmatprep.subr.bf16.mxu0 0
    %3209 = vmatpush1.bf16.msra.mxu0 0
    %3210 = vmatprep.subr.bf16.mxu0 0
    %3211 = vmatpush1.bf16.msra.mxu0 0
    %3212 = vmatprep.subr.bf16.mxu0 0
    %3213 = vmatpush1.bf16.msra.mxu0 0
    %3214 = vmatprep.subr.bf16.mxu0 0
    %3215 = vmatpush1.bf16.msra.mxu0 0
    %3216 = vmatprep.subr.bf16.mxu0 0
    %3217 = vmatpush1.bf16.msra.mxu0 0
    %3218 = vmatprep.subr.bf16.mxu0 0
    %3219 = vmatpush1.bf16.msra.mxu0 0
    %3220 = vmatprep.subr.bf16.mxu0 0
    %3221 = vmatpush1.bf16.msra.mxu0 0
    %3222 = vmatprep.mubr.bf16.mxu0 0
    %3223 = vmatmul.mubr.bf16.gmra.mrb[0].mxu0 %v3189
    %v3224 = vpop.f32.mrb[0].mxu0
    %v3225 = vadd.f32 0.0, %v3224
    %v3226 = vpop.f32.mrb[0].mxu0
    %v3227 = vadd.f32 0.0, %v3226
    %v3228 = vpop.f32.mrb[0].mxu0
    %v3229 = vpop.f32.mrb[0].mxu0
    %3230 = vdwg.mxu0
    %3231 = vmatprep.subr.bf16.mxu0 %v2126
    %3232 = vmatpush1.bf16.msra.mxu0 %v2125
    %3233 = vmatprep.subr.bf16.mxu0 %v2130
    %3234 = vmatpush1.bf16.msra.mxu0 %v2129
    %3235 = vmatprep.subr.bf16.mxu0 %v2134
    %3236 = vmatpush1.bf16.msra.mxu0 %v2133
    %3237 = vmatprep.subr.bf16.mxu0 %v2138
    %3238 = vmatpush1.bf16.msra.mxu0 %v2137
    %3239 = vmatprep.subr.bf16.mxu0 %v2142
    %3240 = vmatpush1.bf16.msra.mxu0 %v2141
    %3241 = vmatprep.subr.bf16.mxu0 %v2146
    %3242 = vmatpush1.bf16.msra.mxu0 %v2145
    %3243 = vmatprep.subr.bf16.mxu0 %v2150
    %3244 = vmatpush1.bf16.msra.mxu0 %v2149
    %3245 = vmatprep.subr.bf16.mxu0 %v2154
    %3246 = vmatpush1.bf16.msra.mxu0 %v2153
    %3247 = vmatprep.subr.bf16.mxu0 0
    %3248 = vmatpush1.bf16.msra.mxu0 0
    %3249 = vmatprep.subr.bf16.mxu0 0
    %3250 = vmatpush1.bf16.msra.mxu0 0
    %3251 = vmatprep.subr.bf16.mxu0 0
    %3252 = vmatpush1.bf16.msra.mxu0 0
    %3253 = vmatprep.subr.bf16.mxu0 0
    %3254 = vmatpush1.bf16.msra.mxu0 0
    %3255 = vmatprep.subr.bf16.mxu0 0
    %3256 = vmatpush1.bf16.msra.mxu0 0
    %3257 = vmatprep.subr.bf16.mxu0 0
    %3258 = vmatpush1.bf16.msra.mxu0 0
    %3259 = vmatprep.subr.bf16.mxu0 0
    %3260 = vmatpush1.bf16.msra.mxu0 0
    %3261 = vmatprep.subr.bf16.mxu0 0
    %3262 = vmatpush1.bf16.msra.mxu0 0
    %3263 = vmatprep.mubr.bf16.mxu0 0
    %3264 = vmatmul.mubr.bf16.gmra.mrb[0].mxu0 %v3189
    %v3265 = vpop.f32.mrb[0].mxu0
    %v3266 = vadd.f32 0.0, %v3265
    %v3267 = vpop.f32.mrb[0].mxu0
    %v3268 = vadd.f32 0.0, %v3267
    %v3269 = vpop.f32.mrb[0].mxu0
    %v3270 = vpop.f32.mrb[0].mxu0
    %3271 = vdwg.mxu0
    %v3272 = vadd.f32 %v3185, %v3225
    %v3273 = vadd.f32 %v3186, %v3227
    %v3274 = vadd.f32 %v3187, %v3266
    %v3275 = vadd.f32 %v3188, %v3268
    %v3276 = vmul.f32 %v3272, 0.5
    %v3277 = vtanh.pop %v3276
    %v3278 = vmul.f32 %v3277, 0.5
    %v3279 = vadd.f32 %v3278, 0.5
    %v3280 = vmul.f32 %v3273, 0.5
    %v3281 = vtanh.pop %v3280
    %v3282 = vmul.f32 %v3281, 0.5
    %v3283 = vadd.f32 %v3282, 0.5
    %v3284 = vtanh.pop %v3274
    %v3285 = vmul.f32 %v3275, 0.5
    %v3286 = vtanh.pop %v3285
    %v3287 = vmul.f32 %v3286, 0.5
    %v3288 = vadd.f32 %v3287, 0.5
    %v3289 = vmul.f32 %v3283, %v2288
    %v3290 = vmul.f32 %v3279, %v3284
    %v3291 = vadd.f32 %v3289, %v3290
    %v3292 = vtanh.pop %v3291
    %v3293 = vmul.f32 %v3288, %v3292
    %v3294 = vpack.c.bf16 %v3175, %v3175
    %3295 = vmatprep.subr.bf16.mxu0 %v2506
    %3296 = vmatpush1.bf16.msra.mxu0 %v2505
    %3297 = vmatprep.subr.bf16.mxu0 %v2510
    %3298 = vmatpush1.bf16.msra.mxu0 %v2509
    %3299 = vmatprep.subr.bf16.mxu0 %v2514
    %3300 = vmatpush1.bf16.msra.mxu0 %v2513
    %3301 = vmatprep.subr.bf16.mxu0 %v2518
    %3302 = vmatpush1.bf16.msra.mxu0 %v2517
    %3303 = vmatprep.subr.bf16.mxu0 %v2522
    %3304 = vmatpush1.bf16.msra.mxu0 %v2521
    %3305 = vmatprep.subr.bf16.mxu0 %v2526
    %3306 = vmatpush1.bf16.msra.mxu0 %v2525
    %3307 = vmatprep.subr.bf16.mxu0 %v2530
    %3308 = vmatpush1.bf16.msra.mxu0 %v2529
    %3309 = vmatprep.subr.bf16.mxu0 %v2534
    %3310 = vmatpush1.bf16.msra.mxu0 %v2533
    %3311 = vmatprep.subr.bf16.mxu0 %v2538
    %3312 = vmatpush1.bf16.msra.mxu0 %v2537
    %3313 = vmatprep.subr.bf16.mxu0 %v2542
    %3314 = vmatpush1.bf16.msra.mxu0 %v2541
    %3315 = vmatprep.subr.bf16.mxu0 %v2546
    %3316 = vmatpush1.bf16.msra.mxu0 %v2545
    %3317 = vmatprep.subr.bf16.mxu0 %v2550
    %3318 = vmatpush1.bf16.msra.mxu0 %v2549
    %3319 = vmatprep.subr.bf16.mxu0 %v2554
    %3320 = vmatpush1.bf16.msra.mxu0 %v2553
    %3321 = vmatprep.subr.bf16.mxu0 %v2558
    %3322 = vmatpush1.bf16.msra.mxu0 %v2557
    %3323 = vmatprep.subr.bf16.mxu0 %v2562
    %3324 = vmatpush1.bf16.msra.mxu0 %v2561
    %3325 = vmatprep.subr.bf16.mxu0 %v2566
    %3326 = vmatpush1.bf16.msra.mxu0 %v2565
    %3327 = vmatprep.mubr.bf16.mxu0 %v3294
    %3328 = vmatmul.mubr.bf16.gmra.mrb[0].mxu0 %v3189
    %v3329 = vpop.f32.mrb[0].mxu0
    %v3330 = vadd.f32 %v2296, %v3329
    %v3331 = vpop.f32.mrb[0].mxu0
    %v3332 = vadd.f32 %v2300, %v3331
    %v3333 = vpop.f32.mrb[0].mxu0
    %v3334 = vpop.f32.mrb[0].mxu0
    %3335 = vdwg.mxu0
    %3336 = vmatprep.subr.bf16.mxu0 %v2508
    %3337 = vmatpush1.bf16.msra.mxu0 %v2507
    %3338 = vmatprep.subr.bf16.mxu0 %v2512
    %3339 = vmatpush1.bf16.msra.mxu0 %v2511
    %3340 = vmatprep.subr.bf16.mxu0 %v2516
    %3341 = vmatpush1.bf16.msra.mxu0 %v2515
    %3342 = vmatprep.subr.bf16.mxu0 %v2520
    %3343 = vmatpush1.bf16.msra.mxu0 %v2519
    %3344 = vmatprep.subr.bf16.mxu0 %v2524
    %3345 = vmatpush1.bf16.msra.mxu0 %v2523
    %3346 = vmatprep.subr.bf16.mxu0 %v2528
    %3347 = vmatpush1.bf16.msra.mxu0 %v2527
    %3348 = vmatprep.subr.bf16.mxu0 %v2532
    %3349 = vmatpush1.bf16.msra.mxu0 %v2531
    %3350 = vmatprep.subr.bf16.mxu0 %v2536
    %3351 = vmatpush1.bf16.msra.mxu0 %v2535
    %3352 = vmatprep.subr.bf16.mxu0 %v2540
    %3353 = vmatpush1.bf16.msra.mxu0 %v2539
    %3354 = vmatprep.subr.bf16.mxu0 %v2544
    %3355 = vmatpush1.bf16.msra.mxu0 %v2543
    %3356 = vmatprep.subr.bf16.mxu0 %v2548
    %3357 = vmatpush1.bf16.msra.mxu0 %v2547
    %3358 = vmatprep.subr.bf16.mxu0 %v2552
    %3359 = vmatpush1.bf16.msra.mxu0 %v2551
    %3360 = vmatprep.subr.bf16.mxu0 %v2556
    %3361 = vmatpush1.bf16.msra.mxu0 %v2555
    %3362 = vmatprep.subr.bf16.mxu0 %v2560
    %3363 = vmatpush1.bf16.msra.mxu0 %v2559
    %3364 = vmatprep.subr.bf16.mxu0 %v2564
    %3365 = vmatpush1.bf16.msra.mxu0 %v2563
    %3366 = vmatprep.subr.bf16.mxu0 %v2568
    %3367 = vmatpush1.bf16.msra.mxu0 %v2567
    %3368 = vmatprep.mubr.bf16.mxu0 %v3294
    %3369 = vmatmul.mubr.bf16.gmra.mrb[0].mxu0 %v3189
    %v3370 = vpop.f32.mrb[0].mxu0
    %v3371 = vadd.f32 %v2304, %v3370
    %v3372 = vpop.f32.mrb[0].mxu0
    %v3373 = vadd.f32 %v2308, %v3372
    %v3374 = vpop.f32.mrb[0].mxu0
    %v3375 = vpop.f32.mrb[0].mxu0
    %3376 = vdwg.mxu0
    %v3377 = vmul.f32 %v3330, 0.5
    %v3378 = vtanh.pop %v3377
    %v3379 = vmul.f32 %v3378, 0.5
    %v3380 = vadd.f32 %v3379, 0.5
    %v3381 = vmul.f32 %v3332, 0.5
    %v3382 = vtanh.pop %v3381
    %v3383 = vmul.f32 %v3382, 0.5
    %v3384 = vadd.f32 %v3383, 0.5
    %v3385 = vtanh.pop %v3371
    %v3386 = vmul.f32 %v3373, 0.5
    %v3387 = vtanh.pop %v3386
    %v3388 = vmul.f32 %v3387, 0.5
    %v3389 = vadd.f32 %v3388, 0.5
    %v3390 = vmul.f32 %v3384, %v3177
    %v3391 = vmul.f32 %v3380, %v3385
    %v3392 = vadd.f32 %v3390, %v3391
    %v3393 = vtanh.pop %v3392
    %v3394 = vmul.f32 %v3389, %v3393
    %v3395 = vpack.c.bf16 %v3179, %v3179
    %3396 = vmatprep.subr.bf16.mxu0 %v2947
    %3397 = vmatpush1.bf16.msra.mxu0 %v2946
    %3398 = vmatprep.subr.bf16.mxu0 %v2951
    %3399 = vmatpush1.bf16.msra.mxu0 %v2950
    %3400 = vmatprep.subr.bf16.mxu0 %v2955
    %3401 = vmatpush1.bf16.msra.mxu0 %v2954
    %3402 = vmatprep.subr.bf16.mxu0 %v2959
    %3403 = vmatpush1.bf16.msra.mxu0 %v2958
    %3404 = vmatprep.subr.bf16.mxu0 %v2963
    %3405 = vmatpush1.bf16.msra.mxu0 %v2962
    %3406 = vmatprep.subr.bf16.mxu0 %v2967
    %3407 = vmatpush1.bf16.msra.mxu0 %v2966
    %3408 = vmatprep.subr.bf16.mxu0 %v2971
    %3409 = vmatpush1.bf16.msra.mxu0 %v2970
    %3410 = vmatprep.subr.bf16.mxu0 %v2975
    %3411 = vmatpush1.bf16.msra.mxu0 %v2974
    %3412 = vmatprep.subr.bf16.mxu0 %v2979
    %3413 = vmatpush1.bf16.msra.mxu0 %v2978
    %3414 = vmatprep.subr.bf16.mxu0 %v2983
    %3415 = vmatpush1.bf16.msra.mxu0 %v2982
    %3416 = vmatprep.subr.bf16.mxu0 %v2987
    %3417 = vmatpush1.bf16.msra.mxu0 %v2986
    %3418 = vmatprep.subr.bf16.mxu0 %v2991
    %3419 = vmatpush1.bf16.msra.mxu0 %v2990
    %3420 = vmatprep.subr.bf16.mxu0 %v2995
    %3421 = vmatpush1.bf16.msra.mxu0 %v2994
    %3422 = vmatprep.subr.bf16.mxu0 %v2999
    %3423 = vmatpush1.bf16.msra.mxu0 %v2998
    %3424 = vmatprep.subr.bf16.mxu0 %v3003
    %3425 = vmatpush1.bf16.msra.mxu0 %v3002
    %3426 = vmatprep.subr.bf16.mxu0 %v3007
    %3427 = vmatpush1.bf16.msra.mxu0 %v3006
    %3428 = vmatprep.mubr.bf16.mxu0 %v3395
    %3429 = vmatmul.mubr.bf16.gmra.mrb[0].mxu0 %v3294
    %v3430 = vpop.f32.mrb[0].mxu0
    %v3431 = vadd.f32 %v2737, %v3430
    %v3432 = vpop.f32.mrb[0].mxu0
    %v3433 = vadd.f32 %v2741, %v3432
    %v3434 = vpop.f32.mrb[0].mxu0
    %v3435 = vpop.f32.mrb[0].mxu0
    %3436 = vdwg.mxu0
    %3437 = vmatprep.subr.bf16.mxu0 %v2949
    %3438 = vmatpush1.bf16.msra.mxu0 %v2948
    %3439 = vmatprep.subr.bf16.mxu0 %v2953
    %3440 = vmatpush1.bf16.msra.mxu0 %v2952
    %3441 = vmatprep.subr.bf16.mxu0 %v2957
    %3442 = vmatpush1.bf16.msra.mxu0 %v2956
    %3443 = vmatprep.subr.bf16.mxu0 %v2961
    %3444 = vmatpush1.bf16.msra.mxu0 %v2960
    %3445 = vmatprep.subr.bf16.mxu0 %v2965
    %3446 = vmatpush1.bf16.msra.mxu0 %v2964
    %3447 = vmatprep.subr.bf16.mxu0 %v2969
    %3448 = vmatpush1.bf16.msra.mxu0 %v2968
    %3449 = vmatprep.subr.bf16.mxu0 %v2973
    %3450 = vmatpush1.bf16.msra.mxu0 %v2972
    %3451 = vmatprep.subr.bf16.mxu0 %v2977
    %3452 = vmatpush1.bf16.msra.mxu0 %v2976
    %3453 = vmatprep.subr.bf16.mxu0 %v2981
    %3454 = vmatpush1.bf16.msra.mxu0 %v2980
    %3455 = vmatprep.subr.bf16.mxu0 %v2985
    %3456 = vmatpush1.bf16.msra.mxu0 %v2984
    %3457 = vmatprep.subr.bf16.mxu0 %v2989
    %3458 = vmatpush1.bf16.msra.mxu0 %v2988
    %3459 = vmatprep.subr.bf16.mxu0 %v2993
    %3460 = vmatpush1.bf16.msra.mxu0 %v2992
    %3461 = vmatprep.subr.bf16.mxu0 %v2997
    %3462 = vmatpush1.bf16.msra.mxu0 %v2996
    %3463 = vmatprep.subr.bf16.mxu0 %v3001
    %3464 = vmatpush1.bf16.msra.mxu0 %v3000
    %3465 = vmatprep.subr.bf16.mxu0 %v3005
    %3466 = vmatpush1.bf16.msra.mxu0 %v3004
    %3467 = vmatprep.subr.bf16.mxu0 %v3009
    %3468 = vmatpush1.bf16.msra.mxu0 %v3008
    %3469 = vmatprep.mubr.bf16.mxu0 %v3395
    %3470 = vmatmul.mubr.bf16.gmra.mrb[0].mxu0 %v3294
    %v3471 = vpop.f32.mrb[0].mxu0
    %v3472 = vadd.f32 %v2745, %v3471
    %v3473 = vpop.f32.mrb[0].mxu0
    %v3474 = vadd.f32 %v2749, %v3473
    %v3475 = vpop.f32.mrb[0].mxu0
    %v3476 = vpop.f32.mrb[0].mxu0
    %3477 = vdwg.mxu0
    %v3478 = vmul.f32 %v3431, 0.5
    %v3479 = vtanh.pop %v3478
    %v3480 = vmul.f32 %v3479, 0.5
    %v3481 = vadd.f32 %v3480, 0.5
    %v3482 = vmul.f32 %v3433, 0.5
    %v3483 = vtanh.pop %v3482
    %v3484 = vmul.f32 %v3483, 0.5
    %v3485 = vadd.f32 %v3484, 0.5
    %v3486 = vtanh.pop %v3472
    %v3487 = vmul.f32 %v3474, 0.5
    %v3488 = vtanh.pop %v3487
    %v3489 = vmul.f32 %v3488, 0.5
    %v3490 = vadd.f32 %v3489, 0.5
    %v3491 = vmul.f32 %v3485, %v3181
    %v3492 = vmul.f32 %v3481, %v3486
    %v3493 = vadd.f32 %v3491, %v3492
    %v3494 = vtanh.pop %v3493
    %v3495 = vmul.f32 %v3490, %v3494
    %v3496 = vsub.f32 %v3394, %v3175
    %v3497 = vadd.f32 %v3175, %v3496
    %v3498 = vsub.f32 %v3392, %v3177
    %v3499 = vadd.f32 %v3177, %v3498
    %v3500 = vsub.f32 %v3495, %v3179
    %v3501 = vmul.f32 %v3500, 0.0
    %v3502 = vadd.f32 %v3179, %v3501
    %v3503 = vsub.f32 %v3493, %v3181
    %v3504 = vmul.f32 %v3503, 0.0
    %v3505 = vadd.f32 %v3181, %v3504
    %s3506 = smul.u32 2, 4
    %s3507 = smul.addr %s3506, 8
    %s3508 = scalar_lea.vmem [#allocation2], %s3507
    %v3509 = vld [vmem:[%s3508] sm:$0xff]
    %v3510 = vld [vmem:[%s3508 + $0x8] sm:$0xff]
    %v3511 = vld [vmem:[%s3508 + $0x10] sm:$0xff]
    %v3512 = vld [vmem:[%s3508 + $0x18] sm:$0xff]
    %v3513 = vpack.c.bf16 %v3293, %v3293
    %3514 = vmatprep.subr.bf16.mxu0 %v2124
    %3515 = vmatpush1.bf16.msra.mxu0 %v2123
    %3516 = vmatprep.subr.bf16.mxu0 %v2128
    %3517 = vmatpush1.bf16.msra.mxu0 %v2127
    %3518 = vmatprep.subr.bf16.mxu0 %v2132
    %3519 = vmatpush1.bf16.msra.mxu0 %v2131
    %3520 = vmatprep.subr.bf16.mxu0 %v2136
    %3521 = vmatpush1.bf16.msra.mxu0 %v2135
    %3522 = vmatprep.subr.bf16.mxu0 %v2140
    %3523 = vmatpush1.bf16.msra.mxu0 %v2139
    %3524 = vmatprep.subr.bf16.mxu0 %v2144
    %3525 = vmatpush1.bf16.msra.mxu0 %v2143
    %3526 = vmatprep.subr.bf16.mxu0 %v2148
    %3527 = vmatpush1.bf16.msra.mxu0 %v2147
    %3528 = vmatprep.subr.bf16.mxu0 %v2152
    %3529 = vmatpush1.bf16.msra.mxu0 %v2151
    %3530 = vmatprep.subr.bf16.mxu0 0
    %3531 = vmatpush1.bf16.msra.mxu0 0
    %3532 = vmatprep.subr.bf16.mxu0 0
    %3533 = vmatpush1.bf16.msra.mxu0 0
    %3534 = vmatprep.subr.bf16.mxu0 0
    %3535 = vmatpush1.bf16.msra.mxu0 0
    %3536 = vmatprep.subr.bf16.mxu0 0
    %3537 = vmatpush1.bf16.msra.mxu0 0
    %3538 = vmatprep.subr.bf16.mxu0 0
    %3539 = vmatpush1.bf16.msra.mxu0 0
    %3540 = vmatprep.subr.bf16.mxu0 0
    %3541 = vmatpush1.bf16.msra.mxu0 0
    %3542 = vmatprep.subr.bf16.mxu0 0
    %3543 = vmatpush1.bf16.msra.mxu0 0
    %3544 = vmatprep.subr.bf16.mxu0 0
    %3545 = vmatpush1.bf16.msra.mxu0 0
    %3546 = vmatprep.mubr.bf16.mxu0 0
    %3547 = vmatmul.mubr.bf16.gmra.mrb[0].mxu0 %v3513
    %v3548 = vpop.f32.mrb[0].mxu0
    %v3549 = vadd.f32 0.0, %v3548
    %v3550 = vpop.f32.mrb[0].mxu0
    %v3551 = vadd.f32 0.0, %v3550
    %v3552 = vpop.f32.mrb[0].mxu0
    %v3553 = vpop.f32.mrb[0].mxu0
    %3554 = vdwg.mxu0
    %3555 = vmatprep.subr.bf16.mxu0 %v2126
    %3556 = vmatpush1.bf16.msra.mxu0 %v2125
    %3557 = vmatprep.subr.bf16.mxu0 %v2130
    %3558 = vmatpush1.bf16.msra.mxu0 %v2129
    %3559 = vmatprep.subr.bf16.mxu0 %v2134
    %3560 = vmatpush1.bf16.msra.mxu0 %v2133
    %3561 = vmatprep.subr.bf16.mxu0 %v2138
    %3562 = vmatpush1.bf16.msra.mxu0 %v2137
    %3563 = vmatprep.subr.bf16.mxu0 %v2142
    %3564 = vmatpush1.bf16.msra.mxu0 %v2141
    %3565 = vmatprep.subr.bf16.mxu0 %v2146
    %3566 = vmatpush1.bf16.msra.mxu0 %v2145
    %3567 = vmatprep.subr.bf16.mxu0 %v2150
    %3568 = vmatpush1.bf16.msra.mxu0 %v2149
    %3569 = vmatprep.subr.bf16.mxu0 %v2154
    %3570 = vmatpush1.bf16.msra.mxu0 %v2153
    %3571 = vmatprep.subr.bf16.mxu0 0
    %3572 = vmatpush1.bf16.msra.mxu0 0
    %3573 = vmatprep.subr.bf16.mxu0 0
    %3574 = vmatpush1.bf16.msra.mxu0 0
    %3575 = vmatprep.subr.bf16.mxu0 0
    %3576 = vmatpush1.bf16.msra.mxu0 0
    %3577 = vmatprep.subr.bf16.mxu0 0
    %3578 = vmatpush1.bf16.msra.mxu0 0
    %3579 = vmatprep.subr.bf16.mxu0 0
    %3580 = vmatpush1.bf16.msra.mxu0 0
    %3581 = vmatprep.subr.bf16.mxu0 0
    %3582 = vmatpush1.bf16.msra.mxu0 0
    %3583 = vmatprep.subr.bf16.mxu0 0
    %3584 = vmatpush1.bf16.msra.mxu0 0
    %3585 = vmatprep.subr.bf16.mxu0 0
    %3586 = vmatpush1.bf16.msra.mxu0 0
    %3587 = vmatprep.mubr.bf16.mxu0 0
    %3588 = vmatmul.mubr.bf16.gmra.mrb[0].mxu0 %v3513
    %v3589 = vpop.f32.mrb[0].mxu0
    %v3590 = vadd.f32 0.0, %v3589
    %v3591 = vpop.f32.mrb[0].mxu0
    %v3592 = vadd.f32 0.0, %v3591
    %v3593 = vpop.f32.mrb[0].mxu0
    %v3594 = vpop.f32.mrb[0].mxu0
    %3595 = vdwg.mxu0
    %v3596 = vadd.f32 %v3509, %v3549
    %v3597 = vadd.f32 %v3510, %v3551
    %v3598 = vadd.f32 %v3511, %v3590
    %v3599 = vadd.f32 %v3512, %v3592
    %v3600 = vmul.f32 %v3596, 0.5
    %v3601 = vtanh.pop %v3600
    %v3602 = vmul.f32 %v3601, 0.5
    %v3603 = vadd.f32 %v3602, 0.5
    %v3604 = vmul.f32 %v3597, 0.5
    %v3605 = vtanh.pop %v3604
    %v3606 = vmul.f32 %v3605, 0.5
    %v3607 = vadd.f32 %v3606, 0.5
    %v3608 = vtanh.pop %v3598
    %v3609 = vmul.f32 %v3599, 0.5
    %v3610 = vtanh.pop %v3609
    %v3611 = vmul.f32 %v3610, 0.5
    %v3612 = vadd.f32 %v3611, 0.5
    %v3613 = vmul.f32 %v3607, %v3291
    %v3614 = vmul.f32 %v3603, %v3608
    %v3615 = vadd.f32 %v3613, %v3614
    %v3616 = vtanh.pop %v3615
    %v3617 = vmul.f32 %v3612, %v3616
    %v3618 = vpack.c.bf16 %v3497, %v3497
    %3619 = vmatprep.subr.bf16.mxu0 %v2506
    %3620 = vmatpush1.bf16.msra.mxu0 %v2505
    %3621 = vmatprep.subr.bf16.mxu0 %v2510
    %3622 = vmatpush1.bf16.msra.mxu0 %v2509
    %3623 = vmatprep.subr.bf16.mxu0 %v2514
    %3624 = vmatpush1.bf16.msra.mxu0 %v2513
    %3625 = vmatprep.subr.bf16.mxu0 %v2518
    %3626 = vmatpush1.bf16.msra.mxu0 %v2517
    %3627 = vmatprep.subr.bf16.mxu0 %v2522
    %3628 = vmatpush1.bf16.msra.mxu0 %v2521
    %3629 = vmatprep.subr.bf16.mxu0 %v2526
    %3630 = vmatpush1.bf16.msra.mxu0 %v2525
    %3631 = vmatprep.subr.bf16.mxu0 %v2530
    %3632 = vmatpush1.bf16.msra.mxu0 %v2529
    %3633 = vmatprep.subr.bf16.mxu0 %v2534
    %3634 = vmatpush1.bf16.msra.mxu0 %v2533
    %3635 = vmatprep.subr.bf16.mxu0 %v2538
    %3636 = vmatpush1.bf16.msra.mxu0 %v2537
    %3637 = vmatprep.subr.bf16.mxu0 %v2542
    %3638 = vmatpush1.bf16.msra.mxu0 %v2541
    %3639 = vmatprep.subr.bf16.mxu0 %v2546
    %3640 = vmatpush1.bf16.msra.mxu0 %v2545
    %3641 = vmatprep.subr.bf16.mxu0 %v2550
    %3642 = vmatpush1.bf16.msra.mxu0 %v2549
    %3643 = vmatprep.subr.bf16.mxu0 %v2554
    %3644 = vmatpush1.bf16.msra.mxu0 %v2553
    %3645 = vmatprep.subr.bf16.mxu0 %v2558
    %3646 = vmatpush1.bf16.msra.mxu0 %v2557
    %3647 = vmatprep.subr.bf16.mxu0 %v2562
    %3648 = vmatpush1.bf16.msra.mxu0 %v2561
    %3649 = vmatprep.subr.bf16.mxu0 %v2566
    %3650 = vmatpush1.bf16.msra.mxu0 %v2565
    %3651 = vmatprep.mubr.bf16.mxu0 %v3618
    %3652 = vmatmul.mubr.bf16.gmra.mrb[0].mxu0 %v3513
    %v3653 = vpop.f32.mrb[0].mxu0
    %v3654 = vadd.f32 %v2296, %v3653
    %v3655 = vpop.f32.mrb[0].mxu0
    %v3656 = vadd.f32 %v2300, %v3655
    %v3657 = vpop.f32.mrb[0].mxu0
    %v3658 = vpop.f32.mrb[0].mxu0
    %3659 = vdwg.mxu0
    %3660 = vmatprep.subr.bf16.mxu0 %v2508
    %3661 = vmatpush1.bf16.msra.mxu0 %v2507
    %3662 = vmatprep.subr.bf16.mxu0 %v2512
    %3663 = vmatpush1.bf16.msra.mxu0 %v2511
    %3664 = vmatprep.subr.bf16.mxu0 %v2516
    %3665 = vmatpush1.bf16.msra.mxu0 %v2515
    %3666 = vmatprep.subr.bf16.mxu0 %v2520
    %3667 = vmatpush1.bf16.msra.mxu0 %v2519
    %3668 = vmatprep.subr.bf16.mxu0 %v2524
    %3669 = vmatpush1.bf16.msra.mxu0 %v2523
    %3670 = vmatprep.subr.bf16.mxu0 %v2528
    %3671 = vmatpush1.bf16.msra.mxu0 %v2527
    %3672 = vmatprep.subr.bf16.mxu0 %v2532
    %3673 = vmatpush1.bf16.msra.mxu0 %v2531
    %3674 = vmatprep.subr.bf16.mxu0 %v2536
    %3675 = vmatpush1.bf16.msra.mxu0 %v2535
    %3676 = vmatprep.subr.bf16.mxu0 %v2540
    %3677 = vmatpush1.bf16.msra.mxu0 %v2539
    %3678 = vmatprep.subr.bf16.mxu0 %v2544
    %3679 = vmatpush1.bf16.msra.mxu0 %v2543
    %3680 = vmatprep.subr.bf16.mxu0 %v2548
    %3681 = vmatpush1.bf16.msra.mxu0 %v2547
    %3682 = vmatprep.subr.bf16.mxu0 %v2552
    %3683 = vmatpush1.bf16.msra.mxu0 %v2551
    %3684 = vmatprep.subr.bf16.mxu0 %v2556
    %3685 = vmatpush1.bf16.msra.mxu0 %v2555
    %3686 = vmatprep.subr.bf16.mxu0 %v2560
    %3687 = vmatpush1.bf16.msra.mxu0 %v2559
    %3688 = vmatprep.subr.bf16.mxu0 %v2564
    %3689 = vmatpush1.bf16.msra.mxu0 %v2563
    %3690 = vmatprep.subr.bf16.mxu0 %v2568
    %3691 = vmatpush1.bf16.msra.mxu0 %v2567
    %3692 = vmatprep.mubr.bf16.mxu0 %v3618
    %3693 = vmatmul.mubr.bf16.gmra.mrb[0].mxu0 %v3513
    %v3694 = vpop.f32.mrb[0].mxu0
    %v3695 = vadd.f32 %v2304, %v3694
    %v3696 = vpop.f32.mrb[0].mxu0
    %v3697 = vadd.f32 %v2308, %v3696
    %v3698 = vpop.f32.mrb[0].mxu0
    %v3699 = vpop.f32.mrb[0].mxu0
    %3700 = vdwg.mxu0
    %v3701 = vmul.f32 %v3654, 0.5
    %v3702 = vtanh.pop %v3701
    %v3703 = vmul.f32 %v3702, 0.5
    %v3704 = vadd.f32 %v3703, 0.5
    %v3705 = vmul.f32 %v3656, 0.5
    %v3706 = vtanh.pop %v3705
    %v3707 = vmul.f32 %v3706, 0.5
    %v3708 = vadd.f32 %v3707, 0.5
    %v3709 = vtanh.pop %v3695
    %v3710 = vmul.f32 %v3697, 0.5
    %v3711 = vtanh.pop %v3710
    %v3712 = vmul.f32 %v3711, 0.5
    %v3713 = vadd.f32 %v3712, 0.5
    %v3714 = vmul.f32 %v3708, %v3499
    %v3715 = vmul.f32 %v3704, %v3709
    %v3716 = vadd.f32 %v3714, %v3715
    %v3717 = vtanh.pop %v3716
    %v3718 = vmul.f32 %v3713, %v3717
    %v3719 = vpack.c.bf16 %v3502, %v3502
    %3720 = vmatprep.subr.bf16.mxu0 %v2947
    %3721 = vmatpush1.bf16.msra.mxu0 %v2946
    %3722 = vmatprep.subr.bf16.mxu0 %v2951
    %3723 = vmatpush1.bf16.msra.mxu0 %v2950
    %3724 = vmatprep.subr.bf16.mxu0 %v2955
    %3725 = vmatpush1.bf16.msra.mxu0 %v2954
    %3726 = vmatprep.subr.bf16.mxu0 %v2959
    %3727 = vmatpush1.bf16.msra.mxu0 %v2958
    %3728 = vmatprep.subr.bf16.mxu0 %v2963
    %3729 = vmatpush1.bf16.msra.mxu0 %v2962
    %3730 = vmatprep.subr.bf16.mxu0 %v2967
    %3731 = vmatpush1.bf16.msra.mxu0 %v2966
    %3732 = vmatprep.subr.bf16.mxu0 %v2971
    %3733 = vmatpush1.bf16.msra.mxu0 %v2970
    %3734 = vmatprep.subr.bf16.mxu0 %v2975
    %3735 = vmatpush1.bf16.msra.mxu0 %v2974
    %3736 = vmatprep.subr.bf16.mxu0 %v2979
    %3737 = vmatpush1.bf16.msra.mxu0 %v2978
    %3738 = vmatprep.subr.bf16.mxu0 %v2983
    %3739 = vmatpush1.bf16.msra.mxu0 %v2982
    %3740 = vmatprep.subr.bf16.mxu0 %v2987
    %3741 = vmatpush1.bf16.msra.mxu0 %v2986
    %3742 = vmatprep.subr.bf16.mxu0 %v2991
    %3743 = vmatpush1.bf16.msra.mxu0 %v2990
    %3744 = vmatprep.subr.bf16.mxu0 %v2995
    %3745 = vmatpush1.bf16.msra.mxu0 %v2994
    %3746 = vmatprep.subr.bf16.mxu0 %v2999
    %3747 = vmatpush1.bf16.msra.mxu0 %v2998
    %3748 = vmatprep.subr.bf16.mxu0 %v3003
    %3749 = vmatpush1.bf16.msra.mxu0 %v3002
    %3750 = vmatprep.subr.bf16.mxu0 %v3007
    %3751 = vmatpush1.bf16.msra.mxu0 %v3006
    %3752 = vmatprep.mubr.bf16.mxu0 %v3719
    %3753 = vmatmul.mubr.bf16.gmra.mrb[0].mxu0 %v3618
    %v3754 = vpop.f32.mrb[0].mxu0
    %v3755 = vadd.f32 %v2737, %v3754
    %v3756 = vpop.f32.mrb[0].mxu0
    %v3757 = vadd.f32 %v2741, %v3756
    %v3758 = vpop.f32.mrb[0].mxu0
    %v3759 = vpop.f32.mrb[0].mxu0
    %3760 = vdwg.mxu0
    %3761 = vmatprep.subr.bf16.mxu0 %v2949
    %3762 = vmatpush1.bf16.msra.mxu0 %v2948
    %3763 = vmatprep.subr.bf16.mxu0 %v2953
    %3764 = vmatpush1.bf16.msra.mxu0 %v2952
    %3765 = vmatprep.subr.bf16.mxu0 %v2957
    %3766 = vmatpush1.bf16.msra.mxu0 %v2956
    %3767 = vmatprep.subr.bf16.mxu0 %v2961
    %3768 = vmatpush1.bf16.msra.mxu0 %v2960
    %3769 = vmatprep.subr.bf16.mxu0 %v2965
    %3770 = vmatpush1.bf16.msra.mxu0 %v2964
    %3771 = vmatprep.subr.bf16.mxu0 %v2969
    %3772 = vmatpush1.bf16.msra.mxu0 %v2968
    %3773 = vmatprep.subr.bf16.mxu0 %v2973
    %3774 = vmatpush1.bf16.msra.mxu0 %v2972
    %3775 = vmatprep.subr.bf16.mxu0 %v2977
    %3776 = vmatpush1.bf16.msra.mxu0 %v2976
    %3777 = vmatprep.subr.bf16.mxu0 %v2981
    %3778 = vmatpush1.bf16.msra.mxu0 %v2980
    %3779 = vmatprep.subr.bf16.mxu0 %v2985
    %3780 = vmatpush1.bf16.msra.mxu0 %v2984
    %3781 = vmatprep.subr.bf16.mxu0 %v2989
    %3782 = vmatpush1.bf16.msra.mxu0 %v2988
    %3783 = vmatprep.subr.bf16.mxu0 %v2993
    %3784 = vmatpush1.bf16.msra.mxu0 %v2992
    %3785 = vmatprep.subr.bf16.mxu0 %v2997
    %3786 = vmatpush1.bf16.msra.mxu0 %v2996
    %3787 = vmatprep.subr.bf16.mxu0 %v3001
    %3788 = vmatpush1.bf16.msra.mxu0 %v3000
    %3789 = vmatprep.subr.bf16.mxu0 %v3005
    %3790 = vmatpush1.bf16.msra.mxu0 %v3004
    %3791 = vmatprep.subr.bf16.mxu0 %v3009
    %3792 = vmatpush1.bf16.msra.mxu0 %v3008
    %3793 = vmatprep.mubr.bf16.mxu0 %v3719
    %3794 = vmatmul.mubr.bf16.gmra.mrb[0].mxu0 %v3618
    %v3795 = vpop.f32.mrb[0].mxu0
    %v3796 = vadd.f32 %v2745, %v3795
    %v3797 = vpop.f32.mrb[0].mxu0
    %v3798 = vadd.f32 %v2749, %v3797
    %v3799 = vpop.f32.mrb[0].mxu0
    %v3800 = vpop.f32.mrb[0].mxu0
    %3801 = vdwg.mxu0
    %v3802 = vmul.f32 %v3755, 0.5
    %v3803 = vtanh.pop %v3802
    %v3804 = vmul.f32 %v3803, 0.5
    %v3805 = vadd.f32 %v3804, 0.5
    %v3806 = vmul.f32 %v3757, 0.5
    %v3807 = vtanh.pop %v3806
    %v3808 = vmul.f32 %v3807, 0.5
    %v3809 = vadd.f32 %v3808, 0.5
    %v3810 = vtanh.pop %v3796
    %v3811 = vmul.f32 %v3798, 0.5
    %v3812 = vtanh.pop %v3811
    %v3813 = vmul.f32 %v3812, 0.5
    %v3814 = vadd.f32 %v3813, 0.5
    %v3815 = vmul.f32 %v3809, %v3505
    %v3816 = vmul.f32 %v3805, %v3810
    %v3817 = vadd.f32 %v3815, %v3816
    %v3818 = vtanh.pop %v3817
    %v3819 = vmul.f32 %v3814, %v3818
    %v3820 = vsub.f32 %v3718, %v3497
    %v3821 = vadd.f32 %v3497, %v3820
    %v3822 = vsub.f32 %v3716, %v3499
    %v3823 = vadd.f32 %v3499, %v3822
    %v3824 = vsub.f32 %v3819, %v3502
    %v3825 = vadd.f32 %v3502, %v3824
    %v3826 = vsub.f32 %v3817, %v3505
    %v3827 = vadd.f32 %v3505, %v3826
    %s3828 = smul.u32 3, 4
    %s3829 = smul.addr %s3828, 8
    %s3830 = scalar_lea.vmem [#allocation2], %s3829
    %v3831 = vld [vmem:[%s3830] sm:$0xff]
    %v3832 = vld [vmem:[%s3830 + $0x8] sm:$0xff]
    %v3833 = vld [vmem:[%s3830 + $0x10] sm:$0xff]
    %v3834 = vld [vmem:[%s3830 + $0x18] sm:$0xff]
    %v3835 = vpack.c.bf16 %v3617, %v3617
    %3836 = vmatprep.subr.bf16.mxu0 %v2124
    %3837 = vmatpush1.bf16.msra.mxu0 %v2123
    %3838 = vmatprep.subr.bf16.mxu0 %v2128
    %3839 = vmatpush1.bf16.msra.mxu0 %v2127
    %3840 = vmatprep.subr.bf16.mxu0 %v2132
    %3841 = vmatpush1.bf16.msra.mxu0 %v2131
    %3842 = vmatprep.subr.bf16.mxu0 %v2136
    %3843 = vmatpush1.bf16.msra.mxu0 %v2135
    %3844 = vmatprep.subr.bf16.mxu0 %v2140
    %3845 = vmatpush1.bf16.msra.mxu0 %v2139
    %3846 = vmatprep.subr.bf16.mxu0 %v2144
    %3847 = vmatpush1.bf16.msra.mxu0 %v2143
    %3848 = vmatprep.subr.bf16.mxu0 %v2148
    %3849 = vmatpush1.bf16.msra.mxu0 %v2147
    %3850 = vmatprep.subr.bf16.mxu0 %v2152
    %3851 = vmatpush1.bf16.msra.mxu0 %v2151
    %3852 = vmatprep.subr.bf16.mxu0 0
    %3853 = vmatpush1.bf16.msra.mxu0 0
    %3854 = vmatprep.subr.bf16.mxu0 0
    %3855 = vmatpush1.bf16.msra.mxu0 0
    %3856 = vmatprep.subr.bf16.mxu0 0
    %3857 = vmatpush1.bf16.msra.mxu0 0
    %3858 = vmatprep.subr.bf16.mxu0 0
    %3859 = vmatpush1.bf16.msra.mxu0 0
    %3860 = vmatprep.subr.bf16.mxu0 0
    %3861 = vmatpush1.bf16.msra.mxu0 0
    %3862 = vmatprep.subr.bf16.mxu0 0
    %3863 = vmatpush1.bf16.msra.mxu0 0
    %3864 = vmatprep.subr.bf16.mxu0 0
    %3865 = vmatpush1.bf16.msra.mxu0 0
    %3866 = vmatprep.subr.bf16.mxu0 0
    %3867 = vmatpush1.bf16.msra.mxu0 0
    %3868 = vmatprep.mubr.bf16.mxu0 0
    %3869 = vmatmul.mubr.bf16.gmra.mrb[0].mxu0 %v3835
    %v3870 = vpop.f32.mrb[0].mxu0
    %v3871 = vadd.f32 0.0, %v3870
    %v3872 = vpop.f32.mrb[0].mxu0
    %v3873 = vadd.f32 0.0, %v3872
    %v3874 = vpop.f32.mrb[0].mxu0
    %v3875 = vpop.f32.mrb[0].mxu0
    %3876 = vdwg.mxu0
    %3877 = vmatprep.subr.bf16.mxu0 %v2126
    %3878 = vmatpush1.bf16.msra.mxu0 %v2125
    %3879 = vmatprep.subr.bf16.mxu0 %v2130
    %3880 = vmatpush1.bf16.msra.mxu0 %v2129
    %3881 = vmatprep.subr.bf16.mxu0 %v2134
    %3882 = vmatpush1.bf16.msra.mxu0 %v2133
    %3883 = vmatprep.subr.bf16.mxu0 %v2138
    %3884 = vmatpush1.bf16.msra.mxu0 %v2137
    %3885 = vmatprep.subr.bf16.mxu0 %v2142
    %3886 = vmatpush1.bf16.msra.mxu0 %v2141
    %3887 = vmatprep.subr.bf16.mxu0 %v2146
    %3888 = vmatpush1.bf16.msra.mxu0 %v2145
    %3889 = vmatprep.subr.bf16.mxu0 %v2150
    %3890 = vmatpush1.bf16.msra.mxu0 %v2149
    %3891 = vmatprep.subr.bf16.mxu0 %v2154
    %3892 = vmatpush1.bf16.msra.mxu0 %v2153
    %3893 = vmatprep.subr.bf16.mxu0 0
    %3894 = vmatpush1.bf16.msra.mxu0 0
    %3895 = vmatprep.subr.bf16.mxu0 0
    %3896 = vmatpush1.bf16.msra.mxu0 0
    %3897 = vmatprep.subr.bf16.mxu0 0
    %3898 = vmatpush1.bf16.msra.mxu0 0
    %3899 = vmatprep.subr.bf16.mxu0 0
    %3900 = vmatpush1.bf16.msra.mxu0 0
    %3901 = vmatprep.subr.bf16.mxu0 0
    %3902 = vmatpush1.bf16.msra.mxu0 0
    %3903 = vmatprep.subr.bf16.mxu0 0
    %3904 = vmatpush1.bf16.msra.mxu0 0
    %3905 = vmatprep.subr.bf16.mxu0 0
    %3906 = vmatpush1.bf16.msra.mxu0 0
    %3907 = vmatprep.subr.bf16.mxu0 0
    %3908 = vmatpush1.bf16.msra.mxu0 0
    %3909 = vmatprep.mubr.bf16.mxu0 0
    %3910 = vmatmul.mubr.bf16.gmra.mrb[0].mxu0 %v3835
    %v3911 = vpop.f32.mrb[0].mxu0
    %v3912 = vadd.f32 0.0, %v3911
    %v3913 = vpop.f32.mrb[0].mxu0
    %v3914 = vadd.f32 0.0, %v3913
    %v3915 = vpop.f32.mrb[0].mxu0
    %v3916 = vpop.f32.mrb[0].mxu0
    %3917 = vdwg.mxu0
    %v3918 = vadd.f32 %v3831, %v3871
    %v3919 = vadd.f32 %v3832, %v3873
    %v3920 = vadd.f32 %v3833, %v3912
    %v3921 = vadd.f32 %v3834, %v3914
    %v3922 = vmul.f32 %v3918, 0.5
    %v3923 = vtanh.pop %v3922
    %v3924 = vmul.f32 %v3923, 0.5
    %v3925 = vadd.f32 %v3924, 0.5
    %v3926 = vmul.f32 %v3919, 0.5
    %v3927 = vtanh.pop %v3926
    %v3928 = vmul.f32 %v3927, 0.5
    %v3929 = vadd.f32 %v3928, 0.5
    %v3930 = vtanh.pop %v3920
    %v3931 = vmul.f32 %v3921, 0.5
    %v3932 = vtanh.pop %v3931
    %v3933 = vmul.f32 %v3932, 0.5
    %v3934 = vadd.f32 %v3933, 0.5
    %v3935 = vmul.f32 %v3929, %v3615
    %v3936 = vmul.f32 %v3925, %v3930
    %v3937 = vadd.f32 %v3935, %v3936
    %v3938 = vtanh.pop %v3937
    %v3939 = vmul.f32 %v3934, %v3938
    %v3940 = vpack.c.bf16 %v3821, %v3821
    %3941 = vmatprep.subr.bf16.mxu0 %v2506
    %3942 = vmatpush1.bf16.msra.mxu0 %v2505
    %3943 = vmatprep.subr.bf16.mxu0 %v2510
    %3944 = vmatpush1.bf16.msra.mxu0 %v2509
    %3945 = vmatprep.subr.bf16.mxu0 %v2514
    %3946 = vmatpush1.bf16.msra.mxu0 %v2513
    %3947 = vmatprep.subr.bf16.mxu0 %v2518
    %3948 = vmatpush1.bf16.msra.mxu0 %v2517
    %3949 = vmatprep.subr.bf16.mxu0 %v2522
    %3950 = vmatpush1.bf16.msra.mxu0 %v2521
    %3951 = vmatprep.subr.bf16.mxu0 %v2526
    %3952 = vmatpush1.bf16.msra.mxu0 %v2525
    %3953 = vmatprep.subr.bf16.mxu0 %v2530
    %3954 = vmatpush1.bf16.msra.mxu0 %v2529
    %3955 = vmatprep.subr.bf16.mxu0 %v2534
    %3956 = vmatpush1.bf16.msra.mxu0 %v2533
    %3957 = vmatprep.subr.bf16.mxu0 %v2538
    %3958 = vmatpush1.bf16.msra.mxu0 %v2537
    %3959 = vmatprep.subr.bf16.mxu0 %v2542
    %3960 = vmatpush1.bf16.msra.mxu0 %v2541
    %3961 = vmatprep.subr.bf16.mxu0 %v2546
    %3962 = vmatpush1.bf16.msra.mxu0 %v2545
    %3963 = vmatprep.subr.bf16.mxu0 %v2550
    %3964 = vmatpush1.bf16.msra.mxu0 %v2549
    %3965 = vmatprep.subr.bf16.mxu0 %v2554
    %3966 = vmatpush1.bf16.msra.mxu0 %v2553
    %3967 = vmatprep.subr.bf16.mxu0 %v2558
    %3968 = vmatpush1.bf16.msra.mxu0 %v2557
    %3969 = vmatprep.subr.bf16.mxu0 %v2562
    %3970 = vmatpush1.bf16.msra.mxu0 %v2561
    %3971 = vmatprep.subr.bf16.mxu0 %v2566
    %3972 = vmatpush1.bf16.msra.mxu0 %v2565
    %3973 = vmatprep.mubr.bf16.mxu0 %v3940
    %3974 = vmatmul.mubr.bf16.gmra.mrb[0].mxu0 %v3835
    %v3975 = vpop.f32.mrb[0].mxu0
    %v3976 = vadd.f32 %v2296, %v3975
    %v3977 = vpop.f32.mrb[0].mxu0
    %v3978 = vadd.f32 %v2300, %v3977
    %v3979 = vpop.f32.mrb[0].mxu0
    %v3980 = vpop.f32.mrb[0].mxu0
    %3981 = vdwg.mxu0
    %3982 = vmatprep.subr.bf16.mxu0 %v2508
    %3983 = vmatpush1.bf16.msra.mxu0 %v2507
    %3984 = vmatprep.subr.bf16.mxu0 %v2512
    %3985 = vmatpush1.bf16.msra.mxu0 %v2511
    %3986 = vmatprep.subr.bf16.mxu0 %v2516
    %3987 = vmatpush1.bf16.msra.mxu0 %v2515
    %3988 = vmatprep.subr.bf16.mxu0 %v2520
    %3989 = vmatpush1.bf16.msra.mxu0 %v2519
    %3990 = vmatprep.subr.bf16.mxu0 %v2524
    %3991 = vmatpush1.bf16.msra.mxu0 %v2523
    %3992 = vmatprep.subr.bf16.mxu0 %v2528
    %3993 = vmatpush1.bf16.msra.mxu0 %v2527
    %3994 = vmatprep.subr.bf16.mxu0 %v2532
    %3995 = vmatpush1.bf16.msra.mxu0 %v2531
    %3996 = vmatprep.subr.bf16.mxu0 %v2536
    %3997 = vmatpush1.bf16.msra.mxu0 %v2535
    %3998 = vmatprep.subr.bf16.mxu0 %v2540
    %3999 = vmatpush1.bf16.msra.mxu0 %v2539
    %4000 = vmatprep.subr.bf16.mxu0 %v2544
    %4001 = vmatpush1.bf16.msra.mxu0 %v2543
    %4002 = vmatprep.subr.bf16.mxu0 %v2548
    %4003 = vmatpush1.bf16.msra.mxu0 %v2547
    %4004 = vmatprep.subr.bf16.mxu0 %v2552
    %4005 = vmatpush1.bf16.msra.mxu0 %v2551
    %4006 = vmatprep.subr.bf16.mxu0 %v2556
    %4007 = vmatpush1.bf16.msra.mxu0 %v2555
    %4008 = vmatprep.subr.bf16.mxu0 %v2560
    %4009 = vmatpush1.bf16.msra.mxu0 %v2559
    %4010 = vmatprep.subr.bf16.mxu0 %v2564
    %4011 = vmatpush1.bf16.msra.mxu0 %v2563
    %4012 = vmatprep.subr.bf16.mxu0 %v2568
    %4013 = vmatpush1.bf16.msra.mxu0 %v2567
    %4014 = vmatprep.mubr.bf16.mxu0 %v3940
    %4015 = vmatmul.mubr.bf16.gmra.mrb[0].mxu0 %v3835
    %v4016 = vpop.f32.mrb[0].mxu0
    %v4017 = vadd.f32 %v2304, %v4016
    %v4018 = vpop.f32.mrb[0].mxu0
    %v4019 = vadd.f32 %v2308, %v4018
    %v4020 = vpop.f32.mrb[0].mxu0
    %v4021 = vpop.f32.mrb[0].mxu0
    %4022 = vdwg.mxu0
    %v4023 = vmul.f32 %v3976, 0.5
    %v4024 = vtanh.pop %v4023
    %v4025 = vmul.f32 %v4024, 0.5
    %v4026 = vadd.f32 %v4025, 0.5
    %v4027 = vmul.f32 %v3978, 0.5
    %v4028 = vtanh.pop %v4027
    %v4029 = vmul.f32 %v4028, 0.5
    %v4030 = vadd.f32 %v4029, 0.5
    %v4031 = vtanh.pop %v4017
    %v4032 = vmul.f32 %v4019, 0.5
    %v4033 = vtanh.pop %v4032
    %v4034 = vmul.f32 %v4033, 0.5
    %v4035 = vadd.f32 %v4034, 0.5
    %v4036 = vmul.f32 %v4030, %v3823
    %v4037 = vmul.f32 %v4026, %v4031
    %v4038 = vadd.f32 %v4036, %v4037
    %v4039 = vtanh.pop %v4038
    %v4040 = vmul.f32 %v4035, %v4039
    %v4041 = vpack.c.bf16 %v3825, %v3825
    %4042 = vmatprep.subr.bf16.mxu0 %v2947
    %4043 = vmatpush1.bf16.msra.mxu0 %v2946
    %4044 = vmatprep.subr.bf16.mxu0 %v2951
    %4045 = vmatpush1.bf16.msra.mxu0 %v2950
    %4046 = vmatprep.subr.bf16.mxu0 %v2955
    %4047 = vmatpush1.bf16.msra.mxu0 %v2954
    %4048 = vmatprep.subr.bf16.mxu0 %v2959
    %4049 = vmatpush1.bf16.msra.mxu0 %v2958
    %4050 = vmatprep.subr.bf16.mxu0 %v2963
    %4051 = vmatpush1.bf16.msra.mxu0 %v2962
    %4052 = vmatprep.subr.bf16.mxu0 %v2967
    %4053 = vmatpush1.bf16.msra.mxu0 %v2966
    %4054 = vmatprep.subr.bf16.mxu0 %v2971
    %4055 = vmatpush1.bf16.msra.mxu0 %v2970
    %4056 = vmatprep.subr.bf16.mxu0 %v2975
    %4057 = vmatpush1.bf16.msra.mxu0 %v2974
    %4058 = vmatprep.subr.bf16.mxu0 %v2979
    %4059 = vmatpush1.bf16.msra.mxu0 %v2978
    %4060 = vmatprep.subr.bf16.mxu0 %v2983
    %4061 = vmatpush1.bf16.msra.mxu0 %v2982
    %4062 = vmatprep.subr.bf16.mxu0 %v2987
    %4063 = vmatpush1.bf16.msra.mxu0 %v2986
    %4064 = vmatprep.subr.bf16.mxu0 %v2991
    %4065 = vmatpush1.bf16.msra.mxu0 %v2990
    %4066 = vmatprep.subr.bf16.mxu0 %v2995
    %4067 = vmatpush1.bf16.msra.mxu0 %v2994
    %4068 = vmatprep.subr.bf16.mxu0 %v2999
    %4069 = vmatpush1.bf16.msra.mxu0 %v2998
    %4070 = vmatprep.subr.bf16.mxu0 %v3003
    %4071 = vmatpush1.bf16.msra.mxu0 %v3002
    %4072 = vmatprep.subr.bf16.mxu0 %v3007
    %4073 = vmatpush1.bf16.msra.mxu0 %v3006
    %4074 = vmatprep.mubr.bf16.mxu0 %v4041
    %4075 = vmatmul.mubr.bf16.gmra.mrb[0].mxu0 %v3940
    %v4076 = vpop.f32.mrb[0].mxu0
    %v4077 = vadd.f32 %v2737, %v4076
    %v4078 = vpop.f32.mrb[0].mxu0
    %v4079 = vadd.f32 %v2741, %v4078
    %v4080 = vpop.f32.mrb[0].mxu0
    %v4081 = vpop.f32.mrb[0].mxu0
    %4082 = vdwg.mxu0
    %4083 = vmatprep.subr.bf16.mxu0 %v2949
    %4084 = vmatpush1.bf16.msra.mxu0 %v2948
    %4085 = vmatprep.subr.bf16.mxu0 %v2953
    %4086 = vmatpush1.bf16.msra.mxu0 %v2952
    %4087 = vmatprep.subr.bf16.mxu0 %v2957
    %4088 = vmatpush1.bf16.msra.mxu0 %v2956
    %4089 = vmatprep.subr.bf16.mxu0 %v2961
    %4090 = vmatpush1.bf16.msra.mxu0 %v2960
    %4091 = vmatprep.subr.bf16.mxu0 %v2965
    %4092 = vmatpush1.bf16.msra.mxu0 %v2964
    %4093 = vmatprep.subr.bf16.mxu0 %v2969
    %4094 = vmatpush1.bf16.msra.mxu0 %v2968
    %4095 = vmatprep.subr.bf16.mxu0 %v2973
    %4096 = vmatpush1.bf16.msra.mxu0 %v2972
    %4097 = vmatprep.subr.bf16.mxu0 %v2977
    %4098 = vmatpush1.bf16.msra.mxu0 %v2976
    %4099 = vmatprep.subr.bf16.mxu0 %v2981
    %4100 = vmatpush1.bf16.msra.mxu0 %v2980
    %4101 = vmatprep.subr.bf16.mxu0 %v2985
    %4102 = vmatpush1.bf16.msra.mxu0 %v2984
    %4103 = vmatprep.subr.bf16.mxu0 %v2989
    %4104 = vmatpush1.bf16.msra.mxu0 %v2988
    %4105 = vmatprep.subr.bf16.mxu0 %v2993
    %4106 = vmatpush1.bf16.msra.mxu0 %v2992
    %4107 = vmatprep.subr.bf16.mxu0 %v2997
    %4108 = vmatpush1.bf16.msra.mxu0 %v2996
    %4109 = vmatprep.subr.bf16.mxu0 %v3001
    %4110 = vmatpush1.bf16.msra.mxu0 %v3000
    %4111 = vmatprep.subr.bf16.mxu0 %v3005
    %4112 = vmatpush1.bf16.msra.mxu0 %v3004
    %4113 = vmatprep.subr.bf16.mxu0 %v3009
    %4114 = vmatpush1.bf16.msra.mxu0 %v3008
    %4115 = vmatprep.mubr.bf16.mxu0 %v4041
    %4116 = vmatmul.mubr.bf16.gmra.mrb[0].mxu0 %v3940
    %v4117 = vpop.f32.mrb[0].mxu0
    %v4118 = vadd.f32 %v2745, %v4117
    %v4119 = vpop.f32.mrb[0].mxu0
    %v4120 = vadd.f32 %v2749, %v4119
    %v4121 = vpop.f32.mrb[0].mxu0
    %v4122 = vpop.f32.mrb[0].mxu0
    %4123 = vdwg.mxu0
    %v4124 = vmul.f32 %v4077, 0.5
    %v4125 = vtanh.pop %v4124
    %v4126 = vmul.f32 %v4125, 0.5
    %v4127 = vadd.f32 %v4126, 0.5
    %v4128 = vmul.f32 %v4079, 0.5
    %v4129 = vtanh.pop %v4128
    %v4130 = vmul.f32 %v4129, 0.5
    %v4131 = vadd.f32 %v4130, 0.5
    %v4132 = vtanh.pop %v4118
    %v4133 = vmul.f32 %v4120, 0.5
    %v4134 = vtanh.pop %v4133
    %v4135 = vmul.f32 %v4134, 0.5
    %v4136 = vadd.f32 %v4135, 0.5
    %v4137 = vmul.f32 %v4131, %v3827
    %v4138 = vmul.f32 %v4127, %v4132
    %v4139 = vadd.f32 %v4137, %v4138
    %v4140 = vtanh.pop %v4139
    %v4141 = vmul.f32 %v4136, %v4140
    %v4142 = vsub.f32 %v4040, %v3821
    %v4143 = vadd.f32 %v3821, %v4142
    %v4144 = vsub.f32 %v4038, %v3823
    %v4145 = vadd.f32 %v3823, %v4144
    %v4146 = vsub.f32 %v4141, %v3825
    %v4147 = vadd.f32 %v3825, %v4146
    %v4148 = vsub.f32 %v4139, %v3827
    %v4149 = vadd.f32 %v3827, %v4148
    %s4150 = smul.u32 4, 4
    %s4151 = smul.addr %s4150, 8
    %s4152 = scalar_lea.vmem [#allocation2], %s4151
    %v4153 = vld [vmem:[%s4152] sm:$0xff]
    %v4154 = vld [vmem:[%s4152 + $0x8] sm:$0xff]
    %v4155 = vld [vmem:[%s4152 + $0x10] sm:$0xff]
    %v4156 = vld [vmem:[%s4152 + $0x18] sm:$0xff]
    %v4157 = vpack.c.bf16 %v3939, %v3939
    %4158 = vmatprep.subr.bf16.mxu0 %v2124
    %4159 = vmatpush1.bf16.msra.mxu0 %v2123
    %4160 = vmatprep.subr.bf16.mxu0 %v2128
    %4161 = vmatpush1.bf16.msra.mxu0 %v2127
    %4162 = vmatprep.subr.bf16.mxu0 %v2132
    %4163 = vmatpush1.bf16.msra.mxu0 %v2131
    %4164 = vmatprep.subr.bf16.mxu0 %v2136
    %4165 = vmatpush1.bf16.msra.mxu0 %v2135
    %4166 = vmatprep.subr.bf16.mxu0 %v2140
    %4167 = vmatpush1.bf16.msra.mxu0 %v2139
    %4168 = vmatprep.subr.bf16.mxu0 %v2144
    %4169 = vmatpush1.bf16.msra.mxu0 %v2143
    %4170 = vmatprep.subr.bf16.mxu0 %v2148
    %4171 = vmatpush1.bf16.msra.mxu0 %v2147
    %4172 = vmatprep.subr.bf16.mxu0 %v2152
    %4173 = vmatpush1.bf16.msra.mxu0 %v2151
    %4174 = vmatprep.subr.bf16.mxu0 0
    %4175 = vmatpush1.bf16.msra.mxu0 0
    %4176 = vmatprep.subr.bf16.mxu0 0
    %4177 = vmatpush1.bf16.msra.mxu0 0
    %4178 = vmatprep.subr.bf16.mxu0 0
    %4179 = vmatpush1.bf16.msra.mxu0 0
    %4180 = vmatprep.subr.bf16.mxu0 0
    %4181 = vmatpush1.bf16.msra.mxu0 0
    %4182 = vmatprep.subr.bf16.mxu0 0
    %4183 = vmatpush1.bf16.msra.mxu0 0
    %4184 = vmatprep.subr.bf16.mxu0 0
    %4185 = vmatpush1.bf16.msra.mxu0 0
    %4186 = vmatprep.subr.bf16.mxu0 0
    %4187 = vmatpush1.bf16.msra.mxu0 0
    %4188 = vmatprep.subr.bf16.mxu0 0
    %4189 = vmatpush1.bf16.msra.mxu0 0
    %4190 = vmatprep.mubr.bf16.mxu0 0
    %4191 = vmatmul.mubr.bf16.gmra.mrb[0].mxu0 %v4157
    %v4192 = vpop.f32.mrb[0].mxu0
    %v4193 = vadd.f32 0.0, %v4192
    %v4194 = vpop.f32.mrb[0].mxu0
    %v4195 = vadd.f32 0.0, %v4194
    %v4196 = vpop.f32.mrb[0].mxu0
    %v4197 = vpop.f32.mrb[0].mxu0
    %4198 = vdwg.mxu0
    %4199 = vmatprep.subr.bf16.mxu0 %v2126
    %4200 = vmatpush1.bf16.msra.mxu0 %v2125
    %4201 = vmatprep.subr.bf16.mxu0 %v2130
    %4202 = vmatpush1.bf16.msra.mxu0 %v2129
    %4203 = vmatprep.subr.bf16.mxu0 %v2134
    %4204 = vmatpush1.bf16.msra.mxu0 %v2133
    %4205 = vmatprep.subr.bf16.mxu0 %v2138
    %4206 = vmatpush1.bf16.msra.mxu0 %v2137
    %4207 = vmatprep.subr.bf16.mxu0 %v2142
    %4208 = vmatpush1.bf16.msra.mxu0 %v2141
    %4209 = vmatprep.subr.bf16.mxu0 %v2146
    %4210 = vmatpush1.bf16.msra.mxu0 %v2145
    %4211 = vmatprep.subr.bf16.mxu0 %v2150
    %4212 = vmatpush1.bf16.msra.mxu0 %v2149
    %4213 = vmatprep.subr.bf16.mxu0 %v2154
    %4214 = vmatpush1.bf16.msra.mxu0 %v2153
    %4215 = vmatprep.subr.bf16.mxu0 0
    %4216 = vmatpush1.bf16.msra.mxu0 0
    %4217 = vmatprep.subr.bf16.mxu0 0
    %4218 = vmatpush1.bf16.msra.mxu0 0
    %4219 = vmatprep.subr.bf16.mxu0 0
    %4220 = vmatpush1.bf16.msra.mxu0 0
    %4221 = vmatprep.subr.bf16.mxu0 0
    %4222 = vmatpush1.bf16.msra.mxu0 0
    %4223 = vmatprep.subr.bf16.mxu0 0
    %4224 = vmatpush1.bf16.msra.mxu0 0
    %4225 = vmatprep.subr.bf16.mxu0 0
    %4226 = vmatpush1.bf16.msra.mxu0 0
    %4227 = vmatprep.subr.bf16.mxu0 0
    %4228 = vmatpush1.bf16.msra.mxu0 0
    %4229 = vmatprep.subr.bf16.mxu0 0
    %4230 = vmatpush1.bf16.msra.mxu0 0
    %4231 = vmatprep.mubr.bf16.mxu0 0
    %4232 = vmatmul.mubr.bf16.gmra.mrb[0].mxu0 %v4157
    %v4233 = vpop.f32.mrb[0].mxu0
    %v4234 = vadd.f32 0.0, %v4233
    %v4235 = vpop.f32.mrb[0].mxu0
    %v4236 = vadd.f32 0.0, %v4235
    %v4237 = vpop.f32.mrb[0].mxu0
    %v4238 = vpop.f32.mrb[0].mxu0
    %4239 = vdwg.mxu0
    %v4240 = vadd.f32 %v4153, %v4193
    %v4241 = vadd.f32 %v4154, %v4195
    %v4242 = vadd.f32 %v4155, %v4234
    %v4243 = vadd.f32 %v4156, %v4236
    %v4244 = vmul.f32 %v4240, 0.5
    %v4245 = vtanh.pop %v4244
    %v4246 = vmul.f32 %v4245, 0.5
    %v4247 = vadd.f32 %v4246, 0.5
    %v4248 = vmul.f32 %v4241, 0.5
    %v4249 = vtanh.pop %v4248
    %v4250 = vmul.f32 %v4249, 0.5
    %v4251 = vadd.f32 %v4250, 0.5
    %v4252 = vtanh.pop %v4242
    %v4253 = vmul.f32 %v4243, 0.5
    %v4254 = vtanh.pop %v4253
    %v4255 = vmul.f32 %v4254, 0.5
    %v4256 = vadd.f32 %v4255, 0.5
    %v4257 = vmul.f32 %v4251, %v3937
    %v4258 = vmul.f32 %v4247, %v4252
    %v4259 = vadd.f32 %v4257, %v4258
    %v4260 = vtanh.pop %v4259
    %v4261 = vmul.f32 %v4256, %v4260
    %v4262 = vpack.c.bf16 %v4143, %v4143
    %4263 = vmatprep.subr.bf16.mxu0 %v2506
    %4264 = vmatpush1.bf16.msra.mxu0 %v2505
    %4265 = vmatprep.subr.bf16.mxu0 %v2510
    %4266 = vmatpush1.bf16.msra.mxu0 %v2509
    %4267 = vmatprep.subr.bf16.mxu0 %v2514
    %4268 = vmatpush1.bf16.msra.mxu0 %v2513
    %4269 = vmatprep.subr.bf16.mxu0 %v2518
    %4270 = vmatpush1.bf16.msra.mxu0 %v2517
    %4271 = vmatprep.subr.bf16.mxu0 %v2522
    %4272 = vmatpush1.bf16.msra.mxu0 %v2521
    %4273 = vmatprep.subr.bf16.mxu0 %v2526
    %4274 = vmatpush1.bf16.msra.mxu0 %v2525
    %4275 = vmatprep.subr.bf16.mxu0 %v2530
    %4276 = vmatpush1.bf16.msra.mxu0 %v2529
    %4277 = vmatprep.subr.bf16.mxu0 %v2534
    %4278 = vmatpush1.bf16.msra.mxu0 %v2533
    %4279 = vmatprep.subr.bf16.mxu0 %v2538
    %4280 = vmatpush1.bf16.msra.mxu0 %v2537
    %4281 = vmatprep.subr.bf16.mxu0 %v2542
    %4282 = vmatpush1.bf16.msra.mxu0 %v2541
    %4283 = vmatprep.subr.bf16.mxu0 %v2546
    %4284 = vmatpush1.bf16.msra.mxu0 %v2545
    %4285 = vmatprep.subr.bf16.mxu0 %v2550
    %4286 = vmatpush1.bf16.msra.mxu0 %v2549
    %4287 = vmatprep.subr.bf16.mxu0 %v2554
    %4288 = vmatpush1.bf16.msra.mxu0 %v2553
    %4289 = vmatprep.subr.bf16.mxu0 %v2558
    %4290 = vmatpush1.bf16.msra.mxu0 %v2557
    %4291 = vmatprep.subr.bf16.mxu0 %v2562
    %4292 = vmatpush1.bf16.msra.mxu0 %v2561
    %4293 = vmatprep.subr.bf16.mxu0 %v2566
    %4294 = vmatpush1.bf16.msra.mxu0 %v2565
    %4295 = vmatprep.mubr.bf16.mxu0 %v4262
    %4296 = vmatmul.mubr.bf16.gmra.mrb[0].mxu0 %v4157
    %v4297 = vpop.f32.mrb[0].mxu0
    %v4298 = vadd.f32 %v2296, %v4297
    %v4299 = vpop.f32.mrb[0].mxu0
    %v4300 = vadd.f32 %v2300, %v4299
    %v4301 = vpop.f32.mrb[0].mxu0
    %v4302 = vpop.f32.mrb[0].mxu0
    %4303 = vdwg.mxu0
    %4304 = vmatprep.subr.bf16.mxu0 %v2508
    %4305 = vmatpush1.bf16.msra.mxu0 %v2507
    %4306 = vmatprep.subr.bf16.mxu0 %v2512
    %4307 = vmatpush1.bf16.msra.mxu0 %v2511
    %4308 = vmatprep.subr.bf16.mxu0 %v2516
    %4309 = vmatpush1.bf16.msra.mxu0 %v2515
    %4310 = vmatprep.subr.bf16.mxu0 %v2520
    %4311 = vmatpush1.bf16.msra.mxu0 %v2519
    %4312 = vmatprep.subr.bf16.mxu0 %v2524
    %4313 = vmatpush1.bf16.msra.mxu0 %v2523
    %4314 = vmatprep.subr.bf16.mxu0 %v2528
    %4315 = vmatpush1.bf16.msra.mxu0 %v2527
    %4316 = vmatprep.subr.bf16.mxu0 %v2532
    %4317 = vmatpush1.bf16.msra.mxu0 %v2531
    %4318 = vmatprep.subr.bf16.mxu0 %v2536
    %4319 = vmatpush1.bf16.msra.mxu0 %v2535
    %4320 = vmatprep.subr.bf16.mxu0 %v2540
    %4321 = vmatpush1.bf16.msra.mxu0 %v2539
    %4322 = vmatprep.subr.bf16.mxu0 %v2544
    %4323 = vmatpush1.bf16.msra.mxu0 %v2543
    %4324 = vmatprep.subr.bf16.mxu0 %v2548
    %4325 = vmatpush1.bf16.msra.mxu0 %v2547
    %4326 = vmatprep.subr.bf16.mxu0 %v2552
    %4327 = vmatpush1.bf16.msra.mxu0 %v2551
    %4328 = vmatprep.subr.bf16.mxu0 %v2556
    %4329 = vmatpush1.bf16.msra.mxu0 %v2555
    %4330 = vmatprep.subr.bf16.mxu0 %v2560
    %4331 = vmatpush1.bf16.msra.mxu0 %v2559
    %4332 = vmatprep.subr.bf16.mxu0 %v2564
    %4333 = vmatpush1.bf16.msra.mxu0 %v2563
    %4334 = vmatprep.subr.bf16.mxu0 %v2568
    %4335 = vmatpush1.bf16.msra.mxu0 %v2567
    %4336 = vmatprep.mubr.bf16.mxu0 %v4262
    %4337 = vmatmul.mubr.bf16.gmra.mrb[0].mxu0 %v4157
    %v4338 = vpop.f32.mrb[0].mxu0
    %v4339 = vadd.f32 %v2304, %v4338
    %v4340 = vpop.f32.mrb[0].mxu0
    %v4341 = vadd.f32 %v2308, %v4340
    %v4342 = vpop.f32.mrb[0].mxu0
    %v4343 = vpop.f32.mrb[0].mxu0
    %4344 = vdwg.mxu0
    %v4345 = vmul.f32 %v4298, 0.5
    %v4346 = vtanh.pop %v4345
    %v4347 = vmul.f32 %v4346, 0.5
    %v4348 = vadd.f32 %v4347, 0.5
    %v4349 = vmul.f32 %v4300, 0.5
    %v4350 = vtanh.pop %v4349
    %v4351 = vmul.f32 %v4350, 0.5
    %v4352 = vadd.f32 %v4351, 0.5
    %v4353 = vtanh.pop %v4339
    %v4354 = vmul.f32 %v4341, 0.5
    %v4355 = vtanh.pop %v4354
    %v4356 = vmul.f32 %v4355, 0.5
    %v4357 = vadd.f32 %v4356, 0.5
    %v4358 = vmul.f32 %v4352, %v4145
    %v4359 = vmul.f32 %v4348, %v4353
    %v4360 = vadd.f32 %v4358, %v4359
    %v4361 = vtanh.pop %v4360
    %v4362 = vmul.f32 %v4357, %v4361
    %v4363 = vpack.c.bf16 %v4147, %v4147
    %4364 = vmatprep.subr.bf16.mxu0 %v2947
    %4365 = vmatpush1.bf16.msra.mxu0 %v2946
    %4366 = vmatprep.subr.bf16.mxu0 %v2951
    %4367 = vmatpush1.bf16.msra.mxu0 %v2950
    %4368 = vmatprep.subr.bf16.mxu0 %v2955
    %4369 = vmatpush1.bf16.msra.mxu0 %v2954
    %4370 = vmatprep.subr.bf16.mxu0 %v2959
    %4371 = vmatpush1.bf16.msra.mxu0 %v2958
    %4372 = vmatprep.subr.bf16.mxu0 %v2963
    %4373 = vmatpush1.bf16.msra.mxu0 %v2962
    %4374 = vmatprep.subr.bf16.mxu0 %v2967
    %4375 = vmatpush1.bf16.msra.mxu0 %v2966
    %4376 = vmatprep.subr.bf16.mxu0 %v2971
    %4377 = vmatpush1.bf16.msra.mxu0 %v2970
    %4378 = vmatprep.subr.bf16.mxu0 %v2975
    %4379 = vmatpush1.bf16.msra.mxu0 %v2974
    %4380 = vmatprep.subr.bf16.mxu0 %v2979
    %4381 = vmatpush1.bf16.msra.mxu0 %v2978
    %4382 = vmatprep.subr.bf16.mxu0 %v2983
    %4383 = vmatpush1.bf16.msra.mxu0 %v2982
    %4384 = vmatprep.subr.bf16.mxu0 %v2987
    %4385 = vmatpush1.bf16.msra.mxu0 %v2986
    %4386 = vmatprep.subr.bf16.mxu0 %v2991
    %4387 = vmatpush1.bf16.msra.mxu0 %v2990
    %4388 = vmatprep.subr.bf16.mxu0 %v2995
    %4389 = vmatpush1.bf16.msra.mxu0 %v2994
    %4390 = vmatprep.subr.bf16.mxu0 %v2999
    %4391 = vmatpush1.bf16.msra.mxu0 %v2998
    %4392 = vmatprep.subr.bf16.mxu0 %v3003
    %4393 = vmatpush1.bf16.msra.mxu0 %v3002
    %4394 = vmatprep.subr.bf16.mxu0 %v3007
    %4395 = vmatpush1.bf16.msra.mxu0 %v3006
    %4396 = vmatprep.mubr.bf16.mxu0 %v4363
    %4397 = vmatmul.mubr.bf16.gmra.mrb[0].mxu0 %v4262
    %v4398 = vpop.f32.mrb[0].mxu0
    %v4399 = vadd.f32 %v2737, %v4398
    %v4400 = vpop.f32.mrb[0].mxu0
    %v4401 = vadd.f32 %v2741, %v4400
    %v4402 = vpop.f32.mrb[0].mxu0
    %v4403 = vpop.f32.mrb[0].mxu0
    %4404 = vdwg.mxu0
    %4405 = vmatprep.subr.bf16.mxu0 %v2949
    %4406 = vmatpush1.bf16.msra.mxu0 %v2948
    %4407 = vmatprep.subr.bf16.mxu0 %v2953
    %4408 = vmatpush1.bf16.msra.mxu0 %v2952
    %4409 = vmatprep.subr.bf16.mxu0 %v2957
    %4410 = vmatpush1.bf16.msra.mxu0 %v2956
    %4411 = vmatprep.subr.bf16.mxu0 %v2961
    %4412 = vmatpush1.bf16.msra.mxu0 %v2960
    %4413 = vmatprep.subr.bf16.mxu0 %v2965
    %4414 = vmatpush1.bf16.msra.mxu0 %v2964
    %4415 = vmatprep.subr.bf16.mxu0 %v2969
    %4416 = vmatpush1.bf16.msra.mxu0 %v2968
    %4417 = vmatprep.subr.bf16.mxu0 %v2973
    %4418 = vmatpush1.bf16.msra.mxu0 %v2972
    %4419 = vmatprep.subr.bf16.mxu0 %v2977
    %4420 = vmatpush1.bf16.msra.mxu0 %v2976
    %4421 = vmatprep.subr.bf16.mxu0 %v2981
    %4422 = vmatpush1.bf16.msra.mxu0 %v2980
    %4423 = vmatprep.subr.bf16.mxu0 %v2985
    %4424 = vmatpush1.bf16.msra.mxu0 %v2984
    %4425 = vmatprep.subr.bf16.mxu0 %v2989
    %4426 = vmatpush1.bf16.msra.mxu0 %v2988
    %4427 = vmatprep.subr.bf16.mxu0 %v2993
    %4428 = vmatpush1.bf16.msra.mxu0 %v2992
    %4429 = vmatprep.subr.bf16.mxu0 %v2997
    %4430 = vmatpush1.bf16.msra.mxu0 %v2996
    %4431 = vmatprep.subr.bf16.mxu0 %v3001
    %4432 = vmatpush1.bf16.msra.mxu0 %v3000
    %4433 = vmatprep.subr.bf16.mxu0 %v3005
    %4434 = vmatpush1.bf16.msra.mxu0 %v3004
    %4435 = vmatprep.subr.bf16.mxu0 %v3009
    %4436 = vmatpush1.bf16.msra.mxu0 %v3008
    %4437 = vmatprep.mubr.bf16.mxu0 %v4363
    %4438 = vmatmul.mubr.bf16.gmra.mrb[0].mxu0 %v4262
    %v4439 = vpop.f32.mrb[0].mxu0
    %v4440 = vadd.f32 %v2745, %v4439
    %v4441 = vpop.f32.mrb[0].mxu0
    %v4442 = vadd.f32 %v2749, %v4441
    %v4443 = vpop.f32.mrb[0].mxu0
    %v4444 = vpop.f32.mrb[0].mxu0
    %4445 = vdwg.mxu0
    %v4446 = vmul.f32 %v4399, 0.5
    %v4447 = vtanh.pop %v4446
    %v4448 = vmul.f32 %v4447, 0.5
    %v4449 = vadd.f32 %v4448, 0.5
    %v4450 = vmul.f32 %v4401, 0.5
    %v4451 = vtanh.pop %v4450
    %v4452 = vmul.f32 %v4451, 0.5
    %v4453 = vadd.f32 %v4452, 0.5
    %v4454 = vtanh.pop %v4440
    %v4455 = vmul.f32 %v4442, 0.5
    %v4456 = vtanh.pop %v4455
    %v4457 = vmul.f32 %v4456, 0.5
    %v4458 = vadd.f32 %v4457, 0.5
    %v4459 = vmul.f32 %v4453, %v4149
    %v4460 = vmul.f32 %v4449, %v4454
    %v4461 = vadd.f32 %v4459, %v4460
    %v4462 = vtanh.pop %v4461
    %v4463 = vmul.f32 %v4458, %v4462
    %v4464 = vsub.f32 %v4362, %v4143
    %v4465 = vadd.f32 %v4143, %v4464
    %v4466 = vsub.f32 %v4360, %v4145
    %v4467 = vadd.f32 %v4145, %v4466
    %v4468 = vsub.f32 %v4463, %v4147
    %v4469 = vadd.f32 %v4147, %v4468
    %v4470 = vsub.f32 %v4461, %v4149
    %v4471 = vadd.f32 %v4149, %v4470
    %s4472 = smul.u32 5, 4
    %s4473 = smul.addr %s4472, 8
    %s4474 = scalar_lea.vmem [#allocation2], %s4473
    %v4475 = vld [vmem:[%s4474] sm:$0xff]
    %v4476 = vld [vmem:[%s4474 + $0x8] sm:$0xff]
    %v4477 = vld [vmem:[%s4474 + $0x10] sm:$0xff]
    %v4478 = vld [vmem:[%s4474 + $0x18] sm:$0xff]
    %v4479 = vpack.c.bf16 %v4261, %v4261
    %4480 = vmatprep.subr.bf16.mxu0 %v2124
    %4481 = vmatpush1.bf16.msra.mxu0 %v2123
    %4482 = vmatprep.subr.bf16.mxu0 %v2128
    %4483 = vmatpush1.bf16.msra.mxu0 %v2127
    %4484 = vmatprep.subr.bf16.mxu0 %v2132
    %4485 = vmatpush1.bf16.msra.mxu0 %v2131
    %4486 = vmatprep.subr.bf16.mxu0 %v2136
    %4487 = vmatpush1.bf16.msra.mxu0 %v2135
    %4488 = vmatprep.subr.bf16.mxu0 %v2140
    %4489 = vmatpush1.bf16.msra.mxu0 %v2139
    %4490 = vmatprep.subr.bf16.mxu0 %v2144
    %4491 = vmatpush1.bf16.msra.mxu0 %v2143
    %4492 = vmatprep.subr.bf16.mxu0 %v2148
    %4493 = vmatpush1.bf16.msra.mxu0 %v2147
    %4494 = vmatprep.subr.bf16.mxu0 %v2152
    %4495 = vmatpush1.bf16.msra.mxu0 %v2151
    %4496 = vmatprep.subr.bf16.mxu0 0
    %4497 = vmatpush1.bf16.msra.mxu0 0
    %4498 = vmatprep.subr.bf16.mxu0 0
    %4499 = vmatpush1.bf16.msra.mxu0 0
    %4500 = vmatprep.subr.bf16.mxu0 0
    %4501 = vmatpush1.bf16.msra.mxu0 0
    %4502 = vmatprep.subr.bf16.mxu0 0
    %4503 = vmatpush1.bf16.msra.mxu0 0
    %4504 = vmatprep.subr.bf16.mxu0 0
    %4505 = vmatpush1.bf16.msra.mxu0 0
    %4506 = vmatprep.subr.bf16.mxu0 0
    %4507 = vmatpush1.bf16.msra.mxu0 0
    %4508 = vmatprep.subr.bf16.mxu0 0
    %4509 = vmatpush1.bf16.msra.mxu0 0
    %4510 = vmatprep.subr.bf16.mxu0 0
    %4511 = vmatpush1.bf16.msra.mxu0 0
    %4512 = vmatprep.mubr.bf16.mxu0 0
    %4513 = vmatmul.mubr.bf16.gmra.mrb[0].mxu0 %v4479
    %v4514 = vpop.f32.mrb[0].mxu0
    %v4515 = vadd.f32 0.0, %v4514
    %v4516 = vpop.f32.mrb[0].mxu0
    %v4517 = vadd.f32 0.0, %v4516
    %v4518 = vpop.f32.mrb[0].mxu0
    %v4519 = vpop.f32.mrb[0].mxu0
    %4520 = vdwg.mxu0
    %4521 = vmatprep.subr.bf16.mxu0 %v2126
    %4522 = vmatpush1.bf16.msra.mxu0 %v2125
    %4523 = vmatprep.subr.bf16.mxu0 %v2130
    %4524 = vmatpush1.bf16.msra.mxu0 %v2129
    %4525 = vmatprep.subr.bf16.mxu0 %v2134
    %4526 = vmatpush1.bf16.msra.mxu0 %v2133
    %4527 = vmatprep.subr.bf16.mxu0 %v2138
    %4528 = vmatpush1.bf16.msra.mxu0 %v2137
    %4529 = vmatprep.subr.bf16.mxu0 %v2142
    %4530 = vmatpush1.bf16.msra.mxu0 %v2141
    %4531 = vmatprep.subr.bf16.mxu0 %v2146
    %4532 = vmatpush1.bf16.msra.mxu0 %v2145
    %4533 = vmatprep.subr.bf16.mxu0 %v2150
    %4534 = vmatpush1.bf16.msra.mxu0 %v2149
    %4535 = vmatprep.subr.bf16.mxu0 %v2154
    %4536 = vmatpush1.bf16.msra.mxu0 %v2153
    %4537 = vmatprep.subr.bf16.mxu0 0
    %4538 = vmatpush1.bf16.msra.mxu0 0
    %4539 = vmatprep.subr.bf16.mxu0 0
    %4540 = vmatpush1.bf16.msra.mxu0 0
    %4541 = vmatprep.subr.bf16.mxu0 0
    %4542 = vmatpush1.bf16.msra.mxu0 0
    %4543 = vmatprep.subr.bf16.mxu0 0
    %4544 = vmatpush1.bf16.msra.mxu0 0
    %4545 = vmatprep.subr.bf16.mxu0 0
    %4546 = vmatpush1.bf16.msra.mxu0 0
    %4547 = vmatprep.subr.bf16.mxu0 0
    %4548 = vmatpush1.bf16.msra.mxu0 0
    %4549 = vmatprep.subr.bf16.mxu0 0
    %4550 = vmatpush1.bf16.msra.mxu0 0
    %4551 = vmatprep.subr.bf16.mxu0 0
    %4552 = vmatpush1.bf16.msra.mxu0 0
    %4553 = vmatprep.mubr.bf16.mxu0 0
    %4554 = vmatmul.mubr.bf16.gmra.mrb[0].mxu0 %v4479
    %v4555 = vpop.f32.mrb[0].mxu0
    %v4556 = vadd.f32 0.0, %v4555
    %v4557 = vpop.f32.mrb[0].mxu0
    %v4558 = vadd.f32 0.0, %v4557
    %v4559 = vpop.f32.mrb[0].mxu0
    %v4560 = vpop.f32.mrb[0].mxu0
    %4561 = vdwg.mxu0
    %v4562 = vadd.f32 %v4475, %v4515
    %v4563 = vadd.f32 %v4476, %v4517
    %v4564 = vadd.f32 %v4477, %v4556
    %v4565 = vadd.f32 %v4478, %v4558
    %v4566 = vmul.f32 %v4562, 0.5
    %v4567 = vtanh.pop %v4566
    %v4568 = vmul.f32 %v4567, 0.5
    %v4569 = vadd.f32 %v4568, 0.5
    %v4570 = vmul.f32 %v4563, 0.5
    %v4571 = vtanh.pop %v4570
    %v4572 = vmul.f32 %v4571, 0.5
    %v4573 = vadd.f32 %v4572, 0.5
    %v4574 = vtanh.pop %v4564
    %v4575 = vmul.f32 %v4565, 0.5
    %v4576 = vtanh.pop %v4575
    %v4577 = vmul.f32 %v4576, 0.5
    %v4578 = vadd.f32 %v4577, 0.5
    %v4579 = vmul.f32 %v4573, %v4259
    %v4580 = vmul.f32 %v4569, %v4574
    %v4581 = vadd.f32 %v4579, %v4580
    %v4582 = vtanh.pop %v4581
    %v4583 = vmul.f32 %v4578, %v4582
    %v4584 = vpack.c.bf16 %v4465, %v4465
    %4585 = vmatprep.subr.bf16.mxu0 %v2506
    %4586 = vmatpush1.bf16.msra.mxu0 %v2505
    %4587 = vmatprep.subr.bf16.mxu0 %v2510
    %4588 = vmatpush1.bf16.msra.mxu0 %v2509
    %4589 = vmatprep.subr.bf16.mxu0 %v2514
    %4590 = vmatpush1.bf16.msra.mxu0 %v2513
    %4591 = vmatprep.subr.bf16.mxu0 %v2518
    %4592 = vmatpush1.bf16.msra.mxu0 %v2517
    %4593 = vmatprep.subr.bf16.mxu0 %v2522
    %4594 = vmatpush1.bf16.msra.mxu0 %v2521
    %4595 = vmatprep.subr.bf16.mxu0 %v2526
    %4596 = vmatpush1.bf16.msra.mxu0 %v2525
    %4597 = vmatprep.subr.bf16.mxu0 %v2530
    %4598 = vmatpush1.bf16.msra.mxu0 %v2529
    %4599 = vmatprep.subr.bf16.mxu0 %v2534
    %4600 = vmatpush1.bf16.msra.mxu0 %v2533
    %4601 = vmatprep.subr.bf16.mxu0 %v2538
    %4602 = vmatpush1.bf16.msra.mxu0 %v2537
    %4603 = vmatprep.subr.bf16.mxu0 %v2542
    %4604 = vmatpush1.bf16.msra.mxu0 %v2541
    %4605 = vmatprep.subr.bf16.mxu0 %v2546
    %4606 = vmatpush1.bf16.msra.mxu0 %v2545
    %4607 = vmatprep.subr.bf16.mxu0 %v2550
    %4608 = vmatpush1.bf16.msra.mxu0 %v2549
    %4609 = vmatprep.subr.bf16.mxu0 %v2554
    %4610 = vmatpush1.bf16.msra.mxu0 %v2553
    %4611 = vmatprep.subr.bf16.mxu0 %v2558
    %4612 = vmatpush1.bf16.msra.mxu0 %v2557
    %4613 = vmatprep.subr.bf16.mxu0 %v2562
    %4614 = vmatpush1.bf16.msra.mxu0 %v2561
    %4615 = vmatprep.subr.bf16.mxu0 %v2566
    %4616 = vmatpush1.bf16.msra.mxu0 %v2565
    %4617 = vmatprep.mubr.bf16.mxu0 %v4584
    %4618 = vmatmul.mubr.bf16.gmra.mrb[0].mxu0 %v4479
    %v4619 = vpop.f32.mrb[0].mxu0
    %v4620 = vadd.f32 %v2296, %v4619
    %v4621 = vpop.f32.mrb[0].mxu0
    %v4622 = vadd.f32 %v2300, %v4621
    %v4623 = vpop.f32.mrb[0].mxu0
    %v4624 = vpop.f32.mrb[0].mxu0
    %4625 = vdwg.mxu0
    %4626 = vmatprep.subr.bf16.mxu0 %v2508
    %4627 = vmatpush1.bf16.msra.mxu0 %v2507
    %4628 = vmatprep.subr.bf16.mxu0 %v2512
    %4629 = vmatpush1.bf16.msra.mxu0 %v2511
    %4630 = vmatprep.subr.bf16.mxu0 %v2516
    %4631 = vmatpush1.bf16.msra.mxu0 %v2515
    %4632 = vmatprep.subr.bf16.mxu0 %v2520
    %4633 = vmatpush1.bf16.msra.mxu0 %v2519
    %4634 = vmatprep.subr.bf16.mxu0 %v2524
    %4635 = vmatpush1.bf16.msra.mxu0 %v2523
    %4636 = vmatprep.subr.bf16.mxu0 %v2528
    %4637 = vmatpush1.bf16.msra.mxu0 %v2527
    %4638 = vmatprep.subr.bf16.mxu0 %v2532
    %4639 = vmatpush1.bf16.msra.mxu0 %v2531
    %4640 = vmatprep.subr.bf16.mxu0 %v2536
    %4641 = vmatpush1.bf16.msra.mxu0 %v2535
    %4642 = vmatprep.subr.bf16.mxu0 %v2540
    %4643 = vmatpush1.bf16.msra.mxu0 %v2539
    %4644 = vmatprep.subr.bf16.mxu0 %v2544
    %4645 = vmatpush1.bf16.msra.mxu0 %v2543
    %4646 = vmatprep.subr.bf16.mxu0 %v2548
    %4647 = vmatpush1.bf16.msra.mxu0 %v2547
    %4648 = vmatprep.subr.bf16.mxu0 %v2552
    %4649 = vmatpush1.bf16.msra.mxu0 %v2551
    %4650 = vmatprep.subr.bf16.mxu0 %v2556
    %4651 = vmatpush1.bf16.msra.mxu0 %v2555
    %4652 = vmatprep.subr.bf16.mxu0 %v2560
    %4653 = vmatpush1.bf16.msra.mxu0 %v2559
    %4654 = vmatprep.subr.bf16.mxu0 %v2564
    %4655 = vmatpush1.bf16.msra.mxu0 %v2563
    %4656 = vmatprep.subr.bf16.mxu0 %v2568
    %4657 = vmatpush1.bf16.msra.mxu0 %v2567
    %4658 = vmatprep.mubr.bf16.mxu0 %v4584
    %4659 = vmatmul.mubr.bf16.gmra.mrb[0].mxu0 %v4479
    %v4660 = vpop.f32.mrb[0].mxu0
    %v4661 = vadd.f32 %v2304, %v4660
    %v4662 = vpop.f32.mrb[0].mxu0
    %v4663 = vadd.f32 %v2308, %v4662
    %v4664 = vpop.f32.mrb[0].mxu0
    %v4665 = vpop.f32.mrb[0].mxu0
    %4666 = vdwg.mxu0
    %v4667 = vmul.f32 %v4620, 0.5
    %v4668 = vtanh.pop %v4667
    %v4669 = vmul.f32 %v4668, 0.5
    %v4670 = vadd.f32 %v4669, 0.5
    %v4671 = vmul.f32 %v4622, 0.5
    %v4672 = vtanh.pop %v4671
    %v4673 = vmul.f32 %v4672, 0.5
    %v4674 = vadd.f32 %v4673, 0.5
    %v4675 = vtanh.pop %v4661
    %v4676 = vmul.f32 %v4663, 0.5
    %v4677 = vtanh.pop %v4676
    %v4678 = vmul.f32 %v4677, 0.5
    %v4679 = vadd.f32 %v4678, 0.5
    %v4680 = vmul.f32 %v4674, %v4467
    %v4681 = vmul.f32 %v4670, %v4675
    %v4682 = vadd.f32 %v4680, %v4681
    %v4683 = vtanh.pop %v4682
    %v4684 = vmul.f32 %v4679, %v4683
    %v4685 = vpack.c.bf16 %v4469, %v4469
    %4686 = vmatprep.subr.bf16.mxu0 %v2947
    %4687 = vmatpush1.bf16.msra.mxu0 %v2946
    %4688 = vmatprep.subr.bf16.mxu0 %v2951
    %4689 = vmatpush1.bf16.msra.mxu0 %v2950
    %4690 = vmatprep.subr.bf16.mxu0 %v2955
    %4691 = vmatpush1.bf16.msra.mxu0 %v2954
    %4692 = vmatprep.subr.bf16.mxu0 %v2959
    %4693 = vmatpush1.bf16.msra.mxu0 %v2958
    %4694 = vmatprep.subr.bf16.mxu0 %v2963
    %4695 = vmatpush1.bf16.msra.mxu0 %v2962
    %4696 = vmatprep.subr.bf16.mxu0 %v2967
    %4697 = vmatpush1.bf16.msra.mxu0 %v2966
    %4698 = vmatprep.subr.bf16.mxu0 %v2971
    %4699 = vmatpush1.bf16.msra.mxu0 %v2970
    %4700 = vmatprep.subr.bf16.mxu0 %v2975
    %4701 = vmatpush1.bf16.msra.mxu0 %v2974
    %4702 = vmatprep.subr.bf16.mxu0 %v2979
    %4703 = vmatpush1.bf16.msra.mxu0 %v2978
    %4704 = vmatprep.subr.bf16.mxu0 %v2983
    %4705 = vmatpush1.bf16.msra.mxu0 %v2982
    %4706 = vmatprep.subr.bf16.mxu0 %v2987
    %4707 = vmatpush1.bf16.msra.mxu0 %v2986
    %4708 = vmatprep.subr.bf16.mxu0 %v2991
    %4709 = vmatpush1.bf16.msra.mxu0 %v2990
    %4710 = vmatprep.subr.bf16.mxu0 %v2995
    %4711 = vmatpush1.bf16.msra.mxu0 %v2994
    %4712 = vmatprep.subr.bf16.mxu0 %v2999
    %4713 = vmatpush1.bf16.msra.mxu0 %v2998
    %4714 = vmatprep.subr.bf16.mxu0 %v3003
    %4715 = vmatpush1.bf16.msra.mxu0 %v3002
    %4716 = vmatprep.subr.bf16.mxu0 %v3007
    %4717 = vmatpush1.bf16.msra.mxu0 %v3006
    %4718 = vmatprep.mubr.bf16.mxu0 %v4685
    %4719 = vmatmul.mubr.bf16.gmra.mrb[0].mxu0 %v4584
    %v4720 = vpop.f32.mrb[0].mxu0
    %v4721 = vadd.f32 %v2737, %v4720
    %v4722 = vpop.f32.mrb[0].mxu0
    %v4723 = vadd.f32 %v2741, %v4722
    %v4724 = vpop.f32.mrb[0].mxu0
    %v4725 = vpop.f32.mrb[0].mxu0
    %4726 = vdwg.mxu0
    %4727 = vmatprep.subr.bf16.mxu0 %v2949
    %4728 = vmatpush1.bf16.msra.mxu0 %v2948
    %4729 = vmatprep.subr.bf16.mxu0 %v2953
    %4730 = vmatpush1.bf16.msra.mxu0 %v2952
    %4731 = vmatprep.subr.bf16.mxu0 %v2957
    %4732 = vmatpush1.bf16.msra.mxu0 %v2956
    %4733 = vmatprep.subr.bf16.mxu0 %v2961
    %4734 = vmatpush1.bf16.msra.mxu0 %v2960
    %4735 = vmatprep.subr.bf16.mxu0 %v2965
    %4736 = vmatpush1.bf16.msra.mxu0 %v2964
    %4737 = vmatprep.subr.bf16.mxu0 %v2969
    %4738 = vmatpush1.bf16.msra.mxu0 %v2968
    %4739 = vmatprep.subr.bf16.mxu0 %v2973
    %4740 = vmatpush1.bf16.msra.mxu0 %v2972
    %4741 = vmatprep.subr.bf16.mxu0 %v2977
    %4742 = vmatpush1.bf16.msra.mxu0 %v2976
    %4743 = vmatprep.subr.bf16.mxu0 %v2981
    %4744 = vmatpush1.bf16.msra.mxu0 %v2980
    %4745 = vmatprep.subr.bf16.mxu0 %v2985
    %4746 = vmatpush1.bf16.msra.mxu0 %v2984
    %4747 = vmatprep.subr.bf16.mxu0 %v2989
    %4748 = vmatpush1.bf16.msra.mxu0 %v2988
    %4749 = vmatprep.subr.bf16.mxu0 %v2993
    %4750 = vmatpush1.bf16.msra.mxu0 %v2992
    %4751 = vmatprep.subr.bf16.mxu0 %v2997
    %4752 = vmatpush1.bf16.msra.mxu0 %v2996
    %4753 = vmatprep.subr.bf16.mxu0 %v3001
    %4754 = vmatpush1.bf16.msra.mxu0 %v3000
    %4755 = vmatprep.subr.bf16.mxu0 %v3005
    %4756 = vmatpush1.bf16.msra.mxu0 %v3004
    %4757 = vmatprep.subr.bf16.mxu0 %v3009
    %4758 = vmatpush1.bf16.msra.mxu0 %v3008
    %4759 = vmatprep.mubr.bf16.mxu0 %v4685
    %4760 = vmatmul.mubr.bf16.gmra.mrb[0].mxu0 %v4584
    %v4761 = vpop.f32.mrb[0].mxu0
    %v4762 = vadd.f32 %v2745, %v4761
    %v4763 = vpop.f32.mrb[0].mxu0
    %v4764 = vadd.f32 %v2749, %v4763
    %v4765 = vpop.f32.mrb[0].mxu0
    %v4766 = vpop.f32.mrb[0].mxu0
    %4767 = vdwg.mxu0
    %v4768 = vmul.f32 %v4721, 0.5
    %v4769 = vtanh.pop %v4768
    %v4770 = vmul.f32 %v4769, 0.5
    %v4771 = vadd.f32 %v4770, 0.5
    %v4772 = vmul.f32 %v4723, 0.5
    %v4773 = vtanh.pop %v4772
    %v4774 = vmul.f32 %v4773, 0.5
    %v4775 = vadd.f32 %v4774, 0.5
    %v4776 = vtanh.pop %v4762
    %v4777 = vmul.f32 %v4764, 0.5
    %v4778 = vtanh.pop %v4777
    %v4779 = vmul.f32 %v4778, 0.5
    %v4780 = vadd.f32 %v4779, 0.5
    %v4781 = vmul.f32 %v4775, %v4471
    %v4782 = vmul.f32 %v4771, %v4776
    %v4783 = vadd.f32 %v4781, %v4782
    %v4784 = vtanh.pop %v4783
    %v4785 = vmul.f32 %v4780, %v4784
    %v4786 = vsub.f32 %v4684, %v4465
    %v4787 = vadd.f32 %v4465, %v4786
    %v4788 = vsub.f32 %v4682, %v4467
    %v4789 = vadd.f32 %v4467, %v4788
    %v4790 = vsub.f32 %v4785, %v4469
    %v4791 = vadd.f32 %v4469, %v4790
    %v4792 = vsub.f32 %v4783, %v4471
    %v4793 = vadd.f32 %v4471, %v4792
    %s4794 = smul.u32 6, 4
    %s4795 = smul.addr %s4794, 8
    %s4796 = scalar_lea.vmem [#allocation2], %s4795
    %v4797 = vld [vmem:[%s4796] sm:$0xff]
    %v4798 = vld [vmem:[%s4796 + $0x8] sm:$0xff]
    %v4799 = vld [vmem:[%s4796 + $0x10] sm:$0xff]
    %v4800 = vld [vmem:[%s4796 + $0x18] sm:$0xff]
    %v4801 = vpack.c.bf16 %v4583, %v4583
    %4802 = vmatprep.subr.bf16.mxu0 %v2124
    %4803 = vmatpush1.bf16.msra.mxu0 %v2123
    %4804 = vmatprep.subr.bf16.mxu0 %v2128
    %4805 = vmatpush1.bf16.msra.mxu0 %v2127
    %4806 = vmatprep.subr.bf16.mxu0 %v2132
    %4807 = vmatpush1.bf16.msra.mxu0 %v2131
    %4808 = vmatprep.subr.bf16.mxu0 %v2136
    %4809 = vmatpush1.bf16.msra.mxu0 %v2135
    %4810 = vmatprep.subr.bf16.mxu0 %v2140
    %4811 = vmatpush1.bf16.msra.mxu0 %v2139
    %4812 = vmatprep.subr.bf16.mxu0 %v2144
    %4813 = vmatpush1.bf16.msra.mxu0 %v2143
    %4814 = vmatprep.subr.bf16.mxu0 %v2148
    %4815 = vmatpush1.bf16.msra.mxu0 %v2147
    %4816 = vmatprep.subr.bf16.mxu0 %v2152
    %4817 = vmatpush1.bf16.msra.mxu0 %v2151
    %4818 = vmatprep.subr.bf16.mxu0 0
    %4819 = vmatpush1.bf16.msra.mxu0 0
    %4820 = vmatprep.subr.bf16.mxu0 0
    %4821 = vmatpush1.bf16.msra.mxu0 0
    %4822 = vmatprep.subr.bf16.mxu0 0
    %4823 = vmatpush1.bf16.msra.mxu0 0
    %4824 = vmatprep.subr.bf16.mxu0 0
    %4825 = vmatpush1.bf16.msra.mxu0 0
    %4826 = vmatprep.subr.bf16.mxu0 0
    %4827 = vmatpush1.bf16.msra.mxu0 0
    %4828 = vmatprep.subr.bf16.mxu0 0
    %4829 = vmatpush1.bf16.msra.mxu0 0
    %4830 = vmatprep.subr.bf16.mxu0 0
    %4831 = vmatpush1.bf16.msra.mxu0 0
    %4832 = vmatprep.subr.bf16.mxu0 0
    %4833 = vmatpush1.bf16.msra.mxu0 0
    %4834 = vmatprep.mubr.bf16.mxu0 0
    %4835 = vmatmul.mubr.bf16.gmra.mrb[0].mxu0 %v4801
    %v4836 = vpop.f32.mrb[0].mxu0
    %v4837 = vadd.f32 0.0, %v4836
    %v4838 = vpop.f32.mrb[0].mxu0
    %v4839 = vadd.f32 0.0, %v4838
    %v4840 = vpop.f32.mrb[0].mxu0
    %v4841 = vpop.f32.mrb[0].mxu0
    %4842 = vdwg.mxu0
    %4843 = vmatprep.subr.bf16.mxu0 %v2126
    %4844 = vmatpush1.bf16.msra.mxu0 %v2125
    %4845 = vmatprep.subr.bf16.mxu0 %v2130
    %4846 = vmatpush1.bf16.msra.mxu0 %v2129
    %4847 = vmatprep.subr.bf16.mxu0 %v2134
    %4848 = vmatpush1.bf16.msra.mxu0 %v2133
    %4849 = vmatprep.subr.bf16.mxu0 %v2138
    %4850 = vmatpush1.bf16.msra.mxu0 %v2137
    %4851 = vmatprep.subr.bf16.mxu0 %v2142
    %4852 = vmatpush1.bf16.msra.mxu0 %v2141
    %4853 = vmatprep.subr.bf16.mxu0 %v2146
    %4854 = vmatpush1.bf16.msra.mxu0 %v2145
    %4855 = vmatprep.subr.bf16.mxu0 %v2150
    %4856 = vmatpush1.bf16.msra.mxu0 %v2149
    %4857 = vmatprep.subr.bf16.mxu0 %v2154
    %4858 = vmatpush1.bf16.msra.mxu0 %v2153
    %4859 = vmatprep.subr.bf16.mxu0 0
    %4860 = vmatpush1.bf16.msra.mxu0 0
    %4861 = vmatprep.subr.bf16.mxu0 0
    %4862 = vmatpush1.bf16.msra.mxu0 0
    %4863 = vmatprep.subr.bf16.mxu0 0
    %4864 = vmatpush1.bf16.msra.mxu0 0
    %4865 = vmatprep.subr.bf16.mxu0 0
    %4866 = vmatpush1.bf16.msra.mxu0 0
    %4867 = vmatprep.subr.bf16.mxu0 0
    %4868 = vmatpush1.bf16.msra.mxu0 0
    %4869 = vmatprep.subr.bf16.mxu0 0
    %4870 = vmatpush1.bf16.msra.mxu0 0
    %4871 = vmatprep.subr.bf16.mxu0 0
    %4872 = vmatpush1.bf16.msra.mxu0 0
    %4873 = vmatprep.subr.bf16.mxu0 0
    %4874 = vmatpush1.bf16.msra.mxu0 0
    %4875 = vmatprep.mubr.bf16.mxu0 0
    %4876 = vmatmul.mubr.bf16.gmra.mrb[0].mxu0 %v4801
    %v4877 = vpop.f32.mrb[0].mxu0
    %v4878 = vadd.f32 0.0, %v4877
    %v4879 = vpop.f32.mrb[0].mxu0
    %v4880 = vadd.f32 0.0, %v4879
    %v4881 = vpop.f32.mrb[0].mxu0
    %v4882 = vpop.f32.mrb[0].mxu0
    %4883 = vdwg.mxu0
    %v4884 = vadd.f32 %v4797, %v4837
    %v4885 = vadd.f32 %v4798, %v4839
    %v4886 = vadd.f32 %v4799, %v4878
    %v4887 = vadd.f32 %v4800, %v4880
    %v4888 = vmul.f32 %v4884, 0.5
    %v4889 = vtanh.pop %v4888
    %v4890 = vmul.f32 %v4889, 0.5
    %v4891 = vadd.f32 %v4890, 0.5
    %v4892 = vmul.f32 %v4885, 0.5
    %v4893 = vtanh.pop %v4892
    %v4894 = vmul.f32 %v4893, 0.5
    %v4895 = vadd.f32 %v4894, 0.5
    %v4896 = vtanh.pop %v4886
    %v4897 = vmul.f32 %v4887, 0.5
    %v4898 = vtanh.pop %v4897
    %v4899 = vmul.f32 %v4898, 0.5
    %v4900 = vadd.f32 %v4899, 0.5
    %v4901 = vmul.f32 %v4895, %v4581
    %v4902 = vmul.f32 %v4891, %v4896
    %v4903 = vadd.f32 %v4901, %v4902
    %v4904 = vtanh.pop %v4903
    %v4905 = vmul.f32 %v4900, %v4904
    %v4906 = vpack.c.bf16 %v4787, %v4787
    %4907 = vmatprep.subr.bf16.mxu0 %v2506
    %4908 = vmatpush1.bf16.msra.mxu0 %v2505
    %4909 = vmatprep.subr.bf16.mxu0 %v2510
    %4910 = vmatpush1.bf16.msra.mxu0 %v2509
    %4911 = vmatprep.subr.bf16.mxu0 %v2514
    %4912 = vmatpush1.bf16.msra.mxu0 %v2513
    %4913 = vmatprep.subr.bf16.mxu0 %v2518
    %4914 = vmatpush1.bf16.msra.mxu0 %v2517
    %4915 = vmatprep.subr.bf16.mxu0 %v2522
    %4916 = vmatpush1.bf16.msra.mxu0 %v2521
    %4917 = vmatprep.subr.bf16.mxu0 %v2526
    %4918 = vmatpush1.bf16.msra.mxu0 %v2525
    %4919 = vmatprep.subr.bf16.mxu0 %v2530
    %4920 = vmatpush1.bf16.msra.mxu0 %v2529
    %4921 = vmatprep.subr.bf16.mxu0 %v2534
    %4922 = vmatpush1.bf16.msra.mxu0 %v2533
    %4923 = vmatprep.subr.bf16.mxu0 %v2538
    %4924 = vmatpush1.bf16.msra.mxu0 %v2537
    %4925 = vmatprep.subr.bf16.mxu0 %v2542
    %4926 = vmatpush1.bf16.msra.mxu0 %v2541
    %4927 = vmatprep.subr.bf16.mxu0 %v2546
    %4928 = vmatpush1.bf16.msra.mxu0 %v2545
    %4929 = vmatprep.subr.bf16.mxu0 %v2550
    %4930 = vmatpush1.bf16.msra.mxu0 %v2549
    %4931 = vmatprep.subr.bf16.mxu0 %v2554
    %4932 = vmatpush1.bf16.msra.mxu0 %v2553
    %4933 = vmatprep.subr.bf16.mxu0 %v2558
    %4934 = vmatpush1.bf16.msra.mxu0 %v2557
    %4935 = vmatprep.subr.bf16.mxu0 %v2562
    %4936 = vmatpush1.bf16.msra.mxu0 %v2561
    %4937 = vmatprep.subr.bf16.mxu0 %v2566
    %4938 = vmatpush1.bf16.msra.mxu0 %v2565
    %4939 = vmatprep.mubr.bf16.mxu0 %v4906
    %4940 = vmatmul.mubr.bf16.gmra.mrb[0].mxu0 %v4801
    %v4941 = vpop.f32.mrb[0].mxu0
    %v4942 = vadd.f32 %v2296, %v4941
    %v4943 = vpop.f32.mrb[0].mxu0
    %v4944 = vadd.f32 %v2300, %v4943
    %v4945 = vpop.f32.mrb[0].mxu0
    %v4946 = vpop.f32.mrb[0].mxu0
    %4947 = vdwg.mxu0
    %4948 = vmatprep.subr.bf16.mxu0 %v2508
    %4949 = vmatpush1.bf16.msra.mxu0 %v2507
    %4950 = vmatprep.subr.bf16.mxu0 %v2512
    %4951 = vmatpush1.bf16.msra.mxu0 %v2511
    %4952 = vmatprep.subr.bf16.mxu0 %v2516
    %4953 = vmatpush1.bf16.msra.mxu0 %v2515
    %4954 = vmatprep.subr.bf16.mxu0 %v2520
    %4955 = vmatpush1.bf16.msra.mxu0 %v2519
    %4956 = vmatprep.subr.bf16.mxu0 %v2524
    %4957 = vmatpush1.bf16.msra.mxu0 %v2523
    %4958 = vmatprep.subr.bf16.mxu0 %v2528
    %4959 = vmatpush1.bf16.msra.mxu0 %v2527
    %4960 = vmatprep.subr.bf16.mxu0 %v2532
    %4961 = vmatpush1.bf16.msra.mxu0 %v2531
    %4962 = vmatprep.subr.bf16.mxu0 %v2536
    %4963 = vmatpush1.bf16.msra.mxu0 %v2535
    %4964 = vmatprep.subr.bf16.mxu0 %v2540
    %4965 = vmatpush1.bf16.msra.mxu0 %v2539
    %4966 = vmatprep.subr.bf16.mxu0 %v2544
    %4967 = vmatpush1.bf16.msra.mxu0 %v2543
    %4968 = vmatprep.subr.bf16.mxu0 %v2548
    %4969 = vmatpush1.bf16.msra.mxu0 %v2547
    %4970 = vmatprep.subr.bf16.mxu0 %v2552
    %4971 = vmatpush1.bf16.msra.mxu0 %v2551
    %4972 = vmatprep.subr.bf16.mxu0 %v2556
    %4973 = vmatpush1.bf16.msra.mxu0 %v2555
    %4974 = vmatprep.subr.bf16.mxu0 %v2560
    %4975 = vmatpush1.bf16.msra.mxu0 %v2559
    %4976 = vmatprep.subr.bf16.mxu0 %v2564
    %4977 = vmatpush1.bf16.msra.mxu0 %v2563
    %4978 = vmatprep.subr.bf16.mxu0 %v2568
    %4979 = vmatpush1.bf16.msra.mxu0 %v2567
    %4980 = vmatprep.mubr.bf16.mxu0 %v4906
    %4981 = vmatmul.mubr.bf16.gmra.mrb[0].mxu0 %v4801
    %v4982 = vpop.f32.mrb[0].mxu0
    %v4983 = vadd.f32 %v2304, %v4982
    %v4984 = vpop.f32.mrb[0].mxu0
    %v4985 = vadd.f32 %v2308, %v4984
    %v4986 = vpop.f32.mrb[0].mxu0
    %v4987 = vpop.f32.mrb[0].mxu0
    %4988 = vdwg.mxu0
    %v4989 = vmul.f32 %v4942, 0.5
    %v4990 = vtanh.pop %v4989
    %v4991 = vmul.f32 %v4990, 0.5
    %v4992 = vadd.f32 %v4991, 0.5
    %v4993 = vmul.f32 %v4944, 0.5
    %v4994 = vtanh.pop %v4993
    %v4995 = vmul.f32 %v4994, 0.5
    %v4996 = vadd.f32 %v4995, 0.5
    %v4997 = vtanh.pop %v4983
    %v4998 = vmul.f32 %v4985, 0.5
    %v4999 = vtanh.pop %v4998
    %v5000 = vmul.f32 %v4999, 0.5
    %v5001 = vadd.f32 %v5000, 0.5
    %v5002 = vmul.f32 %v4996, %v4789
    %v5003 = vmul.f32 %v4992, %v4997
    %v5004 = vadd.f32 %v5002, %v5003
    %v5005 = vtanh.pop %v5004
    %v5006 = vmul.f32 %v5001, %v5005
    %v5007 = vpack.c.bf16 %v4791, %v4791
    %5008 = vmatprep.subr.bf16.mxu0 %v2947
    %5009 = vmatpush1.bf16.msra.mxu0 %v2946
    %5010 = vmatprep.subr.bf16.mxu0 %v2951
    %5011 = vmatpush1.bf16.msra.mxu0 %v2950
    %5012 = vmatprep.subr.bf16.mxu0 %v2955
    %5013 = vmatpush1.bf16.msra.mxu0 %v2954
    %5014 = vmatprep.subr.bf16.mxu0 %v2959
    %5015 = vmatpush1.bf16.msra.mxu0 %v2958
    %5016 = vmatprep.subr.bf16.mxu0 %v2963
    %5017 = vmatpush1.bf16.msra.mxu0 %v2962
    %5018 = vmatprep.subr.bf16.mxu0 %v2967
    %5019 = vmatpush1.bf16.msra.mxu0 %v2966
    %5020 = vmatprep.subr.bf16.mxu0 %v2971
    %5021 = vmatpush1.bf16.msra.mxu0 %v2970
    %5022 = vmatprep.subr.bf16.mxu0 %v2975
    %5023 = vmatpush1.bf16.msra.mxu0 %v2974
    %5024 = vmatprep.subr.bf16.mxu0 %v2979
    %5025 = vmatpush1.bf16.msra.mxu0 %v2978
    %5026 = vmatprep.subr.bf16.mxu0 %v2983
    %5027 = vmatpush1.bf16.msra.mxu0 %v2982
    %5028 = vmatprep.subr.bf16.mxu0 %v2987
    %5029 = vmatpush1.bf16.msra.mxu0 %v2986
    %5030 = vmatprep.subr.bf16.mxu0 %v2991
    %5031 = vmatpush1.bf16.msra.mxu0 %v2990
    %5032 = vmatprep.subr.bf16.mxu0 %v2995
    %5033 = vmatpush1.bf16.msra.mxu0 %v2994
    %5034 = vmatprep.subr.bf16.mxu0 %v2999
    %5035 = vmatpush1.bf16.msra.mxu0 %v2998
    %5036 = vmatprep.subr.bf16.mxu0 %v3003
    %5037 = vmatpush1.bf16.msra.mxu0 %v3002
    %5038 = vmatprep.subr.bf16.mxu0 %v3007
    %5039 = vmatpush1.bf16.msra.mxu0 %v3006
    %5040 = vmatprep.mubr.bf16.mxu0 %v5007
    %5041 = vmatmul.mubr.bf16.gmra.mrb[0].mxu0 %v4906
    %v5042 = vpop.f32.mrb[0].mxu0
    %v5043 = vadd.f32 %v2737, %v5042
    %v5044 = vpop.f32.mrb[0].mxu0
    %v5045 = vadd.f32 %v2741, %v5044
    %v5046 = vpop.f32.mrb[0].mxu0
    %v5047 = vpop.f32.mrb[0].mxu0
    %5048 = vdwg.mxu0
    %5049 = vmatprep.subr.bf16.mxu0 %v2949
    %5050 = vmatpush1.bf16.msra.mxu0 %v2948
    %5051 = vmatprep.subr.bf16.mxu0 %v2953
    %5052 = vmatpush1.bf16.msra.mxu0 %v2952
    %5053 = vmatprep.subr.bf16.mxu0 %v2957
    %5054 = vmatpush1.bf16.msra.mxu0 %v2956
    %5055 = vmatprep.subr.bf16.mxu0 %v2961
    %5056 = vmatpush1.bf16.msra.mxu0 %v2960
    %5057 = vmatprep.subr.bf16.mxu0 %v2965
    %5058 = vmatpush1.bf16.msra.mxu0 %v2964
    %5059 = vmatprep.subr.bf16.mxu0 %v2969
    %5060 = vmatpush1.bf16.msra.mxu0 %v2968
    %5061 = vmatprep.subr.bf16.mxu0 %v2973
    %5062 = vmatpush1.bf16.msra.mxu0 %v2972
    %5063 = vmatprep.subr.bf16.mxu0 %v2977
    %5064 = vmatpush1.bf16.msra.mxu0 %v2976
    %5065 = vmatprep.subr.bf16.mxu0 %v2981
    %5066 = vmatpush1.bf16.msra.mxu0 %v2980
    %5067 = vmatprep.subr.bf16.mxu0 %v2985
    %5068 = vmatpush1.bf16.msra.mxu0 %v2984
    %5069 = vmatprep.subr.bf16.mxu0 %v2989
    %5070 = vmatpush1.bf16.msra.mxu0 %v2988
    %5071 = vmatprep.subr.bf16.mxu0 %v2993
    %5072 = vmatpush1.bf16.msra.mxu0 %v2992
    %5073 = vmatprep.subr.bf16.mxu0 %v2997
    %5074 = vmatpush1.bf16.msra.mxu0 %v2996
    %5075 = vmatprep.subr.bf16.mxu0 %v3001
    %5076 = vmatpush1.bf16.msra.mxu0 %v3000
    %5077 = vmatprep.subr.bf16.mxu0 %v3005
    %5078 = vmatpush1.bf16.msra.mxu0 %v3004
    %5079 = vmatprep.subr.bf16.mxu0 %v3009
    %5080 = vmatpush1.bf16.msra.mxu0 %v3008
    %5081 = vmatprep.mubr.bf16.mxu0 %v5007
    %5082 = vmatmul.mubr.bf16.gmra.mrb[0].mxu0 %v4906
    %v5083 = vpop.f32.mrb[0].mxu0
    %v5084 = vadd.f32 %v2745, %v5083
    %v5085 = vpop.f32.mrb[0].mxu0
    %v5086 = vadd.f32 %v2749, %v5085
    %v5087 = vpop.f32.mrb[0].mxu0
    %v5088 = vpop.f32.mrb[0].mxu0
    %5089 = vdwg.mxu0
    %v5090 = vmul.f32 %v5043, 0.5
    %v5091 = vtanh.pop %v5090
    %v5092 = vmul.f32 %v5091, 0.5
    %v5093 = vadd.f32 %v5092, 0.5
    %v5094 = vmul.f32 %v5045, 0.5
    %v5095 = vtanh.pop %v5094
    %v5096 = vmul.f32 %v5095, 0.5
    %v5097 = vadd.f32 %v5096, 0.5
    %v5098 = vtanh.pop %v5084
    %v5099 = vmul.f32 %v5086, 0.5
    %v5100 = vtanh.pop %v5099
    %v5101 = vmul.f32 %v5100, 0.5
    %v5102 = vadd.f32 %v5101, 0.5
    %v5103 = vmul.f32 %v5097, %v4793
    %v5104 = vmul.f32 %v5093, %v5098
    %v5105 = vadd.f32 %v5103, %v5104
    %v5106 = vtanh.pop %v5105
    %v5107 = vmul.f32 %v5102, %v5106
    %v5108 = vsub.f32 %v5006, %v4787
    %v5109 = vadd.f32 %v4787, %v5108
    %v5110 = vsub.f32 %v5004, %v4789
    %v5111 = vadd.f32 %v4789, %v5110
    %v5112 = vsub.f32 %v5107, %v4791
    %v5113 = vadd.f32 %v4791, %v5112
    %v5114 = vsub.f32 %v5105, %v4793
    %v5115 = vadd.f32 %v4793, %v5114
    %s5116 = smul.u32 7, 4
    %s5117 = smul.addr %s5116, 8
    %s5118 = scalar_lea.vmem [#allocation2], %s5117
    %v5119 = vld [vmem:[%s5118] sm:$0xff]
    %v5120 = vld [vmem:[%s5118 + $0x8] sm:$0xff]
    %v5121 = vld [vmem:[%s5118 + $0x10] sm:$0xff]
    %v5122 = vld [vmem:[%s5118 + $0x18] sm:$0xff]
    %v5123 = vpack.c.bf16 %v4905, %v4905
    %5124 = vmatprep.subr.bf16.mxu0 %v2124
    %5125 = vmatpush1.bf16.msra.mxu0 %v2123
    %5126 = vmatprep.subr.bf16.mxu0 %v2128
    %5127 = vmatpush1.bf16.msra.mxu0 %v2127
    %5128 = vmatprep.subr.bf16.mxu0 %v2132
    %5129 = vmatpush1.bf16.msra.mxu0 %v2131
    %5130 = vmatprep.subr.bf16.mxu0 %v2136
    %5131 = vmatpush1.bf16.msra.mxu0 %v2135
    %5132 = vmatprep.subr.bf16.mxu0 %v2140
    %5133 = vmatpush1.bf16.msra.mxu0 %v2139
    %5134 = vmatprep.subr.bf16.mxu0 %v2144
    %5135 = vmatpush1.bf16.msra.mxu0 %v2143
    %5136 = vmatprep.subr.bf16.mxu0 %v2148
    %5137 = vmatpush1.bf16.msra.mxu0 %v2147
    %5138 = vmatprep.subr.bf16.mxu0 %v2152
    %5139 = vmatpush1.bf16.msra.mxu0 %v2151
    %5140 = vmatprep.subr.bf16.mxu0 0
    %5141 = vmatpush1.bf16.msra.mxu0 0
    %5142 = vmatprep.subr.bf16.mxu0 0
    %5143 = vmatpush1.bf16.msra.mxu0 0
    %5144 = vmatprep.subr.bf16.mxu0 0
    %5145 = vmatpush1.bf16.msra.mxu0 0
    %5146 = vmatprep.subr.bf16.mxu0 0
    %5147 = vmatpush1.bf16.msra.mxu0 0
    %5148 = vmatprep.subr.bf16.mxu0 0
    %5149 = vmatpush1.bf16.msra.mxu0 0
    %5150 = vmatprep.subr.bf16.mxu0 0
    %5151 = vmatpush1.bf16.msra.mxu0 0
    %5152 = vmatprep.subr.bf16.mxu0 0
    %5153 = vmatpush1.bf16.msra.mxu0 0
    %5154 = vmatprep.subr.bf16.mxu0 0
    %5155 = vmatpush1.bf16.msra.mxu0 0
    %5156 = vmatprep.mubr.bf16.mxu0 0
    %5157 = vmatmul.mubr.bf16.gmra.mrb[0].mxu0 %v5123
    %v5158 = vpop.f32.mrb[0].mxu0
    %v5159 = vadd.f32 0.0, %v5158
    %v5160 = vpop.f32.mrb[0].mxu0
    %v5161 = vadd.f32 0.0, %v5160
    %v5162 = vpop.f32.mrb[0].mxu0
    %v5163 = vpop.f32.mrb[0].mxu0
    %5164 = vdwg.mxu0
    %5165 = vmatprep.subr.bf16.mxu0 %v2126
    %5166 = vmatpush1.bf16.msra.mxu0 %v2125
    %5167 = vmatprep.subr.bf16.mxu0 %v2130
    %5168 = vmatpush1.bf16.msra.mxu0 %v2129
    %5169 = vmatprep.subr.bf16.mxu0 %v2134
    %5170 = vmatpush1.bf16.msra.mxu0 %v2133
    %5171 = vmatprep.subr.bf16.mxu0 %v2138
    %5172 = vmatpush1.bf16.msra.mxu0 %v2137
    %5173 = vmatprep.subr.bf16.mxu0 %v2142
    %5174 = vmatpush1.bf16.msra.mxu0 %v2141
    %5175 = vmatprep.subr.bf16.mxu0 %v2146
    %5176 = vmatpush1.bf16.msra.mxu0 %v2145
    %5177 = vmatprep.subr.bf16.mxu0 %v2150
    %5178 = vmatpush1.bf16.msra.mxu0 %v2149
    %5179 = vmatprep.subr.bf16.mxu0 %v2154
    %5180 = vmatpush1.bf16.msra.mxu0 %v2153
    %5181 = vmatprep.subr.bf16.mxu0 0
    %5182 = vmatpush1.bf16.msra.mxu0 0
    %5183 = vmatprep.subr.bf16.mxu0 0
    %5184 = vmatpush1.bf16.msra.mxu0 0
    %5185 = vmatprep.subr.bf16.mxu0 0
    %5186 = vmatpush1.bf16.msra.mxu0 0
    %5187 = vmatprep.subr.bf16.mxu0 0
    %5188 = vmatpush1.bf16.msra.mxu0 0
    %5189 = vmatprep.subr.bf16.mxu0 0
    %5190 = vmatpush1.bf16.msra.mxu0 0
    %5191 = vmatprep.subr.bf16.mxu0 0
    %5192 = vmatpush1.bf16.msra.mxu0 0
    %5193 = vmatprep.subr.bf16.mxu0 0
    %5194 = vmatpush1.bf16.msra.mxu0 0
    %5195 = vmatprep.subr.bf16.mxu0 0
    %5196 = vmatpush1.bf16.msra.mxu0 0
    %5197 = vmatprep.mubr.bf16.mxu0 0
    %5198 = vmatmul.mubr.bf16.gmra.mrb[0].mxu0 %v5123
    %v5199 = vpop.f32.mrb[0].mxu0
    %v5200 = vadd.f32 0.0, %v5199
    %v5201 = vpop.f32.mrb[0].mxu0
    %v5202 = vadd.f32 0.0, %v5201
    %v5203 = vpop.f32.mrb[0].mxu0
    %v5204 = vpop.f32.mrb[0].mxu0
    %5205 = vdwg.mxu0
    %v5206 = vadd.f32 %v5119, %v5159
    %v5207 = vadd.f32 %v5120, %v5161
    %v5208 = vadd.f32 %v5121, %v5200
    %v5209 = vadd.f32 %v5122, %v5202
    %v5210 = vmul.f32 %v5206, 0.5
    %v5211 = vtanh.pop %v5210
    %v5212 = vmul.f32 %v5211, 0.5
    %v5213 = vadd.f32 %v5212, 0.5
    %v5214 = vmul.f32 %v5207, 0.5
    %v5215 = vtanh.pop %v5214
    %v5216 = vmul.f32 %v5215, 0.5
    %v5217 = vadd.f32 %v5216, 0.5
    %v5218 = vtanh.pop %v5208
    %v5219 = vmul.f32 %v5209, 0.5
    %v5220 = vtanh.pop %v5219
    %v5221 = vmul.f32 %v5220, 0.5
    %v5222 = vadd.f32 %v5221, 0.5
    %v5223 = vmul.f32 %v5217, %v4903
    %v5224 = vmul.f32 %v5213, %v5218
    %v5225 = vadd.f32 %v5223, %v5224
    %v5226 = vtanh.pop %v5225
    %v5227 = vmul.f32 %v5222, %v5226
    %v5228 = vpack.c.bf16 %v5109, %v5109
    %5229 = vmatprep.subr.bf16.mxu0 %v2506
    %5230 = vmatpush1.bf16.msra.mxu0 %v2505
    %5231 = vmatprep.subr.bf16.mxu0 %v2510
    %5232 = vmatpush1.bf16.msra.mxu0 %v2509
    %5233 = vmatprep.subr.bf16.mxu0 %v2514
    %5234 = vmatpush1.bf16.msra.mxu0 %v2513
    %5235 = vmatprep.subr.bf16.mxu0 %v2518
    %5236 = vmatpush1.bf16.msra.mxu0 %v2517
    %5237 = vmatprep.subr.bf16.mxu0 %v2522
    %5238 = vmatpush1.bf16.msra.mxu0 %v2521
    %5239 = vmatprep.subr.bf16.mxu0 %v2526
    %5240 = vmatpush1.bf16.msra.mxu0 %v2525
    %5241 = vmatprep.subr.bf16.mxu0 %v2530
    %5242 = vmatpush1.bf16.msra.mxu0 %v2529
    %5243 = vmatprep.subr.bf16.mxu0 %v2534
    %5244 = vmatpush1.bf16.msra.mxu0 %v2533
    %5245 = vmatprep.subr.bf16.mxu0 %v2538
    %5246 = vmatpush1.bf16.msra.mxu0 %v2537
    %5247 = vmatprep.subr.bf16.mxu0 %v2542
    %5248 = vmatpush1.bf16.msra.mxu0 %v2541
    %5249 = vmatprep.subr.bf16.mxu0 %v2546
    %5250 = vmatpush1.bf16.msra.mxu0 %v2545
    %5251 = vmatprep.subr.bf16.mxu0 %v2550
    %5252 = vmatpush1.bf16.msra.mxu0 %v2549
    %5253 = vmatprep.subr.bf16.mxu0 %v2554
    %5254 = vmatpush1.bf16.msra.mxu0 %v2553
    %5255 = vmatprep.subr.bf16.mxu0 %v2558
    %5256 = vmatpush1.bf16.msra.mxu0 %v2557
    %5257 = vmatprep.subr.bf16.mxu0 %v2562
    %5258 = vmatpush1.bf16.msra.mxu0 %v2561
    %5259 = vmatprep.subr.bf16.mxu0 %v2566
    %5260 = vmatpush1.bf16.msra.mxu0 %v2565
    %5261 = vmatprep.mubr.bf16.mxu0 %v5228
    %5262 = vmatmul.mubr.bf16.gmra.mrb[0].mxu0 %v5123
    %v5263 = vpop.f32.mrb[0].mxu0
    %v5264 = vadd.f32 %v2296, %v5263
    %v5265 = vpop.f32.mrb[0].mxu0
    %v5266 = vadd.f32 %v2300, %v5265
    %v5267 = vpop.f32.mrb[0].mxu0
    %v5268 = vpop.f32.mrb[0].mxu0
    %5269 = vdwg.mxu0
    %5270 = vmatprep.subr.bf16.mxu0 %v2508
    %5271 = vmatpush1.bf16.msra.mxu0 %v2507
    %5272 = vmatprep.subr.bf16.mxu0 %v2512
    %5273 = vmatpush1.bf16.msra.mxu0 %v2511
    %5274 = vmatprep.subr.bf16.mxu0 %v2516
    %5275 = vmatpush1.bf16.msra.mxu0 %v2515
    %5276 = vmatprep.subr.bf16.mxu0 %v2520
    %5277 = vmatpush1.bf16.msra.mxu0 %v2519
    %5278 = vmatprep.subr.bf16.mxu0 %v2524
    %5279 = vmatpush1.bf16.msra.mxu0 %v2523
    %5280 = vmatprep.subr.bf16.mxu0 %v2528
    %5281 = vmatpush1.bf16.msra.mxu0 %v2527
    %5282 = vmatprep.subr.bf16.mxu0 %v2532
    %5283 = vmatpush1.bf16.msra.mxu0 %v2531
    %5284 = vmatprep.subr.bf16.mxu0 %v2536
    %5285 = vmatpush1.bf16.msra.mxu0 %v2535
    %5286 = vmatprep.subr.bf16.mxu0 %v2540
    %5287 = vmatpush1.bf16.msra.mxu0 %v2539
    %5288 = vmatprep.subr.bf16.mxu0 %v2544
    %5289 = vmatpush1.bf16.msra.mxu0 %v2543
    %5290 = vmatprep.subr.bf16.mxu0 %v2548
    %5291 = vmatpush1.bf16.msra.mxu0 %v2547
    %5292 = vmatprep.subr.bf16.mxu0 %v2552
    %5293 = vmatpush1.bf16.msra.mxu0 %v2551
    %5294 = vmatprep.subr.bf16.mxu0 %v2556
    %5295 = vmatpush1.bf16.msra.mxu0 %v2555
    %5296 = vmatprep.subr.bf16.mxu0 %v2560
    %5297 = vmatpush1.bf16.msra.mxu0 %v2559
    %5298 = vmatprep.subr.bf16.mxu0 %v2564
    %5299 = vmatpush1.bf16.msra.mxu0 %v2563
    %5300 = vmatprep.subr.bf16.mxu0 %v2568
    %5301 = vmatpush1.bf16.msra.mxu0 %v2567
    %5302 = vmatprep.mubr.bf16.mxu0 %v5228
    %5303 = vmatmul.mubr.bf16.gmra.mrb[0].mxu0 %v5123
    %v5304 = vpop.f32.mrb[0].mxu0
    %v5305 = vadd.f32 %v2304, %v5304
    %v5306 = vpop.f32.mrb[0].mxu0
    %v5307 = vadd.f32 %v2308, %v5306
    %v5308 = vpop.f32.mrb[0].mxu0
    %v5309 = vpop.f32.mrb[0].mxu0
    %5310 = vdwg.mxu0
    %v5311 = vmul.f32 %v5264, 0.5
    %v5312 = vtanh.pop %v5311
    %v5313 = vmul.f32 %v5312, 0.5
    %v5314 = vadd.f32 %v5313, 0.5
    %v5315 = vmul.f32 %v5266, 0.5
    %v5316 = vtanh.pop %v5315
    %v5317 = vmul.f32 %v5316, 0.5
    %v5318 = vadd.f32 %v5317, 0.5
    %v5319 = vtanh.pop %v5305
    %v5320 = vmul.f32 %v5307, 0.5
    %v5321 = vtanh.pop %v5320
    %v5322 = vmul.f32 %v5321, 0.5
    %v5323 = vadd.f32 %v5322, 0.5
    %v5324 = vmul.f32 %v5318, %v5111
    %v5325 = vmul.f32 %v5314, %v5319
    %v5326 = vadd.f32 %v5324, %v5325
    %v5327 = vtanh.pop %v5326
    %v5328 = vmul.f32 %v5323, %v5327
    %v5329 = vpack.c.bf16 %v5113, %v5113
    %5330 = vmatprep.subr.bf16.mxu0 %v2947
    %5331 = vmatpush1.bf16.msra.mxu0 %v2946
    %5332 = vmatprep.subr.bf16.mxu0 %v2951
    %5333 = vmatpush1.bf16.msra.mxu0 %v2950
    %5334 = vmatprep.subr.bf16.mxu0 %v2955
    %5335 = vmatpush1.bf16.msra.mxu0 %v2954
    %5336 = vmatprep.subr.bf16.mxu0 %v2959
    %5337 = vmatpush1.bf16.msra.mxu0 %v2958
    %5338 = vmatprep.subr.bf16.mxu0 %v2963
    %5339 = vmatpush1.bf16.msra.mxu0 %v2962
    %5340 = vmatprep.subr.bf16.mxu0 %v2967
    %5341 = vmatpush1.bf16.msra.mxu0 %v2966
    %5342 = vmatprep.subr.bf16.mxu0 %v2971
    %5343 = vmatpush1.bf16.msra.mxu0 %v2970
    %5344 = vmatprep.subr.bf16.mxu0 %v2975
    %5345 = vmatpush1.bf16.msra.mxu0 %v2974
    %5346 = vmatprep.subr.bf16.mxu0 %v2979
    %5347 = vmatpush1.bf16.msra.mxu0 %v2978
    %5348 = vmatprep.subr.bf16.mxu0 %v2983
    %5349 = vmatpush1.bf16.msra.mxu0 %v2982
    %5350 = vmatprep.subr.bf16.mxu0 %v2987
    %5351 = vmatpush1.bf16.msra.mxu0 %v2986
    %5352 = vmatprep.subr.bf16.mxu0 %v2991
    %5353 = vmatpush1.bf16.msra.mxu0 %v2990
    %5354 = vmatprep.subr.bf16.mxu0 %v2995
    %5355 = vmatpush1.bf16.msra.mxu0 %v2994
    %5356 = vmatprep.subr.bf16.mxu0 %v2999
    %5357 = vmatpush1.bf16.msra.mxu0 %v2998
    %5358 = vmatprep.subr.bf16.mxu0 %v3003
    %5359 = vmatpush1.bf16.msra.mxu0 %v3002
    %5360 = vmatprep.subr.bf16.mxu0 %v3007
    %5361 = vmatpush1.bf16.msra.mxu0 %v3006
    %5362 = vmatprep.mubr.bf16.mxu0 %v5329
    %5363 = vmatmul.mubr.bf16.gmra.mrb[0].mxu0 %v5228
    %v5364 = vpop.f32.mrb[0].mxu0
    %v5365 = vadd.f32 %v2737, %v5364
    %v5366 = vpop.f32.mrb[0].mxu0
    %v5367 = vadd.f32 %v2741, %v5366
    %v5368 = vpop.f32.mrb[0].mxu0
    %v5369 = vpop.f32.mrb[0].mxu0
    %5370 = vdwg.mxu0
    %5371 = vmatprep.subr.bf16.mxu0 %v2949
    %5372 = vmatpush1.bf16.msra.mxu0 %v2948
    %5373 = vmatprep.subr.bf16.mxu0 %v2953
    %5374 = vmatpush1.bf16.msra.mxu0 %v2952
    %5375 = vmatprep.subr.bf16.mxu0 %v2957
    %5376 = vmatpush1.bf16.msra.mxu0 %v2956
    %5377 = vmatprep.subr.bf16.mxu0 %v2961
    %5378 = vmatpush1.bf16.msra.mxu0 %v2960
    %5379 = vmatprep.subr.bf16.mxu0 %v2965
    %5380 = vmatpush1.bf16.msra.mxu0 %v2964
    %5381 = vmatprep.subr.bf16.mxu0 %v2969
    %5382 = vmatpush1.bf16.msra.mxu0 %v2968
    %5383 = vmatprep.subr.bf16.mxu0 %v2973
    %5384 = vmatpush1.bf16.msra.mxu0 %v2972
    %5385 = vmatprep.subr.bf16.mxu0 %v2977
    %5386 = vmatpush1.bf16.msra.mxu0 %v2976
    %5387 = vmatprep.subr.bf16.mxu0 %v2981
    %5388 = vmatpush1.bf16.msra.mxu0 %v2980
    %5389 = vmatprep.subr.bf16.mxu0 %v2985
    %5390 = vmatpush1.bf16.msra.mxu0 %v2984
    %5391 = vmatprep.subr.bf16.mxu0 %v2989
    %5392 = vmatpush1.bf16.msra.mxu0 %v2988
    %5393 = vmatprep.subr.bf16.mxu0 %v2993
    %5394 = vmatpush1.bf16.msra.mxu0 %v2992
    %5395 = vmatprep.subr.bf16.mxu0 %v2997
    %5396 = vmatpush1.bf16.msra.mxu0 %v2996
    %5397 = vmatprep.subr.bf16.mxu0 %v3001
    %5398 = vmatpush1.bf16.msra.mxu0 %v3000
    %5399 = vmatprep.subr.bf16.mxu0 %v3005
    %5400 = vmatpush1.bf16.msra.mxu0 %v3004
    %5401 = vmatprep.subr.bf16.mxu0 %v3009
    %5402 = vmatpush1.bf16.msra.mxu0 %v3008
    %5403 = vmatprep.mubr.bf16.mxu0 %v5329
    %5404 = vmatmul.mubr.bf16.gmra.mrb[0].mxu0 %v5228
    %v5405 = vpop.f32.mrb[0].mxu0
    %v5406 = vadd.f32 %v2745, %v5405
    %v5407 = vpop.f32.mrb[0].mxu0
    %v5408 = vadd.f32 %v2749, %v5407
    %v5409 = vpop.f32.mrb[0].mxu0
    %v5410 = vpop.f32.mrb[0].mxu0
    %5411 = vdwg.mxu0
    %v5412 = vmul.f32 %v5365, 0.5
    %v5413 = vtanh.pop %v5412
    %v5414 = vmul.f32 %v5413, 0.5
    %v5415 = vadd.f32 %v5414, 0.5
    %v5416 = vmul.f32 %v5367, 0.5
    %v5417 = vtanh.pop %v5416
    %v5418 = vmul.f32 %v5417, 0.5
    %v5419 = vadd.f32 %v5418, 0.5
    %v5420 = vtanh.pop %v5406
    %v5421 = vmul.f32 %v5408, 0.5
    %v5422 = vtanh.pop %v5421
    %v5423 = vmul.f32 %v5422, 0.5
    %v5424 = vadd.f32 %v5423, 0.5
    %v5425 = vmul.f32 %v5419, %v5115
    %v5426 = vmul.f32 %v5415, %v5420
    %v5427 = vadd.f32 %v5425, %v5426
    %v5428 = vtanh.pop %v5427
    %v5429 = vmul.f32 %v5424, %v5428
    %v5430 = vsub.f32 %v5328, %v5109
    %v5431 = vadd.f32 %v5109, %v5430
    %v5432 = vsub.f32 %v5326, %v5111
    %v5433 = vadd.f32 %v5111, %v5432
    %v5434 = vsub.f32 %v5429, %v5113
    %v5435 = vadd.f32 %v5113, %v5434
    %v5436 = vsub.f32 %v5427, %v5115
    %v5437 = vadd.f32 %v5115, %v5436
    %v5438 = vpack.c.bf16 %v5227, %v5227
    %v5439 = vpack.c.bf16 %v5431, %v5431
    %5440 = vmatprep.subr.bf16.mxu0 %v2506
    %5441 = vmatpush1.bf16.msra.mxu0 %v2505
    %5442 = vmatprep.subr.bf16.mxu0 %v2510
    %5443 = vmatpush1.bf16.msra.mxu0 %v2509
    %5444 = vmatprep.subr.bf16.mxu0 %v2514
    %5445 = vmatpush1.bf16.msra.mxu0 %v2513
    %5446 = vmatprep.subr.bf16.mxu0 %v2518
    %5447 = vmatpush1.bf16.msra.mxu0 %v2517
    %5448 = vmatprep.subr.bf16.mxu0 %v2522
    %5449 = vmatpush1.bf16.msra.mxu0 %v2521
    %5450 = vmatprep.subr.bf16.mxu0 %v2526
    %5451 = vmatpush1.bf16.msra.mxu0 %v2525
    %5452 = vmatprep.subr.bf16.mxu0 %v2530
    %5453 = vmatpush1.bf16.msra.mxu0 %v2529
    %5454 = vmatprep.subr.bf16.mxu0 %v2534
    %5455 = vmatpush1.bf16.msra.mxu0 %v2533
    %5456 = vmatprep.subr.bf16.mxu0 %v2538
    %5457 = vmatpush1.bf16.msra.mxu0 %v2537
    %5458 = vmatprep.subr.bf16.mxu0 %v2542
    %5459 = vmatpush1.bf16.msra.mxu0 %v2541
    %5460 = vmatprep.subr.bf16.mxu0 %v2546
    %5461 = vmatpush1.bf16.msra.mxu0 %v2545
    %5462 = vmatprep.subr.bf16.mxu0 %v2550
    %5463 = vmatpush1.bf16.msra.mxu0 %v2549
    %5464 = vmatprep.subr.bf16.mxu0 %v2554
    %5465 = vmatpush1.bf16.msra.mxu0 %v2553
    %5466 = vmatprep.subr.bf16.mxu0 %v2558
    %5467 = vmatpush1.bf16.msra.mxu0 %v2557
    %5468 = vmatprep.subr.bf16.mxu0 %v2562
    %5469 = vmatpush1.bf16.msra.mxu0 %v2561
    %5470 = vmatprep.subr.bf16.mxu0 %v2566
    %5471 = vmatpush1.bf16.msra.mxu0 %v2565
    %5472 = vmatprep.mubr.bf16.mxu0 %v5439
    %5473 = vmatmul.mubr.bf16.gmra.mrb[0].mxu0 %v5438
    %v5474 = vpop.f32.mrb[0].mxu0
    %v5475 = vadd.f32 %v2296, %v5474
    %v5476 = vpop.f32.mrb[0].mxu0
    %v5477 = vadd.f32 %v2300, %v5476
    %v5478 = vpop.f32.mrb[0].mxu0
    %v5479 = vpop.f32.mrb[0].mxu0
    %5480 = vdwg.mxu0
    %5481 = vmatprep.subr.bf16.mxu0 %v2508
    %5482 = vmatpush1.bf16.msra.mxu0 %v2507
    %5483 = vmatprep.subr.bf16.mxu0 %v2512
    %5484 = vmatpush1.bf16.msra.mxu0 %v2511
    %5485 = vmatprep.subr.bf16.mxu0 %v2516
    %5486 = vmatpush1.bf16.msra.mxu0 %v2515
    %5487 = vmatprep.subr.bf16.mxu0 %v2520
    %5488 = vmatpush1.bf16.msra.mxu0 %v2519
    %5489 = vmatprep.subr.bf16.mxu0 %v2524
    %5490 = vmatpush1.bf16.msra.mxu0 %v2523
    %5491 = vmatprep.subr.bf16.mxu0 %v2528
    %5492 = vmatpush1.bf16.msra.mxu0 %v2527
    %5493 = vmatprep.subr.bf16.mxu0 %v2532
    %5494 = vmatpush1.bf16.msra.mxu0 %v2531
    %5495 = vmatprep.subr.bf16.mxu0 %v2536
    %5496 = vmatpush1.bf16.msra.mxu0 %v2535
    %5497 = vmatprep.subr.bf16.mxu0 %v2540
    %5498 = vmatpush1.bf16.msra.mxu0 %v2539
    %5499 = vmatprep.subr.bf16.mxu0 %v2544
    %5500 = vmatpush1.bf16.msra.mxu0 %v2543
    %5501 = vmatprep.subr.bf16.mxu0 %v2548
    %5502 = vmatpush1.bf16.msra.mxu0 %v2547
    %5503 = vmatprep.subr.bf16.mxu0 %v2552
    %5504 = vmatpush1.bf16.msra.mxu0 %v2551
    %5505 = vmatprep.subr.bf16.mxu0 %v2556
    %5506 = vmatpush1.bf16.msra.mxu0 %v2555
    %5507 = vmatprep.subr.bf16.mxu0 %v2560
    %5508 = vmatpush1.bf16.msra.mxu0 %v2559
    %5509 = vmatprep.subr.bf16.mxu0 %v2564
    %5510 = vmatpush1.bf16.msra.mxu0 %v2563
    %5511 = vmatprep.subr.bf16.mxu0 %v2568
    %5512 = vmatpush1.bf16.msra.mxu0 %v2567
    %5513 = vmatprep.mubr.bf16.mxu0 %v5439
    %5514 = vmatmul.mubr.bf16.gmra.mrb[0].mxu0 %v5438
    %v5515 = vpop.f32.mrb[0].mxu0
    %v5516 = vadd.f32 %v2304, %v5515
    %v5517 = vpop.f32.mrb[0].mxu0
    %v5518 = vadd.f32 %v2308, %v5517
    %v5519 = vpop.f32.mrb[0].mxu0
    %v5520 = vpop.f32.mrb[0].mxu0
    %5521 = vdwg.mxu0
    %v5522 = vmul.f32 %v5475, 0.5
    %v5523 = vtanh.pop %v5522
    %v5524 = vmul.f32 %v5523, 0.5
    %v5525 = vadd.f32 %v5524, 0.5
    %v5526 = vmul.f32 %v5477, 0.5
    %v5527 = vtanh.pop %v5526
    %v5528 = vmul.f32 %v5527, 0.5
    %v5529 = vadd.f32 %v5528, 0.5
    %v5530 = vtanh.pop %v5516
    %v5531 = vmul.f32 %v5518, 0.5
    %v5532 = vtanh.pop %v5531
    %v5533 = vmul.f32 %v5532, 0.5
    %v5534 = vadd.f32 %v5533, 0.5
    %v5535 = vmul.f32 %v5529, %v5433
    %v5536 = vmul.f32 %v5525, %v5530
    %v5537 = vadd.f32 %v5535, %v5536
    %v5538 = vtanh.pop %v5537
    %v5539 = vmul.f32 %v5534, %v5538
    %v5540 = vpack.c.bf16 %v5435, %v5435
    %5541 = vmatprep.subr.bf16.mxu0 %v2947
    %5542 = vmatpush1.bf16.msra.mxu0 %v2946
    %5543 = vmatprep.subr.bf16.mxu0 %v2951
    %5544 = vmatpush1.bf16.msra.mxu0 %v2950
    %5545 = vmatprep.subr.bf16.mxu0 %v2955
    %5546 = vmatpush1.bf16.msra.mxu0 %v2954
    %5547 = vmatprep.subr.bf16.mxu0 %v2959
    %5548 = vmatpush1.bf16.msra.mxu0 %v2958
    %5549 = vmatprep.subr.bf16.mxu0 %v2963
    %5550 = vmatpush1.bf16.msra.mxu0 %v2962
    %5551 = vmatprep.subr.bf16.mxu0 %v2967
    %5552 = vmatpush1.bf16.msra.mxu0 %v2966
    %5553 = vmatprep.subr.bf16.mxu0 %v2971
    %5554 = vmatpush1.bf16.msra.mxu0 %v2970
    %5555 = vmatprep.subr.bf16.mxu0 %v2975
    %5556 = vmatpush1.bf16.msra.mxu0 %v2974
    %5557 = vmatprep.subr.bf16.mxu0 %v2979
    %5558 = vmatpush1.bf16.msra.mxu0 %v2978
    %5559 = vmatprep.subr.bf16.mxu0 %v2983
    %5560 = vmatpush1.bf16.msra.mxu0 %v2982
    %5561 = vmatprep.subr.bf16.mxu0 %v2987
    %5562 = vmatpush1.bf16.msra.mxu0 %v2986
    %5563 = vmatprep.subr.bf16.mxu0 %v2991
    %5564 = vmatpush1.bf16.msra.mxu0 %v2990
    %5565 = vmatprep.subr.bf16.mxu0 %v2995
    %5566 = vmatpush1.bf16.msra.mxu0 %v2994
    %5567 = vmatprep.subr.bf16.mxu0 %v2999
    %5568 = vmatpush1.bf16.msra.mxu0 %v2998
    %5569 = vmatprep.subr.bf16.mxu0 %v3003
    %5570 = vmatpush1.bf16.msra.mxu0 %v3002
    %5571 = vmatprep.subr.bf16.mxu0 %v3007
    %5572 = vmatpush1.bf16.msra.mxu0 %v3006
    %5573 = vmatprep.mubr.bf16.mxu0 %v5540
    %5574 = vmatmul.mubr.bf16.gmra.mrb[0].mxu0 %v5439
    %v5575 = vpop.f32.mrb[0].mxu0
    %v5576 = vadd.f32 %v2737, %v5575
    %v5577 = vpop.f32.mrb[0].mxu0
    %v5578 = vadd.f32 %v2741, %v5577
    %v5579 = vpop.f32.mrb[0].mxu0
    %v5580 = vpop.f32.mrb[0].mxu0
    %5581 = vdwg.mxu0
    %5582 = vmatprep.subr.bf16.mxu0 %v2949
    %5583 = vmatpush1.bf16.msra.mxu0 %v2948
    %5584 = vmatprep.subr.bf16.mxu0 %v2953
    %5585 = vmatpush1.bf16.msra.mxu0 %v2952
    %5586 = vmatprep.subr.bf16.mxu0 %v2957
    %5587 = vmatpush1.bf16.msra.mxu0 %v2956
    %5588 = vmatprep.subr.bf16.mxu0 %v2961
    %5589 = vmatpush1.bf16.msra.mxu0 %v2960
    %5590 = vmatprep.subr.bf16.mxu0 %v2965
    %5591 = vmatpush1.bf16.msra.mxu0 %v2964
    %5592 = vmatprep.subr.bf16.mxu0 %v2969
    %5593 = vmatpush1.bf16.msra.mxu0 %v2968
    %5594 = vmatprep.subr.bf16.mxu0 %v2973
    %5595 = vmatpush1.bf16.msra.mxu0 %v2972
    %5596 = vmatprep.subr.bf16.mxu0 %v2977
    %5597 = vmatpush1.bf16.msra.mxu0 %v2976
    %5598 = vmatprep.subr.bf16.mxu0 %v2981
    %5599 = vmatpush1.bf16.msra.mxu0 %v2980
    %5600 = vmatprep.subr.bf16.mxu0 %v2985
    %5601 = vmatpush1.bf16.msra.mxu0 %v2984
    %5602 = vmatprep.subr.bf16.mxu0 %v2989
    %5603 = vmatpush1.bf16.msra.mxu0 %v2988
    %5604 = vmatprep.subr.bf16.mxu0 %v2993
    %5605 = vmatpush1.bf16.msra.mxu0 %v2992
    %5606 = vmatprep.subr.bf16.mxu0 %v2997
    %5607 = vmatpush1.bf16.msra.mxu0 %v2996
    %5608 = vmatprep.subr.bf16.mxu0 %v3001
    %5609 = vmatpush1.bf16.msra.mxu0 %v3000
    %5610 = vmatprep.subr.bf16.mxu0 %v3005
    %5611 = vmatpush1.bf16.msra.mxu0 %v3004
    %5612 = vmatprep.subr.bf16.mxu0 %v3009
    %5613 = vmatpush1.bf16.msra.mxu0 %v3008
    %5614 = vmatprep.mubr.bf16.mxu0 %v5540
    %5615 = vmatmul.mubr.bf16.gmra.mrb[0].mxu0 %v5439
    %v5616 = vpop.f32.mrb[0].mxu0
    %v5617 = vadd.f32 %v2745, %v5616
    %v5618 = vpop.f32.mrb[0].mxu0
    %v5619 = vadd.f32 %v2749, %v5618
    %v5620 = vpop.f32.mrb[0].mxu0
    %v5621 = vpop.f32.mrb[0].mxu0
    %5622 = vdwg.mxu0
    %v5623 = vmul.f32 %v5576, 0.5
    %v5624 = vtanh.pop %v5623
    %v5625 = vmul.f32 %v5624, 0.5
    %v5626 = vadd.f32 %v5625, 0.5
    %v5627 = vmul.f32 %v5578, 0.5
    %v5628 = vtanh.pop %v5627
    %v5629 = vmul.f32 %v5628, 0.5
    %v5630 = vadd.f32 %v5629, 0.5
    %v5631 = vtanh.pop %v5617
    %v5632 = vmul.f32 %v5619, 0.5
    %v5633 = vtanh.pop %v5632
    %v5634 = vmul.f32 %v5633, 0.5
    %v5635 = vadd.f32 %v5634, 0.5
    %v5636 = vmul.f32 %v5630, %v5437
    %v5637 = vmul.f32 %v5626, %v5631
    %v5638 = vadd.f32 %v5636, %v5637
    %v5639 = vtanh.pop %v5638
    %v5640 = vmul.f32 %v5635, %v5639
    %v5641 = vsub.f32 %v5539, %v5431
    %v5642 = vadd.f32 %v5431, %v5641
    %v5643 = vsub.f32 %v5640, %v5435
    %v5644 = vadd.f32 %v5435, %v5643
    %v5645 = vsub.f32 %v5638, %v5437
    %v5646 = vadd.f32 %v5437, %v5645
    %v5647 = vpack.c.bf16 %v5642, %v5642
    %v5648 = vpack.c.bf16 %v5644, %v5644
    %5649 = vmatprep.subr.bf16.mxu0 %v2947
    %5650 = vmatpush1.bf16.msra.mxu0 %v2946
    %5651 = vmatprep.subr.bf16.mxu0 %v2951
    %5652 = vmatpush1.bf16.msra.mxu0 %v2950
    %5653 = vmatprep.subr.bf16.mxu0 %v2955
    %5654 = vmatpush1.bf16.msra.mxu0 %v2954
    %5655 = vmatprep.subr.bf16.mxu0 %v2959
    %5656 = vmatpush1.bf16.msra.mxu0 %v2958
    %5657 = vmatprep.subr.bf16.mxu0 %v2963
    %5658 = vmatpush1.bf16.msra.mxu0 %v2962
    %5659 = vmatprep.subr.bf16.mxu0 %v2967
    %5660 = vmatpush1.bf16.msra.mxu0 %v2966
    %5661 = vmatprep.subr.bf16.mxu0 %v2971
    %5662 = vmatpush1.bf16.msra.mxu0 %v2970
    %5663 = vmatprep.subr.bf16.mxu0 %v2975
    %5664 = vmatpush1.bf16.msra.mxu0 %v2974
    %5665 = vmatprep.subr.bf16.mxu0 %v2979
    %5666 = vmatpush1.bf16.msra.mxu0 %v2978
    %5667 = vmatprep.subr.bf16.mxu0 %v2983
    %5668 = vmatpush1.bf16.msra.mxu0 %v2982
    %5669 = vmatprep.subr.bf16.mxu0 %v2987
    %5670 = vmatpush1.bf16.msra.mxu0 %v2986
    %5671 = vmatprep.subr.bf16.mxu0 %v2991
    %5672 = vmatpush1.bf16.msra.mxu0 %v2990
    %5673 = vmatprep.subr.bf16.mxu0 %v2995
    %5674 = vmatpush1.bf16.msra.mxu0 %v2994
    %5675 = vmatprep.subr.bf16.mxu0 %v2999
    %5676 = vmatpush1.bf16.msra.mxu0 %v2998
    %5677 = vmatprep.subr.bf16.mxu0 %v3003
    %5678 = vmatpush1.bf16.msra.mxu0 %v3002
    %5679 = vmatprep.subr.bf16.mxu0 %v3007
    %5680 = vmatpush1.bf16.msra.mxu0 %v3006
    %5681 = vmatprep.mubr.bf16.mxu0 %v5648
    %5682 = vmatmul.mubr.bf16.gmra.mrb[0].mxu0 %v5647
    %v5683 = vpop.f32.mrb[0].mxu0
    %v5684 = vadd.f32 %v2737, %v5683
    %v5685 = vpop.f32.mrb[0].mxu0
    %v5686 = vadd.f32 %v2741, %v5685
    %v5687 = vpop.f32.mrb[0].mxu0
    %v5688 = vpop.f32.mrb[0].mxu0
    %5689 = vdwg.mxu0
    %5690 = vmatprep.subr.bf16.mxu0 %v2949
    %5691 = vmatpush1.bf16.msra.mxu0 %v2948
    %5692 = vmatprep.subr.bf16.mxu0 %v2953
    %5693 = vmatpush1.bf16.msra.mxu0 %v2952
    %5694 = vmatprep.subr.bf16.mxu0 %v2957
    %5695 = vmatpush1.bf16.msra.mxu0 %v2956
    %5696 = vmatprep.subr.bf16.mxu0 %v2961
    %5697 = vmatpush1.bf16.msra.mxu0 %v2960
    %5698 = vmatprep.subr.bf16.mxu0 %v2965
    %5699 = vmatpush1.bf16.msra.mxu0 %v2964
    %5700 = vmatprep.subr.bf16.mxu0 %v2969
    %5701 = vmatpush1.bf16.msra.mxu0 %v2968
    %5702 = vmatprep.subr.bf16.mxu0 %v2973
    %5703 = vmatpush1.bf16.msra.mxu0 %v2972
    %5704 = vmatprep.subr.bf16.mxu0 %v2977
    %5705 = vmatpush1.bf16.msra.mxu0 %v2976
    %5706 = vmatprep.subr.bf16.mxu0 %v2981
    %5707 = vmatpush1.bf16.msra.mxu0 %v2980
    %5708 = vmatprep.subr.bf16.mxu0 %v2985
    %5709 = vmatpush1.bf16.msra.mxu0 %v2984
    %5710 = vmatprep.subr.bf16.mxu0 %v2989
    %5711 = vmatpush1.bf16.msra.mxu0 %v2988
    %5712 = vmatprep.subr.bf16.mxu0 %v2993
    %5713 = vmatpush1.bf16.msra.mxu0 %v2992
    %5714 = vmatprep.subr.bf16.mxu0 %v2997
    %5715 = vmatpush1.bf16.msra.mxu0 %v2996
    %5716 = vmatprep.subr.bf16.mxu0 %v3001
    %5717 = vmatpush1.bf16.msra.mxu0 %v3000
    %5718 = vmatprep.subr.bf16.mxu0 %v3005
    %5719 = vmatpush1.bf16.msra.mxu0 %v3004
    %5720 = vmatprep.subr.bf16.mxu0 %v3009
    %5721 = vmatpush1.bf16.msra.mxu0 %v3008
    %5722 = vmatprep.mubr.bf16.mxu0 %v5648
    %5723 = vmatmul.mubr.bf16.gmra.mrb[0].mxu0 %v5647
    %v5724 = vpop.f32.mrb[0].mxu0
    %v5725 = vadd.f32 %v2745, %v5724
    %v5726 = vpop.f32.mrb[0].mxu0
    %v5727 = vadd.f32 %v2749, %v5726
    %v5728 = vpop.f32.mrb[0].mxu0
    %v5729 = vpop.f32.mrb[0].mxu0
    %5730 = vdwg.mxu0
    %v5731 = vmul.f32 %v5684, 0.5
    %v5732 = vtanh.pop %v5731
    %v5733 = vmul.f32 %v5732, 0.5
    %v5734 = vadd.f32 %v5733, 0.5
    %v5735 = vmul.f32 %v5686, 0.5
    %v5736 = vtanh.pop %v5735
    %v5737 = vmul.f32 %v5736, 0.5
    %v5738 = vadd.f32 %v5737, 0.5
    %v5739 = vtanh.pop %v5725
    %v5740 = vmul.f32 %v5727, 0.5
    %v5741 = vtanh.pop %v5740
    %v5742 = vmul.f32 %v5741, 0.5
    %v5743 = vadd.f32 %v5742, 0.5
    %v5744 = vmul.f32 %v5738, %v5646
    %v5745 = vmul.f32 %v5734, %v5739
    %v5746 = vadd.f32 %v5744, %v5745
    %v5747 = vtanh.pop %v5746
    %v5748 = vmul.f32 %v5743, %v5747
    %v5749 = vsub.f32 %v5748, %v5644
    %v5750 = vadd.f32 %v5644, %v5749
    %v5751 = vpack.c.bf16 %v5750, %v5750
    %v5752 = vld [vmem:[%s8] sm:$0xf]
    %v5753 = vld [vmem:[%s8 + $0x4] sm:$0xf]
    %v5754 = vld [vmem:[%s8 + $0x8] sm:$0xf]
    %v5755 = vld [vmem:[%s8 + $0xc] sm:$0xf]
    %v5756 = vld [vmem:[%s8 + $0x10] sm:$0xf]
    %v5757 = vld [vmem:[%s8 + $0x14] sm:$0xf]
    %v5758 = vld [vmem:[%s8 + $0x18] sm:$0xf]
    %v5759 = vld [vmem:[%s8 + $0x1c] sm:$0xf]
    %v5760 = vld [vmem:[%s8 + $0x20] sm:$0xf]
    %v5761 = vld [vmem:[%s8 + $0x24] sm:$0xf]
    %v5762 = vld [vmem:[%s8 + $0x28] sm:$0xf]
    %v5763 = vld [vmem:[%s8 + $0x2c] sm:$0xf]
    %v5764 = vld [vmem:[%s8 + $0x30] sm:$0xf]
    %v5765 = vld [vmem:[%s8 + $0x34] sm:$0xf]
    %v5766 = vld [vmem:[%s8 + $0x38] sm:$0xf]
    %v5767 = vld [vmem:[%s8 + $0x3c] sm:$0xf]
    %v5768 = vld [vmem:[%s9] sm:$0x1]
    %v5770 = vlaneseq
    %v5771 = vshrl.u32 %v5770, 7
    %v5772 = vsub.s32 0, %v5771
    %v5773 = vrot.slane %v5768, %v5772
    %v5791 = vunpack.c.l.b16 %v5752
    %v5792 = vunpack.c.l.b16 %v5753
    %v5793 = vunpack.c.l.b16 %v5754
    %v5794 = vunpack.c.l.b16 %v5755
    %v5795 = vunpack.c.l.b16 %v5756
    %v5796 = vunpack.c.l.b16 %v5757
    %v5797 = vunpack.c.l.b16 %v5758
    %v5798 = vunpack.c.l.b16 %v5759
    %v5799 = vunpack.c.l.b16 %v5760
    %v5800 = vunpack.c.l.b16 %v5761
    %v5801 = vunpack.c.l.b16 %v5762
    %v5802 = vunpack.c.l.b16 %v5763
    %v5803 = vunpack.c.l.b16 %v5764
    %v5804 = vunpack.c.l.b16 %v5765
    %v5805 = vunpack.c.l.b16 %v5766
    %v5806 = vunpack.c.l.b16 %v5767
    %v5807 = vpack.c.b16 %v5792, %v5791
    %v5808 = vpack.c.b16 %v5794, %v5793
    %v5809 = vpack.c.b16 %v5796, %v5795
    %v5810 = vpack.c.b16 %v5798, %v5797
    %v5811 = vpack.c.b16 %v5800, %v5799
    %v5812 = vpack.c.b16 %v5802, %v5801
    %v5813 = vpack.c.b16 %v5804, %v5803
    %v5814 = vpack.c.b16 %v5806, %v5805
    %5823 = vmatprep.subr.bf16.mxu0 0
    %5824 = vmatpush1.bf16.msra.mxu0 %v5807
    %5825 = vmatprep.subr.bf16.mxu0 0
    %5826 = vmatpush1.bf16.msra.mxu0 %v5808
    %5827 = vmatprep.subr.bf16.mxu0 0
    %5828 = vmatpush1.bf16.msra.mxu0 %v5809
    %5829 = vmatprep.subr.bf16.mxu0 0
    %5830 = vmatpush1.bf16.msra.mxu0 %v5810
    %5831 = vmatprep.subr.bf16.mxu0 0
    %5832 = vmatpush1.bf16.msra.mxu0 %v5811
    %5833 = vmatprep.subr.bf16.mxu0 0
    %5834 = vmatpush1.bf16.msra.mxu0 %v5812
    %5835 = vmatprep.subr.bf16.mxu0 0
    %5836 = vmatpush1.bf16.msra.mxu0 %v5813
    %5837 = vmatprep.subr.bf16.mxu0 0
    %5838 = vmatpush1.bf16.msra.mxu0 %v5814
    %5839 = vmatprep.subr.bf16.mxu0 0
    %5840 = vmatpush1.bf16.msra.mxu0 0
    %5841 = vmatprep.subr.bf16.mxu0 0
    %5842 = vmatpush1.bf16.msra.mxu0 0
    %5843 = vmatprep.subr.bf16.mxu0 0
    %5844 = vmatpush1.bf16.msra.mxu0 0
    %5845 = vmatprep.subr.bf16.mxu0 0
    %5846 = vmatpush1.bf16.msra.mxu0 0
    %5847 = vmatprep.subr.bf16.mxu0 0
    %5848 = vmatpush1.bf16.msra.mxu0 0
    %5849 = vmatprep.subr.bf16.mxu0 0
    %5850 = vmatpush1.bf16.msra.mxu0 0
    %5851 = vmatprep.subr.bf16.mxu0 0
    %5852 = vmatpush1.bf16.msra.mxu0 0
    %5853 = vmatprep.subr.bf16.mxu0 0
    %5854 = vmatpush1.bf16.msra.mxu0 0
    %5855 = vmatprep.mubr.bf16.mxu0 0
    %5856 = vmatmul.mubr.bf16.gmra.mrb[0].mxu0 %v5751
    %v5857 = vpop.f32.mrb[0].mxu0
    %v5858 = vadd.f32 %v5773, %v5857
    %v5859 = vpop.f32.mrb[0].mxu0
    %v5860 = vpop.f32.mrb[0].mxu0
    %v5861 = vpop.f32.mrb[0].mxu0
    %5862 = vdwg.mxu0
    %v5863 = vmax.f32 %v5858, 0.0
    %v5864 = vpack.c.bf16 %v5863, %v5863
    %v5865 = vld [vmem:[%s10] sm:$0xf]
    %v5866 = vld [vmem:[%s10 + $0x4] sm:$0xf]
    %v5867 = vld [vmem:[%s10 + $0x8] sm:$0xf]
    %v5868 = vld [vmem:[%s10 + $0xc] sm:$0xf]
    %v5869 = vld [vmem:[%s10 + $0x10] sm:$0xf]
    %v5870 = vld [vmem:[%s10 + $0x14] sm:$0xf]
    %v5871 = vld [vmem:[%s10 + $0x18] sm:$0xf]
    %v5872 = vld [vmem:[%s10 + $0x1c] sm:$0xf]
    %v5873 = vld [vmem:[%s10 + $0x20] sm:$0xf]
    %v5874 = vld [vmem:[%s10 + $0x24] sm:$0xf]
    %v5875 = vld [vmem:[%s10 + $0x28] sm:$0xf]
    %v5876 = vld [vmem:[%s10 + $0x2c] sm:$0xf]
    %v5877 = vld [vmem:[%s10 + $0x30] sm:$0xf]
    %v5878 = vld [vmem:[%s10 + $0x34] sm:$0xf]
    %v5879 = vld [vmem:[%s10 + $0x38] sm:$0xf]
    %v5880 = vld [vmem:[%s10 + $0x3c] sm:$0xf]
    %v5881 = vld [vmem:[%s11] sm:$0x1]
    %v5883 = vlaneseq
    %v5884 = vshrl.u32 %v5883, 7
    %v5885 = vsub.s32 0, %v5884
    %v5886 = vrot.slane %v5881, %v5885
    %v5904 = vunpack.c.l.b16 %v5865
    %v5905 = vunpack.c.l.b16 %v5866
    %v5906 = vunpack.c.l.b16 %v5867
    %v5907 = vunpack.c.l.b16 %v5868
    %v5908 = vunpack.c.l.b16 %v5869
    %v5909 = vunpack.c.l.b16 %v5870
    %v5910 = vunpack.c.l.b16 %v5871
    %v5911 = vunpack.c.l.b16 %v5872
    %v5912 = vunpack.c.l.b16 %v5873
    %v5913 = vunpack.c.l.b16 %v5874
    %v5914 = vunpack.c.l.b16 %v5875
    %v5915 = vunpack.c.l.b16 %v5876
    %v5916 = vunpack.c.l.b16 %v5877
    %v5917 = vunpack.c.l.b16 %v5878
    %v5918 = vunpack.c.l.b16 %v5879
    %v5919 = vunpack.c.l.b16 %v5880
    %v5920 = vpack.c.b16 %v5905, %v5904
    %v5921 = vpack.c.b16 %v5907, %v5906
    %v5922 = vpack.c.b16 %v5909, %v5908
    %v5923 = vpack.c.b16 %v5911, %v5910
    %v5924 = vpack.c.b16 %v5913, %v5912
    %v5925 = vpack.c.b16 %v5915, %v5914
    %v5926 = vpack.c.b16 %v5917, %v5916
    %v5927 = vpack.c.b16 %v5919, %v5918
    %5936 = vmatprep.subr.bf16.mxu0 0
    %5937 = vmatpush1.bf16.msra.mxu0 %v5920
    %5938 = vmatprep.subr.bf16.mxu0 0
    %5939 = vmatpush1.bf16.msra.mxu0 %v5921
    %5940 = vmatprep.subr.bf16.mxu0 0
    %5941 = vmatpush1.bf16.msra.mxu0 %v5922
    %5942 = vmatprep.subr.bf16.mxu0 0
    %5943 = vmatpush1.bf16.msra.mxu0 %v5923
    %5944 = vmatprep.subr.bf16.mxu0 0
    %5945 = vmatpush1.bf16.msra.mxu0 %v5924
    %5946 = vmatprep.subr.bf16.mxu0 0
    %5947 = vmatpush1.bf16.msra.mxu0 %v5925
    %5948 = vmatprep.subr.bf16.mxu0 0
    %5949 = vmatpush1.bf16.msra.mxu0 %v5926
    %5950 = vmatprep.subr.bf16.mxu0 0
    %5951 = vmatpush1.bf16.msra.mxu0 %v5927
    %5952 = vmatprep.subr.bf16.mxu0 0
    %5953 = vmatpush1.bf16.msra.mxu0 0
    %5954 = vmatprep.subr.bf16.mxu0 0
    %5955 = vmatpush1.bf16.msra.mxu0 0
    %5956 = vmatprep.subr.bf16.mxu0 0
    %5957 = vmatpush1.bf16.msra.mxu0 0
    %5958 = vmatprep.subr.bf16.mxu0 0
    %5959 = vmatpush1.bf16.msra.mxu0 0
    %5960 = vmatprep.subr.bf16.mxu0 0
    %5961 = vmatpush1.bf16.msra.mxu0 0
    %5962 = vmatprep.subr.bf16.mxu0 0
    %5963 = vmatpush1.bf16.msra.mxu0 0
    %5964 = vmatprep.subr.bf16.mxu0 0
    %5965 = vmatpush1.bf16.msra.mxu0 0
    %5966 = vmatprep.subr.bf16.mxu0 0
    %5967 = vmatpush1.bf16.msra.mxu0 0
    %5968 = vmatprep.mubr.bf16.mxu0 0
    %5969 = vmatmul.mubr.bf16.gmra.mrb[0].mxu0 %v5864
    %v5970 = vpop.f32.mrb[0].mxu0
    %v5971 = vadd.f32 %v5886, %v5970
    %v5972 = vpop.f32.mrb[0].mxu0
    %v5973 = vpop.f32.mrb[0].mxu0
    %v5974 = vpop.f32.mrb[0].mxu0
    %5975 = vdwg.mxu0
    %5976 = vst [vmem:[%s12] sm:$0xff] %v5971
    // Predicated region
    $region58: #{lstm_net_forward.1} parent=1 // pred_check
      _
    $region59: #{lstm_net_forward.1} parent=1 // pred_check_branch
      %5978 = sbr.rel (0) target = $region61
    $region60: #{lstm_net_forward.1} parent=1 // pred_region
      _
    $region61: #{lstm_net_forward.1} parent=1 // pred_fallthru
      _
    // Predicated region
    $region62: #{lstm_net_forward.1} parent=1 // pred_check
      _
    $region63: #{lstm_net_forward.1} parent=1 // pred_check_branch
      %5980 = sbr.rel (0) target = $region65
    $region64: #{lstm_net_forward.1} parent=1 // pred_region
      _
    $region65: #{lstm_net_forward.1} parent=1 // pred_fallthru
      _
    %5981 = vsyncpa [#allocation4], 1
    %5982 = vsyncpa [#allocation6], 1

</llo_original>
